<compile_context>
chip_gen: v5e
topology: v5e:2x2
jax: 0.10.0
libtpu: 0.0.40
codegen_flags: <defaults>
</compile_context>

<pallas_src>
import jax
import jax.numpy as jnp
from jax.experimental import pallas as pl
from jax.experimental.pallas import tpu as pltpu

EPS = 1e-5
LEAKY_SLOPE = 0.01  # PyTorch nn.LeakyReLU default


def _cp(num_axes):
    return pltpu.CompilerParams(
        dimension_semantics=("parallel",) * num_axes,
        vmem_limit_bytes=48 * 1024 * 1024,
    )


def _pick_hw_tile(hw, cap=1024):
    """Largest HW tile <= cap that divides HW (multiple of 8 when tiling)."""
    if hw <= cap:
        return hw
    t = cap
    while t > 8 and hw % t:
        t -= 8
    if hw % t:
        return hw
    return t


# ---------------------------------------------------------------------------
# Kernels
# ---------------------------------------------------------------------------
def _conv3x3_bn_lrelu_kernel(x_ref, w_ref, s_ref, b_ref, o_ref):
    # x_ref: (1, T, 9*Cin) bf16   -- im2col rows
    # w_ref: (9*Cin, Cout) bf16
    # s_ref, b_ref: (1, Cout) f32 -- folded BatchNorm (+ conv bias)
    # o_ref: (1, T, Cout) bf16
    acc = jnp.dot(x_ref[0], w_ref[...], preferred_element_type=jnp.float32)
    y = acc * s_ref[...] + b_ref[...]
    y = jnp.where(y >= 0, y, LEAKY_SLOPE * y)
    o_ref[0] = y.astype(o_ref.dtype)


def _conv3x3_bn_lrelu_1x1_kernel(x_ref, w_ref, s_ref, b_ref, wl_ref, bl_ref, o_ref):
    # Fused: 3x3 conv + BN + LeakyReLU, then the final 1x1 conv.  The
    # 16-channel intermediate stays in registers/VMEM (never hits HBM).
    acc = jnp.dot(x_ref[0], w_ref[...], preferred_element_type=jnp.float32)
    y = acc * s_ref[...] + b_ref[...]
    y = jnp.where(y >= 0, y, LEAKY_SLOPE * y)
    out = jnp.dot(y.astype(jnp.bfloat16), wl_ref[...],
                  preferred_element_type=jnp.float32)
    o_ref[0] = out + bl_ref[...]


def _deconv2x2_kernel(x_ref, w_ref, b_ref, o_ref):
    # ConvTranspose2d k=2, s=2 as a single matmul.
    # x_ref: (1, T, Cin) bf16; w_ref: (Cin, 4*Cout) bf16; b_ref: (1, 4*Cout) f32
    # o_ref: (1, T, 4*Cout) bf16  -- columns grouped as tap k = dy*2+dx
    acc = jnp.dot(x_ref[0], w_ref[...], preferred_element_type=jnp.float32)
    o_ref[0] = (acc + b_ref[...]).astype(o_ref.dtype)


def _maxpool2x2_kernel(x_ref, o_ref):
    # x_ref: (1, 4, HW_out, C) -- 4 = 2x2 pooling window (space-to-depth)
    o_ref[0] = jnp.maximum(jnp.maximum(x_ref[0, 0], x_ref[0, 1]),
                           jnp.maximum(x_ref[0, 2], x_ref[0, 3]))


# ---------------------------------------------------------------------------
# Wrappers (padding / im2col / reassembly are wrapper-side XLA glue, jit-fused)
# ---------------------------------------------------------------------------
def _im2col3x3(x):
    # x: (N, H, W, C) -> (N, H*W, 9*C) bf16, tap k = dy*3 + dx in column blocks.
    n, h, w, c = x.shape
    xp = jnp.pad(x.astype(jnp.bfloat16), ((0, 0), (1, 1), (1, 1), (0, 0)))
    cols = [xp[:, dy:dy + h, dx:dx + w, :]
            for dy in range(3) for dx in range(3)]
    return jnp.concatenate(cols, axis=-1).reshape(n, h * w, 9 * c)


def conv3x3_bn_lrelu(x, w9, scale, bias):
    n, h, w, _ = x.shape
    k9, cout = w9.shape
    hw = h * w
    t = _pick_hw_tile(hw)
    xcol = _im2col3x3(x)
    out = pl.pallas_call(
        _conv3x3_bn_lrelu_kernel,
        out_shape=jax.ShapeDtypeStruct((n, hw, cout), jnp.bfloat16),
        grid=(n, hw // t),
        in_specs=[
            pl.BlockSpec((1, t, k9), lambda i, j: (i, j, 0)),
            pl.BlockSpec((k9, cout), lambda i, j: (0, 0)),
            pl.BlockSpec((1, cout), lambda i, j: (0, 0)),
            pl.BlockSpec((1, cout), lambda i, j: (0, 0)),
        ],
        out_specs=pl.BlockSpec((1, t, cout), lambda i, j: (i, j, 0)),
        compiler_params=_cp(2),
    )(xcol, w9, scale.reshape(1, -1), bias.reshape(1, -1))
    return out.reshape(n, h, w, cout)


def conv3x3_bn_lrelu_then_1x1(x, w9, scale, bias, w1, b1):
    n, h, w, _ = x.shape
    k9, cmid = w9.shape
    cout = w1.shape[1]
    hw = h * w
    t = _pick_hw_tile(hw)
    xcol = _im2col3x3(x)
    out = pl.pallas_call(
        _conv3x3_bn_lrelu_1x1_kernel,
        out_shape=jax.ShapeDtypeStruct((n, hw, cout), jnp.float32),
        grid=(n, hw // t),
        in_specs=[
            pl.BlockSpec((1, t, k9), lambda i, j: (i, j, 0)),
            pl.BlockSpec((k9, cmid), lambda i, j: (0, 0)),
            pl.BlockSpec((1, cmid), lambda i, j: (0, 0)),
            pl.BlockSpec((1, cmid), lambda i, j: (0, 0)),
            pl.BlockSpec((cmid, cout), lambda i, j: (0, 0)),
            pl.BlockSpec((1, cout), lambda i, j: (0, 0)),
        ],
        out_specs=pl.BlockSpec((1, t, cout), lambda i, j: (i, j, 0)),
        compiler_params=_cp(2),
    )(xcol, w9, scale.reshape(1, -1), bias.reshape(1, -1), w1, b1)
    return out.reshape(n, h, w, cout)


def deconv2x2(x, w4, b4):
    # w4: (Cin, 4*Cout) bf16 with columns [tap k][cout]; b4: (1, 4*Cout) f32
    n, h, wd, cin = x.shape
    cout = w4.shape[1] // 4
    hw = h * wd
    t = _pick_hw_tile(hw)
    xf = x.reshape(n, hw, cin).astype(jnp.bfloat16)
    out = pl.pallas_call(
        _deconv2x2_kernel,
        out_shape=jax.ShapeDtypeStruct((n, hw, 4 * cout), jnp.bfloat16),
        grid=(n, hw // t),
        in_specs=[
            pl.BlockSpec((1, t, cin), lambda i, j: (i, j, 0)),
            pl.BlockSpec((cin, 4 * cout), lambda i, j: (0, 0)),
            pl.BlockSpec((1, 4 * cout), lambda i, j: (0, 0)),
        ],
        out_specs=pl.BlockSpec((1, t, 4 * cout), lambda i, j: (i, j, 0)),
        compiler_params=_cp(2),
    )(xf, w4, b4)
    # out[n, i*W+j, (2*dy+dx)*Cout + c] -> out[n, 2i+dy, 2j+dx, c]
    out = (out.reshape(n, h, wd, 2, 2, cout)
              .transpose(0, 1, 3, 2, 4, 5)
              .reshape(n, 2 * h, 2 * wd, cout))
    return out


def maxpool2x2(x):
    n, h, w, c = x.shape
    ho, wo = h // 2, w // 2
    xr = (x.reshape(n, ho, 2, wo, 2, c)
            .transpose(0, 2, 4, 1, 3, 5)
            .reshape(n, 4, ho * wo, c))
    out = pl.pallas_call(
        _maxpool2x2_kernel,
        out_shape=jax.ShapeDtypeStruct((n, ho * wo, c), x.dtype),
        grid=(n,),
        in_specs=[pl.BlockSpec((1, 4, ho * wo, c), lambda i: (i, 0, 0, 0))],
        out_specs=pl.BlockSpec((1, ho * wo, c), lambda i: (i, 0, 0)),
        compiler_params=_cp(1),
    )(xr)
    return out.reshape(n, ho, wo, c)


# ---------------------------------------------------------------------------
# Parameter initialization (deterministic, kernel-ready layouts)
# ---------------------------------------------------------------------------
def _init_conv_bn(key, cin, cout):
    kw, kb, kg, kbeta = jax.random.split(key, 4)
    w = jax.random.normal(kw, (cout, cin, 3, 3), jnp.float32) * 0.1
    b = jax.random.normal(kb, (cout,), jnp.float32) * 0.1
    gamma = 1.0 + 0.1 * jax.random.normal(kg, (cout,), jnp.float32)
    beta = 0.1 * jax.random.normal(kbeta, (cout,), jnp.float32)
    # Fold BN (eval mode: running_mean=0, running_var=1) with the conv bias.
    scale = gamma / jnp.sqrt(1.0 + EPS)
    bias_total = b * scale + beta
    # (Cout, Cin, 3, 3) -> (9*Cin, Cout), row index = (dy*3+dx)*Cin + cin
    w9 = jnp.transpose(w, (2, 3, 1, 0)).reshape(9 * cin, cout).astype(jnp.bfloat16)
    return {"w9": w9, "scale": scale, "bias": bias_total}


def _init_double_conv(key, cin, cout):
    k1, k2 = jax.random.split(key)
    return {"a": _init_conv_bn(k1, cin, cout), "b": _init_conv_bn(k2, cout, cout)}


def _init_deconv(key, cin, cout):
    kw, kb = jax.random.split(key)
    w = jax.random.normal(kw, (cin, cout, 2, 2), jnp.float32) * 0.1
    b = jax.random.normal(kb, (cout,), jnp.float32) * 0.1
    # (Cin, Cout, 2, 2) -> (Cin, 4*Cout), column index = (dy*2+dx)*Cout + cout
    w4 = jnp.transpose(w, (0, 2, 3, 1)).reshape(cin, 4 * cout).astype(jnp.bfloat16)
    b4 = jnp.tile(b, 4).reshape(1, 4 * cout)
    return {"w4": w4, "b4": b4}


def init_params(key):
    keys = jax.random.split(key, 8)
    kw, kb = jax.random.split(keys[7])
    w_last = jax.random.normal(kw, (3, 16, 1, 1), jnp.float32) * 0.1
    b_last = jax.random.normal(kb, (3,), jnp.float32) * 0.1
    return {
        "conv1": _init_double_conv(keys[0], 3, 16),
        "conv2": _init_double_conv(keys[1], 16, 32),
        "conv3": _init_double_conv(keys[2], 32, 64),
        "deconv1": _init_deconv(keys[3], 64, 32),
        "conv5": _init_double_conv(keys[4], 64, 32),
        "deconv2": _init_deconv(keys[5], 32, 16),
        "conv6": _init_double_conv(keys[6], 32, 16),
        "last_conv": {
            "w1": w_last.reshape(3, 16).T.astype(jnp.bfloat16),  # (Cin, Cout)
            "b1": b_last.reshape(1, 3),
        },
    }


# ---------------------------------------------------------------------------
# Forward pass (mirrors ConvWithConn.forward)
# ---------------------------------------------------------------------------
def _double_conv(x, p):
    x = conv3x3_bn_lrelu(x, p["a"]["w9"], p["a"]["scale"], p["a"]["bias"])
    x = conv3x3_bn_lrelu(x, p["b"]["w9"], p["b"]["scale"], p["b"]["bias"])
    return x


def conv_with_conn_forward(x_nchw, params):
    x = jnp.transpose(x_nchw.astype(jnp.float32), (0, 2, 3, 1))  # NCHW -> NHWC
    conv1 = _double_conv(x, params["conv1"])
    pool1 = maxpool2x2(conv1)
    conv2 = _double_conv(pool1, params["conv2"])
    pool2 = maxpool2x2(conv2)
    conv3 = _double_conv(pool2, params["conv3"])
    up1 = deconv2x2(conv3, params["deconv1"]["w4"], params["deconv1"]["b4"])
    up1 = jnp.concatenate([conv2, up1], axis=-1)   # torch.cat(dim=1) == channels
    up1 = _double_conv(up1, params["conv5"])
    up2 = deconv2x2(up1, params["deconv2"]["w4"], params["deconv2"]["b4"])
    up2 = jnp.concatenate([conv1, up2], axis=-1)
    p6 = params["conv6"]
    u = conv3x3_bn_lrelu(up2, p6["a"]["w9"], p6["a"]["scale"], p6["a"]["bias"])
    out = conv3x3_bn_lrelu_then_1x1(
        u, p6["b"]["w9"], p6["b"]["scale"], p6["b"]["bias"],
        params["last_conv"]["w1"], params["last_conv"]["b1"])
    return jnp.transpose(out, (0, 3, 1, 2))  # NHWC -> NCHW


if __name__ == "__main__":
    key = jax.random.PRNGKey(0)
    kp, kx = jax.random.split(key)
    params = init_params(kp)
    x = jax.random.normal(kx, (2, 3, 16, 16), jnp.float32)  # NCHW like PyTorch

    fwd = jax.jit(conv_with_conn_forward)
    out = jax.block_until_ready(fwd(x, params))

    assert out.shape == (2, 3, 16, 16), out.shape
    assert out.dtype == jnp.float32
    assert bool(jnp.all(jnp.isfinite(out)))
    print("KERNEL_OK")
</pallas_src>

<mosaic_0001>
module attributes {stable_mosaic.version = 11 : i64} {
  func.func @_conv3x3_bn_lrelu_kernel(%arg0: i32, %arg1: i32, %arg2: memref<1x256x27xbf16, #tpu.memory_space<vmem>>, %arg3: memref<27x16xbf16, #tpu.memory_space<vmem>>, %arg4: memref<1x16xf32, #tpu.memory_space<vmem>>, %arg5: memref<1x16xf32, #tpu.memory_space<vmem>>, %arg6: memref<1x256x16xbf16, #tpu.memory_space<vmem>>) attributes {dimension_semantics = [#tpu.dimension_semantics<parallel>, #tpu.dimension_semantics<parallel>], iteration_bounds = array<i64: 2, 1>, scalar_prefetch = 0 : i64, scratch_operands = 0 : i64, tpu.core_type = #tpu.core_type<tc>, window_params = [{transform_indices = @transform_0, window_bounds = array<i64: 1, 256, 27>}, {pipeline_mode = #tpu.pipeline_mode<synchronous>, transform_indices = @transform_1, window_bounds = array<i64: 27, 16>}, {pipeline_mode = #tpu.pipeline_mode<synchronous>, transform_indices = @transform_2, window_bounds = array<i64: 1, 16>}, {pipeline_mode = #tpu.pipeline_mode<synchronous>, transform_indices = @transform_3, window_bounds = array<i64: 1, 16>}, {transform_indices = @transform_4, window_bounds = array<i64: 1, 256, 16>}]} {
    %c0 = arith.constant 0 : index
    %c0_0 = arith.constant 0 : index
    %c0_1 = arith.constant 0 : index
    %0 = vector.load %arg2[%c0, %c0_0, %c0_1] : memref<1x256x27xbf16, #tpu.memory_space<vmem>>, vector<1x256x27xbf16>
    %1 = vector.shape_cast %0 : vector<1x256x27xbf16> to vector<256x27xbf16>
    %c0_2 = arith.constant 0 : index
    %c0_3 = arith.constant 0 : index
    %2 = vector.load %arg3[%c0_2, %c0_3] : memref<27x16xbf16, #tpu.memory_space<vmem>>, vector<27x16xbf16>
    %cst = arith.constant dense<0.000000e+00> : vector<256x16xf32>
    %3 = tpu.matmul %1, %2, %cst {dimension_numbers = #tpu.dot_dimension_numbers<[1], [0], [0], [1], [0, 0, 1, 1], [], []>} : vector<256x27xbf16>, vector<27x16xbf16>, vector<256x16xf32> -> vector<256x16xf32>
    %c0_4 = arith.constant 0 : index
    %c0_5 = arith.constant 0 : index
    %4 = vector.load %arg4[%c0_4, %c0_5] : memref<1x16xf32, #tpu.memory_space<vmem>>, vector<1x16xf32>
    %5 = vector.broadcast %4 : vector<1x16xf32> to vector<256x16xf32>
    %6 = arith.mulf %3, %5 : vector<256x16xf32>
    %c0_6 = arith.constant 0 : index
    %c0_7 = arith.constant 0 : index
    %7 = vector.load %arg5[%c0_6, %c0_7] : memref<1x16xf32, #tpu.memory_space<vmem>>, vector<1x16xf32>
    %8 = vector.broadcast %7 : vector<1x16xf32> to vector<256x16xf32>
    %9 = arith.addf %6, %8 : vector<256x16xf32>
    %cst_8 = arith.constant 0.000000e+00 : f32
    %10 = vector.broadcast %cst_8 : f32 to vector<256x16xf32>
    %11 = arith.cmpf oge, %9, %10 : vector<256x16xf32>
    %cst_9 = arith.constant 0.00999999977 : f32
    %12 = vector.broadcast %cst_9 : f32 to vector<256x16xf32>
    %13 = arith.mulf %12, %9 : vector<256x16xf32>
    %14 = arith.select %11, %9, %13 : vector<256x16xi1>, vector<256x16xf32>
    %15 = arith.truncf %14 : vector<256x16xf32> to vector<256x16xbf16>
    %c0_10 = arith.constant 0 : index
    %c0_11 = arith.constant 0 : index
    %c0_12 = arith.constant 0 : index
    %16 = vector.load %arg6[%c0_10, %c0_11, %c0_12] : memref<1x256x16xbf16, #tpu.memory_space<vmem>>, vector<1x256x16xbf16>
    %17 = vector.shape_cast %16 : vector<1x256x16xbf16> to vector<256x16xbf16>
    %18 = vector.shape_cast %15 : vector<256x16xbf16> to vector<1x256x16xbf16>
    tpu.vector_store %arg6[%c0_10, %c0_11, %c0_12], %18 {strides = array<i32>} : memref<1x256x16xbf16, #tpu.memory_space<vmem>>, vector<1x256x16xbf16>,
    return
  }
  func.func @transform_0(%arg0: i32, %arg1: i32) -> (i32, i32, i32) {
    %c0_i32 = arith.constant 0 : i32
    %c0_i32_0 = arith.constant 0 : i32
    return %arg0, %arg1, %c0_i32 : i32, i32, i32
  }
  func.func @transform_1(%arg0: i32, %arg1: i32) -> (i32, i32) {
    %c0_i32 = arith.constant 0 : i32
    %c0_i32_0 = arith.constant 0 : i32
    %c0_i32_1 = arith.constant 0 : i32
    return %c0_i32, %c0_i32_0 : i32, i32
  }
  func.func @transform_2(%arg0: i32, %arg1: i32) -> (i32, i32) {
    %c0_i32 = arith.constant 0 : i32
    %c0_i32_0 = arith.constant 0 : i32
    %c0_i32_1 = arith.constant 0 : i32
    return %c0_i32, %c0_i32_0 : i32, i32
  }
  func.func @transform_3(%arg0: i32, %arg1: i32) -> (i32, i32) {
    %c0_i32 = arith.constant 0 : i32
    %c0_i32_0 = arith.constant 0 : i32
    %c0_i32_1 = arith.constant 0 : i32
    return %c0_i32, %c0_i32_0 : i32, i32
  }
  func.func @transform_4(%arg0: i32, %arg1: i32) -> (i32, i32, i32) {
    %c0_i32 = arith.constant 0 : i32
    %c0_i32_0 = arith.constant 0 : i32
    return %arg0, %arg1, %c0_i32 : i32, i32, i32
  }
}

module attributes {stable_mosaic.version = 11 : i64} {
  func.func @_conv3x3_bn_lrelu_kernel(%arg0: i32, %arg1: i32, %arg2: memref<1x256x144xbf16, #tpu.memory_space<vmem>>, %arg3: memref<144x16xbf16, #tpu.memory_space<vmem>>, %arg4: memref<1x16xf32, #tpu.memory_space<vmem>>, %arg5: memref<1x16xf32, #tpu.memory_space<vmem>>, %arg6: memref<1x256x16xbf16, #tpu.memory_space<vmem>>) attributes {dimension_semantics = [#tpu.dimension_semantics<parallel>, #tpu.dimension_semantics<parallel>], iteration_bounds = array<i64: 2, 1>, scalar_prefetch = 0 : i64, scratch_operands = 0 : i64, tpu.core_type = #tpu.core_type<tc>, window_params = [{transform_indices = @transform_0, window_bounds = array<i64: 1, 256, 144>}, {pipeline_mode = #tpu.pipeline_mode<synchronous>, transform_indices = @transform_1, window_bounds = array<i64: 144, 16>}, {pipeline_mode = #tpu.pipeline_mode<synchronous>, transform_indices = @transform_2, window_bounds = array<i64: 1, 16>}, {pipeline_mode = #tpu.pipeline_mode<synchronous>, transform_indices = @transform_3, window_bounds = array<i64: 1, 16>}, {transform_indices = @transform_4, window_bounds = array<i64: 1, 256, 16>}]} {
    %c0 = arith.constant 0 : index
    %c0_0 = arith.constant 0 : index
    %c0_1 = arith.constant 0 : index
    %0 = vector.load %arg2[%c0, %c0_0, %c0_1] : memref<1x256x144xbf16, #tpu.memory_space<vmem>>, vector<1x256x144xbf16>
    %1 = vector.shape_cast %0 : vector<1x256x144xbf16> to vector<256x144xbf16>
    %c0_2 = arith.constant 0 : index
    %c0_3 = arith.constant 0 : index
    %2 = vector.load %arg3[%c0_2, %c0_3] : memref<144x16xbf16, #tpu.memory_space<vmem>>, vector<144x16xbf16>
    %cst = arith.constant dense<0.000000e+00> : vector<256x16xf32>
    %3 = tpu.matmul %1, %2, %cst {dimension_numbers = #tpu.dot_dimension_numbers<[1], [0], [0], [1], [0, 0, 1, 1], [], []>} : vector<256x144xbf16>, vector<144x16xbf16>, vector<256x16xf32> -> vector<256x16xf32>
    %c0_4 = arith.constant 0 : index
    %c0_5 = arith.constant 0 : index
    %4 = vector.load %arg4[%c0_4, %c0_5] : memref<1x16xf32, #tpu.memory_space<vmem>>, vector<1x16xf32>
    %5 = vector.broadcast %4 : vector<1x16xf32> to vector<256x16xf32>
    %6 = arith.mulf %3, %5 : vector<256x16xf32>
    %c0_6 = arith.constant 0 : index
    %c0_7 = arith.constant 0 : index
    %7 = vector.load %arg5[%c0_6, %c0_7] : memref<1x16xf32, #tpu.memory_space<vmem>>, vector<1x16xf32>
    %8 = vector.broadcast %7 : vector<1x16xf32> to vector<256x16xf32>
    %9 = arith.addf %6, %8 : vector<256x16xf32>
    %cst_8 = arith.constant 0.000000e+00 : f32
    %10 = vector.broadcast %cst_8 : f32 to vector<256x16xf32>
    %11 = arith.cmpf oge, %9, %10 : vector<256x16xf32>
    %cst_9 = arith.constant 0.00999999977 : f32
    %12 = vector.broadcast %cst_9 : f32 to vector<256x16xf32>
    %13 = arith.mulf %12, %9 : vector<256x16xf32>
    %14 = arith.select %11, %9, %13 : vector<256x16xi1>, vector<256x16xf32>
    %15 = arith.truncf %14 : vector<256x16xf32> to vector<256x16xbf16>
    %c0_10 = arith.constant 0 : index
    %c0_11 = arith.constant 0 : index
    %c0_12 = arith.constant 0 : index
    %16 = vector.load %arg6[%c0_10, %c0_11, %c0_12] : memref<1x256x16xbf16, #tpu.memory_space<vmem>>, vector<1x256x16xbf16>
    %17 = vector.shape_cast %16 : vector<1x256x16xbf16> to vector<256x16xbf16>
    %18 = vector.shape_cast %15 : vector<256x16xbf16> to vector<1x256x16xbf16>
    tpu.vector_store %arg6[%c0_10, %c0_11, %c0_12], %18 {strides = array<i32>} : memref<1x256x16xbf16, #tpu.memory_space<vmem>>, vector<1x256x16xbf16>,
    return
  }
  func.func @transform_0(%arg0: i32, %arg1: i32) -> (i32, i32, i32) {
    %c0_i32 = arith.constant 0 : i32
    %c0_i32_0 = arith.constant 0 : i32
    return %arg0, %arg1, %c0_i32 : i32, i32, i32
  }
  func.func @transform_1(%arg0: i32, %arg1: i32) -> (i32, i32) {
    %c0_i32 = arith.constant 0 : i32
    %c0_i32_0 = arith.constant 0 : i32
    %c0_i32_1 = arith.constant 0 : i32
    return %c0_i32, %c0_i32_0 : i32, i32
  }
  func.func @transform_2(%arg0: i32, %arg1: i32) -> (i32, i32) {
    %c0_i32 = arith.constant 0 : i32
    %c0_i32_0 = arith.constant 0 : i32
    %c0_i32_1 = arith.constant 0 : i32
    return %c0_i32, %c0_i32_0 : i32, i32
  }
  func.func @transform_3(%arg0: i32, %arg1: i32) -> (i32, i32) {
    %c0_i32 = arith.constant 0 : i32
    %c0_i32_0 = arith.constant 0 : i32
    %c0_i32_1 = arith.constant 0 : i32
    return %c0_i32, %c0_i32_0 : i32, i32
  }
  func.func @transform_4(%arg0: i32, %arg1: i32) -> (i32, i32, i32) {
    %c0_i32 = arith.constant 0 : i32
    %c0_i32_0 = arith.constant 0 : i32
    return %arg0, %arg1, %c0_i32 : i32, i32, i32
  }
}

module attributes {stable_mosaic.version = 11 : i64} {
  func.func @_maxpool2x2_kernel(%arg0: i32, %arg1: memref<1x4x64x16xbf16, #tpu.memory_space<vmem>>, %arg2: memref<1x64x16xbf16, #tpu.memory_space<vmem>>) attributes {dimension_semantics = [#tpu.dimension_semantics<parallel>], iteration_bounds = array<i64: 2>, scalar_prefetch = 0 : i64, scratch_operands = 0 : i64, tpu.core_type = #tpu.core_type<tc>, window_params = [{transform_indices = @transform_0, window_bounds = array<i64: 1, 4, 64, 16>}, {transform_indices = @transform_1, window_bounds = array<i64: 1, 64, 16>}]} {
    %c0 = arith.constant 0 : index
    %c0_0 = arith.constant 0 : index
    %c0_1 = arith.constant 0 : index
    %c0_2 = arith.constant 0 : index
    %0 = vector.load %arg1[%c0, %c0_0, %c0_1, %c0_2] : memref<1x4x64x16xbf16, #tpu.memory_space<vmem>>, vector<1x1x64x16xbf16>
    %1 = vector.shape_cast %0 : vector<1x1x64x16xbf16> to vector<64x16xbf16>
    %c0_3 = arith.constant 0 : index
    %c1 = arith.constant 1 : index
    %c0_4 = arith.constant 0 : index
    %c0_5 = arith.constant 0 : index
    %2 = vector.load %arg1[%c0_3, %c1, %c0_4, %c0_5] : memref<1x4x64x16xbf16, #tpu.memory_space<vmem>>, vector<1x1x64x16xbf16>
    %3 = vector.shape_cast %2 : vector<1x1x64x16xbf16> to vector<64x16xbf16>
    %4 = arith.maximumf %1, %3 : vector<64x16xbf16>
    %c0_6 = arith.constant 0 : index
    %c2 = arith.constant 2 : index
    %c0_7 = arith.constant 0 : index
    %c0_8 = arith.constant 0 : index
    %5 = vector.load %arg1[%c0_6, %c2, %c0_7, %c0_8] : memref<1x4x64x16xbf16, #tpu.memory_space<vmem>>, vector<1x1x64x16xbf16>
    %6 = vector.shape_cast %5 : vector<1x1x64x16xbf16> to vector<64x16xbf16>
    %c0_9 = arith.constant 0 : index
    %c3 = arith.constant 3 : index
    %c0_10 = arith.constant 0 : index
    %c0_11 = arith.constant 0 : index
    %7 = vector.load %arg1[%c0_9, %c3, %c0_10, %c0_11] : memref<1x4x64x16xbf16, #tpu.memory_space<vmem>>, vector<1x1x64x16xbf16>
    %8 = vector.shape_cast %7 : vector<1x1x64x16xbf16> to vector<64x16xbf16>
    %9 = arith.maximumf %6, %8 : vector<64x16xbf16>
    %10 = arith.maximumf %4, %9 : vector<64x16xbf16>
    %c0_12 = arith.constant 0 : index
    %c0_13 = arith.constant 0 : index
    %c0_14 = arith.constant 0 : index
    %11 = vector.load %arg2[%c0_12, %c0_13, %c0_14] : memref<1x64x16xbf16, #tpu.memory_space<vmem>>, vector<1x64x16xbf16>
    %12 = vector.shape_cast %11 : vector<1x64x16xbf16> to vector<64x16xbf16>
    %13 = vector.shape_cast %10 : vector<64x16xbf16> to vector<1x64x16xbf16>
    tpu.vector_store %arg2[%c0_12, %c0_13, %c0_14], %13 {strides = array<i32>} : memref<1x64x16xbf16, #tpu.memory_space<vmem>>, vector<1x64x16xbf16>,
    return
  }
  func.func @transform_0(%arg0: i32) -> (i32, i32, i32, i32) {
    %c0_i32 = arith.constant 0 : i32
    %c0_i32_0 = arith.constant 0 : i32
    %c0_i32_1 = arith.constant 0 : i32
    %c0_i32_2 = arith.constant 0 : i32
    return %arg0, %c0_i32, %c0_i32_0, %c0_i32_1 : i32, i32, i32, i32
  }
  func.func @transform_1(%arg0: i32) -> (i32, i32, i32) {
    %c0_i32 = arith.constant 0 : i32
    %c0_i32_0 = arith.constant 0 : i32
    %c0_i32_1 = arith.constant 0 : i32
    return %arg0, %c0_i32, %c0_i32_0 : i32, i32, i32
  }
}

module attributes {stable_mosaic.version = 11 : i64} {
  func.func @_conv3x3_bn_lrelu_kernel(%arg0: i32, %arg1: i32, %arg2: memref<1x64x144xbf16, #tpu.memory_space<vmem>>, %arg3: memref<144x32xbf16, #tpu.memory_space<vmem>>, %arg4: memref<1x32xf32, #tpu.memory_space<vmem>>, %arg5: memref<1x32xf32, #tpu.memory_space<vmem>>, %arg6: memref<1x64x32xbf16, #tpu.memory_space<vmem>>) attributes {dimension_semantics = [#tpu.dimension_semantics<parallel>, #tpu.dimension_semantics<parallel>], iteration_bounds = array<i64: 2, 1>, scalar_prefetch = 0 : i64, scratch_operands = 0 : i64, tpu.core_type = #tpu.core_type<tc>, window_params = [{transform_indices = @transform_0, window_bounds = array<i64: 1, 64, 144>}, {pipeline_mode = #tpu.pipeline_mode<synchronous>, transform_indices = @transform_1, window_bounds = array<i64: 144, 32>}, {pipeline_mode = #tpu.pipeline_mode<synchronous>, transform_indices = @transform_2, window_bounds = array<i64: 1, 32>}, {pipeline_mode = #tpu.pipeline_mode<synchronous>, transform_indices = @transform_3, window_bounds = array<i64: 1, 32>}, {transform_indices = @transform_4, window_bounds = array<i64: 1, 64, 32>}]} {
    %c0 = arith.constant 0 : index
    %c0_0 = arith.constant 0 : index
    %c0_1 = arith.constant 0 : index
    %0 = vector.load %arg2[%c0, %c0_0, %c0_1] : memref<1x64x144xbf16, #tpu.memory_space<vmem>>, vector<1x64x144xbf16>
    %1 = vector.shape_cast %0 : vector<1x64x144xbf16> to vector<64x144xbf16>
    %c0_2 = arith.constant 0 : index
    %c0_3 = arith.constant 0 : index
    %2 = vector.load %arg3[%c0_2, %c0_3] : memref<144x32xbf16, #tpu.memory_space<vmem>>, vector<144x32xbf16>
    %cst = arith.constant dense<0.000000e+00> : vector<64x32xf32>
    %3 = tpu.matmul %1, %2, %cst {dimension_numbers = #tpu.dot_dimension_numbers<[1], [0], [0], [1], [0, 0, 1, 1], [], []>} : vector<64x144xbf16>, vector<144x32xbf16>, vector<64x32xf32> -> vector<64x32xf32>
    %c0_4 = arith.constant 0 : index
    %c0_5 = arith.constant 0 : index
    %4 = vector.load %arg4[%c0_4, %c0_5] : memref<1x32xf32, #tpu.memory_space<vmem>>, vector<1x32xf32>
    %5 = vector.broadcast %4 : vector<1x32xf32> to vector<64x32xf32>
    %6 = arith.mulf %3, %5 : vector<64x32xf32>
    %c0_6 = arith.constant 0 : index
    %c0_7 = arith.constant 0 : index
    %7 = vector.load %arg5[%c0_6, %c0_7] : memref<1x32xf32, #tpu.memory_space<vmem>>, vector<1x32xf32>
    %8 = vector.broadcast %7 : vector<1x32xf32> to vector<64x32xf32>
    %9 = arith.addf %6, %8 : vector<64x32xf32>
    %cst_8 = arith.constant 0.000000e+00 : f32
    %10 = vector.broadcast %cst_8 : f32 to vector<64x32xf32>
    %11 = arith.cmpf oge, %9, %10 : vector<64x32xf32>
    %cst_9 = arith.constant 0.00999999977 : f32
    %12 = vector.broadcast %cst_9 : f32 to vector<64x32xf32>
    %13 = arith.mulf %12, %9 : vector<64x32xf32>
    %14 = arith.select %11, %9, %13 : vector<64x32xi1>, vector<64x32xf32>
    %15 = arith.truncf %14 : vector<64x32xf32> to vector<64x32xbf16>
    %c0_10 = arith.constant 0 : index
    %c0_11 = arith.constant 0 : index
    %c0_12 = arith.constant 0 : index
    %16 = vector.load %arg6[%c0_10, %c0_11, %c0_12] : memref<1x64x32xbf16, #tpu.memory_space<vmem>>, vector<1x64x32xbf16>
    %17 = vector.shape_cast %16 : vector<1x64x32xbf16> to vector<64x32xbf16>
    %18 = vector.shape_cast %15 : vector<64x32xbf16> to vector<1x64x32xbf16>
    tpu.vector_store %arg6[%c0_10, %c0_11, %c0_12], %18 {strides = array<i32>} : memref<1x64x32xbf16, #tpu.memory_space<vmem>>, vector<1x64x32xbf16>,
    return
  }
  func.func @transform_0(%arg0: i32, %arg1: i32) -> (i32, i32, i32) {
    %c0_i32 = arith.constant 0 : i32
    %c0_i32_0 = arith.constant 0 : i32
    return %arg0, %arg1, %c0_i32 : i32, i32, i32
  }
  func.func @transform_1(%arg0: i32, %arg1: i32) -> (i32, i32) {
    %c0_i32 = arith.constant 0 : i32
    %c0_i32_0 = arith.constant 0 : i32
    %c0_i32_1 = arith.constant 0 : i32
    return %c0_i32, %c0_i32_0 : i32, i32
  }
  func.func @transform_2(%arg0: i32, %arg1: i32) -> (i32, i32) {
    %c0_i32 = arith.constant 0 : i32
    %c0_i32_0 = arith.constant 0 : i32
    %c0_i32_1 = arith.constant 0 : i32
    return %c0_i32, %c0_i32_0 : i32, i32
  }
  func.func @transform_3(%arg0: i32, %arg1: i32) -> (i32, i32) {
    %c0_i32 = arith.constant 0 : i32
    %c0_i32_0 = arith.constant 0 : i32
    %c0_i32_1 = arith.constant 0 : i32
    return %c0_i32, %c0_i32_0 : i32, i32
  }
  func.func @transform_4(%arg0: i32, %arg1: i32) -> (i32, i32, i32) {
    %c0_i32 = arith.constant 0 : i32
    %c0_i32_0 = arith.constant 0 : i32
    return %arg0, %arg1, %c0_i32 : i32, i32, i32
  }
}

module attributes {stable_mosaic.version = 11 : i64} {
  func.func @_maxpool2x2_kernel(%arg0: i32, %arg1: memref<1x4x16x32xbf16, #tpu.memory_space<vmem>>, %arg2: memref<1x16x32xbf16, #tpu.memory_space<vmem>>) attributes {dimension_semantics = [#tpu.dimension_semantics<parallel>], iteration_bounds = array<i64: 2>, scalar_prefetch = 0 : i64, scratch_operands = 0 : i64, tpu.core_type = #tpu.core_type<tc>, window_params = [{transform_indices = @transform_0, window_bounds = array<i64: 1, 4, 16, 32>}, {transform_indices = @transform_1, window_bounds = array<i64: 1, 16, 32>}]} {
    %c0 = arith.constant 0 : index
    %c0_0 = arith.constant 0 : index
    %c0_1 = arith.constant 0 : index
    %c0_2 = arith.constant 0 : index
    %0 = vector.load %arg1[%c0, %c0_0, %c0_1, %c0_2] : memref<1x4x16x32xbf16, #tpu.memory_space<vmem>>, vector<1x1x16x32xbf16>
    %1 = vector.shape_cast %0 : vector<1x1x16x32xbf16> to vector<16x32xbf16>
    %c0_3 = arith.constant 0 : index
    %c1 = arith.constant 1 : index
    %c0_4 = arith.constant 0 : index
    %c0_5 = arith.constant 0 : index
    %2 = vector.load %arg1[%c0_3, %c1, %c0_4, %c0_5] : memref<1x4x16x32xbf16, #tpu.memory_space<vmem>>, vector<1x1x16x32xbf16>
    %3 = vector.shape_cast %2 : vector<1x1x16x32xbf16> to vector<16x32xbf16>
    %4 = arith.maximumf %1, %3 : vector<16x32xbf16>
    %c0_6 = arith.constant 0 : index
    %c2 = arith.constant 2 : index
    %c0_7 = arith.constant 0 : index
    %c0_8 = arith.constant 0 : index
    %5 = vector.load %arg1[%c0_6, %c2, %c0_7, %c0_8] : memref<1x4x16x32xbf16, #tpu.memory_space<vmem>>, vector<1x1x16x32xbf16>
    %6 = vector.shape_cast %5 : vector<1x1x16x32xbf16> to vector<16x32xbf16>
    %c0_9 = arith.constant 0 : index
    %c3 = arith.constant 3 : index
    %c0_10 = arith.constant 0 : index
    %c0_11 = arith.constant 0 : index
    %7 = vector.load %arg1[%c0_9, %c3, %c0_10, %c0_11] : memref<1x4x16x32xbf16, #tpu.memory_space<vmem>>, vector<1x1x16x32xbf16>
    %8 = vector.shape_cast %7 : vector<1x1x16x32xbf16> to vector<16x32xbf16>
    %9 = arith.maximumf %6, %8 : vector<16x32xbf16>
    %10 = arith.maximumf %4, %9 : vector<16x32xbf16>
    %c0_12 = arith.constant 0 : index
    %c0_13 = arith.constant 0 : index
    %c0_14 = arith.constant 0 : index
    %11 = vector.load %arg2[%c0_12, %c0_13, %c0_14] : memref<1x16x32xbf16, #tpu.memory_space<vmem>>, vector<1x16x32xbf16>
    %12 = vector.shape_cast %11 : vector<1x16x32xbf16> to vector<16x32xbf16>
    %13 = vector.shape_cast %10 : vector<16x32xbf16> to vector<1x16x32xbf16>
    tpu.vector_store %arg2[%c0_12, %c0_13, %c0_14], %13 {strides = array<i32>} : memref<1x16x32xbf16, #tpu.memory_space<vmem>>, vector<1x16x32xbf16>,
    return
  }
  func.func @transform_0(%arg0: i32) -> (i32, i32, i32, i32) {
    %c0_i32 = arith.constant 0 : i32
    %c0_i32_0 = arith.constant 0 : i32
    %c0_i32_1 = arith.constant 0 : i32
    %c0_i32_2 = arith.constant 0 : i32
    return %arg0, %c0_i32, %c0_i32_0, %c0_i32_1 : i32, i32, i32, i32
  }
  func.func @transform_1(%arg0: i32) -> (i32, i32, i32) {
    %c0_i32 = arith.constant 0 : i32
    %c0_i32_0 = arith.constant 0 : i32
    %c0_i32_1 = arith.constant 0 : i32
    return %arg0, %c0_i32, %c0_i32_0 : i32, i32, i32
  }
}

module attributes {stable_mosaic.version = 11 : i64} {
  func.func @_conv3x3_bn_lrelu_kernel(%arg0: i32, %arg1: i32, %arg2: memref<1x64x288xbf16, #tpu.memory_space<vmem>>, %arg3: memref<288x32xbf16, #tpu.memory_space<vmem>>, %arg4: memref<1x32xf32, #tpu.memory_space<vmem>>, %arg5: memref<1x32xf32, #tpu.memory_space<vmem>>, %arg6: memref<1x64x32xbf16, #tpu.memory_space<vmem>>) attributes {dimension_semantics = [#tpu.dimension_semantics<parallel>, #tpu.dimension_semantics<parallel>], iteration_bounds = array<i64: 2, 1>, scalar_prefetch = 0 : i64, scratch_operands = 0 : i64, tpu.core_type = #tpu.core_type<tc>, window_params = [{transform_indices = @transform_0, window_bounds = array<i64: 1, 64, 288>}, {pipeline_mode = #tpu.pipeline_mode<synchronous>, transform_indices = @transform_1, window_bounds = array<i64: 288, 32>}, {pipeline_mode = #tpu.pipeline_mode<synchronous>, transform_indices = @transform_2, window_bounds = array<i64: 1, 32>}, {pipeline_mode = #tpu.pipeline_mode<synchronous>, transform_indices = @transform_3, window_bounds = array<i64: 1, 32>}, {transform_indices = @transform_4, window_bounds = array<i64: 1, 64, 32>}]} {
    %c0 = arith.constant 0 : index
    %c0_0 = arith.constant 0 : index
    %c0_1 = arith.constant 0 : index
    %0 = vector.load %arg2[%c0, %c0_0, %c0_1] : memref<1x64x288xbf16, #tpu.memory_space<vmem>>, vector<1x64x288xbf16>
    %1 = vector.shape_cast %0 : vector<1x64x288xbf16> to vector<64x288xbf16>
    %c0_2 = arith.constant 0 : index
    %c0_3 = arith.constant 0 : index
    %2 = vector.load %arg3[%c0_2, %c0_3] : memref<288x32xbf16, #tpu.memory_space<vmem>>, vector<288x32xbf16>
    %cst = arith.constant dense<0.000000e+00> : vector<64x32xf32>
    %3 = tpu.matmul %1, %2, %cst {dimension_numbers = #tpu.dot_dimension_numbers<[1], [0], [0], [1], [0, 0, 1, 1], [], []>} : vector<64x288xbf16>, vector<288x32xbf16>, vector<64x32xf32> -> vector<64x32xf32>
    %c0_4 = arith.constant 0 : index
    %c0_5 = arith.constant 0 : index
    %4 = vector.load %arg4[%c0_4, %c0_5] : memref<1x32xf32, #tpu.memory_space<vmem>>, vector<1x32xf32>
    %5 = vector.broadcast %4 : vector<1x32xf32> to vector<64x32xf32>
    %6 = arith.mulf %3, %5 : vector<64x32xf32>
    %c0_6 = arith.constant 0 : index
    %c0_7 = arith.constant 0 : index
    %7 = vector.load %arg5[%c0_6, %c0_7] : memref<1x32xf32, #tpu.memory_space<vmem>>, vector<1x32xf32>
    %8 = vector.broadcast %7 : vector<1x32xf32> to vector<64x32xf32>
    %9 = arith.addf %6, %8 : vector<64x32xf32>
    %cst_8 = arith.constant 0.000000e+00 : f32
    %10 = vector.broadcast %cst_8 : f32 to vector<64x32xf32>
    %11 = arith.cmpf oge, %9, %10 : vector<64x32xf32>
    %cst_9 = arith.constant 0.00999999977 : f32
    %12 = vector.broadcast %cst_9 : f32 to vector<64x32xf32>
    %13 = arith.mulf %12, %9 : vector<64x32xf32>
    %14 = arith.select %11, %9, %13 : vector<64x32xi1>, vector<64x32xf32>
    %15 = arith.truncf %14 : vector<64x32xf32> to vector<64x32xbf16>
    %c0_10 = arith.constant 0 : index
    %c0_11 = arith.constant 0 : index
    %c0_12 = arith.constant 0 : index
    %16 = vector.load %arg6[%c0_10, %c0_11, %c0_12] : memref<1x64x32xbf16, #tpu.memory_space<vmem>>, vector<1x64x32xbf16>
    %17 = vector.shape_cast %16 : vector<1x64x32xbf16> to vector<64x32xbf16>
    %18 = vector.shape_cast %15 : vector<64x32xbf16> to vector<1x64x32xbf16>
    tpu.vector_store %arg6[%c0_10, %c0_11, %c0_12], %18 {strides = array<i32>} : memref<1x64x32xbf16, #tpu.memory_space<vmem>>, vector<1x64x32xbf16>,
    return
  }
  func.func @transform_0(%arg0: i32, %arg1: i32) -> (i32, i32, i32) {
    %c0_i32 = arith.constant 0 : i32
    %c0_i32_0 = arith.constant 0 : i32
    return %arg0, %arg1, %c0_i32 : i32, i32, i32
  }
  func.func @transform_1(%arg0: i32, %arg1: i32) -> (i32, i32) {
    %c0_i32 = arith.constant 0 : i32
    %c0_i32_0 = arith.constant 0 : i32
    %c0_i32_1 = arith.constant 0 : i32
    return %c0_i32, %c0_i32_0 : i32, i32
  }
  func.func @transform_2(%arg0: i32, %arg1: i32) -> (i32, i32) {
    %c0_i32 = arith.constant 0 : i32
    %c0_i32_0 = arith.constant 0 : i32
    %c0_i32_1 = arith.constant 0 : i32
    return %c0_i32, %c0_i32_0 : i32, i32
  }
  func.func @transform_3(%arg0: i32, %arg1: i32) -> (i32, i32) {
    %c0_i32 = arith.constant 0 : i32
    %c0_i32_0 = arith.constant 0 : i32
    %c0_i32_1 = arith.constant 0 : i32
    return %c0_i32, %c0_i32_0 : i32, i32
  }
  func.func @transform_4(%arg0: i32, %arg1: i32) -> (i32, i32, i32) {
    %c0_i32 = arith.constant 0 : i32
    %c0_i32_0 = arith.constant 0 : i32
    return %arg0, %arg1, %c0_i32 : i32, i32, i32
  }
}

module attributes {stable_mosaic.version = 11 : i64} {
  func.func @_conv3x3_bn_lrelu_kernel(%arg0: i32, %arg1: i32, %arg2: memref<1x16x288xbf16, #tpu.memory_space<vmem>>, %arg3: memref<288x64xbf16, #tpu.memory_space<vmem>>, %arg4: memref<1x64xf32, #tpu.memory_space<vmem>>, %arg5: memref<1x64xf32, #tpu.memory_space<vmem>>, %arg6: memref<1x16x64xbf16, #tpu.memory_space<vmem>>) attributes {dimension_semantics = [#tpu.dimension_semantics<parallel>, #tpu.dimension_semantics<parallel>], iteration_bounds = array<i64: 2, 1>, scalar_prefetch = 0 : i64, scratch_operands = 0 : i64, tpu.core_type = #tpu.core_type<tc>, window_params = [{transform_indices = @transform_0, window_bounds = array<i64: 1, 16, 288>}, {pipeline_mode = #tpu.pipeline_mode<synchronous>, transform_indices = @transform_1, window_bounds = array<i64: 288, 64>}, {pipeline_mode = #tpu.pipeline_mode<synchronous>, transform_indices = @transform_2, window_bounds = array<i64: 1, 64>}, {pipeline_mode = #tpu.pipeline_mode<synchronous>, transform_indices = @transform_3, window_bounds = array<i64: 1, 64>}, {transform_indices = @transform_4, window_bounds = array<i64: 1, 16, 64>}]} {
    %c0 = arith.constant 0 : index
    %c0_0 = arith.constant 0 : index
    %c0_1 = arith.constant 0 : index
    %0 = vector.load %arg2[%c0, %c0_0, %c0_1] : memref<1x16x288xbf16, #tpu.memory_space<vmem>>, vector<1x16x288xbf16>
    %1 = vector.shape_cast %0 : vector<1x16x288xbf16> to vector<16x288xbf16>
    %c0_2 = arith.constant 0 : index
    %c0_3 = arith.constant 0 : index
    %2 = vector.load %arg3[%c0_2, %c0_3] : memref<288x64xbf16, #tpu.memory_space<vmem>>, vector<288x64xbf16>
    %cst = arith.constant dense<0.000000e+00> : vector<16x64xf32>
    %3 = tpu.matmul %1, %2, %cst {dimension_numbers = #tpu.dot_dimension_numbers<[1], [0], [0], [1], [0, 0, 1, 1], [], []>} : vector<16x288xbf16>, vector<288x64xbf16>, vector<16x64xf32> -> vector<16x64xf32>
    %c0_4 = arith.constant 0 : index
    %c0_5 = arith.constant 0 : index
    %4 = vector.load %arg4[%c0_4, %c0_5] : memref<1x64xf32, #tpu.memory_space<vmem>>, vector<1x64xf32>
    %5 = vector.broadcast %4 : vector<1x64xf32> to vector<16x64xf32>
    %6 = arith.mulf %3, %5 : vector<16x64xf32>
    %c0_6 = arith.constant 0 : index
    %c0_7 = arith.constant 0 : index
    %7 = vector.load %arg5[%c0_6, %c0_7] : memref<1x64xf32, #tpu.memory_space<vmem>>, vector<1x64xf32>
    %8 = vector.broadcast %7 : vector<1x64xf32> to vector<16x64xf32>
    %9 = arith.addf %6, %8 : vector<16x64xf32>
    %cst_8 = arith.constant 0.000000e+00 : f32
    %10 = vector.broadcast %cst_8 : f32 to vector<16x64xf32>
    %11 = arith.cmpf oge, %9, %10 : vector<16x64xf32>
    %cst_9 = arith.constant 0.00999999977 : f32
    %12 = vector.broadcast %cst_9 : f32 to vector<16x64xf32>
    %13 = arith.mulf %12, %9 : vector<16x64xf32>
    %14 = arith.select %11, %9, %13 : vector<16x64xi1>, vector<16x64xf32>
    %15 = arith.truncf %14 : vector<16x64xf32> to vector<16x64xbf16>
    %c0_10 = arith.constant 0 : index
    %c0_11 = arith.constant 0 : index
    %c0_12 = arith.constant 0 : index
    %16 = vector.load %arg6[%c0_10, %c0_11, %c0_12] : memref<1x16x64xbf16, #tpu.memory_space<vmem>>, vector<1x16x64xbf16>
    %17 = vector.shape_cast %16 : vector<1x16x64xbf16> to vector<16x64xbf16>
    %18 = vector.shape_cast %15 : vector<16x64xbf16> to vector<1x16x64xbf16>
    tpu.vector_store %arg6[%c0_10, %c0_11, %c0_12], %18 {strides = array<i32>} : memref<1x16x64xbf16, #tpu.memory_space<vmem>>, vector<1x16x64xbf16>,
    return
  }
  func.func @transform_0(%arg0: i32, %arg1: i32) -> (i32, i32, i32) {
    %c0_i32 = arith.constant 0 : i32
    %c0_i32_0 = arith.constant 0 : i32
    return %arg0, %arg1, %c0_i32 : i32, i32, i32
  }
  func.func @transform_1(%arg0: i32, %arg1: i32) -> (i32, i32) {
    %c0_i32 = arith.constant 0 : i32
    %c0_i32_0 = arith.constant 0 : i32
    %c0_i32_1 = arith.constant 0 : i32
    return %c0_i32, %c0_i32_0 : i32, i32
  }
  func.func @transform_2(%arg0: i32, %arg1: i32) -> (i32, i32) {
    %c0_i32 = arith.constant 0 : i32
    %c0_i32_0 = arith.constant 0 : i32
    %c0_i32_1 = arith.constant 0 : i32
    return %c0_i32, %c0_i32_0 : i32, i32
  }
  func.func @transform_3(%arg0: i32, %arg1: i32) -> (i32, i32) {
    %c0_i32 = arith.constant 0 : i32
    %c0_i32_0 = arith.constant 0 : i32
    %c0_i32_1 = arith.constant 0 : i32
    return %c0_i32, %c0_i32_0 : i32, i32
  }
  func.func @transform_4(%arg0: i32, %arg1: i32) -> (i32, i32, i32) {
    %c0_i32 = arith.constant 0 : i32
    %c0_i32_0 = arith.constant 0 : i32
    return %arg0, %arg1, %c0_i32 : i32, i32, i32
  }
}

module attributes {stable_mosaic.version = 11 : i64} {
  func.func @_conv3x3_bn_lrelu_kernel(%arg0: i32, %arg1: i32, %arg2: memref<1x16x576xbf16, #tpu.memory_space<vmem>>, %arg3: memref<576x64xbf16, #tpu.memory_space<vmem>>, %arg4: memref<1x64xf32, #tpu.memory_space<vmem>>, %arg5: memref<1x64xf32, #tpu.memory_space<vmem>>, %arg6: memref<1x16x64xbf16, #tpu.memory_space<vmem>>) attributes {dimension_semantics = [#tpu.dimension_semantics<parallel>, #tpu.dimension_semantics<parallel>], iteration_bounds = array<i64: 2, 1>, scalar_prefetch = 0 : i64, scratch_operands = 0 : i64, tpu.core_type = #tpu.core_type<tc>, window_params = [{transform_indices = @transform_0, window_bounds = array<i64: 1, 16, 576>}, {pipeline_mode = #tpu.pipeline_mode<synchronous>, transform_indices = @transform_1, window_bounds = array<i64: 576, 64>}, {pipeline_mode = #tpu.pipeline_mode<synchronous>, transform_indices = @transform_2, window_bounds = array<i64: 1, 64>}, {pipeline_mode = #tpu.pipeline_mode<synchronous>, transform_indices = @transform_3, window_bounds = array<i64: 1, 64>}, {transform_indices = @transform_4, window_bounds = array<i64: 1, 16, 64>}]} {
    %c0 = arith.constant 0 : index
    %c0_0 = arith.constant 0 : index
    %c0_1 = arith.constant 0 : index
    %0 = vector.load %arg2[%c0, %c0_0, %c0_1] : memref<1x16x576xbf16, #tpu.memory_space<vmem>>, vector<1x16x576xbf16>
    %1 = vector.shape_cast %0 : vector<1x16x576xbf16> to vector<16x576xbf16>
    %c0_2 = arith.constant 0 : index
    %c0_3 = arith.constant 0 : index
    %2 = vector.load %arg3[%c0_2, %c0_3] : memref<576x64xbf16, #tpu.memory_space<vmem>>, vector<576x64xbf16>
    %cst = arith.constant dense<0.000000e+00> : vector<16x64xf32>
    %3 = tpu.matmul %1, %2, %cst {dimension_numbers = #tpu.dot_dimension_numbers<[1], [0], [0], [1], [0, 0, 1, 1], [], []>} : vector<16x576xbf16>, vector<576x64xbf16>, vector<16x64xf32> -> vector<16x64xf32>
    %c0_4 = arith.constant 0 : index
    %c0_5 = arith.constant 0 : index
    %4 = vector.load %arg4[%c0_4, %c0_5] : memref<1x64xf32, #tpu.memory_space<vmem>>, vector<1x64xf32>
    %5 = vector.broadcast %4 : vector<1x64xf32> to vector<16x64xf32>
    %6 = arith.mulf %3, %5 : vector<16x64xf32>
    %c0_6 = arith.constant 0 : index
    %c0_7 = arith.constant 0 : index
    %7 = vector.load %arg5[%c0_6, %c0_7] : memref<1x64xf32, #tpu.memory_space<vmem>>, vector<1x64xf32>
    %8 = vector.broadcast %7 : vector<1x64xf32> to vector<16x64xf32>
    %9 = arith.addf %6, %8 : vector<16x64xf32>
    %cst_8 = arith.constant 0.000000e+00 : f32
    %10 = vector.broadcast %cst_8 : f32 to vector<16x64xf32>
    %11 = arith.cmpf oge, %9, %10 : vector<16x64xf32>
    %cst_9 = arith.constant 0.00999999977 : f32
    %12 = vector.broadcast %cst_9 : f32 to vector<16x64xf32>
    %13 = arith.mulf %12, %9 : vector<16x64xf32>
    %14 = arith.select %11, %9, %13 : vector<16x64xi1>, vector<16x64xf32>
    %15 = arith.truncf %14 : vector<16x64xf32> to vector<16x64xbf16>
    %c0_10 = arith.constant 0 : index
    %c0_11 = arith.constant 0 : index
    %c0_12 = arith.constant 0 : index
    %16 = vector.load %arg6[%c0_10, %c0_11, %c0_12] : memref<1x16x64xbf16, #tpu.memory_space<vmem>>, vector<1x16x64xbf16>
    %17 = vector.shape_cast %16 : vector<1x16x64xbf16> to vector<16x64xbf16>
    %18 = vector.shape_cast %15 : vector<16x64xbf16> to vector<1x16x64xbf16>
    tpu.vector_store %arg6[%c0_10, %c0_11, %c0_12], %18 {strides = array<i32>} : memref<1x16x64xbf16, #tpu.memory_space<vmem>>, vector<1x16x64xbf16>,
    return
  }
  func.func @transform_0(%arg0: i32, %arg1: i32) -> (i32, i32, i32) {
    %c0_i32 = arith.constant 0 : i32
    %c0_i32_0 = arith.constant 0 : i32
    return %arg0, %arg1, %c0_i32 : i32, i32, i32
  }
  func.func @transform_1(%arg0: i32, %arg1: i32) -> (i32, i32) {
    %c0_i32 = arith.constant 0 : i32
    %c0_i32_0 = arith.constant 0 : i32
    %c0_i32_1 = arith.constant 0 : i32
    return %c0_i32, %c0_i32_0 : i32, i32
  }
  func.func @transform_2(%arg0: i32, %arg1: i32) -> (i32, i32) {
    %c0_i32 = arith.constant 0 : i32
    %c0_i32_0 = arith.constant 0 : i32
    %c0_i32_1 = arith.constant 0 : i32
    return %c0_i32, %c0_i32_0 : i32, i32
  }
  func.func @transform_3(%arg0: i32, %arg1: i32) -> (i32, i32) {
    %c0_i32 = arith.constant 0 : i32
    %c0_i32_0 = arith.constant 0 : i32
    %c0_i32_1 = arith.constant 0 : i32
    return %c0_i32, %c0_i32_0 : i32, i32
  }
  func.func @transform_4(%arg0: i32, %arg1: i32) -> (i32, i32, i32) {
    %c0_i32 = arith.constant 0 : i32
    %c0_i32_0 = arith.constant 0 : i32
    return %arg0, %arg1, %c0_i32 : i32, i32, i32
  }
}

module attributes {stable_mosaic.version = 11 : i64} {
  func.func @_deconv2x2_kernel(%arg0: i32, %arg1: i32, %arg2: memref<1x16x64xbf16, #tpu.memory_space<vmem>>, %arg3: memref<64x128xbf16, #tpu.memory_space<vmem>>, %arg4: memref<1x128xf32, #tpu.memory_space<vmem>>, %arg5: memref<1x16x128xbf16, #tpu.memory_space<vmem>>) attributes {dimension_semantics = [#tpu.dimension_semantics<parallel>, #tpu.dimension_semantics<parallel>], iteration_bounds = array<i64: 2, 1>, scalar_prefetch = 0 : i64, scratch_operands = 0 : i64, tpu.core_type = #tpu.core_type<tc>, window_params = [{transform_indices = @transform_0, window_bounds = array<i64: 1, 16, 64>}, {pipeline_mode = #tpu.pipeline_mode<synchronous>, transform_indices = @transform_1, window_bounds = array<i64: 64, 128>}, {pipeline_mode = #tpu.pipeline_mode<synchronous>, transform_indices = @transform_2, window_bounds = array<i64: 1, 128>}, {transform_indices = @transform_3, window_bounds = array<i64: 1, 16, 128>}]} {
    %c0 = arith.constant 0 : index
    %c0_0 = arith.constant 0 : index
    %c0_1 = arith.constant 0 : index
    %0 = vector.load %arg2[%c0, %c0_0, %c0_1] : memref<1x16x64xbf16, #tpu.memory_space<vmem>>, vector<1x16x64xbf16>
    %1 = vector.shape_cast %0 : vector<1x16x64xbf16> to vector<16x64xbf16>
    %c0_2 = arith.constant 0 : index
    %c0_3 = arith.constant 0 : index
    %2 = vector.load %arg3[%c0_2, %c0_3] : memref<64x128xbf16, #tpu.memory_space<vmem>>, vector<64x128xbf16>
    %cst = arith.constant dense<0.000000e+00> : vector<16x128xf32>
    %3 = tpu.matmul %1, %2, %cst {dimension_numbers = #tpu.dot_dimension_numbers<[1], [0], [0], [1], [0, 0, 1, 1], [], []>} : vector<16x64xbf16>, vector<64x128xbf16>, vector<16x128xf32> -> vector<16x128xf32>
    %c0_4 = arith.constant 0 : index
    %c0_5 = arith.constant 0 : index
    %4 = vector.load %arg4[%c0_4, %c0_5] : memref<1x128xf32, #tpu.memory_space<vmem>>, vector<1x128xf32>
    %5 = vector.broadcast %4 : vector<1x128xf32> to vector<16x128xf32>
    %6 = arith.addf %3, %5 : vector<16x128xf32>
    %7 = arith.truncf %6 : vector<16x128xf32> to vector<16x128xbf16>
    %c0_6 = arith.constant 0 : index
    %c0_7 = arith.constant 0 : index
    %c0_8 = arith.constant 0 : index
    %8 = vector.load %arg5[%c0_6, %c0_7, %c0_8] : memref<1x16x128xbf16, #tpu.memory_space<vmem>>, vector<1x16x128xbf16>
    %9 = vector.shape_cast %8 : vector<1x16x128xbf16> to vector<16x128xbf16>
    %10 = vector.shape_cast %7 : vector<16x128xbf16> to vector<1x16x128xbf16>
    tpu.vector_store %arg5[%c0_6, %c0_7, %c0_8], %10 {strides = array<i32>} : memref<1x16x128xbf16, #tpu.memory_space<vmem>>, vector<1x16x128xbf16>,
    return
  }
  func.func @transform_0(%arg0: i32, %arg1: i32) -> (i32, i32, i32) {
    %c0_i32 = arith.constant 0 : i32
    %c0_i32_0 = arith.constant 0 : i32
    return %arg0, %arg1, %c0_i32 : i32, i32, i32
  }
  func.func @transform_1(%arg0: i32, %arg1: i32) -> (i32, i32) {
    %c0_i32 = arith.constant 0 : i32
    %c0_i32_0 = arith.constant 0 : i32
    %c0_i32_1 = arith.constant 0 : i32
    return %c0_i32, %c0_i32_0 : i32, i32
  }
  func.func @transform_2(%arg0: i32, %arg1: i32) -> (i32, i32) {
    %c0_i32 = arith.constant 0 : i32
    %c0_i32_0 = arith.constant 0 : i32
    %c0_i32_1 = arith.constant 0 : i32
    return %c0_i32, %c0_i32_0 : i32, i32
  }
  func.func @transform_3(%arg0: i32, %arg1: i32) -> (i32, i32, i32) {
    %c0_i32 = arith.constant 0 : i32
    %c0_i32_0 = arith.constant 0 : i32
    return %arg0, %arg1, %c0_i32 : i32, i32, i32
  }
}

module attributes {stable_mosaic.version = 11 : i64} {
  func.func @_deconv2x2_kernel(%arg0: i32, %arg1: i32, %arg2: memref<1x64x32xbf16, #tpu.memory_space<vmem>>, %arg3: memref<32x64xbf16, #tpu.memory_space<vmem>>, %arg4: memref<1x64xf32, #tpu.memory_space<vmem>>, %arg5: memref<1x64x64xbf16, #tpu.memory_space<vmem>>) attributes {dimension_semantics = [#tpu.dimension_semantics<parallel>, #tpu.dimension_semantics<parallel>], iteration_bounds = array<i64: 2, 1>, scalar_prefetch = 0 : i64, scratch_operands = 0 : i64, tpu.core_type = #tpu.core_type<tc>, window_params = [{transform_indices = @transform_0, window_bounds = array<i64: 1, 64, 32>}, {pipeline_mode = #tpu.pipeline_mode<synchronous>, transform_indices = @transform_1, window_bounds = array<i64: 32, 64>}, {pipeline_mode = #tpu.pipeline_mode<synchronous>, transform_indices = @transform_2, window_bounds = array<i64: 1, 64>}, {transform_indices = @transform_3, window_bounds = array<i64: 1, 64, 64>}]} {
    %c0 = arith.constant 0 : index
    %c0_0 = arith.constant 0 : index
    %c0_1 = arith.constant 0 : index
    %0 = vector.load %arg2[%c0, %c0_0, %c0_1] : memref<1x64x32xbf16, #tpu.memory_space<vmem>>, vector<1x64x32xbf16>
    %1 = vector.shape_cast %0 : vector<1x64x32xbf16> to vector<64x32xbf16>
    %c0_2 = arith.constant 0 : index
    %c0_3 = arith.constant 0 : index
    %2 = vector.load %arg3[%c0_2, %c0_3] : memref<32x64xbf16, #tpu.memory_space<vmem>>, vector<32x64xbf16>
    %cst = arith.constant dense<0.000000e+00> : vector<64x64xf32>
    %3 = tpu.matmul %1, %2, %cst {dimension_numbers = #tpu.dot_dimension_numbers<[1], [0], [0], [1], [0, 0, 1, 1], [], []>} : vector<64x32xbf16>, vector<32x64xbf16>, vector<64x64xf32> -> vector<64x64xf32>
    %c0_4 = arith.constant 0 : index
    %c0_5 = arith.constant 0 : index
    %4 = vector.load %arg4[%c0_4, %c0_5] : memref<1x64xf32, #tpu.memory_space<vmem>>, vector<1x64xf32>
    %5 = vector.broadcast %4 : vector<1x64xf32> to vector<64x64xf32>
    %6 = arith.addf %3, %5 : vector<64x64xf32>
    %7 = arith.truncf %6 : vector<64x64xf32> to vector<64x64xbf16>
    %c0_6 = arith.constant 0 : index
    %c0_7 = arith.constant 0 : index
    %c0_8 = arith.constant 0 : index
    %8 = vector.load %arg5[%c0_6, %c0_7, %c0_8] : memref<1x64x64xbf16, #tpu.memory_space<vmem>>, vector<1x64x64xbf16>
    %9 = vector.shape_cast %8 : vector<1x64x64xbf16> to vector<64x64xbf16>
    %10 = vector.shape_cast %7 : vector<64x64xbf16> to vector<1x64x64xbf16>
    tpu.vector_store %arg5[%c0_6, %c0_7, %c0_8], %10 {strides = array<i32>} : memref<1x64x64xbf16, #tpu.memory_space<vmem>>, vector<1x64x64xbf16>,
    return
  }
  func.func @transform_0(%arg0: i32, %arg1: i32) -> (i32, i32, i32) {
    %c0_i32 = arith.constant 0 : i32
    %c0_i32_0 = arith.constant 0 : i32
    return %arg0, %arg1, %c0_i32 : i32, i32, i32
  }
  func.func @transform_1(%arg0: i32, %arg1: i32) -> (i32, i32) {
    %c0_i32 = arith.constant 0 : i32
    %c0_i32_0 = arith.constant 0 : i32
    %c0_i32_1 = arith.constant 0 : i32
    return %c0_i32, %c0_i32_0 : i32, i32
  }
  func.func @transform_2(%arg0: i32, %arg1: i32) -> (i32, i32) {
    %c0_i32 = arith.constant 0 : i32
    %c0_i32_0 = arith.constant 0 : i32
    %c0_i32_1 = arith.constant 0 : i32
    return %c0_i32, %c0_i32_0 : i32, i32
  }
  func.func @transform_3(%arg0: i32, %arg1: i32) -> (i32, i32, i32) {
    %c0_i32 = arith.constant 0 : i32
    %c0_i32_0 = arith.constant 0 : i32
    return %arg0, %arg1, %c0_i32 : i32, i32, i32
  }
}

module attributes {stable_mosaic.version = 11 : i64} {
  func.func @_conv3x3_bn_lrelu_kernel(%arg0: i32, %arg1: i32, %arg2: memref<1x64x576xbf16, #tpu.memory_space<vmem>>, %arg3: memref<576x32xbf16, #tpu.memory_space<vmem>>, %arg4: memref<1x32xf32, #tpu.memory_space<vmem>>, %arg5: memref<1x32xf32, #tpu.memory_space<vmem>>, %arg6: memref<1x64x32xbf16, #tpu.memory_space<vmem>>) attributes {dimension_semantics = [#tpu.dimension_semantics<parallel>, #tpu.dimension_semantics<parallel>], iteration_bounds = array<i64: 2, 1>, scalar_prefetch = 0 : i64, scratch_operands = 0 : i64, tpu.core_type = #tpu.core_type<tc>, window_params = [{transform_indices = @transform_0, window_bounds = array<i64: 1, 64, 576>}, {pipeline_mode = #tpu.pipeline_mode<synchronous>, transform_indices = @transform_1, window_bounds = array<i64: 576, 32>}, {pipeline_mode = #tpu.pipeline_mode<synchronous>, transform_indices = @transform_2, window_bounds = array<i64: 1, 32>}, {pipeline_mode = #tpu.pipeline_mode<synchronous>, transform_indices = @transform_3, window_bounds = array<i64: 1, 32>}, {transform_indices = @transform_4, window_bounds = array<i64: 1, 64, 32>}]} {
    %c0 = arith.constant 0 : index
    %c0_0 = arith.constant 0 : index
    %c0_1 = arith.constant 0 : index
    %0 = vector.load %arg2[%c0, %c0_0, %c0_1] : memref<1x64x576xbf16, #tpu.memory_space<vmem>>, vector<1x64x576xbf16>
    %1 = vector.shape_cast %0 : vector<1x64x576xbf16> to vector<64x576xbf16>
    %c0_2 = arith.constant 0 : index
    %c0_3 = arith.constant 0 : index
    %2 = vector.load %arg3[%c0_2, %c0_3] : memref<576x32xbf16, #tpu.memory_space<vmem>>, vector<576x32xbf16>
    %cst = arith.constant dense<0.000000e+00> : vector<64x32xf32>
    %3 = tpu.matmul %1, %2, %cst {dimension_numbers = #tpu.dot_dimension_numbers<[1], [0], [0], [1], [0, 0, 1, 1], [], []>} : vector<64x576xbf16>, vector<576x32xbf16>, vector<64x32xf32> -> vector<64x32xf32>
    %c0_4 = arith.constant 0 : index
    %c0_5 = arith.constant 0 : index
    %4 = vector.load %arg4[%c0_4, %c0_5] : memref<1x32xf32, #tpu.memory_space<vmem>>, vector<1x32xf32>
    %5 = vector.broadcast %4 : vector<1x32xf32> to vector<64x32xf32>
    %6 = arith.mulf %3, %5 : vector<64x32xf32>
    %c0_6 = arith.constant 0 : index
    %c0_7 = arith.constant 0 : index
    %7 = vector.load %arg5[%c0_6, %c0_7] : memref<1x32xf32, #tpu.memory_space<vmem>>, vector<1x32xf32>
    %8 = vector.broadcast %7 : vector<1x32xf32> to vector<64x32xf32>
    %9 = arith.addf %6, %8 : vector<64x32xf32>
    %cst_8 = arith.constant 0.000000e+00 : f32
    %10 = vector.broadcast %cst_8 : f32 to vector<64x32xf32>
    %11 = arith.cmpf oge, %9, %10 : vector<64x32xf32>
    %cst_9 = arith.constant 0.00999999977 : f32
    %12 = vector.broadcast %cst_9 : f32 to vector<64x32xf32>
    %13 = arith.mulf %12, %9 : vector<64x32xf32>
    %14 = arith.select %11, %9, %13 : vector<64x32xi1>, vector<64x32xf32>
    %15 = arith.truncf %14 : vector<64x32xf32> to vector<64x32xbf16>
    %c0_10 = arith.constant 0 : index
    %c0_11 = arith.constant 0 : index
    %c0_12 = arith.constant 0 : index
    %16 = vector.load %arg6[%c0_10, %c0_11, %c0_12] : memref<1x64x32xbf16, #tpu.memory_space<vmem>>, vector<1x64x32xbf16>
    %17 = vector.shape_cast %16 : vector<1x64x32xbf16> to vector<64x32xbf16>
    %18 = vector.shape_cast %15 : vector<64x32xbf16> to vector<1x64x32xbf16>
    tpu.vector_store %arg6[%c0_10, %c0_11, %c0_12], %18 {strides = array<i32>} : memref<1x64x32xbf16, #tpu.memory_space<vmem>>, vector<1x64x32xbf16>,
    return
  }
  func.func @transform_0(%arg0: i32, %arg1: i32) -> (i32, i32, i32) {
    %c0_i32 = arith.constant 0 : i32
    %c0_i32_0 = arith.constant 0 : i32
    return %arg0, %arg1, %c0_i32 : i32, i32, i32
  }
  func.func @transform_1(%arg0: i32, %arg1: i32) -> (i32, i32) {
    %c0_i32 = arith.constant 0 : i32
    %c0_i32_0 = arith.constant 0 : i32
    %c0_i32_1 = arith.constant 0 : i32
    return %c0_i32, %c0_i32_0 : i32, i32
  }
  func.func @transform_2(%arg0: i32, %arg1: i32) -> (i32, i32) {
    %c0_i32 = arith.constant 0 : i32
    %c0_i32_0 = arith.constant 0 : i32
    %c0_i32_1 = arith.constant 0 : i32
    return %c0_i32, %c0_i32_0 : i32, i32
  }
  func.func @transform_3(%arg0: i32, %arg1: i32) -> (i32, i32) {
    %c0_i32 = arith.constant 0 : i32
    %c0_i32_0 = arith.constant 0 : i32
    %c0_i32_1 = arith.constant 0 : i32
    return %c0_i32, %c0_i32_0 : i32, i32
  }
  func.func @transform_4(%arg0: i32, %arg1: i32) -> (i32, i32, i32) {
    %c0_i32 = arith.constant 0 : i32
    %c0_i32_0 = arith.constant 0 : i32
    return %arg0, %arg1, %c0_i32 : i32, i32, i32
  }
}

module attributes {stable_mosaic.version = 11 : i64} {
  func.func @_conv3x3_bn_lrelu_kernel(%arg0: i32, %arg1: i32, %arg2: memref<1x256x288xbf16, #tpu.memory_space<vmem>>, %arg3: memref<288x16xbf16, #tpu.memory_space<vmem>>, %arg4: memref<1x16xf32, #tpu.memory_space<vmem>>, %arg5: memref<1x16xf32, #tpu.memory_space<vmem>>, %arg6: memref<1x256x16xbf16, #tpu.memory_space<vmem>>) attributes {dimension_semantics = [#tpu.dimension_semantics<parallel>, #tpu.dimension_semantics<parallel>], iteration_bounds = array<i64: 2, 1>, scalar_prefetch = 0 : i64, scratch_operands = 0 : i64, tpu.core_type = #tpu.core_type<tc>, window_params = [{transform_indices = @transform_0, window_bounds = array<i64: 1, 256, 288>}, {pipeline_mode = #tpu.pipeline_mode<synchronous>, transform_indices = @transform_1, window_bounds = array<i64: 288, 16>}, {pipeline_mode = #tpu.pipeline_mode<synchronous>, transform_indices = @transform_2, window_bounds = array<i64: 1, 16>}, {pipeline_mode = #tpu.pipeline_mode<synchronous>, transform_indices = @transform_3, window_bounds = array<i64: 1, 16>}, {transform_indices = @transform_4, window_bounds = array<i64: 1, 256, 16>}]} {
    %c0 = arith.constant 0 : index
    %c0_0 = arith.constant 0 : index
    %c0_1 = arith.constant 0 : index
    %0 = vector.load %arg2[%c0, %c0_0, %c0_1] : memref<1x256x288xbf16, #tpu.memory_space<vmem>>, vector<1x256x288xbf16>
    %1 = vector.shape_cast %0 : vector<1x256x288xbf16> to vector<256x288xbf16>
    %c0_2 = arith.constant 0 : index
    %c0_3 = arith.constant 0 : index
    %2 = vector.load %arg3[%c0_2, %c0_3] : memref<288x16xbf16, #tpu.memory_space<vmem>>, vector<288x16xbf16>
    %cst = arith.constant dense<0.000000e+00> : vector<256x16xf32>
    %3 = tpu.matmul %1, %2, %cst {dimension_numbers = #tpu.dot_dimension_numbers<[1], [0], [0], [1], [0, 0, 1, 1], [], []>} : vector<256x288xbf16>, vector<288x16xbf16>, vector<256x16xf32> -> vector<256x16xf32>
    %c0_4 = arith.constant 0 : index
    %c0_5 = arith.constant 0 : index
    %4 = vector.load %arg4[%c0_4, %c0_5] : memref<1x16xf32, #tpu.memory_space<vmem>>, vector<1x16xf32>
    %5 = vector.broadcast %4 : vector<1x16xf32> to vector<256x16xf32>
    %6 = arith.mulf %3, %5 : vector<256x16xf32>
    %c0_6 = arith.constant 0 : index
    %c0_7 = arith.constant 0 : index
    %7 = vector.load %arg5[%c0_6, %c0_7] : memref<1x16xf32, #tpu.memory_space<vmem>>, vector<1x16xf32>
    %8 = vector.broadcast %7 : vector<1x16xf32> to vector<256x16xf32>
    %9 = arith.addf %6, %8 : vector<256x16xf32>
    %cst_8 = arith.constant 0.000000e+00 : f32
    %10 = vector.broadcast %cst_8 : f32 to vector<256x16xf32>
    %11 = arith.cmpf oge, %9, %10 : vector<256x16xf32>
    %cst_9 = arith.constant 0.00999999977 : f32
    %12 = vector.broadcast %cst_9 : f32 to vector<256x16xf32>
    %13 = arith.mulf %12, %9 : vector<256x16xf32>
    %14 = arith.select %11, %9, %13 : vector<256x16xi1>, vector<256x16xf32>
    %15 = arith.truncf %14 : vector<256x16xf32> to vector<256x16xbf16>
    %c0_10 = arith.constant 0 : index
    %c0_11 = arith.constant 0 : index
    %c0_12 = arith.constant 0 : index
    %16 = vector.load %arg6[%c0_10, %c0_11, %c0_12] : memref<1x256x16xbf16, #tpu.memory_space<vmem>>, vector<1x256x16xbf16>
    %17 = vector.shape_cast %16 : vector<1x256x16xbf16> to vector<256x16xbf16>
    %18 = vector.shape_cast %15 : vector<256x16xbf16> to vector<1x256x16xbf16>
    tpu.vector_store %arg6[%c0_10, %c0_11, %c0_12], %18 {strides = array<i32>} : memref<1x256x16xbf16, #tpu.memory_space<vmem>>, vector<1x256x16xbf16>,
    return
  }
  func.func @transform_0(%arg0: i32, %arg1: i32) -> (i32, i32, i32) {
    %c0_i32 = arith.constant 0 : i32
    %c0_i32_0 = arith.constant 0 : i32
    return %arg0, %arg1, %c0_i32 : i32, i32, i32
  }
  func.func @transform_1(%arg0: i32, %arg1: i32) -> (i32, i32) {
    %c0_i32 = arith.constant 0 : i32
    %c0_i32_0 = arith.constant 0 : i32
    %c0_i32_1 = arith.constant 0 : i32
    return %c0_i32, %c0_i32_0 : i32, i32
  }
  func.func @transform_2(%arg0: i32, %arg1: i32) -> (i32, i32) {
    %c0_i32 = arith.constant 0 : i32
    %c0_i32_0 = arith.constant 0 : i32
    %c0_i32_1 = arith.constant 0 : i32
    return %c0_i32, %c0_i32_0 : i32, i32
  }
  func.func @transform_3(%arg0: i32, %arg1: i32) -> (i32, i32) {
    %c0_i32 = arith.constant 0 : i32
    %c0_i32_0 = arith.constant 0 : i32
    %c0_i32_1 = arith.constant 0 : i32
    return %c0_i32, %c0_i32_0 : i32, i32
  }
  func.func @transform_4(%arg0: i32, %arg1: i32) -> (i32, i32, i32) {
    %c0_i32 = arith.constant 0 : i32
    %c0_i32_0 = arith.constant 0 : i32
    return %arg0, %arg1, %c0_i32 : i32, i32, i32
  }
}

module attributes {stable_mosaic.version = 11 : i64} {
  func.func @_conv3x3_bn_lrelu_1x1_kernel(%arg0: i32, %arg1: i32, %arg2: memref<1x256x144xbf16, #tpu.memory_space<vmem>>, %arg3: memref<144x16xbf16, #tpu.memory_space<vmem>>, %arg4: memref<1x16xf32, #tpu.memory_space<vmem>>, %arg5: memref<1x16xf32, #tpu.memory_space<vmem>>, %arg6: memref<16x3xbf16, #tpu.memory_space<vmem>>, %arg7: memref<1x3xf32, #tpu.memory_space<vmem>>, %arg8: memref<1x256x3xf32, #tpu.memory_space<vmem>>) attributes {dimension_semantics = [#tpu.dimension_semantics<parallel>, #tpu.dimension_semantics<parallel>], iteration_bounds = array<i64: 2, 1>, scalar_prefetch = 0 : i64, scratch_operands = 0 : i64, tpu.core_type = #tpu.core_type<tc>, window_params = [{transform_indices = @transform_0, window_bounds = array<i64: 1, 256, 144>}, {pipeline_mode = #tpu.pipeline_mode<synchronous>, transform_indices = @transform_1, window_bounds = array<i64: 144, 16>}, {pipeline_mode = #tpu.pipeline_mode<synchronous>, transform_indices = @transform_2, window_bounds = array<i64: 1, 16>}, {pipeline_mode = #tpu.pipeline_mode<synchronous>, transform_indices = @transform_3, window_bounds = array<i64: 1, 16>}, {pipeline_mode = #tpu.pipeline_mode<synchronous>, transform_indices = @transform_4, window_bounds = array<i64: 16, 3>}, {pipeline_mode = #tpu.pipeline_mode<synchronous>, transform_indices = @transform_5, window_bounds = array<i64: 1, 3>}, {transform_indices = @transform_6, window_bounds = array<i64: 1, 256, 3>}]} {
    %c0 = arith.constant 0 : index
    %c0_0 = arith.constant 0 : index
    %c0_1 = arith.constant 0 : index
    %0 = vector.load %arg2[%c0, %c0_0, %c0_1] : memref<1x256x144xbf16, #tpu.memory_space<vmem>>, vector<1x256x144xbf16>
    %1 = vector.shape_cast %0 : vector<1x256x144xbf16> to vector<256x144xbf16>
    %c0_2 = arith.constant 0 : index
    %c0_3 = arith.constant 0 : index
    %2 = vector.load %arg3[%c0_2, %c0_3] : memref<144x16xbf16, #tpu.memory_space<vmem>>, vector<144x16xbf16>
    %cst = arith.constant dense<0.000000e+00> : vector<256x16xf32>
    %3 = tpu.matmul %1, %2, %cst {dimension_numbers = #tpu.dot_dimension_numbers<[1], [0], [0], [1], [0, 0, 1, 1], [], []>} : vector<256x144xbf16>, vector<144x16xbf16>, vector<256x16xf32> -> vector<256x16xf32>
    %c0_4 = arith.constant 0 : index
    %c0_5 = arith.constant 0 : index
    %4 = vector.load %arg4[%c0_4, %c0_5] : memref<1x16xf32, #tpu.memory_space<vmem>>, vector<1x16xf32>
    %5 = vector.broadcast %4 : vector<1x16xf32> to vector<256x16xf32>
    %6 = arith.mulf %3, %5 : vector<256x16xf32>
    %c0_6 = arith.constant 0 : index
    %c0_7 = arith.constant 0 : index
    %7 = vector.load %arg5[%c0_6, %c0_7] : memref<1x16xf32, #tpu.memory_space<vmem>>, vector<1x16xf32>
    %8 = vector.broadcast %7 : vector<1x16xf32> to vector<256x16xf32>
    %9 = arith.addf %6, %8 : vector<256x16xf32>
    %cst_8 = arith.constant 0.000000e+00 : f32
    %10 = vector.broadcast %cst_8 : f32 to vector<256x16xf32>
    %11 = arith.cmpf oge, %9, %10 : vector<256x16xf32>
    %cst_9 = arith.constant 0.00999999977 : f32
    %12 = vector.broadcast %cst_9 : f32 to vector<256x16xf32>
    %13 = arith.mulf %12, %9 : vector<256x16xf32>
    %14 = arith.select %11, %9, %13 : vector<256x16xi1>, vector<256x16xf32>
    %15 = arith.truncf %14 : vector<256x16xf32> to vector<256x16xbf16>
    %c0_10 = arith.constant 0 : index
    %c0_11 = arith.constant 0 : index
    %16 = vector.load %arg6[%c0_10, %c0_11] : memref<16x3xbf16, #tpu.memory_space<vmem>>, vector<16x3xbf16>
    %cst_12 = arith.constant dense<0.000000e+00> : vector<256x3xf32>
    %17 = tpu.matmul %15, %16, %cst_12 {dimension_numbers = #tpu.dot_dimension_numbers<[1], [0], [0], [1], [0, 0, 1, 1], [], []>} : vector<256x16xbf16>, vector<16x3xbf16>, vector<256x3xf32> -> vector<256x3xf32>
    %c0_13 = arith.constant 0 : index
    %c0_14 = arith.constant 0 : index
    %18 = vector.load %arg7[%c0_13, %c0_14] : memref<1x3xf32, #tpu.memory_space<vmem>>, vector<1x3xf32>
    %19 = vector.broadcast %18 : vector<1x3xf32> to vector<256x3xf32>
    %20 = arith.addf %17, %19 : vector<256x3xf32>
    %c0_15 = arith.constant 0 : index
    %c0_16 = arith.constant 0 : index
    %c0_17 = arith.constant 0 : index
    %21 = vector.load %arg8[%c0_15, %c0_16, %c0_17] : memref<1x256x3xf32, #tpu.memory_space<vmem>>, vector<1x256x3xf32>
    %22 = vector.shape_cast %21 : vector<1x256x3xf32> to vector<256x3xf32>
    %23 = vector.shape_cast %20 : vector<256x3xf32> to vector<1x256x3xf32>
    tpu.vector_store %arg8[%c0_15, %c0_16, %c0_17], %23 {strides = array<i32>} : memref<1x256x3xf32, #tpu.memory_space<vmem>>, vector<1x256x3xf32>,
    return
  }
  func.func @transform_0(%arg0: i32, %arg1: i32) -> (i32, i32, i32) {
    %c0_i32 = arith.constant 0 : i32
    %c0_i32_0 = arith.constant 0 : i32
    return %arg0, %arg1, %c0_i32 : i32, i32, i32
  }
  func.func @transform_1(%arg0: i32, %arg1: i32) -> (i32, i32) {
    %c0_i32 = arith.constant 0 : i32
    %c0_i32_0 = arith.constant 0 : i32
    %c0_i32_1 = arith.constant 0 : i32
    return %c0_i32, %c0_i32_0 : i32, i32
  }
  func.func @transform_2(%arg0: i32, %arg1: i32) -> (i32, i32) {
    %c0_i32 = arith.constant 0 : i32
    %c0_i32_0 = arith.constant 0 : i32
    %c0_i32_1 = arith.constant 0 : i32
    return %c0_i32, %c0_i32_0 : i32, i32
  }
  func.func @transform_3(%arg0: i32, %arg1: i32) -> (i32, i32) {
    %c0_i32 = arith.constant 0 : i32
    %c0_i32_0 = arith.constant 0 : i32
    %c0_i32_1 = arith.constant 0 : i32
    return %c0_i32, %c0_i32_0 : i32, i32
  }
  func.func @transform_4(%arg0: i32, %arg1: i32) -> (i32, i32) {
    %c0_i32 = arith.constant 0 : i32
    %c0_i32_0 = arith.constant 0 : i32
    %c0_i32_1 = arith.constant 0 : i32
    return %c0_i32, %c0_i32_0 : i32, i32
  }
  func.func @transform_5(%arg0: i32, %arg1: i32) -> (i32, i32) {
    %c0_i32 = arith.constant 0 : i32
    %c0_i32_0 = arith.constant 0 : i32
    %c0_i32_1 = arith.constant 0 : i32
    return %c0_i32, %c0_i32_0 : i32, i32
  }
  func.func @transform_6(%arg0: i32, %arg1: i32) -> (i32, i32, i32) {
    %c0_i32 = arith.constant 0 : i32
    %c0_i32_0 = arith.constant 0 : i32
    return %arg0, %arg1, %c0_i32 : i32, i32, i32
  }
}

</mosaic_0001>

<llo_original>
// kernel: conv_with_conn_forward.14
$region0: #{conv_with_conn_forward.14}
  #allocation0 [shape = 'u32[]', space=smem, size = 0x4, offset = 0x4, fixed_abs, tag = 'smem constant byte address 0x4 - core index']
  #allocation1 [shape = 'u32[72,128]{1,0:T(1,128)}', space=vmem, size = 0x9000, scoped, tag = 'internal scratch']
  %s0 = inlined_call_operand.vmem [shape: bf16[2,256,27], index: 0, kind: input, shape index: {}]
  %s1 = inlined_call_operand.vmem [shape: bf16[27,16], index: 1, kind: input, shape index: {}]
  %s2 = inlined_call_operand.vmem [shape: f32[1,16], index: 2, kind: input, shape index: {}]
  %s3 = inlined_call_operand.vmem [shape: f32[1,16], index: 3, kind: input, shape index: {}]
  %s4 = inlined_call_operand.vmem [shape: bf16[2,256,16], index: 4, kind: output, shape index: {}]
  %s5 = sld [smem:[#allocation0]]
  $region49: #{conv_with_conn_forward.14} parent=0
    _
  %s7 = ssub.s32 1, %s5
  %s8 = scalar_select 0, %s7, %s5
  loop: start=0, step=1, limit=4
  $region2: #{conv_with_conn_forward.14} parent=0 // loop_pre_header
    _
  $region3: #{conv_with_conn_forward.14} parent=0 // loop_header
    %s10 = sphi 0, %s14
    %p11 = scmp.ge.s32.totalorder %s10, 4
    %s17 = sphi 0, %s29
    %s18 = sphi 0, %s25
    %s19 = sphi 0, %s17
    %s20 = sphi 0, %s18
    %s21 = sphi 0, %s19
    %s22 = sphi 0, %s20
    %s34 = sphi 0, %s36
    %s37 = sphi 0, %s34
    %s38 = sphi 0, %s37
    %s54 = sphi 0, %s38
    %s58 = sphi 0, %s58
    %s60 = sphi 0, %s58
    %s61 = sphi 0, %s60
    %s75 = sphi 0, %s61
    %s79 = sphi 0, %s79
    %s81 = sphi 0, %s79
    %s82 = sphi 0, %s81
    %s96 = sphi 0, %s82
    %s100 = sphi 0, %s100
    %s102 = sphi 0, %s100
    %s103 = sphi 0, %s102
    %s117 = sphi 0, %s103
    %s125 = sphi 0, %s127
    %s128 = sphi 0, %s125
    %s129 = sphi 0, %s128
    %s145 = sphi 0, %s129
  $region4: #{conv_with_conn_forward.14} parent=0 // loop_header_branch
    %13 = sbr.rel (%p11) target = $region8
  $region5: #{conv_with_conn_forward.14} parent=0 // loop_body
    %s15 = ssub.s32 %s10, 1
    %s16 = ssub.s32 %s10, 2
    %s23 = sadd.s32 1, %s18
    %p24 = scmp.ge.s32.totalorder %s23, 1
    %s25 = scalar_select %p24, 0, %s23
    %s26 = sadd.s32 1, %s17
    %s27 = scalar_select %p24, %s26, %s17
    %p28 = scmp.ge.s32.totalorder %s27, 2
    %s29 = scalar_select %p28, 0, %s27
    %s30 = ssub.s32 %s17, %s29
    %s31 = ssub.s32 %s18, %s25
    %s32 = sor.u32 %s30, %s31
    %p33 = scmp.eq.s32.totalorder %s32, 0
    %s35 = sadd.s32 %s34, 1
    %s36 = scalar_select %p33, %s34, %s35
    %p39 = pneg %p33
    %p40 = scmp.eq.s32.totalorder %s10, 1
    %p41 = por %p39, %p40
    %p42 = scmp.ne.s32.totalorder %s34, %s37
    %p43 = scmp.eq.s32.totalorder %s10, 0
    %p44 = por %p42, %p43
    %p45 = scmp.ne.s32.totalorder %s34, %s37
    %p46 = scmp.eq.s32.totalorder %s15, 1
    %p47 = por %p45, %p46
    %p48 = scmp.ne.s32.totalorder %s37, %s38
    %p49 = scmp.eq.s32.totalorder %s15, 0
    %p50 = por %p48, %p49
    %p51 = scmp.ne.s32.totalorder %s37, %s38
    %p52 = scmp.eq.s32.totalorder %s16, 1
    %p53 = por %p51, %p52
    %p55 = scmp.ne.s32.totalorder %s38, %s54
    %p56 = scmp.eq.s32.totalorder %s16, 0
    %p57 = por %p55, %p56
    %s59 = sadd.s32 %s58, 1
    %p62 = scmp.eq.s32.totalorder %s10, 1
    %p63 = scmp.ne.s32.totalorder %s58, %s60
    %p64 = scmp.eq.s32.totalorder %s10, 0
    %p65 = por %p63, %p64
    %p66 = scmp.ne.s32.totalorder %s58, %s60
    %p67 = scmp.eq.s32.totalorder %s15, 1
    %p68 = por %p66, %p67
    %p69 = scmp.ne.s32.totalorder %s60, %s61
    %p70 = scmp.eq.s32.totalorder %s15, 0
    %p71 = por %p69, %p70
    %p72 = scmp.ne.s32.totalorder %s60, %s61
    %p73 = scmp.eq.s32.totalorder %s16, 1
    %p74 = por %p72, %p73
    %p76 = scmp.ne.s32.totalorder %s61, %s75
    %p77 = scmp.eq.s32.totalorder %s16, 0
    %p78 = por %p76, %p77
    %s80 = sadd.s32 %s79, 1
    %p83 = scmp.eq.s32.totalorder %s10, 1
    %p84 = scmp.ne.s32.totalorder %s79, %s81
    %p85 = scmp.eq.s32.totalorder %s10, 0
    %p86 = por %p84, %p85
    %p87 = scmp.ne.s32.totalorder %s79, %s81
    %p88 = scmp.eq.s32.totalorder %s15, 1
    %p89 = por %p87, %p88
    %p90 = scmp.ne.s32.totalorder %s81, %s82
    %p91 = scmp.eq.s32.totalorder %s15, 0
    %p92 = por %p90, %p91
    %p93 = scmp.ne.s32.totalorder %s81, %s82
    %p94 = scmp.eq.s32.totalorder %s16, 1
    %p95 = por %p93, %p94
    %p97 = scmp.ne.s32.totalorder %s82, %s96
    %p98 = scmp.eq.s32.totalorder %s16, 0
    %p99 = por %p97, %p98
    %s101 = sadd.s32 %s100, 1
    %p104 = scmp.eq.s32.totalorder %s10, 1
    %p105 = scmp.ne.s32.totalorder %s100, %s102
    %p106 = scmp.eq.s32.totalorder %s10, 0
    %p107 = por %p105, %p106
    %p108 = scmp.ne.s32.totalorder %s100, %s102
    %p109 = scmp.eq.s32.totalorder %s15, 1
    %p110 = por %p108, %p109
    %p111 = scmp.ne.s32.totalorder %s102, %s103
    %p112 = scmp.eq.s32.totalorder %s15, 0
    %p113 = por %p111, %p112
    %p114 = scmp.ne.s32.totalorder %s102, %s103
    %p115 = scmp.eq.s32.totalorder %s16, 1
    %p116 = por %p114, %p115
    %p118 = scmp.ne.s32.totalorder %s103, %s117
    %p119 = scmp.eq.s32.totalorder %s16, 0
    %p120 = por %p118, %p119
    %s121 = ssub.s32 %s17, %s29
    %s122 = ssub.s32 %s18, %s25
    %s123 = sor.u32 %s121, %s122
    %p124 = scmp.eq.s32.totalorder %s123, 0
    %s126 = sadd.s32 %s125, 1
    %s127 = scalar_select %p124, %s125, %s126
    %p130 = pneg %p124
    %p131 = scmp.eq.s32.totalorder %s10, 1
    %p132 = por %p130, %p131
    %p133 = scmp.ne.s32.totalorder %s125, %s128
    %p134 = scmp.eq.s32.totalorder %s10, 0
    %p135 = por %p133, %p134
    %p136 = scmp.ne.s32.totalorder %s125, %s128
    %p137 = scmp.eq.s32.totalorder %s15, 1
    %p138 = por %p136, %p137
    %p139 = scmp.ne.s32.totalorder %s128, %s129
    %p140 = scmp.eq.s32.totalorder %s15, 0
    %p141 = por %p139, %p140
    %p142 = scmp.ne.s32.totalorder %s128, %s129
    %p143 = scmp.eq.s32.totalorder %s16, 1
    %p144 = por %p142, %p143
    %p146 = scmp.ne.s32.totalorder %s129, %s145
    %p147 = scmp.eq.s32.totalorder %s16, 0
    %p148 = por %p146, %p147
    %p149 = scmp.le.s32.totalorder 1, %s10
    %p150 = scmp.lt.s32.totalorder %s10, 3
    %p151 = pnand %p149, %p150
    %p152 = pneg %p151
    // Predicated region
    $region9: #{conv_with_conn_forward.14} parent=5 // pred_check
      _
    $region10: #{conv_with_conn_forward.14} parent=5 // pred_check_branch
      %154 = sbr.rel (%p151) target = $region12
    $region11: #{conv_with_conn_forward.14} parent=5 // pred_region
      %s155 = ssub.s32 %s10, 1
      // Predicated region
      $region13: #{conv_with_conn_forward.14} parent=11 // pred_check
        %p156 = pneg %p71
      $region14: #{conv_with_conn_forward.14} parent=11 // pred_check_branch
        %158 = sbr.rel (%p156) target = $region16
      $region15: #{conv_with_conn_forward.14} parent=11 // pred_region
        _
      $region16: #{conv_with_conn_forward.14} parent=11 // pred_fallthru
        _
      // Predicated region
      $region17: #{conv_with_conn_forward.14} parent=11 // pred_check
        %p159 = pneg %p92
      $region18: #{conv_with_conn_forward.14} parent=11 // pred_check_branch
        %161 = sbr.rel (%p159) target = $region20
      $region19: #{conv_with_conn_forward.14} parent=11 // pred_region
        _
      $region20: #{conv_with_conn_forward.14} parent=11 // pred_fallthru
        _
      // Predicated region
      $region21: #{conv_with_conn_forward.14} parent=11 // pred_check
        %p162 = pneg %p113
      $region22: #{conv_with_conn_forward.14} parent=11 // pred_check_branch
        %164 = sbr.rel (%p162) target = $region24
      $region23: #{conv_with_conn_forward.14} parent=11 // pred_region
        _
      $region24: #{conv_with_conn_forward.14} parent=11 // pred_fallthru
        _
    $region12: #{conv_with_conn_forward.14} parent=5 // pred_fallthru
      _
    %p165 = scmp.lt.s32.totalorder %s10, 2
    // Predicated region
    $region25: #{conv_with_conn_forward.14} parent=5 // pred_check
      %p166 = pneg %p165
    $region26: #{conv_with_conn_forward.14} parent=5 // pred_check_branch
      %168 = sbr.rel (%p166) target = $region28
    $region27: #{conv_with_conn_forward.14} parent=5 // pred_region
      // Predicated region
      $region29: #{conv_with_conn_forward.14} parent=27 // pred_check
        %p169 = pneg %p44
      $region30: #{conv_with_conn_forward.14} parent=27 // pred_check_branch
        %171 = sbr.rel (%p169) target = $region32
      $region31: #{conv_with_conn_forward.14} parent=27 // pred_region
        %s172 = smul.u32 32, %s18
        %p173 = scmp.lt.s32.totalorder %s17, 1
        %s174 = scalar_select %p173, %s17, 1
        %p175 = scmp.lt.s32.totalorder %s172, 31
        %s176 = scalar_select %p175, %s172, 31
        %s177 = smul.addr %s174, 32
        %s178 = sadd.s32 %s176, %s177
        %s179 = smul.addr %s178, 4
        %s180 = scalar_lea.vmem %s0, %s179
        %s181 = smul.u32 32, %s18
      $region32: #{conv_with_conn_forward.14} parent=27 // pred_fallthru
        _
    $region28: #{conv_with_conn_forward.14} parent=5 // pred_fallthru
      _
    %p182 = scmp.le.s32.totalorder 1, %s10
    %p183 = scmp.lt.s32.totalorder %s10, 3
    %p184 = pnand %p182, %p183
    %p185 = pneg %p184
    // Predicated region
    $region33: #{conv_with_conn_forward.14} parent=5 // pred_check
      _
    $region34: #{conv_with_conn_forward.14} parent=5 // pred_check_branch
      %187 = sbr.rel (%p184) target = $region36
    $region35: #{conv_with_conn_forward.14} parent=5 // pred_region
      %s188 = ssub.s32 %s10, 1
      %s189 = smul.u32 32, %s20
      %p190 = scmp.lt.s32.totalorder %s19, 1
      %s191 = scalar_select %p190, %s19, 1
      %p192 = scmp.lt.s32.totalorder %s189, 31
      %s193 = scalar_select %p192, %s189, 31
      %s194 = smul.addr %s191, 32
      %s195 = sadd.s32 %s193, %s194
      %s196 = smul.addr %s195, 4
      %s197 = scalar_lea.vmem %s0, %s196
      %p198 = pneg %p50
      %p199 = pneg %p47
      %p200 = pneg %p71
      %p201 = pneg %p68
      %p202 = pneg %p92
      %p203 = pneg %p89
      %p204 = pneg %p113
      %p205 = pneg %p110
      %p206 = pneg %p141
      %p207 = pneg %p138
      %s208 = smul.u32 32, %s20
      %p209 = scmp.lt.s32.totalorder %s19, 1
      %s210 = scalar_select %p209, %s19, 1
      %p211 = scmp.lt.s32.totalorder %s208, 31
      %s212 = scalar_select %p211, %s208, 31
      %s213 = smul.addr %s210, 32
      %s214 = sadd.s32 %s212, %s213
      %s215 = smul.addr %s214, 4
      %s216 = scalar_lea.vmem %s4, %s215
      %s217 = smul.u32 32, %s20
      %p218 = scmp.lt.s32.totalorder %s19, 1
      %s219 = scalar_select %p218, %s19, 1
      %p220 = scmp.lt.s32.totalorder %s217, 31
      %s221 = scalar_select %p220, %s217, 31
      %s222 = smul.addr %s219, 32
      %s223 = sadd.s32 %s221, %s222
      %s224 = smul.addr %s223, 4
      %s225 = scalar_lea.vmem %s0, %s224
      %s226 = smul.u32 32, %s20
      %s227 = smul.u32 32, %s20
      %p228 = scmp.lt.s32.totalorder %s19, 1
      %s229 = scalar_select %p228, %s19, 1
      %p230 = scmp.lt.s32.totalorder %s227, 31
      %s231 = scalar_select %p230, %s227, 31
      %s232 = smul.addr %s229, 32
      %s233 = sadd.s32 %s231, %s232
      %s234 = smul.addr %s233, 4
      %s235 = scalar_lea.vmem %s4, %s234
      %s236 = smul.u32 32, %s20
      %v238 = vld [vmem:[%s225] sm:$0xf]
      %v239 = vld [vmem:[%s225 + $0x4] sm:$0xf]
      %v240 = vld [vmem:[%s225 + $0x8] sm:$0xf]
      %v241 = vld [vmem:[%s225 + $0xc] sm:$0xf]
      %v242 = vld [vmem:[%s225 + $0x10] sm:$0xf]
      %v243 = vld [vmem:[%s225 + $0x14] sm:$0xf]
      %v244 = vld [vmem:[%s225 + $0x18] sm:$0xf]
      %v245 = vld [vmem:[%s225 + $0x1c] sm:$0xf]
      %v246 = vld [vmem:[%s225 + $0x20] sm:$0xf]
      %v247 = vld [vmem:[%s225 + $0x24] sm:$0xf]
      %v248 = vld [vmem:[%s225 + $0x28] sm:$0xf]
      %v249 = vld [vmem:[%s225 + $0x2c] sm:$0xf]
      %v250 = vld [vmem:[%s225 + $0x30] sm:$0xf]
      %v251 = vld [vmem:[%s225 + $0x34] sm:$0xf]
      %v252 = vld [vmem:[%s225 + $0x38] sm:$0xf]
      %v253 = vld [vmem:[%s225 + $0x3c] sm:$0xf]
      %v254 = vld [vmem:[%s225 + $0x40] sm:$0xf]
      %v255 = vld [vmem:[%s225 + $0x44] sm:$0xf]
      %v256 = vld [vmem:[%s225 + $0x48] sm:$0xf]
      %v257 = vld [vmem:[%s225 + $0x4c] sm:$0xf]
      %v258 = vld [vmem:[%s225 + $0x50] sm:$0xf]
      %v259 = vld [vmem:[%s225 + $0x54] sm:$0xf]
      %v260 = vld [vmem:[%s225 + $0x58] sm:$0xf]
      %v261 = vld [vmem:[%s225 + $0x5c] sm:$0xf]
      %v262 = vld [vmem:[%s225 + $0x60] sm:$0xf]
      %v263 = vld [vmem:[%s225 + $0x64] sm:$0xf]
      %v264 = vld [vmem:[%s225 + $0x68] sm:$0xf]
      %v265 = vld [vmem:[%s225 + $0x6c] sm:$0xf]
      %v266 = vld [vmem:[%s225 + $0x70] sm:$0xf]
      %v267 = vld [vmem:[%s225 + $0x74] sm:$0xf]
      %v268 = vld [vmem:[%s225 + $0x78] sm:$0xf]
      %v269 = vld [vmem:[%s225 + $0x7c] sm:$0xf]
      %v270 = vld [vmem:[%s1] sm:$0xf]
      %v271 = vld [vmem:[%s1 + $0x4] sm:$0xf]
      %v272 = vld [vmem:[%s1 + $0x8] sm:$0xf]
      %v273 = vld [vmem:[%s1 + $0xc] sm:$0x3]
      %v306 = vunpack.c.l.b16 %v238
      %v307 = vunpack.c.l.b16 %v239
      %v308 = vunpack.c.l.b16 %v240
      %v309 = vunpack.c.l.b16 %v241
      %v310 = vunpack.c.l.b16 %v242
      %v311 = vunpack.c.l.b16 %v243
      %v312 = vunpack.c.l.b16 %v244
      %v313 = vunpack.c.l.b16 %v245
      %v314 = vunpack.c.l.b16 %v246
      %v315 = vunpack.c.l.b16 %v247
      %v316 = vunpack.c.l.b16 %v248
      %v317 = vunpack.c.l.b16 %v249
      %v318 = vunpack.c.l.b16 %v250
      %v319 = vunpack.c.l.b16 %v251
      %v320 = vunpack.c.l.b16 %v252
      %v321 = vunpack.c.l.b16 %v253
      %v322 = vunpack.c.l.b16 %v254
      %v323 = vunpack.c.l.b16 %v255
      %v324 = vunpack.c.l.b16 %v256
      %v325 = vunpack.c.l.b16 %v257
      %v326 = vunpack.c.l.b16 %v258
      %v327 = vunpack.c.l.b16 %v259
      %v328 = vunpack.c.l.b16 %v260
      %v329 = vunpack.c.l.b16 %v261
      %v330 = vunpack.c.l.b16 %v262
      %v331 = vunpack.c.l.b16 %v263
      %v332 = vunpack.c.l.b16 %v264
      %v333 = vunpack.c.l.b16 %v265
      %v334 = vunpack.c.l.b16 %v266
      %v335 = vunpack.c.l.b16 %v267
      %v336 = vunpack.c.l.b16 %v268
      %v337 = vunpack.c.l.b16 %v269
      %v338 = vpack.c.b16 %v307, %v306
      %v339 = vpack.c.b16 %v309, %v308
      %v340 = vpack.c.b16 %v311, %v310
      %v341 = vpack.c.b16 %v313, %v312
      %v342 = vpack.c.b16 %v315, %v314
      %v343 = vpack.c.b16 %v317, %v316
      %v344 = vpack.c.b16 %v319, %v318
      %v345 = vpack.c.b16 %v321, %v320
      %v346 = vpack.c.b16 %v323, %v322
      %v347 = vpack.c.b16 %v325, %v324
      %v348 = vpack.c.b16 %v327, %v326
      %v349 = vpack.c.b16 %v329, %v328
      %v350 = vpack.c.b16 %v331, %v330
      %v351 = vpack.c.b16 %v333, %v332
      %v352 = vpack.c.b16 %v335, %v334
      %v353 = vpack.c.b16 %v337, %v336
      %v358 = vunpack.c.l.b16 %v270
      %v359 = vunpack.c.l.b16 %v271
      %v360 = vunpack.c.l.b16 %v272
      %v361 = vunpack.c.l.b16 %v273
      %v362 = vpack.c.b16 %v359, %v358
      %v363 = vpack.c.b16 %v361, %v360
      %vm365 = vcmask 220160
      %v367 = vsel %vm365, %v338, 0
      %v370 = vsel %vm365, %v339, 0
      %v373 = vsel %vm365, %v340, 0
      %v376 = vsel %vm365, %v341, 0
      %v379 = vsel %vm365, %v342, 0
      %v382 = vsel %vm365, %v343, 0
      %v385 = vsel %vm365, %v344, 0
      %v388 = vsel %vm365, %v345, 0
      %v391 = vsel %vm365, %v346, 0
      %v394 = vsel %vm365, %v347, 0
      %v397 = vsel %vm365, %v348, 0
      %v400 = vsel %vm365, %v349, 0
      %v403 = vsel %vm365, %v350, 0
      %v406 = vsel %vm365, %v351, 0
      %v409 = vsel %vm365, %v352, 0
      %v412 = vsel %vm365, %v353, 0
      %vm414 = vcmask 1044480
      %vm415 = vcmask 1045504
      %v416 = vsel %vm414, 4294967295, 65535
      %v417 = vsel %vm415, %v416, 0
      %v419 = vand.u32 %v363, %v417
      %421 = vmatpush.bf16.msra.mxu0 0
      %422 = vmatpush.bf16.msra.mxu0 0
      %423 = vmatpush.bf16.msra.mxu0 0
      %424 = vmatpush.bf16.msra.mxu0 0
      %425 = vmatpush.bf16.msra.mxu0 0
      %426 = vmatpush.bf16.msra.mxu0 0
      %427 = vmatpush.bf16.msra.mxu0 %v419
      %428 = vmatpush.bf16.msra.mxu0 %v362
      %429 = vmatmul.bf16.gmra.mxu0 %v367
      %v430 = vpop.f32.mrf.mxu0
      %v431 = vadd.f32 0.0, %v430
      %v432 = vpop.f32.mrf.mxu0
      %v433 = vadd.f32 0.0, %v432
      %434 = vmatmul.bf16.gmra.mxu0 %v370
      %v435 = vpop.f32.mrf.mxu0
      %v436 = vadd.f32 0.0, %v435
      %v437 = vpop.f32.mrf.mxu0
      %v438 = vadd.f32 0.0, %v437
      %439 = vmatmul.bf16.gmra.mxu0 %v373
      %v440 = vpop.f32.mrf.mxu0
      %v441 = vadd.f32 0.0, %v440
      %v442 = vpop.f32.mrf.mxu0
      %v443 = vadd.f32 0.0, %v442
      %444 = vmatmul.bf16.gmra.mxu0 %v376
      %v445 = vpop.f32.mrf.mxu0
      %v446 = vadd.f32 0.0, %v445
      %v447 = vpop.f32.mrf.mxu0
      %v448 = vadd.f32 0.0, %v447
      %449 = vmatmul.bf16.gmra.mxu0 %v379
      %v450 = vpop.f32.mrf.mxu0
      %v451 = vadd.f32 0.0, %v450
      %v452 = vpop.f32.mrf.mxu0
      %v453 = vadd.f32 0.0, %v452
      %454 = vmatmul.bf16.gmra.mxu0 %v382
      %v455 = vpop.f32.mrf.mxu0
      %v456 = vadd.f32 0.0, %v455
      %v457 = vpop.f32.mrf.mxu0
      %v458 = vadd.f32 0.0, %v457
      %459 = vmatmul.bf16.gmra.mxu0 %v385
      %v460 = vpop.f32.mrf.mxu0
      %v461 = vadd.f32 0.0, %v460
      %v462 = vpop.f32.mrf.mxu0
      %v463 = vadd.f32 0.0, %v462
      %464 = vmatmul.bf16.gmra.mxu0 %v388
      %v465 = vpop.f32.mrf.mxu0
      %v466 = vadd.f32 0.0, %v465
      %v467 = vpop.f32.mrf.mxu0
      %v468 = vadd.f32 0.0, %v467
      %469 = vmatmul.bf16.gmra.mxu0 %v391
      %v470 = vpop.f32.mrf.mxu0
      %v471 = vadd.f32 0.0, %v470
      %v472 = vpop.f32.mrf.mxu0
      %v473 = vadd.f32 0.0, %v472
      %474 = vmatmul.bf16.gmra.mxu0 %v394
      %v475 = vpop.f32.mrf.mxu0
      %v476 = vadd.f32 0.0, %v475
      %v477 = vpop.f32.mrf.mxu0
      %v478 = vadd.f32 0.0, %v477
      %479 = vmatmul.bf16.gmra.mxu0 %v397
      %v480 = vpop.f32.mrf.mxu0
      %v481 = vadd.f32 0.0, %v480
      %v482 = vpop.f32.mrf.mxu0
      %v483 = vadd.f32 0.0, %v482
      %484 = vmatmul.bf16.gmra.mxu0 %v400
      %v485 = vpop.f32.mrf.mxu0
      %v486 = vadd.f32 0.0, %v485
      %v487 = vpop.f32.mrf.mxu0
      %v488 = vadd.f32 0.0, %v487
      %489 = vmatmul.bf16.gmra.mxu0 %v403
      %v490 = vpop.f32.mrf.mxu0
      %v491 = vadd.f32 0.0, %v490
      %v492 = vpop.f32.mrf.mxu0
      %v493 = vadd.f32 0.0, %v492
      %494 = vmatmul.bf16.gmra.mxu0 %v406
      %v495 = vpop.f32.mrf.mxu0
      %v496 = vadd.f32 0.0, %v495
      %v497 = vpop.f32.mrf.mxu0
      %v498 = vadd.f32 0.0, %v497
      %499 = vmatmul.bf16.gmra.mxu0 %v409
      %v500 = vpop.f32.mrf.mxu0
      %v501 = vadd.f32 0.0, %v500
      %v502 = vpop.f32.mrf.mxu0
      %v503 = vadd.f32 0.0, %v502
      %504 = vmatmul.bf16.gmra.mxu0 %v412
      %v505 = vpop.f32.mrf.mxu0
      %v506 = vadd.f32 0.0, %v505
      %v507 = vpop.f32.mrf.mxu0
      %v508 = vadd.f32 0.0, %v507
      %509 = vdwg.mxu0
      %v510 = vld [vmem:[%s2] sm:$0x1]
      %v512 = vperm.slane %v510, 0
      %v514 = vmul.f32 %v431, %v512
      %v515 = vmul.f32 %v433, %v512
      %v516 = vmul.f32 %v436, %v512
      %v517 = vmul.f32 %v438, %v512
      %v518 = vmul.f32 %v441, %v512
      %v519 = vmul.f32 %v443, %v512
      %v520 = vmul.f32 %v446, %v512
      %v521 = vmul.f32 %v448, %v512
      %v522 = vmul.f32 %v451, %v512
      %v523 = vmul.f32 %v453, %v512
      %v524 = vmul.f32 %v456, %v512
      %v525 = vmul.f32 %v458, %v512
      %v526 = vmul.f32 %v461, %v512
      %v527 = vmul.f32 %v463, %v512
      %v528 = vmul.f32 %v466, %v512
      %v529 = vmul.f32 %v468, %v512
      %v530 = vmul.f32 %v471, %v512
      %v531 = vmul.f32 %v473, %v512
      %v532 = vmul.f32 %v476, %v512
      %v533 = vmul.f32 %v478, %v512
      %v534 = vmul.f32 %v481, %v512
      %v535 = vmul.f32 %v483, %v512
      %v536 = vmul.f32 %v486, %v512
      %v537 = vmul.f32 %v488, %v512
      %v538 = vmul.f32 %v491, %v512
      %v539 = vmul.f32 %v493, %v512
      %v540 = vmul.f32 %v496, %v512
      %v541 = vmul.f32 %v498, %v512
      %v542 = vmul.f32 %v501, %v512
      %v543 = vmul.f32 %v503, %v512
      %v544 = vmul.f32 %v506, %v512
      %v545 = vmul.f32 %v508, %v512
      %v546 = vld [vmem:[%s3] sm:$0x1]
      %v548 = vperm.slane %v546, 0
      %v550 = vadd.f32 %v514, %v548
      %v551 = vadd.f32 %v515, %v548
      %v552 = vadd.f32 %v516, %v548
      %v553 = vadd.f32 %v517, %v548
      %v554 = vadd.f32 %v518, %v548
      %v555 = vadd.f32 %v519, %v548
      %v556 = vadd.f32 %v520, %v548
      %v557 = vadd.f32 %v521, %v548
      %v558 = vadd.f32 %v522, %v548
      %v559 = vadd.f32 %v523, %v548
      %v560 = vadd.f32 %v524, %v548
      %v561 = vadd.f32 %v525, %v548
      %v562 = vadd.f32 %v526, %v548
      %v563 = vadd.f32 %v527, %v548
      %v564 = vadd.f32 %v528, %v548
      %v565 = vadd.f32 %v529, %v548
      %v566 = vadd.f32 %v530, %v548
      %v567 = vadd.f32 %v531, %v548
      %v568 = vadd.f32 %v532, %v548
      %v569 = vadd.f32 %v533, %v548
      %v570 = vadd.f32 %v534, %v548
      %v571 = vadd.f32 %v535, %v548
      %v572 = vadd.f32 %v536, %v548
      %v573 = vadd.f32 %v537, %v548
      %v574 = vadd.f32 %v538, %v548
      %v575 = vadd.f32 %v539, %v548
      %v576 = vadd.f32 %v540, %v548
      %v577 = vadd.f32 %v541, %v548
      %v578 = vadd.f32 %v542, %v548
      %v579 = vadd.f32 %v543, %v548
      %v580 = vadd.f32 %v544, %v548
      %v581 = vadd.f32 %v545, %v548
      %vm582 = vcmp.ge.f32.partialorder %v550, 0.0
      %vm583 = vcmp.ge.f32.partialorder %v551, 0.0
      %vm584 = vcmp.ge.f32.partialorder %v552, 0.0
      %vm585 = vcmp.ge.f32.partialorder %v553, 0.0
      %vm586 = vcmp.ge.f32.partialorder %v554, 0.0
      %vm587 = vcmp.ge.f32.partialorder %v555, 0.0
      %vm588 = vcmp.ge.f32.partialorder %v556, 0.0
      %vm589 = vcmp.ge.f32.partialorder %v557, 0.0
      %vm590 = vcmp.ge.f32.partialorder %v558, 0.0
      %vm591 = vcmp.ge.f32.partialorder %v559, 0.0
      %vm592 = vcmp.ge.f32.partialorder %v560, 0.0
      %vm593 = vcmp.ge.f32.partialorder %v561, 0.0
      %vm594 = vcmp.ge.f32.partialorder %v562, 0.0
      %vm595 = vcmp.ge.f32.partialorder %v563, 0.0
      %vm596 = vcmp.ge.f32.partialorder %v564, 0.0
      %vm597 = vcmp.ge.f32.partialorder %v565, 0.0
      %vm598 = vcmp.ge.f32.partialorder %v566, 0.0
      %vm599 = vcmp.ge.f32.partialorder %v567, 0.0
      %vm600 = vcmp.ge.f32.partialorder %v568, 0.0
      %vm601 = vcmp.ge.f32.partialorder %v569, 0.0
      %vm602 = vcmp.ge.f32.partialorder %v570, 0.0
      %vm603 = vcmp.ge.f32.partialorder %v571, 0.0
      %vm604 = vcmp.ge.f32.partialorder %v572, 0.0
      %vm605 = vcmp.ge.f32.partialorder %v573, 0.0
      %vm606 = vcmp.ge.f32.partialorder %v574, 0.0
      %vm607 = vcmp.ge.f32.partialorder %v575, 0.0
      %vm608 = vcmp.ge.f32.partialorder %v576, 0.0
      %vm609 = vcmp.ge.f32.partialorder %v577, 0.0
      %vm610 = vcmp.ge.f32.partialorder %v578, 0.0
      %vm611 = vcmp.ge.f32.partialorder %v579, 0.0
      %vm612 = vcmp.ge.f32.partialorder %v580, 0.0
      %vm613 = vcmp.ge.f32.partialorder %v581, 0.0
      %v614 = vmul.f32 %v550, 0.01
      %v615 = vmul.f32 %v551, 0.01
      %v616 = vmul.f32 %v552, 0.01
      %v617 = vmul.f32 %v553, 0.01
      %v618 = vmul.f32 %v554, 0.01
      %v619 = vmul.f32 %v555, 0.01
      %v620 = vmul.f32 %v556, 0.01
      %v621 = vmul.f32 %v557, 0.01
      %v622 = vmul.f32 %v558, 0.01
      %v623 = vmul.f32 %v559, 0.01
      %v624 = vmul.f32 %v560, 0.01
      %v625 = vmul.f32 %v561, 0.01
      %v626 = vmul.f32 %v562, 0.01
      %v627 = vmul.f32 %v563, 0.01
      %v628 = vmul.f32 %v564, 0.01
      %v629 = vmul.f32 %v565, 0.01
      %v630 = vmul.f32 %v566, 0.01
      %v631 = vmul.f32 %v567, 0.01
      %v632 = vmul.f32 %v568, 0.01
      %v633 = vmul.f32 %v569, 0.01
      %v634 = vmul.f32 %v570, 0.01
      %v635 = vmul.f32 %v571, 0.01
      %v636 = vmul.f32 %v572, 0.01
      %v637 = vmul.f32 %v573, 0.01
      %v638 = vmul.f32 %v574, 0.01
      %v639 = vmul.f32 %v575, 0.01
      %v640 = vmul.f32 %v576, 0.01
      %v641 = vmul.f32 %v577, 0.01
      %v642 = vmul.f32 %v578, 0.01
      %v643 = vmul.f32 %v579, 0.01
      %v644 = vmul.f32 %v580, 0.01
      %v645 = vmul.f32 %v581, 0.01
      %v646 = vsel %vm582, %v550, %v614
      %v647 = vsel %vm583, %v551, %v615
      %v648 = vsel %vm584, %v552, %v616
      %v649 = vsel %vm585, %v553, %v617
      %v650 = vsel %vm586, %v554, %v618
      %v651 = vsel %vm587, %v555, %v619
      %v652 = vsel %vm588, %v556, %v620
      %v653 = vsel %vm589, %v557, %v621
      %v654 = vsel %vm590, %v558, %v622
      %v655 = vsel %vm591, %v559, %v623
      %v656 = vsel %vm592, %v560, %v624
      %v657 = vsel %vm593, %v561, %v625
      %v658 = vsel %vm594, %v562, %v626
      %v659 = vsel %vm595, %v563, %v627
      %v660 = vsel %vm596, %v564, %v628
      %v661 = vsel %vm597, %v565, %v629
      %v662 = vsel %vm598, %v566, %v630
      %v663 = vsel %vm599, %v567, %v631
      %v664 = vsel %vm600, %v568, %v632
      %v665 = vsel %vm601, %v569, %v633
      %v666 = vsel %vm602, %v570, %v634
      %v667 = vsel %vm603, %v571, %v635
      %v668 = vsel %vm604, %v572, %v636
      %v669 = vsel %vm605, %v573, %v637
      %v670 = vsel %vm606, %v574, %v638
      %v671 = vsel %vm607, %v575, %v639
      %v672 = vsel %vm608, %v576, %v640
      %v673 = vsel %vm609, %v577, %v641
      %v674 = vsel %vm610, %v578, %v642
      %v675 = vsel %vm611, %v579, %v643
      %v676 = vsel %vm612, %v580, %v644
      %v677 = vsel %vm613, %v581, %v645
      %v678 = vpack.c.bf16 %v646, %v646
      %v679 = vpack.c.bf16 %v647, %v647
      %v680 = vpack.c.bf16 %v648, %v648
      %v681 = vpack.c.bf16 %v649, %v649
      %v682 = vpack.c.bf16 %v650, %v650
      %v683 = vpack.c.bf16 %v651, %v651
      %v684 = vpack.c.bf16 %v652, %v652
      %v685 = vpack.c.bf16 %v653, %v653
      %v686 = vpack.c.bf16 %v654, %v654
      %v687 = vpack.c.bf16 %v655, %v655
      %v688 = vpack.c.bf16 %v656, %v656
      %v689 = vpack.c.bf16 %v657, %v657
      %v690 = vpack.c.bf16 %v658, %v658
      %v691 = vpack.c.bf16 %v659, %v659
      %v692 = vpack.c.bf16 %v660, %v660
      %v693 = vpack.c.bf16 %v661, %v661
      %v694 = vpack.c.bf16 %v662, %v662
      %v695 = vpack.c.bf16 %v663, %v663
      %v696 = vpack.c.bf16 %v664, %v664
      %v697 = vpack.c.bf16 %v665, %v665
      %v698 = vpack.c.bf16 %v666, %v666
      %v699 = vpack.c.bf16 %v667, %v667
      %v700 = vpack.c.bf16 %v668, %v668
      %v701 = vpack.c.bf16 %v669, %v669
      %v702 = vpack.c.bf16 %v670, %v670
      %v703 = vpack.c.bf16 %v671, %v671
      %v704 = vpack.c.bf16 %v672, %v672
      %v705 = vpack.c.bf16 %v673, %v673
      %v706 = vpack.c.bf16 %v674, %v674
      %v707 = vpack.c.bf16 %v675, %v675
      %v708 = vpack.c.bf16 %v676, %v676
      %v709 = vpack.c.bf16 %v677, %v677
      %vm710 = vcmask 125952
      %711 = vst.msk [vmem:[%s235] sm:$0xf] %vm710, %v678
      %712 = vst.msk [vmem:[%s235 + $0x4] sm:$0xf] %vm710, %v679
      %713 = vst.msk [vmem:[%s235 + $0x8] sm:$0xf] %vm710, %v680
      %714 = vst.msk [vmem:[%s235 + $0xc] sm:$0xf] %vm710, %v681
      %715 = vst.msk [vmem:[%s235 + $0x10] sm:$0xf] %vm710, %v682
      %716 = vst.msk [vmem:[%s235 + $0x14] sm:$0xf] %vm710, %v683
      %717 = vst.msk [vmem:[%s235 + $0x18] sm:$0xf] %vm710, %v684
      %718 = vst.msk [vmem:[%s235 + $0x1c] sm:$0xf] %vm710, %v685
      %719 = vst.msk [vmem:[%s235 + $0x20] sm:$0xf] %vm710, %v686
      %720 = vst.msk [vmem:[%s235 + $0x24] sm:$0xf] %vm710, %v687
      %721 = vst.msk [vmem:[%s235 + $0x28] sm:$0xf] %vm710, %v688
      %722 = vst.msk [vmem:[%s235 + $0x2c] sm:$0xf] %vm710, %v689
      %723 = vst.msk [vmem:[%s235 + $0x30] sm:$0xf] %vm710, %v690
      %724 = vst.msk [vmem:[%s235 + $0x34] sm:$0xf] %vm710, %v691
      %725 = vst.msk [vmem:[%s235 + $0x38] sm:$0xf] %vm710, %v692
      %726 = vst.msk [vmem:[%s235 + $0x3c] sm:$0xf] %vm710, %v693
      %727 = vst.msk [vmem:[%s235 + $0x40] sm:$0xf] %vm710, %v694
      %728 = vst.msk [vmem:[%s235 + $0x44] sm:$0xf] %vm710, %v695
      %729 = vst.msk [vmem:[%s235 + $0x48] sm:$0xf] %vm710, %v696
      %730 = vst.msk [vmem:[%s235 + $0x4c] sm:$0xf] %vm710, %v697
      %731 = vst.msk [vmem:[%s235 + $0x50] sm:$0xf] %vm710, %v698
      %732 = vst.msk [vmem:[%s235 + $0x54] sm:$0xf] %vm710, %v699
      %733 = vst.msk [vmem:[%s235 + $0x58] sm:$0xf] %vm710, %v700
      %734 = vst.msk [vmem:[%s235 + $0x5c] sm:$0xf] %vm710, %v701
      %735 = vst.msk [vmem:[%s235 + $0x60] sm:$0xf] %vm710, %v702
      %736 = vst.msk [vmem:[%s235 + $0x64] sm:$0xf] %vm710, %v703
      %737 = vst.msk [vmem:[%s235 + $0x68] sm:$0xf] %vm710, %v704
      %738 = vst.msk [vmem:[%s235 + $0x6c] sm:$0xf] %vm710, %v705
      %739 = vst.msk [vmem:[%s235 + $0x70] sm:$0xf] %vm710, %v706
      %740 = vst.msk [vmem:[%s235 + $0x74] sm:$0xf] %vm710, %v707
      %741 = vst.msk [vmem:[%s235 + $0x78] sm:$0xf] %vm710, %v708
      %742 = vst.msk [vmem:[%s235 + $0x7c] sm:$0xf] %vm710, %v709
      %s743 = smul.u32 32, %s20
      %p744 = scmp.lt.s32.totalorder %s19, 1
      %s745 = scalar_select %p744, %s19, 1
      %p746 = scmp.lt.s32.totalorder %s743, 31
      %s747 = scalar_select %p746, %s743, 31
      %s748 = smul.addr %s745, 32
      %s749 = sadd.s32 %s747, %s748
      %s750 = smul.addr %s749, 4
      %s751 = scalar_lea.vmem %s4, %s750
      // Predicated region
      $region37: #{conv_with_conn_forward.14} parent=35 // pred_check
        %p752 = pneg %p138
      $region38: #{conv_with_conn_forward.14} parent=35 // pred_check_branch
        %754 = sbr.rel (%p752) target = $region40
      $region39: #{conv_with_conn_forward.14} parent=35 // pred_region
        %s755 = smul.u32 32, %s20
      $region40: #{conv_with_conn_forward.14} parent=35 // pred_fallthru
        _
    $region36: #{conv_with_conn_forward.14} parent=5 // pred_fallthru
      _
    %p756 = scmp.le.s32.totalorder 2, %s10
    // Predicated region
    $region41: #{conv_with_conn_forward.14} parent=5 // pred_check
      %p757 = pneg %p756
    $region42: #{conv_with_conn_forward.14} parent=5 // pred_check_branch
      %759 = sbr.rel (%p757) target = $region44
    $region43: #{conv_with_conn_forward.14} parent=5 // pred_region
      %s760 = ssub.s32 %s10, 2
      // Predicated region
      $region45: #{conv_with_conn_forward.14} parent=43 // pred_check
        %p761 = pneg %p144
      $region46: #{conv_with_conn_forward.14} parent=43 // pred_check_branch
        %763 = sbr.rel (%p761) target = $region48
      $region47: #{conv_with_conn_forward.14} parent=43 // pred_region
        %s764 = smul.u32 32, %s22
        %p765 = scmp.lt.s32.totalorder %s21, 1
        %s766 = scalar_select %p765, %s21, 1
        %p767 = scmp.lt.s32.totalorder %s764, 31
        %s768 = scalar_select %p767, %s764, 31
        %s769 = smul.addr %s766, 32
        %s770 = sadd.s32 %s768, %s769
        %s771 = smul.addr %s770, 4
        %s772 = scalar_lea.vmem %s4, %s771
      $region48: #{conv_with_conn_forward.14} parent=43 // pred_fallthru
        _
    $region44: #{conv_with_conn_forward.14} parent=5 // pred_fallthru
      _
  $region6: #{conv_with_conn_forward.14} parent=0 // loop_footer
    %s14 = sadd.s32 1, %s10
  $region7: #{conv_with_conn_forward.14} parent=0 // loop_footer_branch
    %9 = sbr.rel target = $region3
  $region8: #{conv_with_conn_forward.14} parent=0 // loop_exit
    _

// kernel: conv_with_conn_forward.16
$region0: #{conv_with_conn_forward.16}
  #allocation0 [shape = 'u32[]', space=smem, size = 0x4, offset = 0x4, fixed_abs, tag = 'smem constant byte address 0x4 - core index']
  #allocation1 [shape = 'u32[72,128]{1,0:T(1,128)}', space=vmem, size = 0x9000, scoped, tag = 'internal scratch']
  %s0 = inlined_call_operand.vmem [shape: bf16[2,4,64,16], index: 0, kind: input, shape index: {}]
  %s1 = inlined_call_operand.vmem [shape: bf16[2,64,16], index: 1, kind: output, shape index: {}]
  %s2 = sld [smem:[#allocation0]]
  $region37: #{conv_with_conn_forward.16} parent=0
    _
  %s4 = ssub.s32 1, %s2
  %s5 = scalar_select 0, %s4, %s2
  loop: start=0, step=1, limit=4
  $region2: #{conv_with_conn_forward.16} parent=0 // loop_pre_header
    _
  $region3: #{conv_with_conn_forward.16} parent=0 // loop_header
    %s7 = sphi 0, %s11
    %p8 = scmp.ge.s32.totalorder %s7, 4
    %s17 = sphi 0, %s19
    %s20 = sphi 0, %s17
    %s21 = sphi 0, %s20
    %s37 = sphi 0, %s21
    %s43 = sphi 0, %s45
    %s46 = sphi 0, %s43
    %s47 = sphi 0, %s46
    %s63 = sphi 0, %s47
  $region4: #{conv_with_conn_forward.16} parent=0 // loop_header_branch
    %10 = sbr.rel (%p8) target = $region8
  $region5: #{conv_with_conn_forward.16} parent=0 // loop_body
    %s12 = ssub.s32 %s7, 1
    %s13 = ssub.s32 %s7, 2
    %s14 = sadd.s32 %s7, 1
    %s15 = ssub.s32 %s7, %s14
    %p16 = scmp.eq.s32.totalorder %s15, 0
    %s18 = sadd.s32 %s17, 1
    %s19 = scalar_select %p16, %s17, %s18
    %p22 = pneg %p16
    %p23 = scmp.eq.s32.totalorder %s7, 1
    %p24 = por %p22, %p23
    %p25 = scmp.ne.s32.totalorder %s17, %s20
    %p26 = scmp.eq.s32.totalorder %s7, 0
    %p27 = por %p25, %p26
    %p28 = scmp.ne.s32.totalorder %s17, %s20
    %p29 = scmp.eq.s32.totalorder %s12, 1
    %p30 = por %p28, %p29
    %p31 = scmp.ne.s32.totalorder %s20, %s21
    %p32 = scmp.eq.s32.totalorder %s12, 0
    %p33 = por %p31, %p32
    %p34 = scmp.ne.s32.totalorder %s20, %s21
    %p35 = scmp.eq.s32.totalorder %s13, 1
    %p36 = por %p34, %p35
    %p38 = scmp.ne.s32.totalorder %s21, %s37
    %p39 = scmp.eq.s32.totalorder %s13, 0
    %p40 = por %p38, %p39
    %s41 = ssub.s32 %s7, %s14
    %p42 = scmp.eq.s32.totalorder %s41, 0
    %s44 = sadd.s32 %s43, 1
    %s45 = scalar_select %p42, %s43, %s44
    %p48 = pneg %p42
    %p49 = scmp.eq.s32.totalorder %s7, 1
    %p50 = por %p48, %p49
    %p51 = scmp.ne.s32.totalorder %s43, %s46
    %p52 = scmp.eq.s32.totalorder %s7, 0
    %p53 = por %p51, %p52
    %p54 = scmp.ne.s32.totalorder %s43, %s46
    %p55 = scmp.eq.s32.totalorder %s12, 1
    %p56 = por %p54, %p55
    %p57 = scmp.ne.s32.totalorder %s46, %s47
    %p58 = scmp.eq.s32.totalorder %s12, 0
    %p59 = por %p57, %p58
    %p60 = scmp.ne.s32.totalorder %s46, %s47
    %p61 = scmp.eq.s32.totalorder %s13, 1
    %p62 = por %p60, %p61
    %p64 = scmp.ne.s32.totalorder %s47, %s63
    %p65 = scmp.eq.s32.totalorder %s13, 0
    %p66 = por %p64, %p65
    %p67 = scmp.le.s32.totalorder 1, %s7
    %p68 = scmp.lt.s32.totalorder %s7, 3
    %p69 = pnand %p67, %p68
    %p70 = pneg %p69
    // Predicated region
    $region9: #{conv_with_conn_forward.16} parent=5 // pred_check
      _
    $region10: #{conv_with_conn_forward.16} parent=5 // pred_check_branch
      %72 = sbr.rel (%p69) target = $region12
    $region11: #{conv_with_conn_forward.16} parent=5 // pred_region
      %s73 = ssub.s32 %s7, 1
    $region12: #{conv_with_conn_forward.16} parent=5 // pred_fallthru
      _
    %p74 = scmp.lt.s32.totalorder %s7, 2
    // Predicated region
    $region13: #{conv_with_conn_forward.16} parent=5 // pred_check
      %p75 = pneg %p74
    $region14: #{conv_with_conn_forward.16} parent=5 // pred_check_branch
      %77 = sbr.rel (%p75) target = $region16
    $region15: #{conv_with_conn_forward.16} parent=5 // pred_region
      // Predicated region
      $region17: #{conv_with_conn_forward.16} parent=15 // pred_check
        %p78 = pneg %p27
      $region18: #{conv_with_conn_forward.16} parent=15 // pred_check_branch
        %80 = sbr.rel (%p78) target = $region20
      $region19: #{conv_with_conn_forward.16} parent=15 // pred_region
        %p81 = scmp.lt.s32.totalorder %s7, 1
        %s82 = scalar_select %p81, %s7, 1
        %s83 = smul.addr %s82, 32
        %s84 = smul.addr %s83, 4
        %s85 = scalar_lea.vmem %s0, %s84
      $region20: #{conv_with_conn_forward.16} parent=15 // pred_fallthru
        _
    $region16: #{conv_with_conn_forward.16} parent=5 // pred_fallthru
      _
    %p86 = scmp.le.s32.totalorder 1, %s7
    %p87 = scmp.lt.s32.totalorder %s7, 3
    %p88 = pnand %p86, %p87
    %p89 = pneg %p88
    // Predicated region
    $region21: #{conv_with_conn_forward.16} parent=5 // pred_check
      _
    $region22: #{conv_with_conn_forward.16} parent=5 // pred_check_branch
      %91 = sbr.rel (%p88) target = $region24
    $region23: #{conv_with_conn_forward.16} parent=5 // pred_region
      %s92 = ssub.s32 %s7, 1
      %p93 = scmp.lt.s32.totalorder %s12, 1
      %s94 = scalar_select %p93, %s12, 1
      %s95 = smul.addr %s94, 32
      %s96 = smul.addr %s95, 4
      %s97 = scalar_lea.vmem %s0, %s96
      %p98 = pneg %p33
      %p99 = pneg %p30
      %p100 = pneg %p59
      %p101 = pneg %p56
      %p102 = scmp.lt.s32.totalorder %s12, 1
      %s103 = scalar_select %p102, %s12, 1
      %s104 = smul.addr %s103, 8
      %s105 = smul.addr %s104, 4
      %s106 = scalar_lea.vmem %s1, %s105
      %p107 = scmp.lt.s32.totalorder %s12, 1
      %s108 = scalar_select %p107, %s12, 1
      %s109 = smul.addr %s108, 32
      %s110 = smul.addr %s109, 4
      %s111 = scalar_lea.vmem %s0, %s110
      %p112 = scmp.lt.s32.totalorder %s12, 1
      %s113 = scalar_select %p112, %s12, 1
      %s114 = smul.addr %s113, 8
      %s115 = smul.addr %s114, 4
      %s116 = scalar_lea.vmem %s1, %s115
      %v117 = vld [vmem:[%s111] sm:$0xf]
      %v118 = vld [vmem:[%s111 + $0x4] sm:$0xf]
      %v119 = vld [vmem:[%s111 + $0x8] sm:$0xf]
      %v120 = vld [vmem:[%s111 + $0xc] sm:$0xf]
      %v121 = vld [vmem:[%s111 + $0x10] sm:$0xf]
      %v122 = vld [vmem:[%s111 + $0x14] sm:$0xf]
      %v123 = vld [vmem:[%s111 + $0x18] sm:$0xf]
      %v124 = vld [vmem:[%s111 + $0x1c] sm:$0xf]
      %s125 = scalar_lea.vmem %s111, 32
      %v126 = vld [vmem:[%s125] sm:$0xf]
      %v127 = vld [vmem:[%s125 + $0x4] sm:$0xf]
      %v128 = vld [vmem:[%s125 + $0x8] sm:$0xf]
      %v129 = vld [vmem:[%s125 + $0xc] sm:$0xf]
      %v130 = vld [vmem:[%s125 + $0x10] sm:$0xf]
      %v131 = vld [vmem:[%s125 + $0x14] sm:$0xf]
      %v132 = vld [vmem:[%s125 + $0x18] sm:$0xf]
      %v133 = vld [vmem:[%s125 + $0x1c] sm:$0xf]
      %v134 = vunpack.c.l.bf16 %v117
      %v135 = vunpack.c.l.bf16 %v118
      %v136 = vunpack.c.l.bf16 %v119
      %v137 = vunpack.c.l.bf16 %v120
      %v138 = vunpack.c.l.bf16 %v121
      %v139 = vunpack.c.l.bf16 %v122
      %v140 = vunpack.c.l.bf16 %v123
      %v141 = vunpack.c.l.bf16 %v124
      %v142 = vunpack.c.l.bf16 %v126
      %v143 = vunpack.c.l.bf16 %v127
      %v144 = vunpack.c.l.bf16 %v128
      %v145 = vunpack.c.l.bf16 %v129
      %v146 = vunpack.c.l.bf16 %v130
      %v147 = vunpack.c.l.bf16 %v131
      %v148 = vunpack.c.l.bf16 %v132
      %v149 = vunpack.c.l.bf16 %v133
      %v150 = vmax.f32 %v134, %v142
      %v151 = vmax.f32 %v135, %v143
      %v152 = vmax.f32 %v136, %v144
      %v153 = vmax.f32 %v137, %v145
      %v154 = vmax.f32 %v138, %v146
      %v155 = vmax.f32 %v139, %v147
      %v156 = vmax.f32 %v140, %v148
      %v157 = vmax.f32 %v141, %v149
      %v158 = vpack.c.bf16 %v150, %v150
      %v159 = vpack.c.bf16 %v151, %v151
      %v160 = vpack.c.bf16 %v152, %v152
      %v161 = vpack.c.bf16 %v153, %v153
      %v162 = vpack.c.bf16 %v154, %v154
      %v163 = vpack.c.bf16 %v155, %v155
      %v164 = vpack.c.bf16 %v156, %v156
      %v165 = vpack.c.bf16 %v157, %v157
      %s166 = scalar_lea.vmem %s111, 64
      %v167 = vld [vmem:[%s166] sm:$0xf]
      %v168 = vld [vmem:[%s166 + $0x4] sm:$0xf]
      %v169 = vld [vmem:[%s166 + $0x8] sm:$0xf]
      %v170 = vld [vmem:[%s166 + $0xc] sm:$0xf]
      %v171 = vld [vmem:[%s166 + $0x10] sm:$0xf]
      %v172 = vld [vmem:[%s166 + $0x14] sm:$0xf]
      %v173 = vld [vmem:[%s166 + $0x18] sm:$0xf]
      %v174 = vld [vmem:[%s166 + $0x1c] sm:$0xf]
      %s175 = scalar_lea.vmem %s111, 96
      %v176 = vld [vmem:[%s175] sm:$0xf]
      %v177 = vld [vmem:[%s175 + $0x4] sm:$0xf]
      %v178 = vld [vmem:[%s175 + $0x8] sm:$0xf]
      %v179 = vld [vmem:[%s175 + $0xc] sm:$0xf]
      %v180 = vld [vmem:[%s175 + $0x10] sm:$0xf]
      %v181 = vld [vmem:[%s175 + $0x14] sm:$0xf]
      %v182 = vld [vmem:[%s175 + $0x18] sm:$0xf]
      %v183 = vld [vmem:[%s175 + $0x1c] sm:$0xf]
      %v184 = vunpack.c.l.bf16 %v167
      %v185 = vunpack.c.l.bf16 %v168
      %v186 = vunpack.c.l.bf16 %v169
      %v187 = vunpack.c.l.bf16 %v170
      %v188 = vunpack.c.l.bf16 %v171
      %v189 = vunpack.c.l.bf16 %v172
      %v190 = vunpack.c.l.bf16 %v173
      %v191 = vunpack.c.l.bf16 %v174
      %v192 = vunpack.c.l.bf16 %v176
      %v193 = vunpack.c.l.bf16 %v177
      %v194 = vunpack.c.l.bf16 %v178
      %v195 = vunpack.c.l.bf16 %v179
      %v196 = vunpack.c.l.bf16 %v180
      %v197 = vunpack.c.l.bf16 %v181
      %v198 = vunpack.c.l.bf16 %v182
      %v199 = vunpack.c.l.bf16 %v183
      %v200 = vmax.f32 %v184, %v192
      %v201 = vmax.f32 %v185, %v193
      %v202 = vmax.f32 %v186, %v194
      %v203 = vmax.f32 %v187, %v195
      %v204 = vmax.f32 %v188, %v196
      %v205 = vmax.f32 %v189, %v197
      %v206 = vmax.f32 %v190, %v198
      %v207 = vmax.f32 %v191, %v199
      %v208 = vpack.c.bf16 %v200, %v200
      %v209 = vpack.c.bf16 %v201, %v201
      %v210 = vpack.c.bf16 %v202, %v202
      %v211 = vpack.c.bf16 %v203, %v203
      %v212 = vpack.c.bf16 %v204, %v204
      %v213 = vpack.c.bf16 %v205, %v205
      %v214 = vpack.c.bf16 %v206, %v206
      %v215 = vpack.c.bf16 %v207, %v207
      %v216 = vunpack.c.l.bf16 %v158
      %v217 = vunpack.c.l.bf16 %v159
      %v218 = vunpack.c.l.bf16 %v160
      %v219 = vunpack.c.l.bf16 %v161
      %v220 = vunpack.c.l.bf16 %v162
      %v221 = vunpack.c.l.bf16 %v163
      %v222 = vunpack.c.l.bf16 %v164
      %v223 = vunpack.c.l.bf16 %v165
      %v224 = vunpack.c.l.bf16 %v208
      %v225 = vunpack.c.l.bf16 %v209
      %v226 = vunpack.c.l.bf16 %v210
      %v227 = vunpack.c.l.bf16 %v211
      %v228 = vunpack.c.l.bf16 %v212
      %v229 = vunpack.c.l.bf16 %v213
      %v230 = vunpack.c.l.bf16 %v214
      %v231 = vunpack.c.l.bf16 %v215
      %v232 = vmax.f32 %v216, %v224
      %v233 = vmax.f32 %v217, %v225
      %v234 = vmax.f32 %v218, %v226
      %v235 = vmax.f32 %v219, %v227
      %v236 = vmax.f32 %v220, %v228
      %v237 = vmax.f32 %v221, %v229
      %v238 = vmax.f32 %v222, %v230
      %v239 = vmax.f32 %v223, %v231
      %v240 = vpack.c.bf16 %v232, %v232
      %v241 = vpack.c.bf16 %v233, %v233
      %v242 = vpack.c.bf16 %v234, %v234
      %v243 = vpack.c.bf16 %v235, %v235
      %v244 = vpack.c.bf16 %v236, %v236
      %v245 = vpack.c.bf16 %v237, %v237
      %v246 = vpack.c.bf16 %v238, %v238
      %v247 = vpack.c.bf16 %v239, %v239
      %vm248 = vcmask 125952
      %249 = vst.msk [vmem:[%s116] sm:$0xf] %vm248, %v240
      %250 = vst.msk [vmem:[%s116 + $0x4] sm:$0xf] %vm248, %v241
      %251 = vst.msk [vmem:[%s116 + $0x8] sm:$0xf] %vm248, %v242
      %252 = vst.msk [vmem:[%s116 + $0xc] sm:$0xf] %vm248, %v243
      %253 = vst.msk [vmem:[%s116 + $0x10] sm:$0xf] %vm248, %v244
      %254 = vst.msk [vmem:[%s116 + $0x14] sm:$0xf] %vm248, %v245
      %255 = vst.msk [vmem:[%s116 + $0x18] sm:$0xf] %vm248, %v246
      %256 = vst.msk [vmem:[%s116 + $0x1c] sm:$0xf] %vm248, %v247
      %p257 = scmp.lt.s32.totalorder %s12, 1
      %s258 = scalar_select %p257, %s12, 1
      %s259 = smul.addr %s258, 8
      %s260 = smul.addr %s259, 4
      %s261 = scalar_lea.vmem %s1, %s260
      // Predicated region
      $region25: #{conv_with_conn_forward.16} parent=23 // pred_check
        %p262 = pneg %p56
      $region26: #{conv_with_conn_forward.16} parent=23 // pred_check_branch
        %264 = sbr.rel (%p262) target = $region28
      $region27: #{conv_with_conn_forward.16} parent=23 // pred_region
        _
      $region28: #{conv_with_conn_forward.16} parent=23 // pred_fallthru
        _
    $region24: #{conv_with_conn_forward.16} parent=5 // pred_fallthru
      _
    %p265 = scmp.le.s32.totalorder 2, %s7
    // Predicated region
    $region29: #{conv_with_conn_forward.16} parent=5 // pred_check
      %p266 = pneg %p265
    $region30: #{conv_with_conn_forward.16} parent=5 // pred_check_branch
      %268 = sbr.rel (%p266) target = $region32
    $region31: #{conv_with_conn_forward.16} parent=5 // pred_region
      %s269 = ssub.s32 %s7, 2
      // Predicated region
      $region33: #{conv_with_conn_forward.16} parent=31 // pred_check
        %p270 = pneg %p62
      $region34: #{conv_with_conn_forward.16} parent=31 // pred_check_branch
        %272 = sbr.rel (%p270) target = $region36
      $region35: #{conv_with_conn_forward.16} parent=31 // pred_region
        %p273 = scmp.lt.s32.totalorder %s13, 1
        %s274 = scalar_select %p273, %s13, 1
        %s275 = smul.addr %s274, 8
        %s276 = smul.addr %s275, 4
        %s277 = scalar_lea.vmem %s1, %s276
      $region36: #{conv_with_conn_forward.16} parent=31 // pred_fallthru
        _
    $region32: #{conv_with_conn_forward.16} parent=5 // pred_fallthru
      _
  $region6: #{conv_with_conn_forward.16} parent=0 // loop_footer
    %s11 = sadd.s32 1, %s7
  $region7: #{conv_with_conn_forward.16} parent=0 // loop_footer_branch
    %6 = sbr.rel target = $region3
  $region8: #{conv_with_conn_forward.16} parent=0 // loop_exit
    _

// kernel: conv_with_conn_forward.15
$region0: #{conv_with_conn_forward.15}
  #allocation0 [shape = 'u32[]', space=smem, size = 0x4, offset = 0x4, fixed_abs, tag = 'smem constant byte address 0x4 - core index']
  #allocation1 [shape = 'u32[72,128]{1,0:T(1,128)}', space=vmem, size = 0x9000, scoped, tag = 'internal scratch']
  %s0 = inlined_call_operand.vmem [shape: bf16[2,256,144], index: 0, kind: input, shape index: {}]
  %s1 = inlined_call_operand.vmem [shape: bf16[144,16], index: 1, kind: input, shape index: {}]
  %s2 = inlined_call_operand.vmem [shape: f32[1,16], index: 2, kind: input, shape index: {}]
  %s3 = inlined_call_operand.vmem [shape: f32[1,16], index: 3, kind: input, shape index: {}]
  %s4 = inlined_call_operand.vmem [shape: bf16[2,256,16], index: 4, kind: output, shape index: {}]
  %s5 = sld [smem:[#allocation0]]
  $region49: #{conv_with_conn_forward.15} parent=0
    _
  %s7 = ssub.s32 1, %s5
  %s8 = scalar_select 0, %s7, %s5
  loop: start=0, step=1, limit=4
  $region2: #{conv_with_conn_forward.15} parent=0 // loop_pre_header
    _
  $region3: #{conv_with_conn_forward.15} parent=0 // loop_header
    %s10 = sphi 0, %s14
    %p11 = scmp.ge.s32.totalorder %s10, 4
    %s17 = sphi 0, %s29
    %s18 = sphi 0, %s25
    %s19 = sphi 0, %s17
    %s20 = sphi 0, %s18
    %s21 = sphi 0, %s19
    %s22 = sphi 0, %s20
    %s34 = sphi 0, %s36
    %s37 = sphi 0, %s34
    %s38 = sphi 0, %s37
    %s54 = sphi 0, %s38
    %s58 = sphi 0, %s58
    %s60 = sphi 0, %s58
    %s61 = sphi 0, %s60
    %s75 = sphi 0, %s61
    %s79 = sphi 0, %s79
    %s81 = sphi 0, %s79
    %s82 = sphi 0, %s81
    %s96 = sphi 0, %s82
    %s100 = sphi 0, %s100
    %s102 = sphi 0, %s100
    %s103 = sphi 0, %s102
    %s117 = sphi 0, %s103
    %s125 = sphi 0, %s127
    %s128 = sphi 0, %s125
    %s129 = sphi 0, %s128
    %s145 = sphi 0, %s129
  $region4: #{conv_with_conn_forward.15} parent=0 // loop_header_branch
    %13 = sbr.rel (%p11) target = $region8
  $region5: #{conv_with_conn_forward.15} parent=0 // loop_body
    %s15 = ssub.s32 %s10, 1
    %s16 = ssub.s32 %s10, 2
    %s23 = sadd.s32 1, %s18
    %p24 = scmp.ge.s32.totalorder %s23, 1
    %s25 = scalar_select %p24, 0, %s23
    %s26 = sadd.s32 1, %s17
    %s27 = scalar_select %p24, %s26, %s17
    %p28 = scmp.ge.s32.totalorder %s27, 2
    %s29 = scalar_select %p28, 0, %s27
    %s30 = ssub.s32 %s17, %s29
    %s31 = ssub.s32 %s18, %s25
    %s32 = sor.u32 %s30, %s31
    %p33 = scmp.eq.s32.totalorder %s32, 0
    %s35 = sadd.s32 %s34, 1
    %s36 = scalar_select %p33, %s34, %s35
    %p39 = pneg %p33
    %p40 = scmp.eq.s32.totalorder %s10, 1
    %p41 = por %p39, %p40
    %p42 = scmp.ne.s32.totalorder %s34, %s37
    %p43 = scmp.eq.s32.totalorder %s10, 0
    %p44 = por %p42, %p43
    %p45 = scmp.ne.s32.totalorder %s34, %s37
    %p46 = scmp.eq.s32.totalorder %s15, 1
    %p47 = por %p45, %p46
    %p48 = scmp.ne.s32.totalorder %s37, %s38
    %p49 = scmp.eq.s32.totalorder %s15, 0
    %p50 = por %p48, %p49
    %p51 = scmp.ne.s32.totalorder %s37, %s38
    %p52 = scmp.eq.s32.totalorder %s16, 1
    %p53 = por %p51, %p52
    %p55 = scmp.ne.s32.totalorder %s38, %s54
    %p56 = scmp.eq.s32.totalorder %s16, 0
    %p57 = por %p55, %p56
    %s59 = sadd.s32 %s58, 1
    %p62 = scmp.eq.s32.totalorder %s10, 1
    %p63 = scmp.ne.s32.totalorder %s58, %s60
    %p64 = scmp.eq.s32.totalorder %s10, 0
    %p65 = por %p63, %p64
    %p66 = scmp.ne.s32.totalorder %s58, %s60
    %p67 = scmp.eq.s32.totalorder %s15, 1
    %p68 = por %p66, %p67
    %p69 = scmp.ne.s32.totalorder %s60, %s61
    %p70 = scmp.eq.s32.totalorder %s15, 0
    %p71 = por %p69, %p70
    %p72 = scmp.ne.s32.totalorder %s60, %s61
    %p73 = scmp.eq.s32.totalorder %s16, 1
    %p74 = por %p72, %p73
    %p76 = scmp.ne.s32.totalorder %s61, %s75
    %p77 = scmp.eq.s32.totalorder %s16, 0
    %p78 = por %p76, %p77
    %s80 = sadd.s32 %s79, 1
    %p83 = scmp.eq.s32.totalorder %s10, 1
    %p84 = scmp.ne.s32.totalorder %s79, %s81
    %p85 = scmp.eq.s32.totalorder %s10, 0
    %p86 = por %p84, %p85
    %p87 = scmp.ne.s32.totalorder %s79, %s81
    %p88 = scmp.eq.s32.totalorder %s15, 1
    %p89 = por %p87, %p88
    %p90 = scmp.ne.s32.totalorder %s81, %s82
    %p91 = scmp.eq.s32.totalorder %s15, 0
    %p92 = por %p90, %p91
    %p93 = scmp.ne.s32.totalorder %s81, %s82
    %p94 = scmp.eq.s32.totalorder %s16, 1
    %p95 = por %p93, %p94
    %p97 = scmp.ne.s32.totalorder %s82, %s96
    %p98 = scmp.eq.s32.totalorder %s16, 0
    %p99 = por %p97, %p98
    %s101 = sadd.s32 %s100, 1
    %p104 = scmp.eq.s32.totalorder %s10, 1
    %p105 = scmp.ne.s32.totalorder %s100, %s102
    %p106 = scmp.eq.s32.totalorder %s10, 0
    %p107 = por %p105, %p106
    %p108 = scmp.ne.s32.totalorder %s100, %s102
    %p109 = scmp.eq.s32.totalorder %s15, 1
    %p110 = por %p108, %p109
    %p111 = scmp.ne.s32.totalorder %s102, %s103
    %p112 = scmp.eq.s32.totalorder %s15, 0
    %p113 = por %p111, %p112
    %p114 = scmp.ne.s32.totalorder %s102, %s103
    %p115 = scmp.eq.s32.totalorder %s16, 1
    %p116 = por %p114, %p115
    %p118 = scmp.ne.s32.totalorder %s103, %s117
    %p119 = scmp.eq.s32.totalorder %s16, 0
    %p120 = por %p118, %p119
    %s121 = ssub.s32 %s17, %s29
    %s122 = ssub.s32 %s18, %s25
    %s123 = sor.u32 %s121, %s122
    %p124 = scmp.eq.s32.totalorder %s123, 0
    %s126 = sadd.s32 %s125, 1
    %s127 = scalar_select %p124, %s125, %s126
    %p130 = pneg %p124
    %p131 = scmp.eq.s32.totalorder %s10, 1
    %p132 = por %p130, %p131
    %p133 = scmp.ne.s32.totalorder %s125, %s128
    %p134 = scmp.eq.s32.totalorder %s10, 0
    %p135 = por %p133, %p134
    %p136 = scmp.ne.s32.totalorder %s125, %s128
    %p137 = scmp.eq.s32.totalorder %s15, 1
    %p138 = por %p136, %p137
    %p139 = scmp.ne.s32.totalorder %s128, %s129
    %p140 = scmp.eq.s32.totalorder %s15, 0
    %p141 = por %p139, %p140
    %p142 = scmp.ne.s32.totalorder %s128, %s129
    %p143 = scmp.eq.s32.totalorder %s16, 1
    %p144 = por %p142, %p143
    %p146 = scmp.ne.s32.totalorder %s129, %s145
    %p147 = scmp.eq.s32.totalorder %s16, 0
    %p148 = por %p146, %p147
    %p149 = scmp.le.s32.totalorder 1, %s10
    %p150 = scmp.lt.s32.totalorder %s10, 3
    %p151 = pnand %p149, %p150
    %p152 = pneg %p151
    // Predicated region
    $region9: #{conv_with_conn_forward.15} parent=5 // pred_check
      _
    $region10: #{conv_with_conn_forward.15} parent=5 // pred_check_branch
      %154 = sbr.rel (%p151) target = $region12
    $region11: #{conv_with_conn_forward.15} parent=5 // pred_region
      %s155 = ssub.s32 %s10, 1
      // Predicated region
      $region13: #{conv_with_conn_forward.15} parent=11 // pred_check
        %p156 = pneg %p71
      $region14: #{conv_with_conn_forward.15} parent=11 // pred_check_branch
        %158 = sbr.rel (%p156) target = $region16
      $region15: #{conv_with_conn_forward.15} parent=11 // pred_region
        _
      $region16: #{conv_with_conn_forward.15} parent=11 // pred_fallthru
        _
      // Predicated region
      $region17: #{conv_with_conn_forward.15} parent=11 // pred_check
        %p159 = pneg %p92
      $region18: #{conv_with_conn_forward.15} parent=11 // pred_check_branch
        %161 = sbr.rel (%p159) target = $region20
      $region19: #{conv_with_conn_forward.15} parent=11 // pred_region
        _
      $region20: #{conv_with_conn_forward.15} parent=11 // pred_fallthru
        _
      // Predicated region
      $region21: #{conv_with_conn_forward.15} parent=11 // pred_check
        %p162 = pneg %p113
      $region22: #{conv_with_conn_forward.15} parent=11 // pred_check_branch
        %164 = sbr.rel (%p162) target = $region24
      $region23: #{conv_with_conn_forward.15} parent=11 // pred_region
        _
      $region24: #{conv_with_conn_forward.15} parent=11 // pred_fallthru
        _
    $region12: #{conv_with_conn_forward.15} parent=5 // pred_fallthru
      _
    %p165 = scmp.lt.s32.totalorder %s10, 2
    // Predicated region
    $region25: #{conv_with_conn_forward.15} parent=5 // pred_check
      %p166 = pneg %p165
    $region26: #{conv_with_conn_forward.15} parent=5 // pred_check_branch
      %168 = sbr.rel (%p166) target = $region28
    $region27: #{conv_with_conn_forward.15} parent=5 // pred_region
      // Predicated region
      $region29: #{conv_with_conn_forward.15} parent=27 // pred_check
        %p169 = pneg %p44
      $region30: #{conv_with_conn_forward.15} parent=27 // pred_check_branch
        %171 = sbr.rel (%p169) target = $region32
      $region31: #{conv_with_conn_forward.15} parent=27 // pred_region
        %s172 = smul.u32 32, %s18
        %p173 = scmp.lt.s32.totalorder %s17, 1
        %s174 = scalar_select %p173, %s17, 1
        %p175 = scmp.lt.s32.totalorder %s172, 31
        %s176 = scalar_select %p175, %s172, 31
        %s177 = smul.addr %s176, 2
        %s178 = smul.addr %s174, 64
        %s179 = sadd.s32 %s177, %s178
        %s180 = smul.addr %s179, 4
        %s181 = scalar_lea.vmem %s0, %s180
        %s182 = smul.u32 32, %s18
      $region32: #{conv_with_conn_forward.15} parent=27 // pred_fallthru
        _
    $region28: #{conv_with_conn_forward.15} parent=5 // pred_fallthru
      _
    %p183 = scmp.le.s32.totalorder 1, %s10
    %p184 = scmp.lt.s32.totalorder %s10, 3
    %p185 = pnand %p183, %p184
    %p186 = pneg %p185
    // Predicated region
    $region33: #{conv_with_conn_forward.15} parent=5 // pred_check
      _
    $region34: #{conv_with_conn_forward.15} parent=5 // pred_check_branch
      %188 = sbr.rel (%p185) target = $region36
    $region35: #{conv_with_conn_forward.15} parent=5 // pred_region
      %s189 = ssub.s32 %s10, 1
      %s190 = smul.u32 32, %s20
      %p191 = scmp.lt.s32.totalorder %s19, 1
      %s192 = scalar_select %p191, %s19, 1
      %p193 = scmp.lt.s32.totalorder %s190, 31
      %s194 = scalar_select %p193, %s190, 31
      %s195 = smul.addr %s194, 2
      %s196 = smul.addr %s192, 64
      %s197 = sadd.s32 %s195, %s196
      %s198 = smul.addr %s197, 4
      %s199 = scalar_lea.vmem %s0, %s198
      %p200 = pneg %p50
      %p201 = pneg %p47
      %p202 = pneg %p71
      %p203 = pneg %p68
      %p204 = pneg %p92
      %p205 = pneg %p89
      %p206 = pneg %p113
      %p207 = pneg %p110
      %p208 = pneg %p141
      %p209 = pneg %p138
      %s210 = smul.u32 32, %s20
      %p211 = scmp.lt.s32.totalorder %s19, 1
      %s212 = scalar_select %p211, %s19, 1
      %p213 = scmp.lt.s32.totalorder %s210, 31
      %s214 = scalar_select %p213, %s210, 31
      %s215 = smul.addr %s212, 32
      %s216 = sadd.s32 %s214, %s215
      %s217 = smul.addr %s216, 4
      %s218 = scalar_lea.vmem %s4, %s217
      %s219 = smul.u32 32, %s20
      %p220 = scmp.lt.s32.totalorder %s19, 1
      %s221 = scalar_select %p220, %s19, 1
      %p222 = scmp.lt.s32.totalorder %s219, 31
      %s223 = scalar_select %p222, %s219, 31
      %s224 = smul.addr %s223, 2
      %s225 = smul.addr %s221, 64
      %s226 = sadd.s32 %s224, %s225
      %s227 = smul.addr %s226, 4
      %s228 = scalar_lea.vmem %s0, %s227
      %s229 = smul.u32 32, %s20
      %s230 = smul.u32 32, %s20
      %p231 = scmp.lt.s32.totalorder %s19, 1
      %s232 = scalar_select %p231, %s19, 1
      %p233 = scmp.lt.s32.totalorder %s230, 31
      %s234 = scalar_select %p233, %s230, 31
      %s235 = smul.addr %s232, 32
      %s236 = sadd.s32 %s234, %s235
      %s237 = smul.addr %s236, 4
      %s238 = scalar_lea.vmem %s4, %s237
      %s239 = smul.u32 32, %s20
      %v241 = vld [vmem:[%s228] sm:$0xff]
      %v242 = vld [vmem:[%s228 + $0x8] sm:$0xff]
      %v243 = vld [vmem:[%s228 + $0x10] sm:$0xff]
      %v244 = vld [vmem:[%s228 + $0x18] sm:$0xff]
      %v245 = vld [vmem:[%s228 + $0x20] sm:$0xff]
      %v246 = vld [vmem:[%s228 + $0x28] sm:$0xff]
      %v247 = vld [vmem:[%s228 + $0x30] sm:$0xff]
      %v248 = vld [vmem:[%s228 + $0x38] sm:$0xff]
      %v249 = vld [vmem:[%s228 + $0x40] sm:$0xff]
      %v250 = vld [vmem:[%s228 + $0x48] sm:$0xff]
      %v251 = vld [vmem:[%s228 + $0x50] sm:$0xff]
      %v252 = vld [vmem:[%s228 + $0x58] sm:$0xff]
      %v253 = vld [vmem:[%s228 + $0x60] sm:$0xff]
      %v254 = vld [vmem:[%s228 + $0x68] sm:$0xff]
      %v255 = vld [vmem:[%s228 + $0x70] sm:$0xff]
      %v256 = vld [vmem:[%s228 + $0x78] sm:$0xff]
      %v257 = vld [vmem:[%s228 + $0x80] sm:$0xff]
      %v258 = vld [vmem:[%s228 + $0x88] sm:$0xff]
      %v259 = vld [vmem:[%s228 + $0x90] sm:$0xff]
      %v260 = vld [vmem:[%s228 + $0x98] sm:$0xff]
      %v261 = vld [vmem:[%s228 + $0xa0] sm:$0xff]
      %v262 = vld [vmem:[%s228 + $0xa8] sm:$0xff]
      %v263 = vld [vmem:[%s228 + $0xb0] sm:$0xff]
      %v264 = vld [vmem:[%s228 + $0xb8] sm:$0xff]
      %v265 = vld [vmem:[%s228 + $0xc0] sm:$0xff]
      %v266 = vld [vmem:[%s228 + $0xc8] sm:$0xff]
      %v267 = vld [vmem:[%s228 + $0xd0] sm:$0xff]
      %v268 = vld [vmem:[%s228 + $0xd8] sm:$0xff]
      %v269 = vld [vmem:[%s228 + $0xe0] sm:$0xff]
      %v270 = vld [vmem:[%s228 + $0xe8] sm:$0xff]
      %v271 = vld [vmem:[%s228 + $0xf0] sm:$0xff]
      %v272 = vld [vmem:[%s228 + $0xf8] sm:$0xff]
      %v273 = vld [vmem:[%s1] sm:$0xf]
      %v274 = vld [vmem:[%s1 + $0x4] sm:$0xf]
      %v275 = vld [vmem:[%s1 + $0x8] sm:$0xf]
      %v276 = vld [vmem:[%s1 + $0xc] sm:$0xf]
      %v277 = vld [vmem:[%s1 + $0x10] sm:$0xf]
      %v278 = vld [vmem:[%s1 + $0x14] sm:$0xf]
      %v279 = vld [vmem:[%s1 + $0x18] sm:$0xf]
      %v280 = vld [vmem:[%s1 + $0x1c] sm:$0xf]
      %v281 = vld [vmem:[%s1 + $0x20] sm:$0xf]
      %v282 = vld [vmem:[%s1 + $0x24] sm:$0xf]
      %v283 = vld [vmem:[%s1 + $0x28] sm:$0xf]
      %v284 = vld [vmem:[%s1 + $0x2c] sm:$0xf]
      %v285 = vld [vmem:[%s1 + $0x30] sm:$0xf]
      %v286 = vld [vmem:[%s1 + $0x34] sm:$0xf]
      %v287 = vld [vmem:[%s1 + $0x38] sm:$0xf]
      %v288 = vld [vmem:[%s1 + $0x3c] sm:$0xf]
      %v289 = vld [vmem:[%s1 + $0x40] sm:$0xf]
      %v290 = vld [vmem:[%s1 + $0x44] sm:$0xf]
      %v323 = vunpack.c.l.b16 %v241
      %v324 = vunpack.c.h.b16 %v241
      %v325 = vunpack.c.l.b16 %v242
      %v326 = vunpack.c.h.b16 %v242
      %v327 = vunpack.c.l.b16 %v243
      %v328 = vunpack.c.h.b16 %v243
      %v329 = vunpack.c.l.b16 %v244
      %v330 = vunpack.c.h.b16 %v244
      %v331 = vunpack.c.l.b16 %v245
      %v332 = vunpack.c.h.b16 %v245
      %v333 = vunpack.c.l.b16 %v246
      %v334 = vunpack.c.h.b16 %v246
      %v335 = vunpack.c.l.b16 %v247
      %v336 = vunpack.c.h.b16 %v247
      %v337 = vunpack.c.l.b16 %v248
      %v338 = vunpack.c.h.b16 %v248
      %v339 = vunpack.c.l.b16 %v249
      %v340 = vunpack.c.h.b16 %v249
      %v341 = vunpack.c.l.b16 %v250
      %v342 = vunpack.c.h.b16 %v250
      %v343 = vunpack.c.l.b16 %v251
      %v344 = vunpack.c.h.b16 %v251
      %v345 = vunpack.c.l.b16 %v252
      %v346 = vunpack.c.h.b16 %v252
      %v347 = vunpack.c.l.b16 %v253
      %v348 = vunpack.c.h.b16 %v253
      %v349 = vunpack.c.l.b16 %v254
      %v350 = vunpack.c.h.b16 %v254
      %v351 = vunpack.c.l.b16 %v255
      %v352 = vunpack.c.h.b16 %v255
      %v353 = vunpack.c.l.b16 %v256
      %v354 = vunpack.c.h.b16 %v256
      %v355 = vunpack.c.l.b16 %v257
      %v356 = vunpack.c.h.b16 %v257
      %v357 = vunpack.c.l.b16 %v258
      %v358 = vunpack.c.h.b16 %v258
      %v359 = vunpack.c.l.b16 %v259
      %v360 = vunpack.c.h.b16 %v259
      %v361 = vunpack.c.l.b16 %v260
      %v362 = vunpack.c.h.b16 %v260
      %v363 = vunpack.c.l.b16 %v261
      %v364 = vunpack.c.h.b16 %v261
      %v365 = vunpack.c.l.b16 %v262
      %v366 = vunpack.c.h.b16 %v262
      %v367 = vunpack.c.l.b16 %v263
      %v368 = vunpack.c.h.b16 %v263
      %v369 = vunpack.c.l.b16 %v264
      %v370 = vunpack.c.h.b16 %v264
      %v371 = vunpack.c.l.b16 %v265
      %v372 = vunpack.c.h.b16 %v265
      %v373 = vunpack.c.l.b16 %v266
      %v374 = vunpack.c.h.b16 %v266
      %v375 = vunpack.c.l.b16 %v267
      %v376 = vunpack.c.h.b16 %v267
      %v377 = vunpack.c.l.b16 %v268
      %v378 = vunpack.c.h.b16 %v268
      %v379 = vunpack.c.l.b16 %v269
      %v380 = vunpack.c.h.b16 %v269
      %v381 = vunpack.c.l.b16 %v270
      %v382 = vunpack.c.h.b16 %v270
      %v383 = vunpack.c.l.b16 %v271
      %v384 = vunpack.c.h.b16 %v271
      %v385 = vunpack.c.l.b16 %v272
      %v386 = vunpack.c.h.b16 %v272
      %v387 = vpack.c.b16 %v325, %v323
      %v388 = vpack.c.b16 %v326, %v324
      %v389 = vpack.c.b16 %v329, %v327
      %v390 = vpack.c.b16 %v330, %v328
      %v391 = vpack.c.b16 %v333, %v331
      %v392 = vpack.c.b16 %v334, %v332
      %v393 = vpack.c.b16 %v337, %v335
      %v394 = vpack.c.b16 %v338, %v336
      %v395 = vpack.c.b16 %v341, %v339
      %v396 = vpack.c.b16 %v342, %v340
      %v397 = vpack.c.b16 %v345, %v343
      %v398 = vpack.c.b16 %v346, %v344
      %v399 = vpack.c.b16 %v349, %v347
      %v400 = vpack.c.b16 %v350, %v348
      %v401 = vpack.c.b16 %v353, %v351
      %v402 = vpack.c.b16 %v354, %v352
      %v403 = vpack.c.b16 %v357, %v355
      %v404 = vpack.c.b16 %v358, %v356
      %v405 = vpack.c.b16 %v361, %v359
      %v406 = vpack.c.b16 %v362, %v360
      %v407 = vpack.c.b16 %v365, %v363
      %v408 = vpack.c.b16 %v366, %v364
      %v409 = vpack.c.b16 %v369, %v367
      %v410 = vpack.c.b16 %v370, %v368
      %v411 = vpack.c.b16 %v373, %v371
      %v412 = vpack.c.b16 %v374, %v372
      %v413 = vpack.c.b16 %v377, %v375
      %v414 = vpack.c.b16 %v378, %v376
      %v415 = vpack.c.b16 %v381, %v379
      %v416 = vpack.c.b16 %v382, %v380
      %v417 = vpack.c.b16 %v385, %v383
      %v418 = vpack.c.b16 %v386, %v384
      %v453 = vunpack.c.l.b16 %v273
      %v454 = vunpack.c.l.b16 %v274
      %v455 = vunpack.c.l.b16 %v275
      %v456 = vunpack.c.l.b16 %v276
      %v457 = vunpack.c.l.b16 %v277
      %v458 = vunpack.c.l.b16 %v278
      %v459 = vunpack.c.l.b16 %v279
      %v460 = vunpack.c.l.b16 %v280
      %v461 = vunpack.c.l.b16 %v281
      %v462 = vunpack.c.l.b16 %v282
      %v463 = vunpack.c.l.b16 %v283
      %v464 = vunpack.c.l.b16 %v284
      %v465 = vunpack.c.l.b16 %v285
      %v466 = vunpack.c.l.b16 %v286
      %v467 = vunpack.c.l.b16 %v287
      %v468 = vunpack.c.l.b16 %v288
      %v469 = vunpack.c.l.b16 %v289
      %v470 = vunpack.c.l.b16 %v290
      %v471 = vpack.c.b16 %v454, %v453
      %v472 = vpack.c.b16 %v456, %v455
      %v473 = vpack.c.b16 %v458, %v457
      %v474 = vpack.c.b16 %v460, %v459
      %v475 = vpack.c.b16 %v462, %v461
      %v476 = vpack.c.b16 %v464, %v463
      %v477 = vpack.c.b16 %v466, %v465
      %v478 = vpack.c.b16 %v468, %v467
      %v479 = vpack.c.b16 %v470, %v469
      %vm489 = vcmask 130048
      %v491 = vsel %vm489, %v388, 0
      %v494 = vsel %vm489, %v390, 0
      %v497 = vsel %vm489, %v392, 0
      %v500 = vsel %vm489, %v394, 0
      %v503 = vsel %vm489, %v396, 0
      %v506 = vsel %vm489, %v398, 0
      %v509 = vsel %vm489, %v400, 0
      %v512 = vsel %vm489, %v402, 0
      %v515 = vsel %vm489, %v404, 0
      %v518 = vsel %vm489, %v406, 0
      %v521 = vsel %vm489, %v408, 0
      %v524 = vsel %vm489, %v410, 0
      %v527 = vsel %vm489, %v412, 0
      %v530 = vsel %vm489, %v414, 0
      %v533 = vsel %vm489, %v416, 0
      %v536 = vsel %vm489, %v418, 0
      %538 = vmatpush.bf16.msra.mxu0 %v478
      %539 = vmatpush.bf16.msra.mxu0 %v477
      %540 = vmatpush.bf16.msra.mxu0 %v476
      %541 = vmatpush.bf16.msra.mxu0 %v475
      %542 = vmatpush.bf16.msra.mxu0 %v474
      %543 = vmatpush.bf16.msra.mxu0 %v473
      %544 = vmatpush.bf16.msra.mxu0 %v472
      %545 = vmatpush.bf16.msra.mxu0 %v471
      %546 = vmatmul.bf16.gmra.mxu0 %v387
      %v547 = vpop.f32.mrf.mxu0
      %v548 = vadd.f32 0.0, %v547
      %v549 = vpop.f32.mrf.mxu0
      %v550 = vadd.f32 0.0, %v549
      %551 = vmatmul.bf16.gmra.mxu0 %v389
      %v552 = vpop.f32.mrf.mxu0
      %v553 = vadd.f32 0.0, %v552
      %v554 = vpop.f32.mrf.mxu0
      %v555 = vadd.f32 0.0, %v554
      %556 = vmatmul.bf16.gmra.mxu0 %v391
      %v557 = vpop.f32.mrf.mxu0
      %v558 = vadd.f32 0.0, %v557
      %v559 = vpop.f32.mrf.mxu0
      %v560 = vadd.f32 0.0, %v559
      %561 = vmatmul.bf16.gmra.mxu0 %v393
      %v562 = vpop.f32.mrf.mxu0
      %v563 = vadd.f32 0.0, %v562
      %v564 = vpop.f32.mrf.mxu0
      %v565 = vadd.f32 0.0, %v564
      %566 = vmatmul.bf16.gmra.mxu0 %v395
      %v567 = vpop.f32.mrf.mxu0
      %v568 = vadd.f32 0.0, %v567
      %v569 = vpop.f32.mrf.mxu0
      %v570 = vadd.f32 0.0, %v569
      %571 = vmatmul.bf16.gmra.mxu0 %v397
      %v572 = vpop.f32.mrf.mxu0
      %v573 = vadd.f32 0.0, %v572
      %v574 = vpop.f32.mrf.mxu0
      %v575 = vadd.f32 0.0, %v574
      %576 = vmatmul.bf16.gmra.mxu0 %v399
      %v577 = vpop.f32.mrf.mxu0
      %v578 = vadd.f32 0.0, %v577
      %v579 = vpop.f32.mrf.mxu0
      %v580 = vadd.f32 0.0, %v579
      %581 = vmatmul.bf16.gmra.mxu0 %v401
      %v582 = vpop.f32.mrf.mxu0
      %v583 = vadd.f32 0.0, %v582
      %v584 = vpop.f32.mrf.mxu0
      %v585 = vadd.f32 0.0, %v584
      %586 = vmatmul.bf16.gmra.mxu0 %v403
      %v587 = vpop.f32.mrf.mxu0
      %v588 = vadd.f32 0.0, %v587
      %v589 = vpop.f32.mrf.mxu0
      %v590 = vadd.f32 0.0, %v589
      %591 = vmatmul.bf16.gmra.mxu0 %v405
      %v592 = vpop.f32.mrf.mxu0
      %v593 = vadd.f32 0.0, %v592
      %v594 = vpop.f32.mrf.mxu0
      %v595 = vadd.f32 0.0, %v594
      %596 = vmatmul.bf16.gmra.mxu0 %v407
      %v597 = vpop.f32.mrf.mxu0
      %v598 = vadd.f32 0.0, %v597
      %v599 = vpop.f32.mrf.mxu0
      %v600 = vadd.f32 0.0, %v599
      %601 = vmatmul.bf16.gmra.mxu0 %v409
      %v602 = vpop.f32.mrf.mxu0
      %v603 = vadd.f32 0.0, %v602
      %v604 = vpop.f32.mrf.mxu0
      %v605 = vadd.f32 0.0, %v604
      %606 = vmatmul.bf16.gmra.mxu0 %v411
      %v607 = vpop.f32.mrf.mxu0
      %v608 = vadd.f32 0.0, %v607
      %v609 = vpop.f32.mrf.mxu0
      %v610 = vadd.f32 0.0, %v609
      %611 = vmatmul.bf16.gmra.mxu0 %v413
      %v612 = vpop.f32.mrf.mxu0
      %v613 = vadd.f32 0.0, %v612
      %v614 = vpop.f32.mrf.mxu0
      %v615 = vadd.f32 0.0, %v614
      %616 = vmatmul.bf16.gmra.mxu0 %v415
      %v617 = vpop.f32.mrf.mxu0
      %v618 = vadd.f32 0.0, %v617
      %v619 = vpop.f32.mrf.mxu0
      %v620 = vadd.f32 0.0, %v619
      %621 = vmatmul.bf16.gmra.mxu0 %v417
      %v622 = vpop.f32.mrf.mxu0
      %v623 = vadd.f32 0.0, %v622
      %v624 = vpop.f32.mrf.mxu0
      %v625 = vadd.f32 0.0, %v624
      %626 = vdwg.mxu0
      %627 = vmatpush.bf16.msra.mxu0 0
      %628 = vmatpush.bf16.msra.mxu0 0
      %629 = vmatpush.bf16.msra.mxu0 0
      %630 = vmatpush.bf16.msra.mxu0 0
      %631 = vmatpush.bf16.msra.mxu0 0
      %632 = vmatpush.bf16.msra.mxu0 0
      %633 = vmatpush.bf16.msra.mxu0 0
      %634 = vmatpush.bf16.msra.mxu0 %v479
      %635 = vmatmul.bf16.gmra.mxu0 %v491
      %v636 = vpop.f32.mrf.mxu0
      %v637 = vadd.f32 %v548, %v636
      %v638 = vpop.f32.mrf.mxu0
      %v639 = vadd.f32 %v550, %v638
      %640 = vmatmul.bf16.gmra.mxu0 %v494
      %v641 = vpop.f32.mrf.mxu0
      %v642 = vadd.f32 %v553, %v641
      %v643 = vpop.f32.mrf.mxu0
      %v644 = vadd.f32 %v555, %v643
      %645 = vmatmul.bf16.gmra.mxu0 %v497
      %v646 = vpop.f32.mrf.mxu0
      %v647 = vadd.f32 %v558, %v646
      %v648 = vpop.f32.mrf.mxu0
      %v649 = vadd.f32 %v560, %v648
      %650 = vmatmul.bf16.gmra.mxu0 %v500
      %v651 = vpop.f32.mrf.mxu0
      %v652 = vadd.f32 %v563, %v651
      %v653 = vpop.f32.mrf.mxu0
      %v654 = vadd.f32 %v565, %v653
      %655 = vmatmul.bf16.gmra.mxu0 %v503
      %v656 = vpop.f32.mrf.mxu0
      %v657 = vadd.f32 %v568, %v656
      %v658 = vpop.f32.mrf.mxu0
      %v659 = vadd.f32 %v570, %v658
      %660 = vmatmul.bf16.gmra.mxu0 %v506
      %v661 = vpop.f32.mrf.mxu0
      %v662 = vadd.f32 %v573, %v661
      %v663 = vpop.f32.mrf.mxu0
      %v664 = vadd.f32 %v575, %v663
      %665 = vmatmul.bf16.gmra.mxu0 %v509
      %v666 = vpop.f32.mrf.mxu0
      %v667 = vadd.f32 %v578, %v666
      %v668 = vpop.f32.mrf.mxu0
      %v669 = vadd.f32 %v580, %v668
      %670 = vmatmul.bf16.gmra.mxu0 %v512
      %v671 = vpop.f32.mrf.mxu0
      %v672 = vadd.f32 %v583, %v671
      %v673 = vpop.f32.mrf.mxu0
      %v674 = vadd.f32 %v585, %v673
      %675 = vmatmul.bf16.gmra.mxu0 %v515
      %v676 = vpop.f32.mrf.mxu0
      %v677 = vadd.f32 %v588, %v676
      %v678 = vpop.f32.mrf.mxu0
      %v679 = vadd.f32 %v590, %v678
      %680 = vmatmul.bf16.gmra.mxu0 %v518
      %v681 = vpop.f32.mrf.mxu0
      %v682 = vadd.f32 %v593, %v681
      %v683 = vpop.f32.mrf.mxu0
      %v684 = vadd.f32 %v595, %v683
      %685 = vmatmul.bf16.gmra.mxu0 %v521
      %v686 = vpop.f32.mrf.mxu0
      %v687 = vadd.f32 %v598, %v686
      %v688 = vpop.f32.mrf.mxu0
      %v689 = vadd.f32 %v600, %v688
      %690 = vmatmul.bf16.gmra.mxu0 %v524
      %v691 = vpop.f32.mrf.mxu0
      %v692 = vadd.f32 %v603, %v691
      %v693 = vpop.f32.mrf.mxu0
      %v694 = vadd.f32 %v605, %v693
      %695 = vmatmul.bf16.gmra.mxu0 %v527
      %v696 = vpop.f32.mrf.mxu0
      %v697 = vadd.f32 %v608, %v696
      %v698 = vpop.f32.mrf.mxu0
      %v699 = vadd.f32 %v610, %v698
      %700 = vmatmul.bf16.gmra.mxu0 %v530
      %v701 = vpop.f32.mrf.mxu0
      %v702 = vadd.f32 %v613, %v701
      %v703 = vpop.f32.mrf.mxu0
      %v704 = vadd.f32 %v615, %v703
      %705 = vmatmul.bf16.gmra.mxu0 %v533
      %v706 = vpop.f32.mrf.mxu0
      %v707 = vadd.f32 %v618, %v706
      %v708 = vpop.f32.mrf.mxu0
      %v709 = vadd.f32 %v620, %v708
      %710 = vmatmul.bf16.gmra.mxu0 %v536
      %v711 = vpop.f32.mrf.mxu0
      %v712 = vadd.f32 %v623, %v711
      %v713 = vpop.f32.mrf.mxu0
      %v714 = vadd.f32 %v625, %v713
      %715 = vdwg.mxu0
      %v716 = vld [vmem:[%s2] sm:$0x1]
      %v718 = vperm.slane %v716, 0
      %v720 = vmul.f32 %v637, %v718
      %v721 = vmul.f32 %v639, %v718
      %v722 = vmul.f32 %v642, %v718
      %v723 = vmul.f32 %v644, %v718
      %v724 = vmul.f32 %v647, %v718
      %v725 = vmul.f32 %v649, %v718
      %v726 = vmul.f32 %v652, %v718
      %v727 = vmul.f32 %v654, %v718
      %v728 = vmul.f32 %v657, %v718
      %v729 = vmul.f32 %v659, %v718
      %v730 = vmul.f32 %v662, %v718
      %v731 = vmul.f32 %v664, %v718
      %v732 = vmul.f32 %v667, %v718
      %v733 = vmul.f32 %v669, %v718
      %v734 = vmul.f32 %v672, %v718
      %v735 = vmul.f32 %v674, %v718
      %v736 = vmul.f32 %v677, %v718
      %v737 = vmul.f32 %v679, %v718
      %v738 = vmul.f32 %v682, %v718
      %v739 = vmul.f32 %v684, %v718
      %v740 = vmul.f32 %v687, %v718
      %v741 = vmul.f32 %v689, %v718
      %v742 = vmul.f32 %v692, %v718
      %v743 = vmul.f32 %v694, %v718
      %v744 = vmul.f32 %v697, %v718
      %v745 = vmul.f32 %v699, %v718
      %v746 = vmul.f32 %v702, %v718
      %v747 = vmul.f32 %v704, %v718
      %v748 = vmul.f32 %v707, %v718
      %v749 = vmul.f32 %v709, %v718
      %v750 = vmul.f32 %v712, %v718
      %v751 = vmul.f32 %v714, %v718
      %v752 = vld [vmem:[%s3] sm:$0x1]
      %v754 = vperm.slane %v752, 0
      %v756 = vadd.f32 %v720, %v754
      %v757 = vadd.f32 %v721, %v754
      %v758 = vadd.f32 %v722, %v754
      %v759 = vadd.f32 %v723, %v754
      %v760 = vadd.f32 %v724, %v754
      %v761 = vadd.f32 %v725, %v754
      %v762 = vadd.f32 %v726, %v754
      %v763 = vadd.f32 %v727, %v754
      %v764 = vadd.f32 %v728, %v754
      %v765 = vadd.f32 %v729, %v754
      %v766 = vadd.f32 %v730, %v754
      %v767 = vadd.f32 %v731, %v754
      %v768 = vadd.f32 %v732, %v754
      %v769 = vadd.f32 %v733, %v754
      %v770 = vadd.f32 %v734, %v754
      %v771 = vadd.f32 %v735, %v754
      %v772 = vadd.f32 %v736, %v754
      %v773 = vadd.f32 %v737, %v754
      %v774 = vadd.f32 %v738, %v754
      %v775 = vadd.f32 %v739, %v754
      %v776 = vadd.f32 %v740, %v754
      %v777 = vadd.f32 %v741, %v754
      %v778 = vadd.f32 %v742, %v754
      %v779 = vadd.f32 %v743, %v754
      %v780 = vadd.f32 %v744, %v754
      %v781 = vadd.f32 %v745, %v754
      %v782 = vadd.f32 %v746, %v754
      %v783 = vadd.f32 %v747, %v754
      %v784 = vadd.f32 %v748, %v754
      %v785 = vadd.f32 %v749, %v754
      %v786 = vadd.f32 %v750, %v754
      %v787 = vadd.f32 %v751, %v754
      %vm788 = vcmp.ge.f32.partialorder %v756, 0.0
      %vm789 = vcmp.ge.f32.partialorder %v757, 0.0
      %vm790 = vcmp.ge.f32.partialorder %v758, 0.0
      %vm791 = vcmp.ge.f32.partialorder %v759, 0.0
      %vm792 = vcmp.ge.f32.partialorder %v760, 0.0
      %vm793 = vcmp.ge.f32.partialorder %v761, 0.0
      %vm794 = vcmp.ge.f32.partialorder %v762, 0.0
      %vm795 = vcmp.ge.f32.partialorder %v763, 0.0
      %vm796 = vcmp.ge.f32.partialorder %v764, 0.0
      %vm797 = vcmp.ge.f32.partialorder %v765, 0.0
      %vm798 = vcmp.ge.f32.partialorder %v766, 0.0
      %vm799 = vcmp.ge.f32.partialorder %v767, 0.0
      %vm800 = vcmp.ge.f32.partialorder %v768, 0.0
      %vm801 = vcmp.ge.f32.partialorder %v769, 0.0
      %vm802 = vcmp.ge.f32.partialorder %v770, 0.0
      %vm803 = vcmp.ge.f32.partialorder %v771, 0.0
      %vm804 = vcmp.ge.f32.partialorder %v772, 0.0
      %vm805 = vcmp.ge.f32.partialorder %v773, 0.0
      %vm806 = vcmp.ge.f32.partialorder %v774, 0.0
      %vm807 = vcmp.ge.f32.partialorder %v775, 0.0
      %vm808 = vcmp.ge.f32.partialorder %v776, 0.0
      %vm809 = vcmp.ge.f32.partialorder %v777, 0.0
      %vm810 = vcmp.ge.f32.partialorder %v778, 0.0
      %vm811 = vcmp.ge.f32.partialorder %v779, 0.0
      %vm812 = vcmp.ge.f32.partialorder %v780, 0.0
      %vm813 = vcmp.ge.f32.partialorder %v781, 0.0
      %vm814 = vcmp.ge.f32.partialorder %v782, 0.0
      %vm815 = vcmp.ge.f32.partialorder %v783, 0.0
      %vm816 = vcmp.ge.f32.partialorder %v784, 0.0
      %vm817 = vcmp.ge.f32.partialorder %v785, 0.0
      %vm818 = vcmp.ge.f32.partialorder %v786, 0.0
      %vm819 = vcmp.ge.f32.partialorder %v787, 0.0
      %v820 = vmul.f32 %v756, 0.01
      %v821 = vmul.f32 %v757, 0.01
      %v822 = vmul.f32 %v758, 0.01
      %v823 = vmul.f32 %v759, 0.01
      %v824 = vmul.f32 %v760, 0.01
      %v825 = vmul.f32 %v761, 0.01
      %v826 = vmul.f32 %v762, 0.01
      %v827 = vmul.f32 %v763, 0.01
      %v828 = vmul.f32 %v764, 0.01
      %v829 = vmul.f32 %v765, 0.01
      %v830 = vmul.f32 %v766, 0.01
      %v831 = vmul.f32 %v767, 0.01
      %v832 = vmul.f32 %v768, 0.01
      %v833 = vmul.f32 %v769, 0.01
      %v834 = vmul.f32 %v770, 0.01
      %v835 = vmul.f32 %v771, 0.01
      %v836 = vmul.f32 %v772, 0.01
      %v837 = vmul.f32 %v773, 0.01
      %v838 = vmul.f32 %v774, 0.01
      %v839 = vmul.f32 %v775, 0.01
      %v840 = vmul.f32 %v776, 0.01
      %v841 = vmul.f32 %v777, 0.01
      %v842 = vmul.f32 %v778, 0.01
      %v843 = vmul.f32 %v779, 0.01
      %v844 = vmul.f32 %v780, 0.01
      %v845 = vmul.f32 %v781, 0.01
      %v846 = vmul.f32 %v782, 0.01
      %v847 = vmul.f32 %v783, 0.01
      %v848 = vmul.f32 %v784, 0.01
      %v849 = vmul.f32 %v785, 0.01
      %v850 = vmul.f32 %v786, 0.01
      %v851 = vmul.f32 %v787, 0.01
      %v852 = vsel %vm788, %v756, %v820
      %v853 = vsel %vm789, %v757, %v821
      %v854 = vsel %vm790, %v758, %v822
      %v855 = vsel %vm791, %v759, %v823
      %v856 = vsel %vm792, %v760, %v824
      %v857 = vsel %vm793, %v761, %v825
      %v858 = vsel %vm794, %v762, %v826
      %v859 = vsel %vm795, %v763, %v827
      %v860 = vsel %vm796, %v764, %v828
      %v861 = vsel %vm797, %v765, %v829
      %v862 = vsel %vm798, %v766, %v830
      %v863 = vsel %vm799, %v767, %v831
      %v864 = vsel %vm800, %v768, %v832
      %v865 = vsel %vm801, %v769, %v833
      %v866 = vsel %vm802, %v770, %v834
      %v867 = vsel %vm803, %v771, %v835
      %v868 = vsel %vm804, %v772, %v836
      %v869 = vsel %vm805, %v773, %v837
      %v870 = vsel %vm806, %v774, %v838
      %v871 = vsel %vm807, %v775, %v839
      %v872 = vsel %vm808, %v776, %v840
      %v873 = vsel %vm809, %v777, %v841
      %v874 = vsel %vm810, %v778, %v842
      %v875 = vsel %vm811, %v779, %v843
      %v876 = vsel %vm812, %v780, %v844
      %v877 = vsel %vm813, %v781, %v845
      %v878 = vsel %vm814, %v782, %v846
      %v879 = vsel %vm815, %v783, %v847
      %v880 = vsel %vm816, %v784, %v848
      %v881 = vsel %vm817, %v785, %v849
      %v882 = vsel %vm818, %v786, %v850
      %v883 = vsel %vm819, %v787, %v851
      %v884 = vpack.c.bf16 %v852, %v852
      %v885 = vpack.c.bf16 %v853, %v853
      %v886 = vpack.c.bf16 %v854, %v854
      %v887 = vpack.c.bf16 %v855, %v855
      %v888 = vpack.c.bf16 %v856, %v856
      %v889 = vpack.c.bf16 %v857, %v857
      %v890 = vpack.c.bf16 %v858, %v858
      %v891 = vpack.c.bf16 %v859, %v859
      %v892 = vpack.c.bf16 %v860, %v860
      %v893 = vpack.c.bf16 %v861, %v861
      %v894 = vpack.c.bf16 %v862, %v862
      %v895 = vpack.c.bf16 %v863, %v863
      %v896 = vpack.c.bf16 %v864, %v864
      %v897 = vpack.c.bf16 %v865, %v865
      %v898 = vpack.c.bf16 %v866, %v866
      %v899 = vpack.c.bf16 %v867, %v867
      %v900 = vpack.c.bf16 %v868, %v868
      %v901 = vpack.c.bf16 %v869, %v869
      %v902 = vpack.c.bf16 %v870, %v870
      %v903 = vpack.c.bf16 %v871, %v871
      %v904 = vpack.c.bf16 %v872, %v872
      %v905 = vpack.c.bf16 %v873, %v873
      %v906 = vpack.c.bf16 %v874, %v874
      %v907 = vpack.c.bf16 %v875, %v875
      %v908 = vpack.c.bf16 %v876, %v876
      %v909 = vpack.c.bf16 %v877, %v877
      %v910 = vpack.c.bf16 %v878, %v878
      %v911 = vpack.c.bf16 %v879, %v879
      %v912 = vpack.c.bf16 %v880, %v880
      %v913 = vpack.c.bf16 %v881, %v881
      %v914 = vpack.c.bf16 %v882, %v882
      %v915 = vpack.c.bf16 %v883, %v883
      %vm916 = vcmask 125952
      %917 = vst.msk [vmem:[%s238] sm:$0xf] %vm916, %v884
      %918 = vst.msk [vmem:[%s238 + $0x4] sm:$0xf] %vm916, %v885
      %919 = vst.msk [vmem:[%s238 + $0x8] sm:$0xf] %vm916, %v886
      %920 = vst.msk [vmem:[%s238 + $0xc] sm:$0xf] %vm916, %v887
      %921 = vst.msk [vmem:[%s238 + $0x10] sm:$0xf] %vm916, %v888
      %922 = vst.msk [vmem:[%s238 + $0x14] sm:$0xf] %vm916, %v889
      %923 = vst.msk [vmem:[%s238 + $0x18] sm:$0xf] %vm916, %v890
      %924 = vst.msk [vmem:[%s238 + $0x1c] sm:$0xf] %vm916, %v891
      %925 = vst.msk [vmem:[%s238 + $0x20] sm:$0xf] %vm916, %v892
      %926 = vst.msk [vmem:[%s238 + $0x24] sm:$0xf] %vm916, %v893
      %927 = vst.msk [vmem:[%s238 + $0x28] sm:$0xf] %vm916, %v894
      %928 = vst.msk [vmem:[%s238 + $0x2c] sm:$0xf] %vm916, %v895
      %929 = vst.msk [vmem:[%s238 + $0x30] sm:$0xf] %vm916, %v896
      %930 = vst.msk [vmem:[%s238 + $0x34] sm:$0xf] %vm916, %v897
      %931 = vst.msk [vmem:[%s238 + $0x38] sm:$0xf] %vm916, %v898
      %932 = vst.msk [vmem:[%s238 + $0x3c] sm:$0xf] %vm916, %v899
      %933 = vst.msk [vmem:[%s238 + $0x40] sm:$0xf] %vm916, %v900
      %934 = vst.msk [vmem:[%s238 + $0x44] sm:$0xf] %vm916, %v901
      %935 = vst.msk [vmem:[%s238 + $0x48] sm:$0xf] %vm916, %v902
      %936 = vst.msk [vmem:[%s238 + $0x4c] sm:$0xf] %vm916, %v903
      %937 = vst.msk [vmem:[%s238 + $0x50] sm:$0xf] %vm916, %v904
      %938 = vst.msk [vmem:[%s238 + $0x54] sm:$0xf] %vm916, %v905
      %939 = vst.msk [vmem:[%s238 + $0x58] sm:$0xf] %vm916, %v906
      %940 = vst.msk [vmem:[%s238 + $0x5c] sm:$0xf] %vm916, %v907
      %941 = vst.msk [vmem:[%s238 + $0x60] sm:$0xf] %vm916, %v908
      %942 = vst.msk [vmem:[%s238 + $0x64] sm:$0xf] %vm916, %v909
      %943 = vst.msk [vmem:[%s238 + $0x68] sm:$0xf] %vm916, %v910
      %944 = vst.msk [vmem:[%s238 + $0x6c] sm:$0xf] %vm916, %v911
      %945 = vst.msk [vmem:[%s238 + $0x70] sm:$0xf] %vm916, %v912
      %946 = vst.msk [vmem:[%s238 + $0x74] sm:$0xf] %vm916, %v913
      %947 = vst.msk [vmem:[%s238 + $0x78] sm:$0xf] %vm916, %v914
      %948 = vst.msk [vmem:[%s238 + $0x7c] sm:$0xf] %vm916, %v915
      %s949 = smul.u32 32, %s20
      %p950 = scmp.lt.s32.totalorder %s19, 1
      %s951 = scalar_select %p950, %s19, 1
      %p952 = scmp.lt.s32.totalorder %s949, 31
      %s953 = scalar_select %p952, %s949, 31
      %s954 = smul.addr %s951, 32
      %s955 = sadd.s32 %s953, %s954
      %s956 = smul.addr %s955, 4
      %s957 = scalar_lea.vmem %s4, %s956
      // Predicated region
      $region37: #{conv_with_conn_forward.15} parent=35 // pred_check
        %p958 = pneg %p138
      $region38: #{conv_with_conn_forward.15} parent=35 // pred_check_branch
        %960 = sbr.rel (%p958) target = $region40
      $region39: #{conv_with_conn_forward.15} parent=35 // pred_region
        %s961 = smul.u32 32, %s20
      $region40: #{conv_with_conn_forward.15} parent=35 // pred_fallthru
        _
    $region36: #{conv_with_conn_forward.15} parent=5 // pred_fallthru
      _
    %p962 = scmp.le.s32.totalorder 2, %s10
    // Predicated region
    $region41: #{conv_with_conn_forward.15} parent=5 // pred_check
      %p963 = pneg %p962
    $region42: #{conv_with_conn_forward.15} parent=5 // pred_check_branch
      %965 = sbr.rel (%p963) target = $region44
    $region43: #{conv_with_conn_forward.15} parent=5 // pred_region
      %s966 = ssub.s32 %s10, 2
      // Predicated region
      $region45: #{conv_with_conn_forward.15} parent=43 // pred_check
        %p967 = pneg %p144
      $region46: #{conv_with_conn_forward.15} parent=43 // pred_check_branch
        %969 = sbr.rel (%p967) target = $region48
      $region47: #{conv_with_conn_forward.15} parent=43 // pred_region
        %s970 = smul.u32 32, %s22
        %p971 = scmp.lt.s32.totalorder %s21, 1
        %s972 = scalar_select %p971, %s21, 1
        %p973 = scmp.lt.s32.totalorder %s970, 31
        %s974 = scalar_select %p973, %s970, 31
        %s975 = smul.addr %s972, 32
        %s976 = sadd.s32 %s974, %s975
        %s977 = smul.addr %s976, 4
        %s978 = scalar_lea.vmem %s4, %s977
      $region48: #{conv_with_conn_forward.15} parent=43 // pred_fallthru
        _
    $region44: #{conv_with_conn_forward.15} parent=5 // pred_fallthru
      _
  $region6: #{conv_with_conn_forward.15} parent=0 // loop_footer
    %s14 = sadd.s32 1, %s10
  $region7: #{conv_with_conn_forward.15} parent=0 // loop_footer_branch
    %9 = sbr.rel target = $region3
  $region8: #{conv_with_conn_forward.15} parent=0 // loop_exit
    _

// kernel: conv_with_conn_forward.17
$region0: #{conv_with_conn_forward.17}
  #allocation0 [shape = 'u32[]', space=smem, size = 0x4, offset = 0x4, fixed_abs, tag = 'smem constant byte address 0x4 - core index']
  #allocation1 [shape = 'u32[72,128]{1,0:T(1,128)}', space=vmem, size = 0x9000, scoped, tag = 'internal scratch']
  %s0 = inlined_call_operand.vmem [shape: bf16[2,64,144], index: 0, kind: input, shape index: {}]
  %s1 = inlined_call_operand.vmem [shape: bf16[144,32], index: 1, kind: input, shape index: {}]
  %s2 = inlined_call_operand.vmem [shape: f32[1,32], index: 2, kind: input, shape index: {}]
  %s3 = inlined_call_operand.vmem [shape: f32[1,32], index: 3, kind: input, shape index: {}]
  %s4 = inlined_call_operand.vmem [shape: bf16[2,64,32], index: 4, kind: output, shape index: {}]
  %s5 = sld [smem:[#allocation0]]
  $region49: #{conv_with_conn_forward.17} parent=0
    _
  %s7 = ssub.s32 1, %s5
  %s8 = scalar_select 0, %s7, %s5
  loop: start=0, step=1, limit=4
  $region2: #{conv_with_conn_forward.17} parent=0 // loop_pre_header
    _
  $region3: #{conv_with_conn_forward.17} parent=0 // loop_header
    %s10 = sphi 0, %s14
    %p11 = scmp.ge.s32.totalorder %s10, 4
    %s17 = sphi 0, %s29
    %s18 = sphi 0, %s25
    %s19 = sphi 0, %s17
    %s20 = sphi 0, %s18
    %s21 = sphi 0, %s19
    %s22 = sphi 0, %s20
    %s34 = sphi 0, %s36
    %s37 = sphi 0, %s34
    %s38 = sphi 0, %s37
    %s54 = sphi 0, %s38
    %s58 = sphi 0, %s58
    %s60 = sphi 0, %s58
    %s61 = sphi 0, %s60
    %s75 = sphi 0, %s61
    %s79 = sphi 0, %s79
    %s81 = sphi 0, %s79
    %s82 = sphi 0, %s81
    %s96 = sphi 0, %s82
    %s100 = sphi 0, %s100
    %s102 = sphi 0, %s100
    %s103 = sphi 0, %s102
    %s117 = sphi 0, %s103
    %s125 = sphi 0, %s127
    %s128 = sphi 0, %s125
    %s129 = sphi 0, %s128
    %s145 = sphi 0, %s129
  $region4: #{conv_with_conn_forward.17} parent=0 // loop_header_branch
    %13 = sbr.rel (%p11) target = $region8
  $region5: #{conv_with_conn_forward.17} parent=0 // loop_body
    %s15 = ssub.s32 %s10, 1
    %s16 = ssub.s32 %s10, 2
    %s23 = sadd.s32 1, %s18
    %p24 = scmp.ge.s32.totalorder %s23, 1
    %s25 = scalar_select %p24, 0, %s23
    %s26 = sadd.s32 1, %s17
    %s27 = scalar_select %p24, %s26, %s17
    %p28 = scmp.ge.s32.totalorder %s27, 2
    %s29 = scalar_select %p28, 0, %s27
    %s30 = ssub.s32 %s17, %s29
    %s31 = ssub.s32 %s18, %s25
    %s32 = sor.u32 %s30, %s31
    %p33 = scmp.eq.s32.totalorder %s32, 0
    %s35 = sadd.s32 %s34, 1
    %s36 = scalar_select %p33, %s34, %s35
    %p39 = pneg %p33
    %p40 = scmp.eq.s32.totalorder %s10, 1
    %p41 = por %p39, %p40
    %p42 = scmp.ne.s32.totalorder %s34, %s37
    %p43 = scmp.eq.s32.totalorder %s10, 0
    %p44 = por %p42, %p43
    %p45 = scmp.ne.s32.totalorder %s34, %s37
    %p46 = scmp.eq.s32.totalorder %s15, 1
    %p47 = por %p45, %p46
    %p48 = scmp.ne.s32.totalorder %s37, %s38
    %p49 = scmp.eq.s32.totalorder %s15, 0
    %p50 = por %p48, %p49
    %p51 = scmp.ne.s32.totalorder %s37, %s38
    %p52 = scmp.eq.s32.totalorder %s16, 1
    %p53 = por %p51, %p52
    %p55 = scmp.ne.s32.totalorder %s38, %s54
    %p56 = scmp.eq.s32.totalorder %s16, 0
    %p57 = por %p55, %p56
    %s59 = sadd.s32 %s58, 1
    %p62 = scmp.eq.s32.totalorder %s10, 1
    %p63 = scmp.ne.s32.totalorder %s58, %s60
    %p64 = scmp.eq.s32.totalorder %s10, 0
    %p65 = por %p63, %p64
    %p66 = scmp.ne.s32.totalorder %s58, %s60
    %p67 = scmp.eq.s32.totalorder %s15, 1
    %p68 = por %p66, %p67
    %p69 = scmp.ne.s32.totalorder %s60, %s61
    %p70 = scmp.eq.s32.totalorder %s15, 0
    %p71 = por %p69, %p70
    %p72 = scmp.ne.s32.totalorder %s60, %s61
    %p73 = scmp.eq.s32.totalorder %s16, 1
    %p74 = por %p72, %p73
    %p76 = scmp.ne.s32.totalorder %s61, %s75
    %p77 = scmp.eq.s32.totalorder %s16, 0
    %p78 = por %p76, %p77
    %s80 = sadd.s32 %s79, 1
    %p83 = scmp.eq.s32.totalorder %s10, 1
    %p84 = scmp.ne.s32.totalorder %s79, %s81
    %p85 = scmp.eq.s32.totalorder %s10, 0
    %p86 = por %p84, %p85
    %p87 = scmp.ne.s32.totalorder %s79, %s81
    %p88 = scmp.eq.s32.totalorder %s15, 1
    %p89 = por %p87, %p88
    %p90 = scmp.ne.s32.totalorder %s81, %s82
    %p91 = scmp.eq.s32.totalorder %s15, 0
    %p92 = por %p90, %p91
    %p93 = scmp.ne.s32.totalorder %s81, %s82
    %p94 = scmp.eq.s32.totalorder %s16, 1
    %p95 = por %p93, %p94
    %p97 = scmp.ne.s32.totalorder %s82, %s96
    %p98 = scmp.eq.s32.totalorder %s16, 0
    %p99 = por %p97, %p98
    %s101 = sadd.s32 %s100, 1
    %p104 = scmp.eq.s32.totalorder %s10, 1
    %p105 = scmp.ne.s32.totalorder %s100, %s102
    %p106 = scmp.eq.s32.totalorder %s10, 0
    %p107 = por %p105, %p106
    %p108 = scmp.ne.s32.totalorder %s100, %s102
    %p109 = scmp.eq.s32.totalorder %s15, 1
    %p110 = por %p108, %p109
    %p111 = scmp.ne.s32.totalorder %s102, %s103
    %p112 = scmp.eq.s32.totalorder %s15, 0
    %p113 = por %p111, %p112
    %p114 = scmp.ne.s32.totalorder %s102, %s103
    %p115 = scmp.eq.s32.totalorder %s16, 1
    %p116 = por %p114, %p115
    %p118 = scmp.ne.s32.totalorder %s103, %s117
    %p119 = scmp.eq.s32.totalorder %s16, 0
    %p120 = por %p118, %p119
    %s121 = ssub.s32 %s17, %s29
    %s122 = ssub.s32 %s18, %s25
    %s123 = sor.u32 %s121, %s122
    %p124 = scmp.eq.s32.totalorder %s123, 0
    %s126 = sadd.s32 %s125, 1
    %s127 = scalar_select %p124, %s125, %s126
    %p130 = pneg %p124
    %p131 = scmp.eq.s32.totalorder %s10, 1
    %p132 = por %p130, %p131
    %p133 = scmp.ne.s32.totalorder %s125, %s128
    %p134 = scmp.eq.s32.totalorder %s10, 0
    %p135 = por %p133, %p134
    %p136 = scmp.ne.s32.totalorder %s125, %s128
    %p137 = scmp.eq.s32.totalorder %s15, 1
    %p138 = por %p136, %p137
    %p139 = scmp.ne.s32.totalorder %s128, %s129
    %p140 = scmp.eq.s32.totalorder %s15, 0
    %p141 = por %p139, %p140
    %p142 = scmp.ne.s32.totalorder %s128, %s129
    %p143 = scmp.eq.s32.totalorder %s16, 1
    %p144 = por %p142, %p143
    %p146 = scmp.ne.s32.totalorder %s129, %s145
    %p147 = scmp.eq.s32.totalorder %s16, 0
    %p148 = por %p146, %p147
    %p149 = scmp.le.s32.totalorder 1, %s10
    %p150 = scmp.lt.s32.totalorder %s10, 3
    %p151 = pnand %p149, %p150
    %p152 = pneg %p151
    // Predicated region
    $region9: #{conv_with_conn_forward.17} parent=5 // pred_check
      _
    $region10: #{conv_with_conn_forward.17} parent=5 // pred_check_branch
      %154 = sbr.rel (%p151) target = $region12
    $region11: #{conv_with_conn_forward.17} parent=5 // pred_region
      %s155 = ssub.s32 %s10, 1
      // Predicated region
      $region13: #{conv_with_conn_forward.17} parent=11 // pred_check
        %p156 = pneg %p71
      $region14: #{conv_with_conn_forward.17} parent=11 // pred_check_branch
        %158 = sbr.rel (%p156) target = $region16
      $region15: #{conv_with_conn_forward.17} parent=11 // pred_region
        _
      $region16: #{conv_with_conn_forward.17} parent=11 // pred_fallthru
        _
      // Predicated region
      $region17: #{conv_with_conn_forward.17} parent=11 // pred_check
        %p159 = pneg %p92
      $region18: #{conv_with_conn_forward.17} parent=11 // pred_check_branch
        %161 = sbr.rel (%p159) target = $region20
      $region19: #{conv_with_conn_forward.17} parent=11 // pred_region
        _
      $region20: #{conv_with_conn_forward.17} parent=11 // pred_fallthru
        _
      // Predicated region
      $region21: #{conv_with_conn_forward.17} parent=11 // pred_check
        %p162 = pneg %p113
      $region22: #{conv_with_conn_forward.17} parent=11 // pred_check_branch
        %164 = sbr.rel (%p162) target = $region24
      $region23: #{conv_with_conn_forward.17} parent=11 // pred_region
        _
      $region24: #{conv_with_conn_forward.17} parent=11 // pred_fallthru
        _
    $region12: #{conv_with_conn_forward.17} parent=5 // pred_fallthru
      _
    %p165 = scmp.lt.s32.totalorder %s10, 2
    // Predicated region
    $region25: #{conv_with_conn_forward.17} parent=5 // pred_check
      %p166 = pneg %p165
    $region26: #{conv_with_conn_forward.17} parent=5 // pred_check_branch
      %168 = sbr.rel (%p166) target = $region28
    $region27: #{conv_with_conn_forward.17} parent=5 // pred_region
      // Predicated region
      $region29: #{conv_with_conn_forward.17} parent=27 // pred_check
        %p169 = pneg %p44
      $region30: #{conv_with_conn_forward.17} parent=27 // pred_check_branch
        %171 = sbr.rel (%p169) target = $region32
      $region31: #{conv_with_conn_forward.17} parent=27 // pred_region
        %s172 = smul.u32 8, %s18
        %p173 = scmp.lt.s32.totalorder %s17, 1
        %s174 = scalar_select %p173, %s17, 1
        %p175 = scmp.lt.s32.totalorder %s172, 7
        %s176 = scalar_select %p175, %s172, 7
        %s177 = smul.addr %s176, 2
        %s178 = smul.addr %s174, 16
        %s179 = sadd.s32 %s177, %s178
        %s180 = smul.addr %s179, 4
        %s181 = scalar_lea.vmem %s0, %s180
        %s182 = smul.u32 8, %s18
      $region32: #{conv_with_conn_forward.17} parent=27 // pred_fallthru
        _
    $region28: #{conv_with_conn_forward.17} parent=5 // pred_fallthru
      _
    %p183 = scmp.le.s32.totalorder 1, %s10
    %p184 = scmp.lt.s32.totalorder %s10, 3
    %p185 = pnand %p183, %p184
    %p186 = pneg %p185
    // Predicated region
    $region33: #{conv_with_conn_forward.17} parent=5 // pred_check
      _
    $region34: #{conv_with_conn_forward.17} parent=5 // pred_check_branch
      %188 = sbr.rel (%p185) target = $region36
    $region35: #{conv_with_conn_forward.17} parent=5 // pred_region
      %s189 = ssub.s32 %s10, 1
      %s190 = smul.u32 8, %s20
      %p191 = scmp.lt.s32.totalorder %s19, 1
      %s192 = scalar_select %p191, %s19, 1
      %p193 = scmp.lt.s32.totalorder %s190, 7
      %s194 = scalar_select %p193, %s190, 7
      %s195 = smul.addr %s194, 2
      %s196 = smul.addr %s192, 16
      %s197 = sadd.s32 %s195, %s196
      %s198 = smul.addr %s197, 4
      %s199 = scalar_lea.vmem %s0, %s198
      %p200 = pneg %p50
      %p201 = pneg %p47
      %p202 = pneg %p71
      %p203 = pneg %p68
      %p204 = pneg %p92
      %p205 = pneg %p89
      %p206 = pneg %p113
      %p207 = pneg %p110
      %p208 = pneg %p141
      %p209 = pneg %p138
      %s210 = smul.u32 8, %s20
      %p211 = scmp.lt.s32.totalorder %s19, 1
      %s212 = scalar_select %p211, %s19, 1
      %p213 = scmp.lt.s32.totalorder %s210, 7
      %s214 = scalar_select %p213, %s210, 7
      %s215 = smul.addr %s212, 8
      %s216 = sadd.s32 %s214, %s215
      %s217 = smul.addr %s216, 4
      %s218 = scalar_lea.vmem %s4, %s217
      %s219 = smul.u32 8, %s20
      %p220 = scmp.lt.s32.totalorder %s19, 1
      %s221 = scalar_select %p220, %s19, 1
      %p222 = scmp.lt.s32.totalorder %s219, 7
      %s223 = scalar_select %p222, %s219, 7
      %s224 = smul.addr %s223, 2
      %s225 = smul.addr %s221, 16
      %s226 = sadd.s32 %s224, %s225
      %s227 = smul.addr %s226, 4
      %s228 = scalar_lea.vmem %s0, %s227
      %s229 = smul.u32 8, %s20
      %s230 = smul.u32 8, %s20
      %p231 = scmp.lt.s32.totalorder %s19, 1
      %s232 = scalar_select %p231, %s19, 1
      %p233 = scmp.lt.s32.totalorder %s230, 7
      %s234 = scalar_select %p233, %s230, 7
      %s235 = smul.addr %s232, 8
      %s236 = sadd.s32 %s234, %s235
      %s237 = smul.addr %s236, 4
      %s238 = scalar_lea.vmem %s4, %s237
      %s239 = smul.u32 8, %s20
      %v241 = vld [vmem:[%s228] sm:$0xff]
      %v242 = vld [vmem:[%s228 + $0x8] sm:$0xff]
      %v243 = vld [vmem:[%s228 + $0x10] sm:$0xff]
      %v244 = vld [vmem:[%s228 + $0x18] sm:$0xff]
      %v245 = vld [vmem:[%s228 + $0x20] sm:$0xff]
      %v246 = vld [vmem:[%s228 + $0x28] sm:$0xff]
      %v247 = vld [vmem:[%s228 + $0x30] sm:$0xff]
      %v248 = vld [vmem:[%s228 + $0x38] sm:$0xff]
      %v249 = vld [vmem:[%s1] sm:$0xf]
      %v250 = vld [vmem:[%s1 + $0x4] sm:$0xf]
      %v251 = vld [vmem:[%s1 + $0x8] sm:$0xf]
      %v252 = vld [vmem:[%s1 + $0xc] sm:$0xf]
      %v253 = vld [vmem:[%s1 + $0x10] sm:$0xf]
      %v254 = vld [vmem:[%s1 + $0x14] sm:$0xf]
      %v255 = vld [vmem:[%s1 + $0x18] sm:$0xf]
      %v256 = vld [vmem:[%s1 + $0x1c] sm:$0xf]
      %v257 = vld [vmem:[%s1 + $0x20] sm:$0xf]
      %v258 = vld [vmem:[%s1 + $0x24] sm:$0xf]
      %v259 = vld [vmem:[%s1 + $0x28] sm:$0xf]
      %v260 = vld [vmem:[%s1 + $0x2c] sm:$0xf]
      %v261 = vld [vmem:[%s1 + $0x30] sm:$0xf]
      %v262 = vld [vmem:[%s1 + $0x34] sm:$0xf]
      %v263 = vld [vmem:[%s1 + $0x38] sm:$0xf]
      %v264 = vld [vmem:[%s1 + $0x3c] sm:$0xf]
      %v265 = vld [vmem:[%s1 + $0x40] sm:$0xf]
      %v266 = vld [vmem:[%s1 + $0x44] sm:$0xf]
      %v275 = vunpack.c.l.b16 %v241
      %v276 = vunpack.c.h.b16 %v241
      %v277 = vunpack.c.l.b16 %v242
      %v278 = vunpack.c.h.b16 %v242
      %v279 = vunpack.c.l.b16 %v243
      %v280 = vunpack.c.h.b16 %v243
      %v281 = vunpack.c.l.b16 %v244
      %v282 = vunpack.c.h.b16 %v244
      %v283 = vunpack.c.l.b16 %v245
      %v284 = vunpack.c.h.b16 %v245
      %v285 = vunpack.c.l.b16 %v246
      %v286 = vunpack.c.h.b16 %v246
      %v287 = vunpack.c.l.b16 %v247
      %v288 = vunpack.c.h.b16 %v247
      %v289 = vunpack.c.l.b16 %v248
      %v290 = vunpack.c.h.b16 %v248
      %v291 = vpack.c.b16 %v277, %v275
      %v292 = vpack.c.b16 %v278, %v276
      %v293 = vpack.c.b16 %v281, %v279
      %v294 = vpack.c.b16 %v282, %v280
      %v295 = vpack.c.b16 %v285, %v283
      %v296 = vpack.c.b16 %v286, %v284
      %v297 = vpack.c.b16 %v289, %v287
      %v298 = vpack.c.b16 %v290, %v288
      %v321 = vunpack.c.l.b16 %v249
      %v322 = vunpack.c.l.b16 %v250
      %v323 = vunpack.c.l.b16 %v251
      %v324 = vunpack.c.l.b16 %v252
      %v325 = vunpack.c.l.b16 %v253
      %v326 = vunpack.c.l.b16 %v254
      %v327 = vunpack.c.l.b16 %v255
      %v328 = vunpack.c.l.b16 %v256
      %v329 = vunpack.c.l.b16 %v257
      %v330 = vunpack.c.l.b16 %v258
      %v331 = vunpack.c.l.b16 %v259
      %v332 = vunpack.c.l.b16 %v260
      %v333 = vunpack.c.l.b16 %v261
      %v334 = vunpack.c.l.b16 %v262
      %v335 = vunpack.c.l.b16 %v263
      %v336 = vunpack.c.l.b16 %v264
      %v337 = vunpack.c.l.b16 %v265
      %v338 = vunpack.c.l.b16 %v266
      %v339 = vpack.c.b16 %v322, %v321
      %v340 = vpack.c.b16 %v324, %v323
      %v341 = vpack.c.b16 %v326, %v325
      %v342 = vpack.c.b16 %v328, %v327
      %v343 = vpack.c.b16 %v330, %v329
      %v344 = vpack.c.b16 %v332, %v331
      %v345 = vpack.c.b16 %v334, %v333
      %v346 = vpack.c.b16 %v336, %v335
      %v347 = vpack.c.b16 %v338, %v337
      %vm357 = vcmask 130048
      %v359 = vsel %vm357, %v292, 0
      %v362 = vsel %vm357, %v294, 0
      %v365 = vsel %vm357, %v296, 0
      %v368 = vsel %vm357, %v298, 0
      %370 = vmatpush.bf16.msra.mxu0 %v346
      %371 = vmatpush.bf16.msra.mxu0 %v345
      %372 = vmatpush.bf16.msra.mxu0 %v344
      %373 = vmatpush.bf16.msra.mxu0 %v343
      %374 = vmatpush.bf16.msra.mxu0 %v342
      %375 = vmatpush.bf16.msra.mxu0 %v341
      %376 = vmatpush.bf16.msra.mxu0 %v340
      %377 = vmatpush.bf16.msra.mxu0 %v339
      %378 = vmatmul.bf16.gmra.mxu0 %v291
      %v379 = vpop.f32.mrf.mxu0
      %v380 = vadd.f32 0.0, %v379
      %v381 = vpop.f32.mrf.mxu0
      %v382 = vadd.f32 0.0, %v381
      %383 = vmatmul.bf16.gmra.mxu0 %v293
      %v384 = vpop.f32.mrf.mxu0
      %v385 = vadd.f32 0.0, %v384
      %v386 = vpop.f32.mrf.mxu0
      %v387 = vadd.f32 0.0, %v386
      %388 = vmatmul.bf16.gmra.mxu0 %v295
      %v389 = vpop.f32.mrf.mxu0
      %v390 = vadd.f32 0.0, %v389
      %v391 = vpop.f32.mrf.mxu0
      %v392 = vadd.f32 0.0, %v391
      %393 = vmatmul.bf16.gmra.mxu0 %v297
      %v394 = vpop.f32.mrf.mxu0
      %v395 = vadd.f32 0.0, %v394
      %v396 = vpop.f32.mrf.mxu0
      %v397 = vadd.f32 0.0, %v396
      %398 = vdwg.mxu0
      %399 = vmatpush.bf16.msra.mxu0 0
      %400 = vmatpush.bf16.msra.mxu0 0
      %401 = vmatpush.bf16.msra.mxu0 0
      %402 = vmatpush.bf16.msra.mxu0 0
      %403 = vmatpush.bf16.msra.mxu0 0
      %404 = vmatpush.bf16.msra.mxu0 0
      %405 = vmatpush.bf16.msra.mxu0 0
      %406 = vmatpush.bf16.msra.mxu0 %v347
      %407 = vmatmul.bf16.gmra.mxu0 %v359
      %v408 = vpop.f32.mrf.mxu0
      %v409 = vadd.f32 %v380, %v408
      %v410 = vpop.f32.mrf.mxu0
      %v411 = vadd.f32 %v382, %v410
      %412 = vmatmul.bf16.gmra.mxu0 %v362
      %v413 = vpop.f32.mrf.mxu0
      %v414 = vadd.f32 %v385, %v413
      %v415 = vpop.f32.mrf.mxu0
      %v416 = vadd.f32 %v387, %v415
      %417 = vmatmul.bf16.gmra.mxu0 %v365
      %v418 = vpop.f32.mrf.mxu0
      %v419 = vadd.f32 %v390, %v418
      %v420 = vpop.f32.mrf.mxu0
      %v421 = vadd.f32 %v392, %v420
      %422 = vmatmul.bf16.gmra.mxu0 %v368
      %v423 = vpop.f32.mrf.mxu0
      %v424 = vadd.f32 %v395, %v423
      %v425 = vpop.f32.mrf.mxu0
      %v426 = vadd.f32 %v397, %v425
      %427 = vdwg.mxu0
      %v428 = vld [vmem:[%s2] sm:$0x1]
      %v430 = vperm.slane %v428, 0
      %v432 = vmul.f32 %v409, %v430
      %v433 = vmul.f32 %v411, %v430
      %v434 = vmul.f32 %v414, %v430
      %v435 = vmul.f32 %v416, %v430
      %v436 = vmul.f32 %v419, %v430
      %v437 = vmul.f32 %v421, %v430
      %v438 = vmul.f32 %v424, %v430
      %v439 = vmul.f32 %v426, %v430
      %v440 = vld [vmem:[%s3] sm:$0x1]
      %v442 = vperm.slane %v440, 0
      %v444 = vadd.f32 %v432, %v442
      %v445 = vadd.f32 %v433, %v442
      %v446 = vadd.f32 %v434, %v442
      %v447 = vadd.f32 %v435, %v442
      %v448 = vadd.f32 %v436, %v442
      %v449 = vadd.f32 %v437, %v442
      %v450 = vadd.f32 %v438, %v442
      %v451 = vadd.f32 %v439, %v442
      %vm452 = vcmp.ge.f32.partialorder %v444, 0.0
      %vm453 = vcmp.ge.f32.partialorder %v445, 0.0
      %vm454 = vcmp.ge.f32.partialorder %v446, 0.0
      %vm455 = vcmp.ge.f32.partialorder %v447, 0.0
      %vm456 = vcmp.ge.f32.partialorder %v448, 0.0
      %vm457 = vcmp.ge.f32.partialorder %v449, 0.0
      %vm458 = vcmp.ge.f32.partialorder %v450, 0.0
      %vm459 = vcmp.ge.f32.partialorder %v451, 0.0
      %v460 = vmul.f32 %v444, 0.01
      %v461 = vmul.f32 %v445, 0.01
      %v462 = vmul.f32 %v446, 0.01
      %v463 = vmul.f32 %v447, 0.01
      %v464 = vmul.f32 %v448, 0.01
      %v465 = vmul.f32 %v449, 0.01
      %v466 = vmul.f32 %v450, 0.01
      %v467 = vmul.f32 %v451, 0.01
      %v468 = vsel %vm452, %v444, %v460
      %v469 = vsel %vm453, %v445, %v461
      %v470 = vsel %vm454, %v446, %v462
      %v471 = vsel %vm455, %v447, %v463
      %v472 = vsel %vm456, %v448, %v464
      %v473 = vsel %vm457, %v449, %v465
      %v474 = vsel %vm458, %v450, %v466
      %v475 = vsel %vm459, %v451, %v467
      %v476 = vpack.c.bf16 %v468, %v468
      %v477 = vpack.c.bf16 %v469, %v469
      %v478 = vpack.c.bf16 %v470, %v470
      %v479 = vpack.c.bf16 %v471, %v471
      %v480 = vpack.c.bf16 %v472, %v472
      %v481 = vpack.c.bf16 %v473, %v473
      %v482 = vpack.c.bf16 %v474, %v474
      %v483 = vpack.c.bf16 %v475, %v475
      %vm484 = vcmask 257024
      %485 = vst.msk [vmem:[%s238] sm:$0xf] %vm484, %v476
      %486 = vst.msk [vmem:[%s238 + $0x4] sm:$0xf] %vm484, %v477
      %487 = vst.msk [vmem:[%s238 + $0x8] sm:$0xf] %vm484, %v478
      %488 = vst.msk [vmem:[%s238 + $0xc] sm:$0xf] %vm484, %v479
      %489 = vst.msk [vmem:[%s238 + $0x10] sm:$0xf] %vm484, %v480
      %490 = vst.msk [vmem:[%s238 + $0x14] sm:$0xf] %vm484, %v481
      %491 = vst.msk [vmem:[%s238 + $0x18] sm:$0xf] %vm484, %v482
      %492 = vst.msk [vmem:[%s238 + $0x1c] sm:$0xf] %vm484, %v483
      %s493 = smul.u32 8, %s20
      %p494 = scmp.lt.s32.totalorder %s19, 1
      %s495 = scalar_select %p494, %s19, 1
      %p496 = scmp.lt.s32.totalorder %s493, 7
      %s497 = scalar_select %p496, %s493, 7
      %s498 = smul.addr %s495, 8
      %s499 = sadd.s32 %s497, %s498
      %s500 = smul.addr %s499, 4
      %s501 = scalar_lea.vmem %s4, %s500
      // Predicated region
      $region37: #{conv_with_conn_forward.17} parent=35 // pred_check
        %p502 = pneg %p138
      $region38: #{conv_with_conn_forward.17} parent=35 // pred_check_branch
        %504 = sbr.rel (%p502) target = $region40
      $region39: #{conv_with_conn_forward.17} parent=35 // pred_region
        %s505 = smul.u32 8, %s20
      $region40: #{conv_with_conn_forward.17} parent=35 // pred_fallthru
        _
    $region36: #{conv_with_conn_forward.17} parent=5 // pred_fallthru
      _
    %p506 = scmp.le.s32.totalorder 2, %s10
    // Predicated region
    $region41: #{conv_with_conn_forward.17} parent=5 // pred_check
      %p507 = pneg %p506
    $region42: #{conv_with_conn_forward.17} parent=5 // pred_check_branch
      %509 = sbr.rel (%p507) target = $region44
    $region43: #{conv_with_conn_forward.17} parent=5 // pred_region
      %s510 = ssub.s32 %s10, 2
      // Predicated region
      $region45: #{conv_with_conn_forward.17} parent=43 // pred_check
        %p511 = pneg %p144
      $region46: #{conv_with_conn_forward.17} parent=43 // pred_check_branch
        %513 = sbr.rel (%p511) target = $region48
      $region47: #{conv_with_conn_forward.17} parent=43 // pred_region
        %s514 = smul.u32 8, %s22
        %p515 = scmp.lt.s32.totalorder %s21, 1
        %s516 = scalar_select %p515, %s21, 1
        %p517 = scmp.lt.s32.totalorder %s514, 7
        %s518 = scalar_select %p517, %s514, 7
        %s519 = smul.addr %s516, 8
        %s520 = sadd.s32 %s518, %s519
        %s521 = smul.addr %s520, 4
        %s522 = scalar_lea.vmem %s4, %s521
      $region48: #{conv_with_conn_forward.17} parent=43 // pred_fallthru
        _
    $region44: #{conv_with_conn_forward.17} parent=5 // pred_fallthru
      _
  $region6: #{conv_with_conn_forward.17} parent=0 // loop_footer
    %s14 = sadd.s32 1, %s10
  $region7: #{conv_with_conn_forward.17} parent=0 // loop_footer_branch
    %9 = sbr.rel target = $region3
  $region8: #{conv_with_conn_forward.17} parent=0 // loop_exit
    _

// kernel: conv_with_conn_forward.19
$region0: #{conv_with_conn_forward.19}
  #allocation0 [shape = 'u32[]', space=smem, size = 0x4, offset = 0x4, fixed_abs, tag = 'smem constant byte address 0x4 - core index']
  #allocation1 [shape = 'u32[72,128]{1,0:T(1,128)}', space=vmem, size = 0x9000, scoped, tag = 'internal scratch']
  %s0 = inlined_call_operand.vmem [shape: bf16[2,4,16,32], index: 0, kind: input, shape index: {}]
  %s1 = inlined_call_operand.vmem [shape: bf16[2,16,32], index: 1, kind: output, shape index: {}]
  %s2 = sld [smem:[#allocation0]]
  $region37: #{conv_with_conn_forward.19} parent=0
    _
  %s4 = ssub.s32 1, %s2
  %s5 = scalar_select 0, %s4, %s2
  loop: start=0, step=1, limit=4
  $region2: #{conv_with_conn_forward.19} parent=0 // loop_pre_header
    _
  $region3: #{conv_with_conn_forward.19} parent=0 // loop_header
    %s7 = sphi 0, %s11
    %p8 = scmp.ge.s32.totalorder %s7, 4
    %s17 = sphi 0, %s19
    %s20 = sphi 0, %s17
    %s21 = sphi 0, %s20
    %s37 = sphi 0, %s21
    %s43 = sphi 0, %s45
    %s46 = sphi 0, %s43
    %s47 = sphi 0, %s46
    %s63 = sphi 0, %s47
  $region4: #{conv_with_conn_forward.19} parent=0 // loop_header_branch
    %10 = sbr.rel (%p8) target = $region8
  $region5: #{conv_with_conn_forward.19} parent=0 // loop_body
    %s12 = ssub.s32 %s7, 1
    %s13 = ssub.s32 %s7, 2
    %s14 = sadd.s32 %s7, 1
    %s15 = ssub.s32 %s7, %s14
    %p16 = scmp.eq.s32.totalorder %s15, 0
    %s18 = sadd.s32 %s17, 1
    %s19 = scalar_select %p16, %s17, %s18
    %p22 = pneg %p16
    %p23 = scmp.eq.s32.totalorder %s7, 1
    %p24 = por %p22, %p23
    %p25 = scmp.ne.s32.totalorder %s17, %s20
    %p26 = scmp.eq.s32.totalorder %s7, 0
    %p27 = por %p25, %p26
    %p28 = scmp.ne.s32.totalorder %s17, %s20
    %p29 = scmp.eq.s32.totalorder %s12, 1
    %p30 = por %p28, %p29
    %p31 = scmp.ne.s32.totalorder %s20, %s21
    %p32 = scmp.eq.s32.totalorder %s12, 0
    %p33 = por %p31, %p32
    %p34 = scmp.ne.s32.totalorder %s20, %s21
    %p35 = scmp.eq.s32.totalorder %s13, 1
    %p36 = por %p34, %p35
    %p38 = scmp.ne.s32.totalorder %s21, %s37
    %p39 = scmp.eq.s32.totalorder %s13, 0
    %p40 = por %p38, %p39
    %s41 = ssub.s32 %s7, %s14
    %p42 = scmp.eq.s32.totalorder %s41, 0
    %s44 = sadd.s32 %s43, 1
    %s45 = scalar_select %p42, %s43, %s44
    %p48 = pneg %p42
    %p49 = scmp.eq.s32.totalorder %s7, 1
    %p50 = por %p48, %p49
    %p51 = scmp.ne.s32.totalorder %s43, %s46
    %p52 = scmp.eq.s32.totalorder %s7, 0
    %p53 = por %p51, %p52
    %p54 = scmp.ne.s32.totalorder %s43, %s46
    %p55 = scmp.eq.s32.totalorder %s12, 1
    %p56 = por %p54, %p55
    %p57 = scmp.ne.s32.totalorder %s46, %s47
    %p58 = scmp.eq.s32.totalorder %s12, 0
    %p59 = por %p57, %p58
    %p60 = scmp.ne.s32.totalorder %s46, %s47
    %p61 = scmp.eq.s32.totalorder %s13, 1
    %p62 = por %p60, %p61
    %p64 = scmp.ne.s32.totalorder %s47, %s63
    %p65 = scmp.eq.s32.totalorder %s13, 0
    %p66 = por %p64, %p65
    %p67 = scmp.le.s32.totalorder 1, %s7
    %p68 = scmp.lt.s32.totalorder %s7, 3
    %p69 = pnand %p67, %p68
    %p70 = pneg %p69
    // Predicated region
    $region9: #{conv_with_conn_forward.19} parent=5 // pred_check
      _
    $region10: #{conv_with_conn_forward.19} parent=5 // pred_check_branch
      %72 = sbr.rel (%p69) target = $region12
    $region11: #{conv_with_conn_forward.19} parent=5 // pred_region
      %s73 = ssub.s32 %s7, 1
    $region12: #{conv_with_conn_forward.19} parent=5 // pred_fallthru
      _
    %p74 = scmp.lt.s32.totalorder %s7, 2
    // Predicated region
    $region13: #{conv_with_conn_forward.19} parent=5 // pred_check
      %p75 = pneg %p74
    $region14: #{conv_with_conn_forward.19} parent=5 // pred_check_branch
      %77 = sbr.rel (%p75) target = $region16
    $region15: #{conv_with_conn_forward.19} parent=5 // pred_region
      // Predicated region
      $region17: #{conv_with_conn_forward.19} parent=15 // pred_check
        %p78 = pneg %p27
      $region18: #{conv_with_conn_forward.19} parent=15 // pred_check_branch
        %80 = sbr.rel (%p78) target = $region20
      $region19: #{conv_with_conn_forward.19} parent=15 // pred_region
        %p81 = scmp.lt.s32.totalorder %s7, 1
        %s82 = scalar_select %p81, %s7, 1
        %s83 = smul.addr %s82, 8
        %s84 = smul.addr %s83, 4
        %s85 = scalar_lea.vmem %s0, %s84
      $region20: #{conv_with_conn_forward.19} parent=15 // pred_fallthru
        _
    $region16: #{conv_with_conn_forward.19} parent=5 // pred_fallthru
      _
    %p86 = scmp.le.s32.totalorder 1, %s7
    %p87 = scmp.lt.s32.totalorder %s7, 3
    %p88 = pnand %p86, %p87
    %p89 = pneg %p88
    // Predicated region
    $region21: #{conv_with_conn_forward.19} parent=5 // pred_check
      _
    $region22: #{conv_with_conn_forward.19} parent=5 // pred_check_branch
      %91 = sbr.rel (%p88) target = $region24
    $region23: #{conv_with_conn_forward.19} parent=5 // pred_region
      %s92 = ssub.s32 %s7, 1
      %p93 = scmp.lt.s32.totalorder %s12, 1
      %s94 = scalar_select %p93, %s12, 1
      %s95 = smul.addr %s94, 8
      %s96 = smul.addr %s95, 4
      %s97 = scalar_lea.vmem %s0, %s96
      %p98 = pneg %p33
      %p99 = pneg %p30
      %p100 = pneg %p59
      %p101 = pneg %p56
      %p102 = scmp.lt.s32.totalorder %s12, 1
      %s103 = scalar_select %p102, %s12, 1
      %s104 = smul.addr %s103, 2
      %s105 = smul.addr %s104, 4
      %s106 = scalar_lea.vmem %s1, %s105
      %p107 = scmp.lt.s32.totalorder %s12, 1
      %s108 = scalar_select %p107, %s12, 1
      %s109 = smul.addr %s108, 8
      %s110 = smul.addr %s109, 4
      %s111 = scalar_lea.vmem %s0, %s110
      %p112 = scmp.lt.s32.totalorder %s12, 1
      %s113 = scalar_select %p112, %s12, 1
      %s114 = smul.addr %s113, 2
      %s115 = smul.addr %s114, 4
      %s116 = scalar_lea.vmem %s1, %s115
      %v117 = vld [vmem:[%s111] sm:$0xf]
      %v118 = vld [vmem:[%s111 + $0x4] sm:$0xf]
      %s119 = scalar_lea.vmem %s111, 8
      %v120 = vld [vmem:[%s119] sm:$0xf]
      %v121 = vld [vmem:[%s119 + $0x4] sm:$0xf]
      %v122 = vunpack.c.l.bf16 %v117
      %v123 = vunpack.c.l.bf16 %v118
      %v124 = vunpack.c.l.bf16 %v120
      %v125 = vunpack.c.l.bf16 %v121
      %v126 = vmax.f32 %v122, %v124
      %v127 = vmax.f32 %v123, %v125
      %v128 = vpack.c.bf16 %v126, %v126
      %v129 = vpack.c.bf16 %v127, %v127
      %s130 = scalar_lea.vmem %s111, 16
      %v131 = vld [vmem:[%s130] sm:$0xf]
      %v132 = vld [vmem:[%s130 + $0x4] sm:$0xf]
      %s133 = scalar_lea.vmem %s111, 24
      %v134 = vld [vmem:[%s133] sm:$0xf]
      %v135 = vld [vmem:[%s133 + $0x4] sm:$0xf]
      %v136 = vunpack.c.l.bf16 %v131
      %v137 = vunpack.c.l.bf16 %v132
      %v138 = vunpack.c.l.bf16 %v134
      %v139 = vunpack.c.l.bf16 %v135
      %v140 = vmax.f32 %v136, %v138
      %v141 = vmax.f32 %v137, %v139
      %v142 = vpack.c.bf16 %v140, %v140
      %v143 = vpack.c.bf16 %v141, %v141
      %v144 = vunpack.c.l.bf16 %v128
      %v145 = vunpack.c.l.bf16 %v129
      %v146 = vunpack.c.l.bf16 %v142
      %v147 = vunpack.c.l.bf16 %v143
      %v148 = vmax.f32 %v144, %v146
      %v149 = vmax.f32 %v145, %v147
      %v150 = vpack.c.bf16 %v148, %v148
      %v151 = vpack.c.bf16 %v149, %v149
      %vm152 = vcmask 257024
      %153 = vst.msk [vmem:[%s116] sm:$0xf] %vm152, %v150
      %154 = vst.msk [vmem:[%s116 + $0x4] sm:$0xf] %vm152, %v151
      %p155 = scmp.lt.s32.totalorder %s12, 1
      %s156 = scalar_select %p155, %s12, 1
      %s157 = smul.addr %s156, 2
      %s158 = smul.addr %s157, 4
      %s159 = scalar_lea.vmem %s1, %s158
      // Predicated region
      $region25: #{conv_with_conn_forward.19} parent=23 // pred_check
        %p160 = pneg %p56
      $region26: #{conv_with_conn_forward.19} parent=23 // pred_check_branch
        %162 = sbr.rel (%p160) target = $region28
      $region27: #{conv_with_conn_forward.19} parent=23 // pred_region
        _
      $region28: #{conv_with_conn_forward.19} parent=23 // pred_fallthru
        _
    $region24: #{conv_with_conn_forward.19} parent=5 // pred_fallthru
      _
    %p163 = scmp.le.s32.totalorder 2, %s7
    // Predicated region
    $region29: #{conv_with_conn_forward.19} parent=5 // pred_check
      %p164 = pneg %p163
    $region30: #{conv_with_conn_forward.19} parent=5 // pred_check_branch
      %166 = sbr.rel (%p164) target = $region32
    $region31: #{conv_with_conn_forward.19} parent=5 // pred_region
      %s167 = ssub.s32 %s7, 2
      // Predicated region
      $region33: #{conv_with_conn_forward.19} parent=31 // pred_check
        %p168 = pneg %p62
      $region34: #{conv_with_conn_forward.19} parent=31 // pred_check_branch
        %170 = sbr.rel (%p168) target = $region36
      $region35: #{conv_with_conn_forward.19} parent=31 // pred_region
        %p171 = scmp.lt.s32.totalorder %s13, 1
        %s172 = scalar_select %p171, %s13, 1
        %s173 = smul.addr %s172, 2
        %s174 = smul.addr %s173, 4
        %s175 = scalar_lea.vmem %s1, %s174
      $region36: #{conv_with_conn_forward.19} parent=31 // pred_fallthru
        _
    $region32: #{conv_with_conn_forward.19} parent=5 // pred_fallthru
      _
  $region6: #{conv_with_conn_forward.19} parent=0 // loop_footer
    %s11 = sadd.s32 1, %s7
  $region7: #{conv_with_conn_forward.19} parent=0 // loop_footer_branch
    %6 = sbr.rel target = $region3
  $region8: #{conv_with_conn_forward.19} parent=0 // loop_exit
    _

// kernel: conv_with_conn_forward.20
$region0: #{conv_with_conn_forward.20}
  #allocation0 [shape = 'u32[]', space=smem, size = 0x4, offset = 0x4, fixed_abs, tag = 'smem constant byte address 0x4 - core index']
  #allocation1 [shape = 'u32[72,128]{1,0:T(1,128)}', space=vmem, size = 0x9000, scoped, tag = 'internal scratch']
  %s0 = inlined_call_operand.vmem [shape: bf16[2,16,288], index: 0, kind: input, shape index: {}]
  %s1 = inlined_call_operand.vmem [shape: bf16[288,64], index: 1, kind: input, shape index: {}]
  %s2 = inlined_call_operand.vmem [shape: f32[1,64], index: 2, kind: input, shape index: {}]
  %s3 = inlined_call_operand.vmem [shape: f32[1,64], index: 3, kind: input, shape index: {}]
  %s4 = inlined_call_operand.vmem [shape: bf16[2,16,64], index: 4, kind: output, shape index: {}]
  %s5 = sld [smem:[#allocation0]]
  $region49: #{conv_with_conn_forward.20} parent=0
    _
  %s7 = ssub.s32 1, %s5
  %s8 = scalar_select 0, %s7, %s5
  loop: start=0, step=1, limit=4
  $region2: #{conv_with_conn_forward.20} parent=0 // loop_pre_header
    _
  $region3: #{conv_with_conn_forward.20} parent=0 // loop_header
    %s10 = sphi 0, %s14
    %p11 = scmp.ge.s32.totalorder %s10, 4
    %s17 = sphi 0, %s29
    %s18 = sphi 0, %s25
    %s19 = sphi 0, %s17
    %s20 = sphi 0, %s18
    %s21 = sphi 0, %s19
    %s22 = sphi 0, %s20
    %s34 = sphi 0, %s36
    %s37 = sphi 0, %s34
    %s38 = sphi 0, %s37
    %s54 = sphi 0, %s38
    %s58 = sphi 0, %s58
    %s60 = sphi 0, %s58
    %s61 = sphi 0, %s60
    %s75 = sphi 0, %s61
    %s79 = sphi 0, %s79
    %s81 = sphi 0, %s79
    %s82 = sphi 0, %s81
    %s96 = sphi 0, %s82
    %s100 = sphi 0, %s100
    %s102 = sphi 0, %s100
    %s103 = sphi 0, %s102
    %s117 = sphi 0, %s103
    %s125 = sphi 0, %s127
    %s128 = sphi 0, %s125
    %s129 = sphi 0, %s128
    %s145 = sphi 0, %s129
  $region4: #{conv_with_conn_forward.20} parent=0 // loop_header_branch
    %13 = sbr.rel (%p11) target = $region8
  $region5: #{conv_with_conn_forward.20} parent=0 // loop_body
    %s15 = ssub.s32 %s10, 1
    %s16 = ssub.s32 %s10, 2
    %s23 = sadd.s32 1, %s18
    %p24 = scmp.ge.s32.totalorder %s23, 1
    %s25 = scalar_select %p24, 0, %s23
    %s26 = sadd.s32 1, %s17
    %s27 = scalar_select %p24, %s26, %s17
    %p28 = scmp.ge.s32.totalorder %s27, 2
    %s29 = scalar_select %p28, 0, %s27
    %s30 = ssub.s32 %s17, %s29
    %s31 = ssub.s32 %s18, %s25
    %s32 = sor.u32 %s30, %s31
    %p33 = scmp.eq.s32.totalorder %s32, 0
    %s35 = sadd.s32 %s34, 1
    %s36 = scalar_select %p33, %s34, %s35
    %p39 = pneg %p33
    %p40 = scmp.eq.s32.totalorder %s10, 1
    %p41 = por %p39, %p40
    %p42 = scmp.ne.s32.totalorder %s34, %s37
    %p43 = scmp.eq.s32.totalorder %s10, 0
    %p44 = por %p42, %p43
    %p45 = scmp.ne.s32.totalorder %s34, %s37
    %p46 = scmp.eq.s32.totalorder %s15, 1
    %p47 = por %p45, %p46
    %p48 = scmp.ne.s32.totalorder %s37, %s38
    %p49 = scmp.eq.s32.totalorder %s15, 0
    %p50 = por %p48, %p49
    %p51 = scmp.ne.s32.totalorder %s37, %s38
    %p52 = scmp.eq.s32.totalorder %s16, 1
    %p53 = por %p51, %p52
    %p55 = scmp.ne.s32.totalorder %s38, %s54
    %p56 = scmp.eq.s32.totalorder %s16, 0
    %p57 = por %p55, %p56
    %s59 = sadd.s32 %s58, 1
    %p62 = scmp.eq.s32.totalorder %s10, 1
    %p63 = scmp.ne.s32.totalorder %s58, %s60
    %p64 = scmp.eq.s32.totalorder %s10, 0
    %p65 = por %p63, %p64
    %p66 = scmp.ne.s32.totalorder %s58, %s60
    %p67 = scmp.eq.s32.totalorder %s15, 1
    %p68 = por %p66, %p67
    %p69 = scmp.ne.s32.totalorder %s60, %s61
    %p70 = scmp.eq.s32.totalorder %s15, 0
    %p71 = por %p69, %p70
    %p72 = scmp.ne.s32.totalorder %s60, %s61
    %p73 = scmp.eq.s32.totalorder %s16, 1
    %p74 = por %p72, %p73
    %p76 = scmp.ne.s32.totalorder %s61, %s75
    %p77 = scmp.eq.s32.totalorder %s16, 0
    %p78 = por %p76, %p77
    %s80 = sadd.s32 %s79, 1
    %p83 = scmp.eq.s32.totalorder %s10, 1
    %p84 = scmp.ne.s32.totalorder %s79, %s81
    %p85 = scmp.eq.s32.totalorder %s10, 0
    %p86 = por %p84, %p85
    %p87 = scmp.ne.s32.totalorder %s79, %s81
    %p88 = scmp.eq.s32.totalorder %s15, 1
    %p89 = por %p87, %p88
    %p90 = scmp.ne.s32.totalorder %s81, %s82
    %p91 = scmp.eq.s32.totalorder %s15, 0
    %p92 = por %p90, %p91
    %p93 = scmp.ne.s32.totalorder %s81, %s82
    %p94 = scmp.eq.s32.totalorder %s16, 1
    %p95 = por %p93, %p94
    %p97 = scmp.ne.s32.totalorder %s82, %s96
    %p98 = scmp.eq.s32.totalorder %s16, 0
    %p99 = por %p97, %p98
    %s101 = sadd.s32 %s100, 1
    %p104 = scmp.eq.s32.totalorder %s10, 1
    %p105 = scmp.ne.s32.totalorder %s100, %s102
    %p106 = scmp.eq.s32.totalorder %s10, 0
    %p107 = por %p105, %p106
    %p108 = scmp.ne.s32.totalorder %s100, %s102
    %p109 = scmp.eq.s32.totalorder %s15, 1
    %p110 = por %p108, %p109
    %p111 = scmp.ne.s32.totalorder %s102, %s103
    %p112 = scmp.eq.s32.totalorder %s15, 0
    %p113 = por %p111, %p112
    %p114 = scmp.ne.s32.totalorder %s102, %s103
    %p115 = scmp.eq.s32.totalorder %s16, 1
    %p116 = por %p114, %p115
    %p118 = scmp.ne.s32.totalorder %s103, %s117
    %p119 = scmp.eq.s32.totalorder %s16, 0
    %p120 = por %p118, %p119
    %s121 = ssub.s32 %s17, %s29
    %s122 = ssub.s32 %s18, %s25
    %s123 = sor.u32 %s121, %s122
    %p124 = scmp.eq.s32.totalorder %s123, 0
    %s126 = sadd.s32 %s125, 1
    %s127 = scalar_select %p124, %s125, %s126
    %p130 = pneg %p124
    %p131 = scmp.eq.s32.totalorder %s10, 1
    %p132 = por %p130, %p131
    %p133 = scmp.ne.s32.totalorder %s125, %s128
    %p134 = scmp.eq.s32.totalorder %s10, 0
    %p135 = por %p133, %p134
    %p136 = scmp.ne.s32.totalorder %s125, %s128
    %p137 = scmp.eq.s32.totalorder %s15, 1
    %p138 = por %p136, %p137
    %p139 = scmp.ne.s32.totalorder %s128, %s129
    %p140 = scmp.eq.s32.totalorder %s15, 0
    %p141 = por %p139, %p140
    %p142 = scmp.ne.s32.totalorder %s128, %s129
    %p143 = scmp.eq.s32.totalorder %s16, 1
    %p144 = por %p142, %p143
    %p146 = scmp.ne.s32.totalorder %s129, %s145
    %p147 = scmp.eq.s32.totalorder %s16, 0
    %p148 = por %p146, %p147
    %p149 = scmp.le.s32.totalorder 1, %s10
    %p150 = scmp.lt.s32.totalorder %s10, 3
    %p151 = pnand %p149, %p150
    %p152 = pneg %p151
    // Predicated region
    $region9: #{conv_with_conn_forward.20} parent=5 // pred_check
      _
    $region10: #{conv_with_conn_forward.20} parent=5 // pred_check_branch
      %154 = sbr.rel (%p151) target = $region12
    $region11: #{conv_with_conn_forward.20} parent=5 // pred_region
      %s155 = ssub.s32 %s10, 1
      // Predicated region
      $region13: #{conv_with_conn_forward.20} parent=11 // pred_check
        %p156 = pneg %p71
      $region14: #{conv_with_conn_forward.20} parent=11 // pred_check_branch
        %158 = sbr.rel (%p156) target = $region16
      $region15: #{conv_with_conn_forward.20} parent=11 // pred_region
        _
      $region16: #{conv_with_conn_forward.20} parent=11 // pred_fallthru
        _
      // Predicated region
      $region17: #{conv_with_conn_forward.20} parent=11 // pred_check
        %p159 = pneg %p92
      $region18: #{conv_with_conn_forward.20} parent=11 // pred_check_branch
        %161 = sbr.rel (%p159) target = $region20
      $region19: #{conv_with_conn_forward.20} parent=11 // pred_region
        _
      $region20: #{conv_with_conn_forward.20} parent=11 // pred_fallthru
        _
      // Predicated region
      $region21: #{conv_with_conn_forward.20} parent=11 // pred_check
        %p162 = pneg %p113
      $region22: #{conv_with_conn_forward.20} parent=11 // pred_check_branch
        %164 = sbr.rel (%p162) target = $region24
      $region23: #{conv_with_conn_forward.20} parent=11 // pred_region
        _
      $region24: #{conv_with_conn_forward.20} parent=11 // pred_fallthru
        _
    $region12: #{conv_with_conn_forward.20} parent=5 // pred_fallthru
      _
    %p165 = scmp.lt.s32.totalorder %s10, 2
    // Predicated region
    $region25: #{conv_with_conn_forward.20} parent=5 // pred_check
      %p166 = pneg %p165
    $region26: #{conv_with_conn_forward.20} parent=5 // pred_check_branch
      %168 = sbr.rel (%p166) target = $region28
    $region27: #{conv_with_conn_forward.20} parent=5 // pred_region
      // Predicated region
      $region29: #{conv_with_conn_forward.20} parent=27 // pred_check
        %p169 = pneg %p44
      $region30: #{conv_with_conn_forward.20} parent=27 // pred_check_branch
        %171 = sbr.rel (%p169) target = $region32
      $region31: #{conv_with_conn_forward.20} parent=27 // pred_region
        %s172 = smul.u32 2, %s18
        %p173 = scmp.lt.s32.totalorder %s17, 1
        %s174 = scalar_select %p173, %s17, 1
        %p175 = scmp.lt.s32.totalorder %s172, 1
        %s176 = scalar_select %p175, %s172, 1
        %s177 = smul.addr %s176, 3
        %s178 = smul.addr %s174, 6
        %s179 = sadd.s32 %s177, %s178
        %s180 = smul.addr %s179, 4
        %s181 = scalar_lea.vmem %s0, %s180
        %s182 = smul.u32 2, %s18
      $region32: #{conv_with_conn_forward.20} parent=27 // pred_fallthru
        _
    $region28: #{conv_with_conn_forward.20} parent=5 // pred_fallthru
      _
    %p183 = scmp.le.s32.totalorder 1, %s10
    %p184 = scmp.lt.s32.totalorder %s10, 3
    %p185 = pnand %p183, %p184
    %p186 = pneg %p185
    // Predicated region
    $region33: #{conv_with_conn_forward.20} parent=5 // pred_check
      _
    $region34: #{conv_with_conn_forward.20} parent=5 // pred_check_branch
      %188 = sbr.rel (%p185) target = $region36
    $region35: #{conv_with_conn_forward.20} parent=5 // pred_region
      %s189 = ssub.s32 %s10, 1
      %s190 = smul.u32 2, %s20
      %p191 = scmp.lt.s32.totalorder %s19, 1
      %s192 = scalar_select %p191, %s19, 1
      %p193 = scmp.lt.s32.totalorder %s190, 1
      %s194 = scalar_select %p193, %s190, 1
      %s195 = smul.addr %s194, 3
      %s196 = smul.addr %s192, 6
      %s197 = sadd.s32 %s195, %s196
      %s198 = smul.addr %s197, 4
      %s199 = scalar_lea.vmem %s0, %s198
      %p200 = pneg %p50
      %p201 = pneg %p47
      %p202 = pneg %p71
      %p203 = pneg %p68
      %p204 = pneg %p92
      %p205 = pneg %p89
      %p206 = pneg %p113
      %p207 = pneg %p110
      %p208 = pneg %p141
      %p209 = pneg %p138
      %s210 = smul.u32 2, %s20
      %p211 = scmp.lt.s32.totalorder %s19, 1
      %s212 = scalar_select %p211, %s19, 1
      %p213 = scmp.lt.s32.totalorder %s210, 1
      %s214 = scalar_select %p213, %s210, 1
      %s215 = smul.addr %s212, 2
      %s216 = sadd.s32 %s214, %s215
      %s217 = smul.addr %s216, 4
      %s218 = scalar_lea.vmem %s4, %s217
      %s219 = smul.u32 2, %s20
      %p220 = scmp.lt.s32.totalorder %s19, 1
      %s221 = scalar_select %p220, %s19, 1
      %p222 = scmp.lt.s32.totalorder %s219, 1
      %s223 = scalar_select %p222, %s219, 1
      %s224 = smul.addr %s223, 3
      %s225 = smul.addr %s221, 6
      %s226 = sadd.s32 %s224, %s225
      %s227 = smul.addr %s226, 4
      %s228 = scalar_lea.vmem %s0, %s227
      %s229 = smul.u32 2, %s20
      %s230 = smul.u32 2, %s20
      %p231 = scmp.lt.s32.totalorder %s19, 1
      %s232 = scalar_select %p231, %s19, 1
      %p233 = scmp.lt.s32.totalorder %s230, 1
      %s234 = scalar_select %p233, %s230, 1
      %s235 = smul.addr %s232, 2
      %s236 = sadd.s32 %s234, %s235
      %s237 = smul.addr %s236, 4
      %s238 = scalar_lea.vmem %s4, %s237
      %s239 = smul.u32 2, %s20
      %v241 = vld [vmem:[%s228] sm:$0xff]
      %v242 = vld [vmem:[%s228 + $0x8] sm:$0xf]
      %v243 = vld [vmem:[%s228 + $0xc] sm:$0xff]
      %v244 = vld [vmem:[%s228 + $0x14] sm:$0xf]
      %v245 = vld [vmem:[%s1] sm:$0xf]
      %v246 = vld [vmem:[%s1 + $0x4] sm:$0xf]
      %v247 = vld [vmem:[%s1 + $0x8] sm:$0xf]
      %v248 = vld [vmem:[%s1 + $0xc] sm:$0xf]
      %v249 = vld [vmem:[%s1 + $0x10] sm:$0xf]
      %v250 = vld [vmem:[%s1 + $0x14] sm:$0xf]
      %v251 = vld [vmem:[%s1 + $0x18] sm:$0xf]
      %v252 = vld [vmem:[%s1 + $0x1c] sm:$0xf]
      %v253 = vld [vmem:[%s1 + $0x20] sm:$0xf]
      %v254 = vld [vmem:[%s1 + $0x24] sm:$0xf]
      %v255 = vld [vmem:[%s1 + $0x28] sm:$0xf]
      %v256 = vld [vmem:[%s1 + $0x2c] sm:$0xf]
      %v257 = vld [vmem:[%s1 + $0x30] sm:$0xf]
      %v258 = vld [vmem:[%s1 + $0x34] sm:$0xf]
      %v259 = vld [vmem:[%s1 + $0x38] sm:$0xf]
      %v260 = vld [vmem:[%s1 + $0x3c] sm:$0xf]
      %v261 = vld [vmem:[%s1 + $0x40] sm:$0xf]
      %v262 = vld [vmem:[%s1 + $0x44] sm:$0xf]
      %v263 = vld [vmem:[%s1 + $0x48] sm:$0xf]
      %v264 = vld [vmem:[%s1 + $0x4c] sm:$0xf]
      %v265 = vld [vmem:[%s1 + $0x50] sm:$0xf]
      %v266 = vld [vmem:[%s1 + $0x54] sm:$0xf]
      %v267 = vld [vmem:[%s1 + $0x58] sm:$0xf]
      %v268 = vld [vmem:[%s1 + $0x5c] sm:$0xf]
      %v269 = vld [vmem:[%s1 + $0x60] sm:$0xf]
      %v270 = vld [vmem:[%s1 + $0x64] sm:$0xf]
      %v271 = vld [vmem:[%s1 + $0x68] sm:$0xf]
      %v272 = vld [vmem:[%s1 + $0x6c] sm:$0xf]
      %v273 = vld [vmem:[%s1 + $0x70] sm:$0xf]
      %v274 = vld [vmem:[%s1 + $0x74] sm:$0xf]
      %v275 = vld [vmem:[%s1 + $0x78] sm:$0xf]
      %v276 = vld [vmem:[%s1 + $0x7c] sm:$0xf]
      %v277 = vld [vmem:[%s1 + $0x80] sm:$0xf]
      %v278 = vld [vmem:[%s1 + $0x84] sm:$0xf]
      %v279 = vld [vmem:[%s1 + $0x88] sm:$0xf]
      %v280 = vld [vmem:[%s1 + $0x8c] sm:$0xf]
      %v285 = vunpack.c.l.b16 %v241
      %v286 = vunpack.c.h.b16 %v241
      %v287 = vunpack.c.l.b16 %v242
      %v288 = vunpack.c.l.b16 %v243
      %v289 = vunpack.c.h.b16 %v243
      %v290 = vunpack.c.l.b16 %v244
      %v291 = vpack.c.b16 %v288, %v285
      %v292 = vpack.c.b16 %v289, %v286
      %v293 = vpack.c.b16 %v290, %v287
      %v332 = vunpack.c.l.b16 %v245
      %v333 = vunpack.c.l.b16 %v246
      %v334 = vunpack.c.l.b16 %v247
      %v335 = vunpack.c.l.b16 %v248
      %v336 = vunpack.c.l.b16 %v249
      %v337 = vunpack.c.l.b16 %v250
      %v338 = vunpack.c.l.b16 %v251
      %v339 = vunpack.c.l.b16 %v252
      %v340 = vunpack.c.l.b16 %v253
      %v341 = vunpack.c.l.b16 %v254
      %v342 = vunpack.c.l.b16 %v255
      %v343 = vunpack.c.l.b16 %v256
      %v344 = vunpack.c.l.b16 %v257
      %v345 = vunpack.c.l.b16 %v258
      %v346 = vunpack.c.l.b16 %v259
      %v347 = vunpack.c.l.b16 %v260
      %v348 = vunpack.c.l.b16 %v261
      %v349 = vunpack.c.l.b16 %v262
      %v350 = vunpack.c.l.b16 %v263
      %v351 = vunpack.c.l.b16 %v264
      %v352 = vunpack.c.l.b16 %v265
      %v353 = vunpack.c.l.b16 %v266
      %v354 = vunpack.c.l.b16 %v267
      %v355 = vunpack.c.l.b16 %v268
      %v356 = vunpack.c.l.b16 %v269
      %v357 = vunpack.c.l.b16 %v270
      %v358 = vunpack.c.l.b16 %v271
      %v359 = vunpack.c.l.b16 %v272
      %v360 = vunpack.c.l.b16 %v273
      %v361 = vunpack.c.l.b16 %v274
      %v362 = vunpack.c.l.b16 %v275
      %v363 = vunpack.c.l.b16 %v276
      %v364 = vunpack.c.l.b16 %v277
      %v365 = vunpack.c.l.b16 %v278
      %v366 = vunpack.c.l.b16 %v279
      %v367 = vunpack.c.l.b16 %v280
      %v368 = vpack.c.b16 %v333, %v332
      %v369 = vpack.c.b16 %v335, %v334
      %v370 = vpack.c.b16 %v337, %v336
      %v371 = vpack.c.b16 %v339, %v338
      %v372 = vpack.c.b16 %v341, %v340
      %v373 = vpack.c.b16 %v343, %v342
      %v374 = vpack.c.b16 %v345, %v344
      %v375 = vpack.c.b16 %v347, %v346
      %v376 = vpack.c.b16 %v349, %v348
      %v377 = vpack.c.b16 %v351, %v350
      %v378 = vpack.c.b16 %v353, %v352
      %v379 = vpack.c.b16 %v355, %v354
      %v380 = vpack.c.b16 %v357, %v356
      %v381 = vpack.c.b16 %v359, %v358
      %v382 = vpack.c.b16 %v361, %v360
      %v383 = vpack.c.b16 %v363, %v362
      %v384 = vpack.c.b16 %v365, %v364
      %v385 = vpack.c.b16 %v367, %v366
      %vm404 = vcmask 261120
      %v406 = vsel %vm404, %v293, 0
      %408 = vmatpush.bf16.msra.mxu0 %v375
      %409 = vmatpush.bf16.msra.mxu0 %v374
      %410 = vmatpush.bf16.msra.mxu0 %v373
      %411 = vmatpush.bf16.msra.mxu0 %v372
      %412 = vmatpush.bf16.msra.mxu0 %v371
      %413 = vmatpush.bf16.msra.mxu0 %v370
      %414 = vmatpush.bf16.msra.mxu0 %v369
      %415 = vmatpush.bf16.msra.mxu0 %v368
      %416 = vmatmul.bf16.gmra.mxu0 %v291
      %v417 = vpop.f32.mrf.mxu0
      %v418 = vadd.f32 0.0, %v417
      %v419 = vpop.f32.mrf.mxu0
      %v420 = vadd.f32 0.0, %v419
      %421 = vdwg.mxu0
      %422 = vmatpush.bf16.msra.mxu0 %v383
      %423 = vmatpush.bf16.msra.mxu0 %v382
      %424 = vmatpush.bf16.msra.mxu0 %v381
      %425 = vmatpush.bf16.msra.mxu0 %v380
      %426 = vmatpush.bf16.msra.mxu0 %v379
      %427 = vmatpush.bf16.msra.mxu0 %v378
      %428 = vmatpush.bf16.msra.mxu0 %v377
      %429 = vmatpush.bf16.msra.mxu0 %v376
      %430 = vmatmul.bf16.gmra.mxu0 %v292
      %v431 = vpop.f32.mrf.mxu0
      %v432 = vadd.f32 %v418, %v431
      %v433 = vpop.f32.mrf.mxu0
      %v434 = vadd.f32 %v420, %v433
      %435 = vdwg.mxu0
      %436 = vmatpush.bf16.msra.mxu0 0
      %437 = vmatpush.bf16.msra.mxu0 0
      %438 = vmatpush.bf16.msra.mxu0 0
      %439 = vmatpush.bf16.msra.mxu0 0
      %440 = vmatpush.bf16.msra.mxu0 0
      %441 = vmatpush.bf16.msra.mxu0 0
      %442 = vmatpush.bf16.msra.mxu0 %v385
      %443 = vmatpush.bf16.msra.mxu0 %v384
      %444 = vmatmul.bf16.gmra.mxu0 %v406
      %v445 = vpop.f32.mrf.mxu0
      %v446 = vadd.f32 %v432, %v445
      %v447 = vpop.f32.mrf.mxu0
      %v448 = vadd.f32 %v434, %v447
      %449 = vdwg.mxu0
      %v450 = vld [vmem:[%s2] sm:$0x1]
      %v452 = vperm.slane %v450, 0
      %v454 = vmul.f32 %v446, %v452
      %v455 = vmul.f32 %v448, %v452
      %v456 = vld [vmem:[%s3] sm:$0x1]
      %v458 = vperm.slane %v456, 0
      %v460 = vadd.f32 %v454, %v458
      %v461 = vadd.f32 %v455, %v458
      %vm462 = vcmp.ge.f32.partialorder %v460, 0.0
      %vm463 = vcmp.ge.f32.partialorder %v461, 0.0
      %v464 = vmul.f32 %v460, 0.01
      %v465 = vmul.f32 %v461, 0.01
      %v466 = vsel %vm462, %v460, %v464
      %v467 = vsel %vm463, %v461, %v465
      %v468 = vpack.c.bf16 %v466, %v466
      %v469 = vpack.c.bf16 %v467, %v467
      %vm470 = vcmask 519168
      %471 = vst.msk [vmem:[%s238] sm:$0xf] %vm470, %v468
      %472 = vst.msk [vmem:[%s238 + $0x4] sm:$0xf] %vm470, %v469
      %s473 = smul.u32 2, %s20
      %p474 = scmp.lt.s32.totalorder %s19, 1
      %s475 = scalar_select %p474, %s19, 1
      %p476 = scmp.lt.s32.totalorder %s473, 1
      %s477 = scalar_select %p476, %s473, 1
      %s478 = smul.addr %s475, 2
      %s479 = sadd.s32 %s477, %s478
      %s480 = smul.addr %s479, 4
      %s481 = scalar_lea.vmem %s4, %s480
      // Predicated region
      $region37: #{conv_with_conn_forward.20} parent=35 // pred_check
        %p482 = pneg %p138
      $region38: #{conv_with_conn_forward.20} parent=35 // pred_check_branch
        %484 = sbr.rel (%p482) target = $region40
      $region39: #{conv_with_conn_forward.20} parent=35 // pred_region
        %s485 = smul.u32 2, %s20
      $region40: #{conv_with_conn_forward.20} parent=35 // pred_fallthru
        _
    $region36: #{conv_with_conn_forward.20} parent=5 // pred_fallthru
      _
    %p486 = scmp.le.s32.totalorder 2, %s10
    // Predicated region
    $region41: #{conv_with_conn_forward.20} parent=5 // pred_check
      %p487 = pneg %p486
    $region42: #{conv_with_conn_forward.20} parent=5 // pred_check_branch
      %489 = sbr.rel (%p487) target = $region44
    $region43: #{conv_with_conn_forward.20} parent=5 // pred_region
      %s490 = ssub.s32 %s10, 2
      // Predicated region
      $region45: #{conv_with_conn_forward.20} parent=43 // pred_check
        %p491 = pneg %p144
      $region46: #{conv_with_conn_forward.20} parent=43 // pred_check_branch
        %493 = sbr.rel (%p491) target = $region48
      $region47: #{conv_with_conn_forward.20} parent=43 // pred_region
        %s494 = smul.u32 2, %s22
        %p495 = scmp.lt.s32.totalorder %s21, 1
        %s496 = scalar_select %p495, %s21, 1
        %p497 = scmp.lt.s32.totalorder %s494, 1
        %s498 = scalar_select %p497, %s494, 1
        %s499 = smul.addr %s496, 2
        %s500 = sadd.s32 %s498, %s499
        %s501 = smul.addr %s500, 4
        %s502 = scalar_lea.vmem %s4, %s501
      $region48: #{conv_with_conn_forward.20} parent=43 // pred_fallthru
        _
    $region44: #{conv_with_conn_forward.20} parent=5 // pred_fallthru
      _
  $region6: #{conv_with_conn_forward.20} parent=0 // loop_footer
    %s14 = sadd.s32 1, %s10
  $region7: #{conv_with_conn_forward.20} parent=0 // loop_footer_branch
    %9 = sbr.rel target = $region3
  $region8: #{conv_with_conn_forward.20} parent=0 // loop_exit
    _

// kernel: conv_with_conn_forward.18
$region0: #{conv_with_conn_forward.18}
  #allocation0 [shape = 'u32[]', space=smem, size = 0x4, offset = 0x4, fixed_abs, tag = 'smem constant byte address 0x4 - core index']
  #allocation1 [shape = 'u32[72,128]{1,0:T(1,128)}', space=vmem, size = 0x9000, scoped, tag = 'internal scratch']
  %s0 = inlined_call_operand.vmem [shape: bf16[2,64,288], index: 0, kind: input, shape index: {}]
  %s1 = inlined_call_operand.vmem [shape: bf16[288,32], index: 1, kind: input, shape index: {}]
  %s2 = inlined_call_operand.vmem [shape: f32[1,32], index: 2, kind: input, shape index: {}]
  %s3 = inlined_call_operand.vmem [shape: f32[1,32], index: 3, kind: input, shape index: {}]
  %s4 = inlined_call_operand.vmem [shape: bf16[2,64,32], index: 4, kind: output, shape index: {}]
  %s5 = sld [smem:[#allocation0]]
  $region49: #{conv_with_conn_forward.18} parent=0
    _
  %s7 = ssub.s32 1, %s5
  %s8 = scalar_select 0, %s7, %s5
  loop: start=0, step=1, limit=4
  $region2: #{conv_with_conn_forward.18} parent=0 // loop_pre_header
    _
  $region3: #{conv_with_conn_forward.18} parent=0 // loop_header
    %s10 = sphi 0, %s14
    %p11 = scmp.ge.s32.totalorder %s10, 4
    %s17 = sphi 0, %s29
    %s18 = sphi 0, %s25
    %s19 = sphi 0, %s17
    %s20 = sphi 0, %s18
    %s21 = sphi 0, %s19
    %s22 = sphi 0, %s20
    %s34 = sphi 0, %s36
    %s37 = sphi 0, %s34
    %s38 = sphi 0, %s37
    %s54 = sphi 0, %s38
    %s58 = sphi 0, %s58
    %s60 = sphi 0, %s58
    %s61 = sphi 0, %s60
    %s75 = sphi 0, %s61
    %s79 = sphi 0, %s79
    %s81 = sphi 0, %s79
    %s82 = sphi 0, %s81
    %s96 = sphi 0, %s82
    %s100 = sphi 0, %s100
    %s102 = sphi 0, %s100
    %s103 = sphi 0, %s102
    %s117 = sphi 0, %s103
    %s125 = sphi 0, %s127
    %s128 = sphi 0, %s125
    %s129 = sphi 0, %s128
    %s145 = sphi 0, %s129
  $region4: #{conv_with_conn_forward.18} parent=0 // loop_header_branch
    %13 = sbr.rel (%p11) target = $region8
  $region5: #{conv_with_conn_forward.18} parent=0 // loop_body
    %s15 = ssub.s32 %s10, 1
    %s16 = ssub.s32 %s10, 2
    %s23 = sadd.s32 1, %s18
    %p24 = scmp.ge.s32.totalorder %s23, 1
    %s25 = scalar_select %p24, 0, %s23
    %s26 = sadd.s32 1, %s17
    %s27 = scalar_select %p24, %s26, %s17
    %p28 = scmp.ge.s32.totalorder %s27, 2
    %s29 = scalar_select %p28, 0, %s27
    %s30 = ssub.s32 %s17, %s29
    %s31 = ssub.s32 %s18, %s25
    %s32 = sor.u32 %s30, %s31
    %p33 = scmp.eq.s32.totalorder %s32, 0
    %s35 = sadd.s32 %s34, 1
    %s36 = scalar_select %p33, %s34, %s35
    %p39 = pneg %p33
    %p40 = scmp.eq.s32.totalorder %s10, 1
    %p41 = por %p39, %p40
    %p42 = scmp.ne.s32.totalorder %s34, %s37
    %p43 = scmp.eq.s32.totalorder %s10, 0
    %p44 = por %p42, %p43
    %p45 = scmp.ne.s32.totalorder %s34, %s37
    %p46 = scmp.eq.s32.totalorder %s15, 1
    %p47 = por %p45, %p46
    %p48 = scmp.ne.s32.totalorder %s37, %s38
    %p49 = scmp.eq.s32.totalorder %s15, 0
    %p50 = por %p48, %p49
    %p51 = scmp.ne.s32.totalorder %s37, %s38
    %p52 = scmp.eq.s32.totalorder %s16, 1
    %p53 = por %p51, %p52
    %p55 = scmp.ne.s32.totalorder %s38, %s54
    %p56 = scmp.eq.s32.totalorder %s16, 0
    %p57 = por %p55, %p56
    %s59 = sadd.s32 %s58, 1
    %p62 = scmp.eq.s32.totalorder %s10, 1
    %p63 = scmp.ne.s32.totalorder %s58, %s60
    %p64 = scmp.eq.s32.totalorder %s10, 0
    %p65 = por %p63, %p64
    %p66 = scmp.ne.s32.totalorder %s58, %s60
    %p67 = scmp.eq.s32.totalorder %s15, 1
    %p68 = por %p66, %p67
    %p69 = scmp.ne.s32.totalorder %s60, %s61
    %p70 = scmp.eq.s32.totalorder %s15, 0
    %p71 = por %p69, %p70
    %p72 = scmp.ne.s32.totalorder %s60, %s61
    %p73 = scmp.eq.s32.totalorder %s16, 1
    %p74 = por %p72, %p73
    %p76 = scmp.ne.s32.totalorder %s61, %s75
    %p77 = scmp.eq.s32.totalorder %s16, 0
    %p78 = por %p76, %p77
    %s80 = sadd.s32 %s79, 1
    %p83 = scmp.eq.s32.totalorder %s10, 1
    %p84 = scmp.ne.s32.totalorder %s79, %s81
    %p85 = scmp.eq.s32.totalorder %s10, 0
    %p86 = por %p84, %p85
    %p87 = scmp.ne.s32.totalorder %s79, %s81
    %p88 = scmp.eq.s32.totalorder %s15, 1
    %p89 = por %p87, %p88
    %p90 = scmp.ne.s32.totalorder %s81, %s82
    %p91 = scmp.eq.s32.totalorder %s15, 0
    %p92 = por %p90, %p91
    %p93 = scmp.ne.s32.totalorder %s81, %s82
    %p94 = scmp.eq.s32.totalorder %s16, 1
    %p95 = por %p93, %p94
    %p97 = scmp.ne.s32.totalorder %s82, %s96
    %p98 = scmp.eq.s32.totalorder %s16, 0
    %p99 = por %p97, %p98
    %s101 = sadd.s32 %s100, 1
    %p104 = scmp.eq.s32.totalorder %s10, 1
    %p105 = scmp.ne.s32.totalorder %s100, %s102
    %p106 = scmp.eq.s32.totalorder %s10, 0
    %p107 = por %p105, %p106
    %p108 = scmp.ne.s32.totalorder %s100, %s102
    %p109 = scmp.eq.s32.totalorder %s15, 1
    %p110 = por %p108, %p109
    %p111 = scmp.ne.s32.totalorder %s102, %s103
    %p112 = scmp.eq.s32.totalorder %s15, 0
    %p113 = por %p111, %p112
    %p114 = scmp.ne.s32.totalorder %s102, %s103
    %p115 = scmp.eq.s32.totalorder %s16, 1
    %p116 = por %p114, %p115
    %p118 = scmp.ne.s32.totalorder %s103, %s117
    %p119 = scmp.eq.s32.totalorder %s16, 0
    %p120 = por %p118, %p119
    %s121 = ssub.s32 %s17, %s29
    %s122 = ssub.s32 %s18, %s25
    %s123 = sor.u32 %s121, %s122
    %p124 = scmp.eq.s32.totalorder %s123, 0
    %s126 = sadd.s32 %s125, 1
    %s127 = scalar_select %p124, %s125, %s126
    %p130 = pneg %p124
    %p131 = scmp.eq.s32.totalorder %s10, 1
    %p132 = por %p130, %p131
    %p133 = scmp.ne.s32.totalorder %s125, %s128
    %p134 = scmp.eq.s32.totalorder %s10, 0
    %p135 = por %p133, %p134
    %p136 = scmp.ne.s32.totalorder %s125, %s128
    %p137 = scmp.eq.s32.totalorder %s15, 1
    %p138 = por %p136, %p137
    %p139 = scmp.ne.s32.totalorder %s128, %s129
    %p140 = scmp.eq.s32.totalorder %s15, 0
    %p141 = por %p139, %p140
    %p142 = scmp.ne.s32.totalorder %s128, %s129
    %p143 = scmp.eq.s32.totalorder %s16, 1
    %p144 = por %p142, %p143
    %p146 = scmp.ne.s32.totalorder %s129, %s145
    %p147 = scmp.eq.s32.totalorder %s16, 0
    %p148 = por %p146, %p147
    %p149 = scmp.le.s32.totalorder 1, %s10
    %p150 = scmp.lt.s32.totalorder %s10, 3
    %p151 = pnand %p149, %p150
    %p152 = pneg %p151
    // Predicated region
    $region9: #{conv_with_conn_forward.18} parent=5 // pred_check
      _
    $region10: #{conv_with_conn_forward.18} parent=5 // pred_check_branch
      %154 = sbr.rel (%p151) target = $region12
    $region11: #{conv_with_conn_forward.18} parent=5 // pred_region
      %s155 = ssub.s32 %s10, 1
      // Predicated region
      $region13: #{conv_with_conn_forward.18} parent=11 // pred_check
        %p156 = pneg %p71
      $region14: #{conv_with_conn_forward.18} parent=11 // pred_check_branch
        %158 = sbr.rel (%p156) target = $region16
      $region15: #{conv_with_conn_forward.18} parent=11 // pred_region
        _
      $region16: #{conv_with_conn_forward.18} parent=11 // pred_fallthru
        _
      // Predicated region
      $region17: #{conv_with_conn_forward.18} parent=11 // pred_check
        %p159 = pneg %p92
      $region18: #{conv_with_conn_forward.18} parent=11 // pred_check_branch
        %161 = sbr.rel (%p159) target = $region20
      $region19: #{conv_with_conn_forward.18} parent=11 // pred_region
        _
      $region20: #{conv_with_conn_forward.18} parent=11 // pred_fallthru
        _
      // Predicated region
      $region21: #{conv_with_conn_forward.18} parent=11 // pred_check
        %p162 = pneg %p113
      $region22: #{conv_with_conn_forward.18} parent=11 // pred_check_branch
        %164 = sbr.rel (%p162) target = $region24
      $region23: #{conv_with_conn_forward.18} parent=11 // pred_region
        _
      $region24: #{conv_with_conn_forward.18} parent=11 // pred_fallthru
        _
    $region12: #{conv_with_conn_forward.18} parent=5 // pred_fallthru
      _
    %p165 = scmp.lt.s32.totalorder %s10, 2
    // Predicated region
    $region25: #{conv_with_conn_forward.18} parent=5 // pred_check
      %p166 = pneg %p165
    $region26: #{conv_with_conn_forward.18} parent=5 // pred_check_branch
      %168 = sbr.rel (%p166) target = $region28
    $region27: #{conv_with_conn_forward.18} parent=5 // pred_region
      // Predicated region
      $region29: #{conv_with_conn_forward.18} parent=27 // pred_check
        %p169 = pneg %p44
      $region30: #{conv_with_conn_forward.18} parent=27 // pred_check_branch
        %171 = sbr.rel (%p169) target = $region32
      $region31: #{conv_with_conn_forward.18} parent=27 // pred_region
        %s172 = smul.u32 8, %s18
        %p173 = scmp.lt.s32.totalorder %s17, 1
        %s174 = scalar_select %p173, %s17, 1
        %p175 = scmp.lt.s32.totalorder %s172, 7
        %s176 = scalar_select %p175, %s172, 7
        %s177 = smul.addr %s176, 3
        %s178 = smul.addr %s174, 24
        %s179 = sadd.s32 %s177, %s178
        %s180 = smul.addr %s179, 4
        %s181 = scalar_lea.vmem %s0, %s180
        %s182 = smul.u32 8, %s18
      $region32: #{conv_with_conn_forward.18} parent=27 // pred_fallthru
        _
    $region28: #{conv_with_conn_forward.18} parent=5 // pred_fallthru
      _
    %p183 = scmp.le.s32.totalorder 1, %s10
    %p184 = scmp.lt.s32.totalorder %s10, 3
    %p185 = pnand %p183, %p184
    %p186 = pneg %p185
    // Predicated region
    $region33: #{conv_with_conn_forward.18} parent=5 // pred_check
      _
    $region34: #{conv_with_conn_forward.18} parent=5 // pred_check_branch
      %188 = sbr.rel (%p185) target = $region36
    $region35: #{conv_with_conn_forward.18} parent=5 // pred_region
      %s189 = ssub.s32 %s10, 1
      %s190 = smul.u32 8, %s20
      %p191 = scmp.lt.s32.totalorder %s19, 1
      %s192 = scalar_select %p191, %s19, 1
      %p193 = scmp.lt.s32.totalorder %s190, 7
      %s194 = scalar_select %p193, %s190, 7
      %s195 = smul.addr %s194, 3
      %s196 = smul.addr %s192, 24
      %s197 = sadd.s32 %s195, %s196
      %s198 = smul.addr %s197, 4
      %s199 = scalar_lea.vmem %s0, %s198
      %p200 = pneg %p50
      %p201 = pneg %p47
      %p202 = pneg %p71
      %p203 = pneg %p68
      %p204 = pneg %p92
      %p205 = pneg %p89
      %p206 = pneg %p113
      %p207 = pneg %p110
      %p208 = pneg %p141
      %p209 = pneg %p138
      %s210 = smul.u32 8, %s20
      %p211 = scmp.lt.s32.totalorder %s19, 1
      %s212 = scalar_select %p211, %s19, 1
      %p213 = scmp.lt.s32.totalorder %s210, 7
      %s214 = scalar_select %p213, %s210, 7
      %s215 = smul.addr %s212, 8
      %s216 = sadd.s32 %s214, %s215
      %s217 = smul.addr %s216, 4
      %s218 = scalar_lea.vmem %s4, %s217
      %s219 = smul.u32 8, %s20
      %p220 = scmp.lt.s32.totalorder %s19, 1
      %s221 = scalar_select %p220, %s19, 1
      %p222 = scmp.lt.s32.totalorder %s219, 7
      %s223 = scalar_select %p222, %s219, 7
      %s224 = smul.addr %s223, 3
      %s225 = smul.addr %s221, 24
      %s226 = sadd.s32 %s224, %s225
      %s227 = smul.addr %s226, 4
      %s228 = scalar_lea.vmem %s0, %s227
      %s229 = smul.u32 8, %s20
      %s230 = smul.u32 8, %s20
      %p231 = scmp.lt.s32.totalorder %s19, 1
      %s232 = scalar_select %p231, %s19, 1
      %p233 = scmp.lt.s32.totalorder %s230, 7
      %s234 = scalar_select %p233, %s230, 7
      %s235 = smul.addr %s232, 8
      %s236 = sadd.s32 %s234, %s235
      %s237 = smul.addr %s236, 4
      %s238 = scalar_lea.vmem %s4, %s237
      %s239 = smul.u32 8, %s20
      %v241 = vld [vmem:[%s228] sm:$0xff]
      %v242 = vld [vmem:[%s228 + $0x8] sm:$0xf]
      %v243 = vld [vmem:[%s228 + $0xc] sm:$0xff]
      %v244 = vld [vmem:[%s228 + $0x14] sm:$0xf]
      %v245 = vld [vmem:[%s228 + $0x18] sm:$0xff]
      %v246 = vld [vmem:[%s228 + $0x20] sm:$0xf]
      %v247 = vld [vmem:[%s228 + $0x24] sm:$0xff]
      %v248 = vld [vmem:[%s228 + $0x2c] sm:$0xf]
      %v249 = vld [vmem:[%s228 + $0x30] sm:$0xff]
      %v250 = vld [vmem:[%s228 + $0x38] sm:$0xf]
      %v251 = vld [vmem:[%s228 + $0x3c] sm:$0xff]
      %v252 = vld [vmem:[%s228 + $0x44] sm:$0xf]
      %v253 = vld [vmem:[%s228 + $0x48] sm:$0xff]
      %v254 = vld [vmem:[%s228 + $0x50] sm:$0xf]
      %v255 = vld [vmem:[%s228 + $0x54] sm:$0xff]
      %v256 = vld [vmem:[%s228 + $0x5c] sm:$0xf]
      %v257 = vld [vmem:[%s1] sm:$0xf]
      %v258 = vld [vmem:[%s1 + $0x4] sm:$0xf]
      %v259 = vld [vmem:[%s1 + $0x8] sm:$0xf]
      %v260 = vld [vmem:[%s1 + $0xc] sm:$0xf]
      %v261 = vld [vmem:[%s1 + $0x10] sm:$0xf]
      %v262 = vld [vmem:[%s1 + $0x14] sm:$0xf]
      %v263 = vld [vmem:[%s1 + $0x18] sm:$0xf]
      %v264 = vld [vmem:[%s1 + $0x1c] sm:$0xf]
      %v265 = vld [vmem:[%s1 + $0x20] sm:$0xf]
      %v266 = vld [vmem:[%s1 + $0x24] sm:$0xf]
      %v267 = vld [vmem:[%s1 + $0x28] sm:$0xf]
      %v268 = vld [vmem:[%s1 + $0x2c] sm:$0xf]
      %v269 = vld [vmem:[%s1 + $0x30] sm:$0xf]
      %v270 = vld [vmem:[%s1 + $0x34] sm:$0xf]
      %v271 = vld [vmem:[%s1 + $0x38] sm:$0xf]
      %v272 = vld [vmem:[%s1 + $0x3c] sm:$0xf]
      %v273 = vld [vmem:[%s1 + $0x40] sm:$0xf]
      %v274 = vld [vmem:[%s1 + $0x44] sm:$0xf]
      %v275 = vld [vmem:[%s1 + $0x48] sm:$0xf]
      %v276 = vld [vmem:[%s1 + $0x4c] sm:$0xf]
      %v277 = vld [vmem:[%s1 + $0x50] sm:$0xf]
      %v278 = vld [vmem:[%s1 + $0x54] sm:$0xf]
      %v279 = vld [vmem:[%s1 + $0x58] sm:$0xf]
      %v280 = vld [vmem:[%s1 + $0x5c] sm:$0xf]
      %v281 = vld [vmem:[%s1 + $0x60] sm:$0xf]
      %v282 = vld [vmem:[%s1 + $0x64] sm:$0xf]
      %v283 = vld [vmem:[%s1 + $0x68] sm:$0xf]
      %v284 = vld [vmem:[%s1 + $0x6c] sm:$0xf]
      %v285 = vld [vmem:[%s1 + $0x70] sm:$0xf]
      %v286 = vld [vmem:[%s1 + $0x74] sm:$0xf]
      %v287 = vld [vmem:[%s1 + $0x78] sm:$0xf]
      %v288 = vld [vmem:[%s1 + $0x7c] sm:$0xf]
      %v289 = vld [vmem:[%s1 + $0x80] sm:$0xf]
      %v290 = vld [vmem:[%s1 + $0x84] sm:$0xf]
      %v291 = vld [vmem:[%s1 + $0x88] sm:$0xf]
      %v292 = vld [vmem:[%s1 + $0x8c] sm:$0xf]
      %v309 = vunpack.c.l.b16 %v241
      %v310 = vunpack.c.h.b16 %v241
      %v311 = vunpack.c.l.b16 %v242
      %v312 = vunpack.c.l.b16 %v243
      %v313 = vunpack.c.h.b16 %v243
      %v314 = vunpack.c.l.b16 %v244
      %v315 = vunpack.c.l.b16 %v245
      %v316 = vunpack.c.h.b16 %v245
      %v317 = vunpack.c.l.b16 %v246
      %v318 = vunpack.c.l.b16 %v247
      %v319 = vunpack.c.h.b16 %v247
      %v320 = vunpack.c.l.b16 %v248
      %v321 = vunpack.c.l.b16 %v249
      %v322 = vunpack.c.h.b16 %v249
      %v323 = vunpack.c.l.b16 %v250
      %v324 = vunpack.c.l.b16 %v251
      %v325 = vunpack.c.h.b16 %v251
      %v326 = vunpack.c.l.b16 %v252
      %v327 = vunpack.c.l.b16 %v253
      %v328 = vunpack.c.h.b16 %v253
      %v329 = vunpack.c.l.b16 %v254
      %v330 = vunpack.c.l.b16 %v255
      %v331 = vunpack.c.h.b16 %v255
      %v332 = vunpack.c.l.b16 %v256
      %v333 = vpack.c.b16 %v312, %v309
      %v334 = vpack.c.b16 %v313, %v310
      %v335 = vpack.c.b16 %v314, %v311
      %v336 = vpack.c.b16 %v318, %v315
      %v337 = vpack.c.b16 %v319, %v316
      %v338 = vpack.c.b16 %v320, %v317
      %v339 = vpack.c.b16 %v324, %v321
      %v340 = vpack.c.b16 %v325, %v322
      %v341 = vpack.c.b16 %v326, %v323
      %v342 = vpack.c.b16 %v330, %v327
      %v343 = vpack.c.b16 %v331, %v328
      %v344 = vpack.c.b16 %v332, %v329
      %v389 = vunpack.c.l.b16 %v257
      %v390 = vunpack.c.l.b16 %v258
      %v391 = vunpack.c.l.b16 %v259
      %v392 = vunpack.c.l.b16 %v260
      %v393 = vunpack.c.l.b16 %v261
      %v394 = vunpack.c.l.b16 %v262
      %v395 = vunpack.c.l.b16 %v263
      %v396 = vunpack.c.l.b16 %v264
      %v397 = vunpack.c.l.b16 %v265
      %v398 = vunpack.c.l.b16 %v266
      %v399 = vunpack.c.l.b16 %v267
      %v400 = vunpack.c.l.b16 %v268
      %v401 = vunpack.c.l.b16 %v269
      %v402 = vunpack.c.l.b16 %v270
      %v403 = vunpack.c.l.b16 %v271
      %v404 = vunpack.c.l.b16 %v272
      %v405 = vunpack.c.l.b16 %v273
      %v406 = vunpack.c.l.b16 %v274
      %v407 = vunpack.c.l.b16 %v275
      %v408 = vunpack.c.l.b16 %v276
      %v409 = vunpack.c.l.b16 %v277
      %v410 = vunpack.c.l.b16 %v278
      %v411 = vunpack.c.l.b16 %v279
      %v412 = vunpack.c.l.b16 %v280
      %v413 = vunpack.c.l.b16 %v281
      %v414 = vunpack.c.l.b16 %v282
      %v415 = vunpack.c.l.b16 %v283
      %v416 = vunpack.c.l.b16 %v284
      %v417 = vunpack.c.l.b16 %v285
      %v418 = vunpack.c.l.b16 %v286
      %v419 = vunpack.c.l.b16 %v287
      %v420 = vunpack.c.l.b16 %v288
      %v421 = vunpack.c.l.b16 %v289
      %v422 = vunpack.c.l.b16 %v290
      %v423 = vunpack.c.l.b16 %v291
      %v424 = vunpack.c.l.b16 %v292
      %v425 = vpack.c.b16 %v390, %v389
      %v426 = vpack.c.b16 %v392, %v391
      %v427 = vpack.c.b16 %v394, %v393
      %v428 = vpack.c.b16 %v396, %v395
      %v429 = vpack.c.b16 %v398, %v397
      %v430 = vpack.c.b16 %v400, %v399
      %v431 = vpack.c.b16 %v402, %v401
      %v432 = vpack.c.b16 %v404, %v403
      %v433 = vpack.c.b16 %v406, %v405
      %v434 = vpack.c.b16 %v408, %v407
      %v435 = vpack.c.b16 %v410, %v409
      %v436 = vpack.c.b16 %v412, %v411
      %v437 = vpack.c.b16 %v414, %v413
      %v438 = vpack.c.b16 %v416, %v415
      %v439 = vpack.c.b16 %v418, %v417
      %v440 = vpack.c.b16 %v420, %v419
      %v441 = vpack.c.b16 %v422, %v421
      %v442 = vpack.c.b16 %v424, %v423
      %vm461 = vcmask 261120
      %v463 = vsel %vm461, %v335, 0
      %v466 = vsel %vm461, %v338, 0
      %v469 = vsel %vm461, %v341, 0
      %v472 = vsel %vm461, %v344, 0
      %474 = vmatpush.bf16.msra.mxu0 %v432
      %475 = vmatpush.bf16.msra.mxu0 %v431
      %476 = vmatpush.bf16.msra.mxu0 %v430
      %477 = vmatpush.bf16.msra.mxu0 %v429
      %478 = vmatpush.bf16.msra.mxu0 %v428
      %479 = vmatpush.bf16.msra.mxu0 %v427
      %480 = vmatpush.bf16.msra.mxu0 %v426
      %481 = vmatpush.bf16.msra.mxu0 %v425
      %482 = vmatmul.bf16.gmra.mxu0 %v333
      %v483 = vpop.f32.mrf.mxu0
      %v484 = vadd.f32 0.0, %v483
      %v485 = vpop.f32.mrf.mxu0
      %v486 = vadd.f32 0.0, %v485
      %487 = vmatmul.bf16.gmra.mxu0 %v336
      %v488 = vpop.f32.mrf.mxu0
      %v489 = vadd.f32 0.0, %v488
      %v490 = vpop.f32.mrf.mxu0
      %v491 = vadd.f32 0.0, %v490
      %492 = vmatmul.bf16.gmra.mxu0 %v339
      %v493 = vpop.f32.mrf.mxu0
      %v494 = vadd.f32 0.0, %v493
      %v495 = vpop.f32.mrf.mxu0
      %v496 = vadd.f32 0.0, %v495
      %497 = vmatmul.bf16.gmra.mxu0 %v342
      %v498 = vpop.f32.mrf.mxu0
      %v499 = vadd.f32 0.0, %v498
      %v500 = vpop.f32.mrf.mxu0
      %v501 = vadd.f32 0.0, %v500
      %502 = vdwg.mxu0
      %503 = vmatpush.bf16.msra.mxu0 %v440
      %504 = vmatpush.bf16.msra.mxu0 %v439
      %505 = vmatpush.bf16.msra.mxu0 %v438
      %506 = vmatpush.bf16.msra.mxu0 %v437
      %507 = vmatpush.bf16.msra.mxu0 %v436
      %508 = vmatpush.bf16.msra.mxu0 %v435
      %509 = vmatpush.bf16.msra.mxu0 %v434
      %510 = vmatpush.bf16.msra.mxu0 %v433
      %511 = vmatmul.bf16.gmra.mxu0 %v334
      %v512 = vpop.f32.mrf.mxu0
      %v513 = vadd.f32 %v484, %v512
      %v514 = vpop.f32.mrf.mxu0
      %v515 = vadd.f32 %v486, %v514
      %516 = vmatmul.bf16.gmra.mxu0 %v337
      %v517 = vpop.f32.mrf.mxu0
      %v518 = vadd.f32 %v489, %v517
      %v519 = vpop.f32.mrf.mxu0
      %v520 = vadd.f32 %v491, %v519
      %521 = vmatmul.bf16.gmra.mxu0 %v340
      %v522 = vpop.f32.mrf.mxu0
      %v523 = vadd.f32 %v494, %v522
      %v524 = vpop.f32.mrf.mxu0
      %v525 = vadd.f32 %v496, %v524
      %526 = vmatmul.bf16.gmra.mxu0 %v343
      %v527 = vpop.f32.mrf.mxu0
      %v528 = vadd.f32 %v499, %v527
      %v529 = vpop.f32.mrf.mxu0
      %v530 = vadd.f32 %v501, %v529
      %531 = vdwg.mxu0
      %532 = vmatpush.bf16.msra.mxu0 0
      %533 = vmatpush.bf16.msra.mxu0 0
      %534 = vmatpush.bf16.msra.mxu0 0
      %535 = vmatpush.bf16.msra.mxu0 0
      %536 = vmatpush.bf16.msra.mxu0 0
      %537 = vmatpush.bf16.msra.mxu0 0
      %538 = vmatpush.bf16.msra.mxu0 %v442
      %539 = vmatpush.bf16.msra.mxu0 %v441
      %540 = vmatmul.bf16.gmra.mxu0 %v463
      %v541 = vpop.f32.mrf.mxu0
      %v542 = vadd.f32 %v513, %v541
      %v543 = vpop.f32.mrf.mxu0
      %v544 = vadd.f32 %v515, %v543
      %545 = vmatmul.bf16.gmra.mxu0 %v466
      %v546 = vpop.f32.mrf.mxu0
      %v547 = vadd.f32 %v518, %v546
      %v548 = vpop.f32.mrf.mxu0
      %v549 = vadd.f32 %v520, %v548
      %550 = vmatmul.bf16.gmra.mxu0 %v469
      %v551 = vpop.f32.mrf.mxu0
      %v552 = vadd.f32 %v523, %v551
      %v553 = vpop.f32.mrf.mxu0
      %v554 = vadd.f32 %v525, %v553
      %555 = vmatmul.bf16.gmra.mxu0 %v472
      %v556 = vpop.f32.mrf.mxu0
      %v557 = vadd.f32 %v528, %v556
      %v558 = vpop.f32.mrf.mxu0
      %v559 = vadd.f32 %v530, %v558
      %560 = vdwg.mxu0
      %v561 = vld [vmem:[%s2] sm:$0x1]
      %v563 = vperm.slane %v561, 0
      %v565 = vmul.f32 %v542, %v563
      %v566 = vmul.f32 %v544, %v563
      %v567 = vmul.f32 %v547, %v563
      %v568 = vmul.f32 %v549, %v563
      %v569 = vmul.f32 %v552, %v563
      %v570 = vmul.f32 %v554, %v563
      %v571 = vmul.f32 %v557, %v563
      %v572 = vmul.f32 %v559, %v563
      %v573 = vld [vmem:[%s3] sm:$0x1]
      %v575 = vperm.slane %v573, 0
      %v577 = vadd.f32 %v565, %v575
      %v578 = vadd.f32 %v566, %v575
      %v579 = vadd.f32 %v567, %v575
      %v580 = vadd.f32 %v568, %v575
      %v581 = vadd.f32 %v569, %v575
      %v582 = vadd.f32 %v570, %v575
      %v583 = vadd.f32 %v571, %v575
      %v584 = vadd.f32 %v572, %v575
      %vm585 = vcmp.ge.f32.partialorder %v577, 0.0
      %vm586 = vcmp.ge.f32.partialorder %v578, 0.0
      %vm587 = vcmp.ge.f32.partialorder %v579, 0.0
      %vm588 = vcmp.ge.f32.partialorder %v580, 0.0
      %vm589 = vcmp.ge.f32.partialorder %v581, 0.0
      %vm590 = vcmp.ge.f32.partialorder %v582, 0.0
      %vm591 = vcmp.ge.f32.partialorder %v583, 0.0
      %vm592 = vcmp.ge.f32.partialorder %v584, 0.0
      %v593 = vmul.f32 %v577, 0.01
      %v594 = vmul.f32 %v578, 0.01
      %v595 = vmul.f32 %v579, 0.01
      %v596 = vmul.f32 %v580, 0.01
      %v597 = vmul.f32 %v581, 0.01
      %v598 = vmul.f32 %v582, 0.01
      %v599 = vmul.f32 %v583, 0.01
      %v600 = vmul.f32 %v584, 0.01
      %v601 = vsel %vm585, %v577, %v593
      %v602 = vsel %vm586, %v578, %v594
      %v603 = vsel %vm587, %v579, %v595
      %v604 = vsel %vm588, %v580, %v596
      %v605 = vsel %vm589, %v581, %v597
      %v606 = vsel %vm590, %v582, %v598
      %v607 = vsel %vm591, %v583, %v599
      %v608 = vsel %vm592, %v584, %v600
      %v609 = vpack.c.bf16 %v601, %v601
      %v610 = vpack.c.bf16 %v602, %v602
      %v611 = vpack.c.bf16 %v603, %v603
      %v612 = vpack.c.bf16 %v604, %v604
      %v613 = vpack.c.bf16 %v605, %v605
      %v614 = vpack.c.bf16 %v606, %v606
      %v615 = vpack.c.bf16 %v607, %v607
      %v616 = vpack.c.bf16 %v608, %v608
      %vm617 = vcmask 257024
      %618 = vst.msk [vmem:[%s238] sm:$0xf] %vm617, %v609
      %619 = vst.msk [vmem:[%s238 + $0x4] sm:$0xf] %vm617, %v610
      %620 = vst.msk [vmem:[%s238 + $0x8] sm:$0xf] %vm617, %v611
      %621 = vst.msk [vmem:[%s238 + $0xc] sm:$0xf] %vm617, %v612
      %622 = vst.msk [vmem:[%s238 + $0x10] sm:$0xf] %vm617, %v613
      %623 = vst.msk [vmem:[%s238 + $0x14] sm:$0xf] %vm617, %v614
      %624 = vst.msk [vmem:[%s238 + $0x18] sm:$0xf] %vm617, %v615
      %625 = vst.msk [vmem:[%s238 + $0x1c] sm:$0xf] %vm617, %v616
      %s626 = smul.u32 8, %s20
      %p627 = scmp.lt.s32.totalorder %s19, 1
      %s628 = scalar_select %p627, %s19, 1
      %p629 = scmp.lt.s32.totalorder %s626, 7
      %s630 = scalar_select %p629, %s626, 7
      %s631 = smul.addr %s628, 8
      %s632 = sadd.s32 %s630, %s631
      %s633 = smul.addr %s632, 4
      %s634 = scalar_lea.vmem %s4, %s633
      // Predicated region
      $region37: #{conv_with_conn_forward.18} parent=35 // pred_check
        %p635 = pneg %p138
      $region38: #{conv_with_conn_forward.18} parent=35 // pred_check_branch
        %637 = sbr.rel (%p635) target = $region40
      $region39: #{conv_with_conn_forward.18} parent=35 // pred_region
        %s638 = smul.u32 8, %s20
      $region40: #{conv_with_conn_forward.18} parent=35 // pred_fallthru
        _
    $region36: #{conv_with_conn_forward.18} parent=5 // pred_fallthru
      _
    %p639 = scmp.le.s32.totalorder 2, %s10
    // Predicated region
    $region41: #{conv_with_conn_forward.18} parent=5 // pred_check
      %p640 = pneg %p639
    $region42: #{conv_with_conn_forward.18} parent=5 // pred_check_branch
      %642 = sbr.rel (%p640) target = $region44
    $region43: #{conv_with_conn_forward.18} parent=5 // pred_region
      %s643 = ssub.s32 %s10, 2
      // Predicated region
      $region45: #{conv_with_conn_forward.18} parent=43 // pred_check
        %p644 = pneg %p144
      $region46: #{conv_with_conn_forward.18} parent=43 // pred_check_branch
        %646 = sbr.rel (%p644) target = $region48
      $region47: #{conv_with_conn_forward.18} parent=43 // pred_region
        %s647 = smul.u32 8, %s22
        %p648 = scmp.lt.s32.totalorder %s21, 1
        %s649 = scalar_select %p648, %s21, 1
        %p650 = scmp.lt.s32.totalorder %s647, 7
        %s651 = scalar_select %p650, %s647, 7
        %s652 = smul.addr %s649, 8
        %s653 = sadd.s32 %s651, %s652
        %s654 = smul.addr %s653, 4
        %s655 = scalar_lea.vmem %s4, %s654
      $region48: #{conv_with_conn_forward.18} parent=43 // pred_fallthru
        _
    $region44: #{conv_with_conn_forward.18} parent=5 // pred_fallthru
      _
  $region6: #{conv_with_conn_forward.18} parent=0 // loop_footer
    %s14 = sadd.s32 1, %s10
  $region7: #{conv_with_conn_forward.18} parent=0 // loop_footer_branch
    %9 = sbr.rel target = $region3
  $region8: #{conv_with_conn_forward.18} parent=0 // loop_exit
    _

// kernel: conv_with_conn_forward.22
$region0: #{conv_with_conn_forward.22}
  #allocation0 [shape = 'u32[]', space=smem, size = 0x4, offset = 0x4, fixed_abs, tag = 'smem constant byte address 0x4 - core index']
  #allocation1 [shape = 'u32[72,128]{1,0:T(1,128)}', space=vmem, size = 0x9000, scoped, tag = 'internal scratch']
  %s0 = inlined_call_operand.vmem [shape: bf16[2,16,64], index: 0, kind: input, shape index: {}]
  %s1 = inlined_call_operand.vmem [shape: bf16[64,128], index: 1, kind: input, shape index: {}]
  %s2 = inlined_call_operand.vmem [shape: f32[1,128], index: 2, kind: input, shape index: {}]
  %s3 = inlined_call_operand.vmem [shape: bf16[2,16,128], index: 3, kind: output, shape index: {}]
  %s4 = sld [smem:[#allocation0]]
  $region45: #{conv_with_conn_forward.22} parent=0
    _
  %s6 = ssub.s32 1, %s4
  %s7 = scalar_select 0, %s6, %s4
  loop: start=0, step=1, limit=4
  $region2: #{conv_with_conn_forward.22} parent=0 // loop_pre_header
    _
  $region3: #{conv_with_conn_forward.22} parent=0 // loop_header
    %s9 = sphi 0, %s13
    %p10 = scmp.ge.s32.totalorder %s9, 4
    %s16 = sphi 0, %s28
    %s17 = sphi 0, %s24
    %s18 = sphi 0, %s16
    %s19 = sphi 0, %s17
    %s20 = sphi 0, %s18
    %s21 = sphi 0, %s19
    %s33 = sphi 0, %s35
    %s36 = sphi 0, %s33
    %s37 = sphi 0, %s36
    %s53 = sphi 0, %s37
    %s57 = sphi 0, %s57
    %s59 = sphi 0, %s57
    %s60 = sphi 0, %s59
    %s74 = sphi 0, %s60
    %s78 = sphi 0, %s78
    %s80 = sphi 0, %s78
    %s81 = sphi 0, %s80
    %s95 = sphi 0, %s81
    %s103 = sphi 0, %s105
    %s106 = sphi 0, %s103
    %s107 = sphi 0, %s106
    %s123 = sphi 0, %s107
  $region4: #{conv_with_conn_forward.22} parent=0 // loop_header_branch
    %12 = sbr.rel (%p10) target = $region8
  $region5: #{conv_with_conn_forward.22} parent=0 // loop_body
    %s14 = ssub.s32 %s9, 1
    %s15 = ssub.s32 %s9, 2
    %s22 = sadd.s32 1, %s17
    %p23 = scmp.ge.s32.totalorder %s22, 1
    %s24 = scalar_select %p23, 0, %s22
    %s25 = sadd.s32 1, %s16
    %s26 = scalar_select %p23, %s25, %s16
    %p27 = scmp.ge.s32.totalorder %s26, 2
    %s28 = scalar_select %p27, 0, %s26
    %s29 = ssub.s32 %s16, %s28
    %s30 = ssub.s32 %s17, %s24
    %s31 = sor.u32 %s29, %s30
    %p32 = scmp.eq.s32.totalorder %s31, 0
    %s34 = sadd.s32 %s33, 1
    %s35 = scalar_select %p32, %s33, %s34
    %p38 = pneg %p32
    %p39 = scmp.eq.s32.totalorder %s9, 1
    %p40 = por %p38, %p39
    %p41 = scmp.ne.s32.totalorder %s33, %s36
    %p42 = scmp.eq.s32.totalorder %s9, 0
    %p43 = por %p41, %p42
    %p44 = scmp.ne.s32.totalorder %s33, %s36
    %p45 = scmp.eq.s32.totalorder %s14, 1
    %p46 = por %p44, %p45
    %p47 = scmp.ne.s32.totalorder %s36, %s37
    %p48 = scmp.eq.s32.totalorder %s14, 0
    %p49 = por %p47, %p48
    %p50 = scmp.ne.s32.totalorder %s36, %s37
    %p51 = scmp.eq.s32.totalorder %s15, 1
    %p52 = por %p50, %p51
    %p54 = scmp.ne.s32.totalorder %s37, %s53
    %p55 = scmp.eq.s32.totalorder %s15, 0
    %p56 = por %p54, %p55
    %s58 = sadd.s32 %s57, 1
    %p61 = scmp.eq.s32.totalorder %s9, 1
    %p62 = scmp.ne.s32.totalorder %s57, %s59
    %p63 = scmp.eq.s32.totalorder %s9, 0
    %p64 = por %p62, %p63
    %p65 = scmp.ne.s32.totalorder %s57, %s59
    %p66 = scmp.eq.s32.totalorder %s14, 1
    %p67 = por %p65, %p66
    %p68 = scmp.ne.s32.totalorder %s59, %s60
    %p69 = scmp.eq.s32.totalorder %s14, 0
    %p70 = por %p68, %p69
    %p71 = scmp.ne.s32.totalorder %s59, %s60
    %p72 = scmp.eq.s32.totalorder %s15, 1
    %p73 = por %p71, %p72
    %p75 = scmp.ne.s32.totalorder %s60, %s74
    %p76 = scmp.eq.s32.totalorder %s15, 0
    %p77 = por %p75, %p76
    %s79 = sadd.s32 %s78, 1
    %p82 = scmp.eq.s32.totalorder %s9, 1
    %p83 = scmp.ne.s32.totalorder %s78, %s80
    %p84 = scmp.eq.s32.totalorder %s9, 0
    %p85 = por %p83, %p84
    %p86 = scmp.ne.s32.totalorder %s78, %s80
    %p87 = scmp.eq.s32.totalorder %s14, 1
    %p88 = por %p86, %p87
    %p89 = scmp.ne.s32.totalorder %s80, %s81
    %p90 = scmp.eq.s32.totalorder %s14, 0
    %p91 = por %p89, %p90
    %p92 = scmp.ne.s32.totalorder %s80, %s81
    %p93 = scmp.eq.s32.totalorder %s15, 1
    %p94 = por %p92, %p93
    %p96 = scmp.ne.s32.totalorder %s81, %s95
    %p97 = scmp.eq.s32.totalorder %s15, 0
    %p98 = por %p96, %p97
    %s99 = ssub.s32 %s16, %s28
    %s100 = ssub.s32 %s17, %s24
    %s101 = sor.u32 %s99, %s100
    %p102 = scmp.eq.s32.totalorder %s101, 0
    %s104 = sadd.s32 %s103, 1
    %s105 = scalar_select %p102, %s103, %s104
    %p108 = pneg %p102
    %p109 = scmp.eq.s32.totalorder %s9, 1
    %p110 = por %p108, %p109
    %p111 = scmp.ne.s32.totalorder %s103, %s106
    %p112 = scmp.eq.s32.totalorder %s9, 0
    %p113 = por %p111, %p112
    %p114 = scmp.ne.s32.totalorder %s103, %s106
    %p115 = scmp.eq.s32.totalorder %s14, 1
    %p116 = por %p114, %p115
    %p117 = scmp.ne.s32.totalorder %s106, %s107
    %p118 = scmp.eq.s32.totalorder %s14, 0
    %p119 = por %p117, %p118
    %p120 = scmp.ne.s32.totalorder %s106, %s107
    %p121 = scmp.eq.s32.totalorder %s15, 1
    %p122 = por %p120, %p121
    %p124 = scmp.ne.s32.totalorder %s107, %s123
    %p125 = scmp.eq.s32.totalorder %s15, 0
    %p126 = por %p124, %p125
    %p127 = scmp.le.s32.totalorder 1, %s9
    %p128 = scmp.lt.s32.totalorder %s9, 3
    %p129 = pnand %p127, %p128
    %p130 = pneg %p129
    // Predicated region
    $region9: #{conv_with_conn_forward.22} parent=5 // pred_check
      _
    $region10: #{conv_with_conn_forward.22} parent=5 // pred_check_branch
      %132 = sbr.rel (%p129) target = $region12
    $region11: #{conv_with_conn_forward.22} parent=5 // pred_region
      %s133 = ssub.s32 %s9, 1
      // Predicated region
      $region13: #{conv_with_conn_forward.22} parent=11 // pred_check
        %p134 = pneg %p70
      $region14: #{conv_with_conn_forward.22} parent=11 // pred_check_branch
        %136 = sbr.rel (%p134) target = $region16
      $region15: #{conv_with_conn_forward.22} parent=11 // pred_region
        _
      $region16: #{conv_with_conn_forward.22} parent=11 // pred_fallthru
        _
      // Predicated region
      $region17: #{conv_with_conn_forward.22} parent=11 // pred_check
        %p137 = pneg %p91
      $region18: #{conv_with_conn_forward.22} parent=11 // pred_check_branch
        %139 = sbr.rel (%p137) target = $region20
      $region19: #{conv_with_conn_forward.22} parent=11 // pred_region
        _
      $region20: #{conv_with_conn_forward.22} parent=11 // pred_fallthru
        _
    $region12: #{conv_with_conn_forward.22} parent=5 // pred_fallthru
      _
    %p140 = scmp.lt.s32.totalorder %s9, 2
    // Predicated region
    $region21: #{conv_with_conn_forward.22} parent=5 // pred_check
      %p141 = pneg %p140
    $region22: #{conv_with_conn_forward.22} parent=5 // pred_check_branch
      %143 = sbr.rel (%p141) target = $region24
    $region23: #{conv_with_conn_forward.22} parent=5 // pred_region
      // Predicated region
      $region25: #{conv_with_conn_forward.22} parent=23 // pred_check
        %p144 = pneg %p43
      $region26: #{conv_with_conn_forward.22} parent=23 // pred_check_branch
        %146 = sbr.rel (%p144) target = $region28
      $region27: #{conv_with_conn_forward.22} parent=23 // pred_region
        %s147 = smul.u32 2, %s17
        %p148 = scmp.lt.s32.totalorder %s16, 1
        %s149 = scalar_select %p148, %s16, 1
        %p150 = scmp.lt.s32.totalorder %s147, 1
        %s151 = scalar_select %p150, %s147, 1
        %s152 = smul.addr %s149, 2
        %s153 = sadd.s32 %s151, %s152
        %s154 = smul.addr %s153, 4
        %s155 = scalar_lea.vmem %s0, %s154
        %s156 = smul.u32 2, %s17
      $region28: #{conv_with_conn_forward.22} parent=23 // pred_fallthru
        _
    $region24: #{conv_with_conn_forward.22} parent=5 // pred_fallthru
      _
    %p157 = scmp.le.s32.totalorder 1, %s9
    %p158 = scmp.lt.s32.totalorder %s9, 3
    %p159 = pnand %p157, %p158
    %p160 = pneg %p159
    // Predicated region
    $region29: #{conv_with_conn_forward.22} parent=5 // pred_check
      _
    $region30: #{conv_with_conn_forward.22} parent=5 // pred_check_branch
      %162 = sbr.rel (%p159) target = $region32
    $region31: #{conv_with_conn_forward.22} parent=5 // pred_region
      %s163 = ssub.s32 %s9, 1
      %s164 = smul.u32 2, %s19
      %p165 = scmp.lt.s32.totalorder %s18, 1
      %s166 = scalar_select %p165, %s18, 1
      %p167 = scmp.lt.s32.totalorder %s164, 1
      %s168 = scalar_select %p167, %s164, 1
      %s169 = smul.addr %s166, 2
      %s170 = sadd.s32 %s168, %s169
      %s171 = smul.addr %s170, 4
      %s172 = scalar_lea.vmem %s0, %s171
      %p173 = pneg %p49
      %p174 = pneg %p46
      %p175 = pneg %p70
      %p176 = pneg %p67
      %p177 = pneg %p91
      %p178 = pneg %p88
      %p179 = pneg %p119
      %p180 = pneg %p116
      %s181 = smul.u32 2, %s19
      %p182 = scmp.lt.s32.totalorder %s18, 1
      %s183 = scalar_select %p182, %s18, 1
      %p184 = scmp.lt.s32.totalorder %s181, 1
      %s185 = scalar_select %p184, %s181, 1
      %s186 = smul.addr %s183, 2
      %s187 = sadd.s32 %s185, %s186
      %s188 = smul.addr %s187, 4
      %s189 = scalar_lea.vmem %s3, %s188
      %s190 = smul.u32 2, %s19
      %p191 = scmp.lt.s32.totalorder %s18, 1
      %s192 = scalar_select %p191, %s18, 1
      %p193 = scmp.lt.s32.totalorder %s190, 1
      %s194 = scalar_select %p193, %s190, 1
      %s195 = smul.addr %s192, 2
      %s196 = sadd.s32 %s194, %s195
      %s197 = smul.addr %s196, 4
      %s198 = scalar_lea.vmem %s0, %s197
      %s199 = smul.u32 2, %s19
      %s200 = smul.u32 2, %s19
      %p201 = scmp.lt.s32.totalorder %s18, 1
      %s202 = scalar_select %p201, %s18, 1
      %p203 = scmp.lt.s32.totalorder %s200, 1
      %s204 = scalar_select %p203, %s200, 1
      %s205 = smul.addr %s202, 2
      %s206 = sadd.s32 %s204, %s205
      %s207 = smul.addr %s206, 4
      %s208 = scalar_lea.vmem %s3, %s207
      %s209 = smul.u32 2, %s19
      %v211 = vld [vmem:[%s198] sm:$0xf]
      %v212 = vld [vmem:[%s198 + $0x4] sm:$0xf]
      %v213 = vld [vmem:[%s1] sm:$0xf]
      %v214 = vld [vmem:[%s1 + $0x4] sm:$0xf]
      %v215 = vld [vmem:[%s1 + $0x8] sm:$0xf]
      %v216 = vld [vmem:[%s1 + $0xc] sm:$0xf]
      %v217 = vld [vmem:[%s1 + $0x10] sm:$0xf]
      %v218 = vld [vmem:[%s1 + $0x14] sm:$0xf]
      %v219 = vld [vmem:[%s1 + $0x18] sm:$0xf]
      %v220 = vld [vmem:[%s1 + $0x1c] sm:$0xf]
      %v221 = vld [vmem:[%s2] sm:$0x1]
      %v223 = vperm.slane %v221, 0
      %v227 = vunpack.c.l.b16 %v211
      %v228 = vunpack.c.l.b16 %v212
      %v229 = vpack.c.b16 %v228, %v227
      %v238 = vunpack.c.l.b16 %v213
      %v239 = vunpack.c.l.b16 %v214
      %v240 = vunpack.c.l.b16 %v215
      %v241 = vunpack.c.l.b16 %v216
      %v242 = vunpack.c.l.b16 %v217
      %v243 = vunpack.c.l.b16 %v218
      %v244 = vunpack.c.l.b16 %v219
      %v245 = vunpack.c.l.b16 %v220
      %v246 = vpack.c.b16 %v239, %v238
      %v247 = vpack.c.b16 %v241, %v240
      %v248 = vpack.c.b16 %v243, %v242
      %v249 = vpack.c.b16 %v245, %v244
      %vm254 = vcmask 523264
      %v256 = vsel %vm254, %v229, 0
      %258 = vmatpush.bf16.msra.mxu0 0
      %259 = vmatpush.bf16.msra.mxu0 0
      %260 = vmatpush.bf16.msra.mxu0 0
      %261 = vmatpush.bf16.msra.mxu0 0
      %262 = vmatpush.bf16.msra.mxu0 %v249
      %263 = vmatpush.bf16.msra.mxu0 %v248
      %264 = vmatpush.bf16.msra.mxu0 %v247
      %265 = vmatpush.bf16.msra.mxu0 %v246
      %266 = vmatmul.bf16.gmra.mxu0 %v256
      %v267 = vpop.f32.mrf.mxu0
      %v268 = vadd.f32 %v223, %v267
      %v269 = vpop.f32.mrf.mxu0
      %v270 = vadd.f32 %v223, %v269
      %271 = vdwg.mxu0
      %v272 = vpack.c.bf16 %v268, %v268
      %v273 = vpack.c.bf16 %v270, %v270
      %274 = vst [vmem:[%s208] sm:$0xf] %v272
      %275 = vst [vmem:[%s208 + $0x4] sm:$0xf] %v273
      %s276 = smul.u32 2, %s19
      %p277 = scmp.lt.s32.totalorder %s18, 1
      %s278 = scalar_select %p277, %s18, 1
      %p279 = scmp.lt.s32.totalorder %s276, 1
      %s280 = scalar_select %p279, %s276, 1
      %s281 = smul.addr %s278, 2
      %s282 = sadd.s32 %s280, %s281
      %s283 = smul.addr %s282, 4
      %s284 = scalar_lea.vmem %s3, %s283
      // Predicated region
      $region33: #{conv_with_conn_forward.22} parent=31 // pred_check
        %p285 = pneg %p116
      $region34: #{conv_with_conn_forward.22} parent=31 // pred_check_branch
        %287 = sbr.rel (%p285) target = $region36
      $region35: #{conv_with_conn_forward.22} parent=31 // pred_region
        %s288 = smul.u32 2, %s19
      $region36: #{conv_with_conn_forward.22} parent=31 // pred_fallthru
        _
    $region32: #{conv_with_conn_forward.22} parent=5 // pred_fallthru
      _
    %p289 = scmp.le.s32.totalorder 2, %s9
    // Predicated region
    $region37: #{conv_with_conn_forward.22} parent=5 // pred_check
      %p290 = pneg %p289
    $region38: #{conv_with_conn_forward.22} parent=5 // pred_check_branch
      %292 = sbr.rel (%p290) target = $region40
    $region39: #{conv_with_conn_forward.22} parent=5 // pred_region
      %s293 = ssub.s32 %s9, 2
      // Predicated region
      $region41: #{conv_with_conn_forward.22} parent=39 // pred_check
        %p294 = pneg %p122
      $region42: #{conv_with_conn_forward.22} parent=39 // pred_check_branch
        %296 = sbr.rel (%p294) target = $region44
      $region43: #{conv_with_conn_forward.22} parent=39 // pred_region
        %s297 = smul.u32 2, %s21
        %p298 = scmp.lt.s32.totalorder %s20, 1
        %s299 = scalar_select %p298, %s20, 1
        %p300 = scmp.lt.s32.totalorder %s297, 1
        %s301 = scalar_select %p300, %s297, 1
        %s302 = smul.addr %s299, 2
        %s303 = sadd.s32 %s301, %s302
        %s304 = smul.addr %s303, 4
        %s305 = scalar_lea.vmem %s3, %s304
      $region44: #{conv_with_conn_forward.22} parent=39 // pred_fallthru
        _
    $region40: #{conv_with_conn_forward.22} parent=5 // pred_fallthru
      _
  $region6: #{conv_with_conn_forward.22} parent=0 // loop_footer
    %s13 = sadd.s32 1, %s9
  $region7: #{conv_with_conn_forward.22} parent=0 // loop_footer_branch
    %8 = sbr.rel target = $region3
  $region8: #{conv_with_conn_forward.22} parent=0 // loop_exit
    _

// kernel: conv_with_conn_forward.21
$region0: #{conv_with_conn_forward.21}
  #allocation0 [shape = 'u32[]', space=smem, size = 0x4, offset = 0x4, fixed_abs, tag = 'smem constant byte address 0x4 - core index']
  #allocation1 [shape = 'u32[72,128]{1,0:T(1,128)}', space=vmem, size = 0x9000, scoped, tag = 'internal scratch']
  %s0 = inlined_call_operand.vmem [shape: bf16[2,16,576], index: 0, kind: input, shape index: {}]
  %s1 = inlined_call_operand.vmem [shape: bf16[576,64], index: 1, kind: input, shape index: {}]
  %s2 = inlined_call_operand.vmem [shape: f32[1,64], index: 2, kind: input, shape index: {}]
  %s3 = inlined_call_operand.vmem [shape: f32[1,64], index: 3, kind: input, shape index: {}]
  %s4 = inlined_call_operand.vmem [shape: bf16[2,16,64], index: 4, kind: output, shape index: {}]
  %s5 = sld [smem:[#allocation0]]
  $region49: #{conv_with_conn_forward.21} parent=0
    _
  %s7 = ssub.s32 1, %s5
  %s8 = scalar_select 0, %s7, %s5
  loop: start=0, step=1, limit=4
  $region2: #{conv_with_conn_forward.21} parent=0 // loop_pre_header
    _
  $region3: #{conv_with_conn_forward.21} parent=0 // loop_header
    %s10 = sphi 0, %s14
    %p11 = scmp.ge.s32.totalorder %s10, 4
    %s17 = sphi 0, %s29
    %s18 = sphi 0, %s25
    %s19 = sphi 0, %s17
    %s20 = sphi 0, %s18
    %s21 = sphi 0, %s19
    %s22 = sphi 0, %s20
    %s34 = sphi 0, %s36
    %s37 = sphi 0, %s34
    %s38 = sphi 0, %s37
    %s54 = sphi 0, %s38
    %s58 = sphi 0, %s58
    %s60 = sphi 0, %s58
    %s61 = sphi 0, %s60
    %s75 = sphi 0, %s61
    %s79 = sphi 0, %s79
    %s81 = sphi 0, %s79
    %s82 = sphi 0, %s81
    %s96 = sphi 0, %s82
    %s100 = sphi 0, %s100
    %s102 = sphi 0, %s100
    %s103 = sphi 0, %s102
    %s117 = sphi 0, %s103
    %s125 = sphi 0, %s127
    %s128 = sphi 0, %s125
    %s129 = sphi 0, %s128
    %s145 = sphi 0, %s129
  $region4: #{conv_with_conn_forward.21} parent=0 // loop_header_branch
    %13 = sbr.rel (%p11) target = $region8
  $region5: #{conv_with_conn_forward.21} parent=0 // loop_body
    %s15 = ssub.s32 %s10, 1
    %s16 = ssub.s32 %s10, 2
    %s23 = sadd.s32 1, %s18
    %p24 = scmp.ge.s32.totalorder %s23, 1
    %s25 = scalar_select %p24, 0, %s23
    %s26 = sadd.s32 1, %s17
    %s27 = scalar_select %p24, %s26, %s17
    %p28 = scmp.ge.s32.totalorder %s27, 2
    %s29 = scalar_select %p28, 0, %s27
    %s30 = ssub.s32 %s17, %s29
    %s31 = ssub.s32 %s18, %s25
    %s32 = sor.u32 %s30, %s31
    %p33 = scmp.eq.s32.totalorder %s32, 0
    %s35 = sadd.s32 %s34, 1
    %s36 = scalar_select %p33, %s34, %s35
    %p39 = pneg %p33
    %p40 = scmp.eq.s32.totalorder %s10, 1
    %p41 = por %p39, %p40
    %p42 = scmp.ne.s32.totalorder %s34, %s37
    %p43 = scmp.eq.s32.totalorder %s10, 0
    %p44 = por %p42, %p43
    %p45 = scmp.ne.s32.totalorder %s34, %s37
    %p46 = scmp.eq.s32.totalorder %s15, 1
    %p47 = por %p45, %p46
    %p48 = scmp.ne.s32.totalorder %s37, %s38
    %p49 = scmp.eq.s32.totalorder %s15, 0
    %p50 = por %p48, %p49
    %p51 = scmp.ne.s32.totalorder %s37, %s38
    %p52 = scmp.eq.s32.totalorder %s16, 1
    %p53 = por %p51, %p52
    %p55 = scmp.ne.s32.totalorder %s38, %s54
    %p56 = scmp.eq.s32.totalorder %s16, 0
    %p57 = por %p55, %p56
    %s59 = sadd.s32 %s58, 1
    %p62 = scmp.eq.s32.totalorder %s10, 1
    %p63 = scmp.ne.s32.totalorder %s58, %s60
    %p64 = scmp.eq.s32.totalorder %s10, 0
    %p65 = por %p63, %p64
    %p66 = scmp.ne.s32.totalorder %s58, %s60
    %p67 = scmp.eq.s32.totalorder %s15, 1
    %p68 = por %p66, %p67
    %p69 = scmp.ne.s32.totalorder %s60, %s61
    %p70 = scmp.eq.s32.totalorder %s15, 0
    %p71 = por %p69, %p70
    %p72 = scmp.ne.s32.totalorder %s60, %s61
    %p73 = scmp.eq.s32.totalorder %s16, 1
    %p74 = por %p72, %p73
    %p76 = scmp.ne.s32.totalorder %s61, %s75
    %p77 = scmp.eq.s32.totalorder %s16, 0
    %p78 = por %p76, %p77
    %s80 = sadd.s32 %s79, 1
    %p83 = scmp.eq.s32.totalorder %s10, 1
    %p84 = scmp.ne.s32.totalorder %s79, %s81
    %p85 = scmp.eq.s32.totalorder %s10, 0
    %p86 = por %p84, %p85
    %p87 = scmp.ne.s32.totalorder %s79, %s81
    %p88 = scmp.eq.s32.totalorder %s15, 1
    %p89 = por %p87, %p88
    %p90 = scmp.ne.s32.totalorder %s81, %s82
    %p91 = scmp.eq.s32.totalorder %s15, 0
    %p92 = por %p90, %p91
    %p93 = scmp.ne.s32.totalorder %s81, %s82
    %p94 = scmp.eq.s32.totalorder %s16, 1
    %p95 = por %p93, %p94
    %p97 = scmp.ne.s32.totalorder %s82, %s96
    %p98 = scmp.eq.s32.totalorder %s16, 0
    %p99 = por %p97, %p98
    %s101 = sadd.s32 %s100, 1
    %p104 = scmp.eq.s32.totalorder %s10, 1
    %p105 = scmp.ne.s32.totalorder %s100, %s102
    %p106 = scmp.eq.s32.totalorder %s10, 0
    %p107 = por %p105, %p106
    %p108 = scmp.ne.s32.totalorder %s100, %s102
    %p109 = scmp.eq.s32.totalorder %s15, 1
    %p110 = por %p108, %p109
    %p111 = scmp.ne.s32.totalorder %s102, %s103
    %p112 = scmp.eq.s32.totalorder %s15, 0
    %p113 = por %p111, %p112
    %p114 = scmp.ne.s32.totalorder %s102, %s103
    %p115 = scmp.eq.s32.totalorder %s16, 1
    %p116 = por %p114, %p115
    %p118 = scmp.ne.s32.totalorder %s103, %s117
    %p119 = scmp.eq.s32.totalorder %s16, 0
    %p120 = por %p118, %p119
    %s121 = ssub.s32 %s17, %s29
    %s122 = ssub.s32 %s18, %s25
    %s123 = sor.u32 %s121, %s122
    %p124 = scmp.eq.s32.totalorder %s123, 0
    %s126 = sadd.s32 %s125, 1
    %s127 = scalar_select %p124, %s125, %s126
    %p130 = pneg %p124
    %p131 = scmp.eq.s32.totalorder %s10, 1
    %p132 = por %p130, %p131
    %p133 = scmp.ne.s32.totalorder %s125, %s128
    %p134 = scmp.eq.s32.totalorder %s10, 0
    %p135 = por %p133, %p134
    %p136 = scmp.ne.s32.totalorder %s125, %s128
    %p137 = scmp.eq.s32.totalorder %s15, 1
    %p138 = por %p136, %p137
    %p139 = scmp.ne.s32.totalorder %s128, %s129
    %p140 = scmp.eq.s32.totalorder %s15, 0
    %p141 = por %p139, %p140
    %p142 = scmp.ne.s32.totalorder %s128, %s129
    %p143 = scmp.eq.s32.totalorder %s16, 1
    %p144 = por %p142, %p143
    %p146 = scmp.ne.s32.totalorder %s129, %s145
    %p147 = scmp.eq.s32.totalorder %s16, 0
    %p148 = por %p146, %p147
    %p149 = scmp.le.s32.totalorder 1, %s10
    %p150 = scmp.lt.s32.totalorder %s10, 3
    %p151 = pnand %p149, %p150
    %p152 = pneg %p151
    // Predicated region
    $region9: #{conv_with_conn_forward.21} parent=5 // pred_check
      _
    $region10: #{conv_with_conn_forward.21} parent=5 // pred_check_branch
      %154 = sbr.rel (%p151) target = $region12
    $region11: #{conv_with_conn_forward.21} parent=5 // pred_region
      %s155 = ssub.s32 %s10, 1
      // Predicated region
      $region13: #{conv_with_conn_forward.21} parent=11 // pred_check
        %p156 = pneg %p71
      $region14: #{conv_with_conn_forward.21} parent=11 // pred_check_branch
        %158 = sbr.rel (%p156) target = $region16
      $region15: #{conv_with_conn_forward.21} parent=11 // pred_region
        _
      $region16: #{conv_with_conn_forward.21} parent=11 // pred_fallthru
        _
      // Predicated region
      $region17: #{conv_with_conn_forward.21} parent=11 // pred_check
        %p159 = pneg %p92
      $region18: #{conv_with_conn_forward.21} parent=11 // pred_check_branch
        %161 = sbr.rel (%p159) target = $region20
      $region19: #{conv_with_conn_forward.21} parent=11 // pred_region
        _
      $region20: #{conv_with_conn_forward.21} parent=11 // pred_fallthru
        _
      // Predicated region
      $region21: #{conv_with_conn_forward.21} parent=11 // pred_check
        %p162 = pneg %p113
      $region22: #{conv_with_conn_forward.21} parent=11 // pred_check_branch
        %164 = sbr.rel (%p162) target = $region24
      $region23: #{conv_with_conn_forward.21} parent=11 // pred_region
        _
      $region24: #{conv_with_conn_forward.21} parent=11 // pred_fallthru
        _
    $region12: #{conv_with_conn_forward.21} parent=5 // pred_fallthru
      _
    %p165 = scmp.lt.s32.totalorder %s10, 2
    // Predicated region
    $region25: #{conv_with_conn_forward.21} parent=5 // pred_check
      %p166 = pneg %p165
    $region26: #{conv_with_conn_forward.21} parent=5 // pred_check_branch
      %168 = sbr.rel (%p166) target = $region28
    $region27: #{conv_with_conn_forward.21} parent=5 // pred_region
      // Predicated region
      $region29: #{conv_with_conn_forward.21} parent=27 // pred_check
        %p169 = pneg %p44
      $region30: #{conv_with_conn_forward.21} parent=27 // pred_check_branch
        %171 = sbr.rel (%p169) target = $region32
      $region31: #{conv_with_conn_forward.21} parent=27 // pred_region
        %s172 = smul.u32 2, %s18
        %p173 = scmp.lt.s32.totalorder %s17, 1
        %s174 = scalar_select %p173, %s17, 1
        %p175 = scmp.lt.s32.totalorder %s172, 1
        %s176 = scalar_select %p175, %s172, 1
        %s177 = smul.addr %s176, 5
        %s178 = smul.addr %s174, 10
        %s179 = sadd.s32 %s177, %s178
        %s180 = smul.addr %s179, 4
        %s181 = scalar_lea.vmem %s0, %s180
        %s182 = smul.u32 2, %s18
      $region32: #{conv_with_conn_forward.21} parent=27 // pred_fallthru
        _
    $region28: #{conv_with_conn_forward.21} parent=5 // pred_fallthru
      _
    %p183 = scmp.le.s32.totalorder 1, %s10
    %p184 = scmp.lt.s32.totalorder %s10, 3
    %p185 = pnand %p183, %p184
    %p186 = pneg %p185
    // Predicated region
    $region33: #{conv_with_conn_forward.21} parent=5 // pred_check
      _
    $region34: #{conv_with_conn_forward.21} parent=5 // pred_check_branch
      %188 = sbr.rel (%p185) target = $region36
    $region35: #{conv_with_conn_forward.21} parent=5 // pred_region
      %s189 = ssub.s32 %s10, 1
      %s190 = smul.u32 2, %s20
      %p191 = scmp.lt.s32.totalorder %s19, 1
      %s192 = scalar_select %p191, %s19, 1
      %p193 = scmp.lt.s32.totalorder %s190, 1
      %s194 = scalar_select %p193, %s190, 1
      %s195 = smul.addr %s194, 5
      %s196 = smul.addr %s192, 10
      %s197 = sadd.s32 %s195, %s196
      %s198 = smul.addr %s197, 4
      %s199 = scalar_lea.vmem %s0, %s198
      %p200 = pneg %p50
      %p201 = pneg %p47
      %p202 = pneg %p71
      %p203 = pneg %p68
      %p204 = pneg %p92
      %p205 = pneg %p89
      %p206 = pneg %p113
      %p207 = pneg %p110
      %p208 = pneg %p141
      %p209 = pneg %p138
      %s210 = smul.u32 2, %s20
      %p211 = scmp.lt.s32.totalorder %s19, 1
      %s212 = scalar_select %p211, %s19, 1
      %p213 = scmp.lt.s32.totalorder %s210, 1
      %s214 = scalar_select %p213, %s210, 1
      %s215 = smul.addr %s212, 2
      %s216 = sadd.s32 %s214, %s215
      %s217 = smul.addr %s216, 4
      %s218 = scalar_lea.vmem %s4, %s217
      %s219 = smul.u32 2, %s20
      %p220 = scmp.lt.s32.totalorder %s19, 1
      %s221 = scalar_select %p220, %s19, 1
      %p222 = scmp.lt.s32.totalorder %s219, 1
      %s223 = scalar_select %p222, %s219, 1
      %s224 = smul.addr %s223, 5
      %s225 = smul.addr %s221, 10
      %s226 = sadd.s32 %s224, %s225
      %s227 = smul.addr %s226, 4
      %s228 = scalar_lea.vmem %s0, %s227
      %s229 = smul.u32 2, %s20
      %s230 = smul.u32 2, %s20
      %p231 = scmp.lt.s32.totalorder %s19, 1
      %s232 = scalar_select %p231, %s19, 1
      %p233 = scmp.lt.s32.totalorder %s230, 1
      %s234 = scalar_select %p233, %s230, 1
      %s235 = smul.addr %s232, 2
      %s236 = sadd.s32 %s234, %s235
      %s237 = smul.addr %s236, 4
      %s238 = scalar_lea.vmem %s4, %s237
      %s239 = smul.u32 2, %s20
      %v241 = vld [vmem:[%s228] sm:$0xff]
      %v242 = vld [vmem:[%s228 + $0x8] sm:$0xff]
      %v243 = vld [vmem:[%s228 + $0x10] sm:$0xf]
      %v244 = vld [vmem:[%s228 + $0x14] sm:$0xff]
      %v245 = vld [vmem:[%s228 + $0x1c] sm:$0xff]
      %v246 = vld [vmem:[%s228 + $0x24] sm:$0xf]
      %v247 = vld [vmem:[%s1] sm:$0xf]
      %v248 = vld [vmem:[%s1 + $0x4] sm:$0xf]
      %v249 = vld [vmem:[%s1 + $0x8] sm:$0xf]
      %v250 = vld [vmem:[%s1 + $0xc] sm:$0xf]
      %v251 = vld [vmem:[%s1 + $0x10] sm:$0xf]
      %v252 = vld [vmem:[%s1 + $0x14] sm:$0xf]
      %v253 = vld [vmem:[%s1 + $0x18] sm:$0xf]
      %v254 = vld [vmem:[%s1 + $0x1c] sm:$0xf]
      %v255 = vld [vmem:[%s1 + $0x20] sm:$0xf]
      %v256 = vld [vmem:[%s1 + $0x24] sm:$0xf]
      %v257 = vld [vmem:[%s1 + $0x28] sm:$0xf]
      %v258 = vld [vmem:[%s1 + $0x2c] sm:$0xf]
      %v259 = vld [vmem:[%s1 + $0x30] sm:$0xf]
      %v260 = vld [vmem:[%s1 + $0x34] sm:$0xf]
      %v261 = vld [vmem:[%s1 + $0x38] sm:$0xf]
      %v262 = vld [vmem:[%s1 + $0x3c] sm:$0xf]
      %v263 = vld [vmem:[%s1 + $0x40] sm:$0xf]
      %v264 = vld [vmem:[%s1 + $0x44] sm:$0xf]
      %v265 = vld [vmem:[%s1 + $0x48] sm:$0xf]
      %v266 = vld [vmem:[%s1 + $0x4c] sm:$0xf]
      %v267 = vld [vmem:[%s1 + $0x50] sm:$0xf]
      %v268 = vld [vmem:[%s1 + $0x54] sm:$0xf]
      %v269 = vld [vmem:[%s1 + $0x58] sm:$0xf]
      %v270 = vld [vmem:[%s1 + $0x5c] sm:$0xf]
      %v271 = vld [vmem:[%s1 + $0x60] sm:$0xf]
      %v272 = vld [vmem:[%s1 + $0x64] sm:$0xf]
      %v273 = vld [vmem:[%s1 + $0x68] sm:$0xf]
      %v274 = vld [vmem:[%s1 + $0x6c] sm:$0xf]
      %v275 = vld [vmem:[%s1 + $0x70] sm:$0xf]
      %v276 = vld [vmem:[%s1 + $0x74] sm:$0xf]
      %v277 = vld [vmem:[%s1 + $0x78] sm:$0xf]
      %v278 = vld [vmem:[%s1 + $0x7c] sm:$0xf]
      %v279 = vld [vmem:[%s1 + $0x80] sm:$0xf]
      %v280 = vld [vmem:[%s1 + $0x84] sm:$0xf]
      %v281 = vld [vmem:[%s1 + $0x88] sm:$0xf]
      %v282 = vld [vmem:[%s1 + $0x8c] sm:$0xf]
      %v283 = vld [vmem:[%s1 + $0x90] sm:$0xf]
      %v284 = vld [vmem:[%s1 + $0x94] sm:$0xf]
      %v285 = vld [vmem:[%s1 + $0x98] sm:$0xf]
      %v286 = vld [vmem:[%s1 + $0x9c] sm:$0xf]
      %v287 = vld [vmem:[%s1 + $0xa0] sm:$0xf]
      %v288 = vld [vmem:[%s1 + $0xa4] sm:$0xf]
      %v289 = vld [vmem:[%s1 + $0xa8] sm:$0xf]
      %v290 = vld [vmem:[%s1 + $0xac] sm:$0xf]
      %v291 = vld [vmem:[%s1 + $0xb0] sm:$0xf]
      %v292 = vld [vmem:[%s1 + $0xb4] sm:$0xf]
      %v293 = vld [vmem:[%s1 + $0xb8] sm:$0xf]
      %v294 = vld [vmem:[%s1 + $0xbc] sm:$0xf]
      %v295 = vld [vmem:[%s1 + $0xc0] sm:$0xf]
      %v296 = vld [vmem:[%s1 + $0xc4] sm:$0xf]
      %v297 = vld [vmem:[%s1 + $0xc8] sm:$0xf]
      %v298 = vld [vmem:[%s1 + $0xcc] sm:$0xf]
      %v299 = vld [vmem:[%s1 + $0xd0] sm:$0xf]
      %v300 = vld [vmem:[%s1 + $0xd4] sm:$0xf]
      %v301 = vld [vmem:[%s1 + $0xd8] sm:$0xf]
      %v302 = vld [vmem:[%s1 + $0xdc] sm:$0xf]
      %v303 = vld [vmem:[%s1 + $0xe0] sm:$0xf]
      %v304 = vld [vmem:[%s1 + $0xe4] sm:$0xf]
      %v305 = vld [vmem:[%s1 + $0xe8] sm:$0xf]
      %v306 = vld [vmem:[%s1 + $0xec] sm:$0xf]
      %v307 = vld [vmem:[%s1 + $0xf0] sm:$0xf]
      %v308 = vld [vmem:[%s1 + $0xf4] sm:$0xf]
      %v309 = vld [vmem:[%s1 + $0xf8] sm:$0xf]
      %v310 = vld [vmem:[%s1 + $0xfc] sm:$0xf]
      %v311 = vld [vmem:[%s1 + $0x100] sm:$0xf]
      %v312 = vld [vmem:[%s1 + $0x104] sm:$0xf]
      %v313 = vld [vmem:[%s1 + $0x108] sm:$0xf]
      %v314 = vld [vmem:[%s1 + $0x10c] sm:$0xf]
      %v315 = vld [vmem:[%s1 + $0x110] sm:$0xf]
      %v316 = vld [vmem:[%s1 + $0x114] sm:$0xf]
      %v317 = vld [vmem:[%s1 + $0x118] sm:$0xf]
      %v318 = vld [vmem:[%s1 + $0x11c] sm:$0xf]
      %v325 = vunpack.c.l.b16 %v241
      %v326 = vunpack.c.h.b16 %v241
      %v327 = vunpack.c.l.b16 %v242
      %v328 = vunpack.c.h.b16 %v242
      %v329 = vunpack.c.l.b16 %v243
      %v330 = vunpack.c.l.b16 %v244
      %v331 = vunpack.c.h.b16 %v244
      %v332 = vunpack.c.l.b16 %v245
      %v333 = vunpack.c.h.b16 %v245
      %v334 = vunpack.c.l.b16 %v246
      %v335 = vpack.c.b16 %v330, %v325
      %v336 = vpack.c.b16 %v331, %v326
      %v337 = vpack.c.b16 %v332, %v327
      %v338 = vpack.c.b16 %v333, %v328
      %v339 = vpack.c.b16 %v334, %v329
      %v416 = vunpack.c.l.b16 %v247
      %v417 = vunpack.c.l.b16 %v248
      %v418 = vunpack.c.l.b16 %v249
      %v419 = vunpack.c.l.b16 %v250
      %v420 = vunpack.c.l.b16 %v251
      %v421 = vunpack.c.l.b16 %v252
      %v422 = vunpack.c.l.b16 %v253
      %v423 = vunpack.c.l.b16 %v254
      %v424 = vunpack.c.l.b16 %v255
      %v425 = vunpack.c.l.b16 %v256
      %v426 = vunpack.c.l.b16 %v257
      %v427 = vunpack.c.l.b16 %v258
      %v428 = vunpack.c.l.b16 %v259
      %v429 = vunpack.c.l.b16 %v260
      %v430 = vunpack.c.l.b16 %v261
      %v431 = vunpack.c.l.b16 %v262
      %v432 = vunpack.c.l.b16 %v263
      %v433 = vunpack.c.l.b16 %v264
      %v434 = vunpack.c.l.b16 %v265
      %v435 = vunpack.c.l.b16 %v266
      %v436 = vunpack.c.l.b16 %v267
      %v437 = vunpack.c.l.b16 %v268
      %v438 = vunpack.c.l.b16 %v269
      %v439 = vunpack.c.l.b16 %v270
      %v440 = vunpack.c.l.b16 %v271
      %v441 = vunpack.c.l.b16 %v272
      %v442 = vunpack.c.l.b16 %v273
      %v443 = vunpack.c.l.b16 %v274
      %v444 = vunpack.c.l.b16 %v275
      %v445 = vunpack.c.l.b16 %v276
      %v446 = vunpack.c.l.b16 %v277
      %v447 = vunpack.c.l.b16 %v278
      %v448 = vunpack.c.l.b16 %v279
      %v449 = vunpack.c.l.b16 %v280
      %v450 = vunpack.c.l.b16 %v281
      %v451 = vunpack.c.l.b16 %v282
      %v452 = vunpack.c.l.b16 %v283
      %v453 = vunpack.c.l.b16 %v284
      %v454 = vunpack.c.l.b16 %v285
      %v455 = vunpack.c.l.b16 %v286
      %v456 = vunpack.c.l.b16 %v287
      %v457 = vunpack.c.l.b16 %v288
      %v458 = vunpack.c.l.b16 %v289
      %v459 = vunpack.c.l.b16 %v290
      %v460 = vunpack.c.l.b16 %v291
      %v461 = vunpack.c.l.b16 %v292
      %v462 = vunpack.c.l.b16 %v293
      %v463 = vunpack.c.l.b16 %v294
      %v464 = vunpack.c.l.b16 %v295
      %v465 = vunpack.c.l.b16 %v296
      %v466 = vunpack.c.l.b16 %v297
      %v467 = vunpack.c.l.b16 %v298
      %v468 = vunpack.c.l.b16 %v299
      %v469 = vunpack.c.l.b16 %v300
      %v470 = vunpack.c.l.b16 %v301
      %v471 = vunpack.c.l.b16 %v302
      %v472 = vunpack.c.l.b16 %v303
      %v473 = vunpack.c.l.b16 %v304
      %v474 = vunpack.c.l.b16 %v305
      %v475 = vunpack.c.l.b16 %v306
      %v476 = vunpack.c.l.b16 %v307
      %v477 = vunpack.c.l.b16 %v308
      %v478 = vunpack.c.l.b16 %v309
      %v479 = vunpack.c.l.b16 %v310
      %v480 = vunpack.c.l.b16 %v311
      %v481 = vunpack.c.l.b16 %v312
      %v482 = vunpack.c.l.b16 %v313
      %v483 = vunpack.c.l.b16 %v314
      %v484 = vunpack.c.l.b16 %v315
      %v485 = vunpack.c.l.b16 %v316
      %v486 = vunpack.c.l.b16 %v317
      %v487 = vunpack.c.l.b16 %v318
      %v488 = vpack.c.b16 %v417, %v416
      %v489 = vpack.c.b16 %v419, %v418
      %v490 = vpack.c.b16 %v421, %v420
      %v491 = vpack.c.b16 %v423, %v422
      %v492 = vpack.c.b16 %v425, %v424
      %v493 = vpack.c.b16 %v427, %v426
      %v494 = vpack.c.b16 %v429, %v428
      %v495 = vpack.c.b16 %v431, %v430
      %v496 = vpack.c.b16 %v433, %v432
      %v497 = vpack.c.b16 %v435, %v434
      %v498 = vpack.c.b16 %v437, %v436
      %v499 = vpack.c.b16 %v439, %v438
      %v500 = vpack.c.b16 %v441, %v440
      %v501 = vpack.c.b16 %v443, %v442
      %v502 = vpack.c.b16 %v445, %v444
      %v503 = vpack.c.b16 %v447, %v446
      %v504 = vpack.c.b16 %v449, %v448
      %v505 = vpack.c.b16 %v451, %v450
      %v506 = vpack.c.b16 %v453, %v452
      %v507 = vpack.c.b16 %v455, %v454
      %v508 = vpack.c.b16 %v457, %v456
      %v509 = vpack.c.b16 %v459, %v458
      %v510 = vpack.c.b16 %v461, %v460
      %v511 = vpack.c.b16 %v463, %v462
      %v512 = vpack.c.b16 %v465, %v464
      %v513 = vpack.c.b16 %v467, %v466
      %v514 = vpack.c.b16 %v469, %v468
      %v515 = vpack.c.b16 %v471, %v470
      %v516 = vpack.c.b16 %v473, %v472
      %v517 = vpack.c.b16 %v475, %v474
      %v518 = vpack.c.b16 %v477, %v476
      %v519 = vpack.c.b16 %v479, %v478
      %v520 = vpack.c.b16 %v481, %v480
      %v521 = vpack.c.b16 %v483, %v482
      %v522 = vpack.c.b16 %v485, %v484
      %v523 = vpack.c.b16 %v487, %v486
      %vm560 = vcmask 523264
      %v562 = vsel %vm560, %v339, 0
      %564 = vmatpush.bf16.msra.mxu0 %v495
      %565 = vmatpush.bf16.msra.mxu0 %v494
      %566 = vmatpush.bf16.msra.mxu0 %v493
      %567 = vmatpush.bf16.msra.mxu0 %v492
      %568 = vmatpush.bf16.msra.mxu0 %v491
      %569 = vmatpush.bf16.msra.mxu0 %v490
      %570 = vmatpush.bf16.msra.mxu0 %v489
      %571 = vmatpush.bf16.msra.mxu0 %v488
      %572 = vmatmul.bf16.gmra.mxu0 %v335
      %v573 = vpop.f32.mrf.mxu0
      %v574 = vadd.f32 0.0, %v573
      %v575 = vpop.f32.mrf.mxu0
      %v576 = vadd.f32 0.0, %v575
      %577 = vdwg.mxu0
      %578 = vmatpush.bf16.msra.mxu0 %v503
      %579 = vmatpush.bf16.msra.mxu0 %v502
      %580 = vmatpush.bf16.msra.mxu0 %v501
      %581 = vmatpush.bf16.msra.mxu0 %v500
      %582 = vmatpush.bf16.msra.mxu0 %v499
      %583 = vmatpush.bf16.msra.mxu0 %v498
      %584 = vmatpush.bf16.msra.mxu0 %v497
      %585 = vmatpush.bf16.msra.mxu0 %v496
      %586 = vmatmul.bf16.gmra.mxu0 %v336
      %v587 = vpop.f32.mrf.mxu0
      %v588 = vadd.f32 %v574, %v587
      %v589 = vpop.f32.mrf.mxu0
      %v590 = vadd.f32 %v576, %v589
      %591 = vdwg.mxu0
      %592 = vmatpush.bf16.msra.mxu0 %v511
      %593 = vmatpush.bf16.msra.mxu0 %v510
      %594 = vmatpush.bf16.msra.mxu0 %v509
      %595 = vmatpush.bf16.msra.mxu0 %v508
      %596 = vmatpush.bf16.msra.mxu0 %v507
      %597 = vmatpush.bf16.msra.mxu0 %v506
      %598 = vmatpush.bf16.msra.mxu0 %v505
      %599 = vmatpush.bf16.msra.mxu0 %v504
      %600 = vmatmul.bf16.gmra.mxu0 %v337
      %v601 = vpop.f32.mrf.mxu0
      %v602 = vadd.f32 %v588, %v601
      %v603 = vpop.f32.mrf.mxu0
      %v604 = vadd.f32 %v590, %v603
      %605 = vdwg.mxu0
      %606 = vmatpush.bf16.msra.mxu0 %v519
      %607 = vmatpush.bf16.msra.mxu0 %v518
      %608 = vmatpush.bf16.msra.mxu0 %v517
      %609 = vmatpush.bf16.msra.mxu0 %v516
      %610 = vmatpush.bf16.msra.mxu0 %v515
      %611 = vmatpush.bf16.msra.mxu0 %v514
      %612 = vmatpush.bf16.msra.mxu0 %v513
      %613 = vmatpush.bf16.msra.mxu0 %v512
      %614 = vmatmul.bf16.gmra.mxu0 %v338
      %v615 = vpop.f32.mrf.mxu0
      %v616 = vadd.f32 %v602, %v615
      %v617 = vpop.f32.mrf.mxu0
      %v618 = vadd.f32 %v604, %v617
      %619 = vdwg.mxu0
      %620 = vmatpush.bf16.msra.mxu0 0
      %621 = vmatpush.bf16.msra.mxu0 0
      %622 = vmatpush.bf16.msra.mxu0 0
      %623 = vmatpush.bf16.msra.mxu0 0
      %624 = vmatpush.bf16.msra.mxu0 %v523
      %625 = vmatpush.bf16.msra.mxu0 %v522
      %626 = vmatpush.bf16.msra.mxu0 %v521
      %627 = vmatpush.bf16.msra.mxu0 %v520
      %628 = vmatmul.bf16.gmra.mxu0 %v562
      %v629 = vpop.f32.mrf.mxu0
      %v630 = vadd.f32 %v616, %v629
      %v631 = vpop.f32.mrf.mxu0
      %v632 = vadd.f32 %v618, %v631
      %633 = vdwg.mxu0
      %v634 = vld [vmem:[%s2] sm:$0x1]
      %v636 = vperm.slane %v634, 0
      %v638 = vmul.f32 %v630, %v636
      %v639 = vmul.f32 %v632, %v636
      %v640 = vld [vmem:[%s3] sm:$0x1]
      %v642 = vperm.slane %v640, 0
      %v644 = vadd.f32 %v638, %v642
      %v645 = vadd.f32 %v639, %v642
      %vm646 = vcmp.ge.f32.partialorder %v644, 0.0
      %vm647 = vcmp.ge.f32.partialorder %v645, 0.0
      %v648 = vmul.f32 %v644, 0.01
      %v649 = vmul.f32 %v645, 0.01
      %v650 = vsel %vm646, %v644, %v648
      %v651 = vsel %vm647, %v645, %v649
      %v652 = vpack.c.bf16 %v650, %v650
      %v653 = vpack.c.bf16 %v651, %v651
      %vm654 = vcmask 519168
      %655 = vst.msk [vmem:[%s238] sm:$0xf] %vm654, %v652
      %656 = vst.msk [vmem:[%s238 + $0x4] sm:$0xf] %vm654, %v653
      %s657 = smul.u32 2, %s20
      %p658 = scmp.lt.s32.totalorder %s19, 1
      %s659 = scalar_select %p658, %s19, 1
      %p660 = scmp.lt.s32.totalorder %s657, 1
      %s661 = scalar_select %p660, %s657, 1
      %s662 = smul.addr %s659, 2
      %s663 = sadd.s32 %s661, %s662
      %s664 = smul.addr %s663, 4
      %s665 = scalar_lea.vmem %s4, %s664
      // Predicated region
      $region37: #{conv_with_conn_forward.21} parent=35 // pred_check
        %p666 = pneg %p138
      $region38: #{conv_with_conn_forward.21} parent=35 // pred_check_branch
        %668 = sbr.rel (%p666) target = $region40
      $region39: #{conv_with_conn_forward.21} parent=35 // pred_region
        %s669 = smul.u32 2, %s20
      $region40: #{conv_with_conn_forward.21} parent=35 // pred_fallthru
        _
    $region36: #{conv_with_conn_forward.21} parent=5 // pred_fallthru
      _
    %p670 = scmp.le.s32.totalorder 2, %s10
    // Predicated region
    $region41: #{conv_with_conn_forward.21} parent=5 // pred_check
      %p671 = pneg %p670
    $region42: #{conv_with_conn_forward.21} parent=5 // pred_check_branch
      %673 = sbr.rel (%p671) target = $region44
    $region43: #{conv_with_conn_forward.21} parent=5 // pred_region
      %s674 = ssub.s32 %s10, 2
      // Predicated region
      $region45: #{conv_with_conn_forward.21} parent=43 // pred_check
        %p675 = pneg %p144
      $region46: #{conv_with_conn_forward.21} parent=43 // pred_check_branch
        %677 = sbr.rel (%p675) target = $region48
      $region47: #{conv_with_conn_forward.21} parent=43 // pred_region
        %s678 = smul.u32 2, %s22
        %p679 = scmp.lt.s32.totalorder %s21, 1
        %s680 = scalar_select %p679, %s21, 1
        %p681 = scmp.lt.s32.totalorder %s678, 1
        %s682 = scalar_select %p681, %s678, 1
        %s683 = smul.addr %s680, 2
        %s684 = sadd.s32 %s682, %s683
        %s685 = smul.addr %s684, 4
        %s686 = scalar_lea.vmem %s4, %s685
      $region48: #{conv_with_conn_forward.21} parent=43 // pred_fallthru
        _
    $region44: #{conv_with_conn_forward.21} parent=5 // pred_fallthru
      _
  $region6: #{conv_with_conn_forward.21} parent=0 // loop_footer
    %s14 = sadd.s32 1, %s10
  $region7: #{conv_with_conn_forward.21} parent=0 // loop_footer_branch
    %9 = sbr.rel target = $region3
  $region8: #{conv_with_conn_forward.21} parent=0 // loop_exit
    _

// kernel: conv_with_conn_forward.25
$region0: #{conv_with_conn_forward.25}
  #allocation0 [shape = 'u32[]', space=smem, size = 0x4, offset = 0x4, fixed_abs, tag = 'smem constant byte address 0x4 - core index']
  #allocation1 [shape = 'u32[72,128]{1,0:T(1,128)}', space=vmem, size = 0x9000, scoped, tag = 'internal scratch']
  %s0 = inlined_call_operand.vmem [shape: bf16[2,64,32], index: 0, kind: input, shape index: {}]
  %s1 = inlined_call_operand.vmem [shape: bf16[32,64], index: 1, kind: input, shape index: {}]
  %s2 = inlined_call_operand.vmem [shape: f32[1,64], index: 2, kind: input, shape index: {}]
  %s3 = inlined_call_operand.vmem [shape: bf16[2,64,64], index: 3, kind: output, shape index: {}]
  %s4 = sld [smem:[#allocation0]]
  $region45: #{conv_with_conn_forward.25} parent=0
    _
  %s6 = ssub.s32 1, %s4
  %s7 = scalar_select 0, %s6, %s4
  loop: start=0, step=1, limit=4
  $region2: #{conv_with_conn_forward.25} parent=0 // loop_pre_header
    _
  $region3: #{conv_with_conn_forward.25} parent=0 // loop_header
    %s9 = sphi 0, %s13
    %p10 = scmp.ge.s32.totalorder %s9, 4
    %s16 = sphi 0, %s28
    %s17 = sphi 0, %s24
    %s18 = sphi 0, %s16
    %s19 = sphi 0, %s17
    %s20 = sphi 0, %s18
    %s21 = sphi 0, %s19
    %s33 = sphi 0, %s35
    %s36 = sphi 0, %s33
    %s37 = sphi 0, %s36
    %s53 = sphi 0, %s37
    %s57 = sphi 0, %s57
    %s59 = sphi 0, %s57
    %s60 = sphi 0, %s59
    %s74 = sphi 0, %s60
    %s78 = sphi 0, %s78
    %s80 = sphi 0, %s78
    %s81 = sphi 0, %s80
    %s95 = sphi 0, %s81
    %s103 = sphi 0, %s105
    %s106 = sphi 0, %s103
    %s107 = sphi 0, %s106
    %s123 = sphi 0, %s107
  $region4: #{conv_with_conn_forward.25} parent=0 // loop_header_branch
    %12 = sbr.rel (%p10) target = $region8
  $region5: #{conv_with_conn_forward.25} parent=0 // loop_body
    %s14 = ssub.s32 %s9, 1
    %s15 = ssub.s32 %s9, 2
    %s22 = sadd.s32 1, %s17
    %p23 = scmp.ge.s32.totalorder %s22, 1
    %s24 = scalar_select %p23, 0, %s22
    %s25 = sadd.s32 1, %s16
    %s26 = scalar_select %p23, %s25, %s16
    %p27 = scmp.ge.s32.totalorder %s26, 2
    %s28 = scalar_select %p27, 0, %s26
    %s29 = ssub.s32 %s16, %s28
    %s30 = ssub.s32 %s17, %s24
    %s31 = sor.u32 %s29, %s30
    %p32 = scmp.eq.s32.totalorder %s31, 0
    %s34 = sadd.s32 %s33, 1
    %s35 = scalar_select %p32, %s33, %s34
    %p38 = pneg %p32
    %p39 = scmp.eq.s32.totalorder %s9, 1
    %p40 = por %p38, %p39
    %p41 = scmp.ne.s32.totalorder %s33, %s36
    %p42 = scmp.eq.s32.totalorder %s9, 0
    %p43 = por %p41, %p42
    %p44 = scmp.ne.s32.totalorder %s33, %s36
    %p45 = scmp.eq.s32.totalorder %s14, 1
    %p46 = por %p44, %p45
    %p47 = scmp.ne.s32.totalorder %s36, %s37
    %p48 = scmp.eq.s32.totalorder %s14, 0
    %p49 = por %p47, %p48
    %p50 = scmp.ne.s32.totalorder %s36, %s37
    %p51 = scmp.eq.s32.totalorder %s15, 1
    %p52 = por %p50, %p51
    %p54 = scmp.ne.s32.totalorder %s37, %s53
    %p55 = scmp.eq.s32.totalorder %s15, 0
    %p56 = por %p54, %p55
    %s58 = sadd.s32 %s57, 1
    %p61 = scmp.eq.s32.totalorder %s9, 1
    %p62 = scmp.ne.s32.totalorder %s57, %s59
    %p63 = scmp.eq.s32.totalorder %s9, 0
    %p64 = por %p62, %p63
    %p65 = scmp.ne.s32.totalorder %s57, %s59
    %p66 = scmp.eq.s32.totalorder %s14, 1
    %p67 = por %p65, %p66
    %p68 = scmp.ne.s32.totalorder %s59, %s60
    %p69 = scmp.eq.s32.totalorder %s14, 0
    %p70 = por %p68, %p69
    %p71 = scmp.ne.s32.totalorder %s59, %s60
    %p72 = scmp.eq.s32.totalorder %s15, 1
    %p73 = por %p71, %p72
    %p75 = scmp.ne.s32.totalorder %s60, %s74
    %p76 = scmp.eq.s32.totalorder %s15, 0
    %p77 = por %p75, %p76
    %s79 = sadd.s32 %s78, 1
    %p82 = scmp.eq.s32.totalorder %s9, 1
    %p83 = scmp.ne.s32.totalorder %s78, %s80
    %p84 = scmp.eq.s32.totalorder %s9, 0
    %p85 = por %p83, %p84
    %p86 = scmp.ne.s32.totalorder %s78, %s80
    %p87 = scmp.eq.s32.totalorder %s14, 1
    %p88 = por %p86, %p87
    %p89 = scmp.ne.s32.totalorder %s80, %s81
    %p90 = scmp.eq.s32.totalorder %s14, 0
    %p91 = por %p89, %p90
    %p92 = scmp.ne.s32.totalorder %s80, %s81
    %p93 = scmp.eq.s32.totalorder %s15, 1
    %p94 = por %p92, %p93
    %p96 = scmp.ne.s32.totalorder %s81, %s95
    %p97 = scmp.eq.s32.totalorder %s15, 0
    %p98 = por %p96, %p97
    %s99 = ssub.s32 %s16, %s28
    %s100 = ssub.s32 %s17, %s24
    %s101 = sor.u32 %s99, %s100
    %p102 = scmp.eq.s32.totalorder %s101, 0
    %s104 = sadd.s32 %s103, 1
    %s105 = scalar_select %p102, %s103, %s104
    %p108 = pneg %p102
    %p109 = scmp.eq.s32.totalorder %s9, 1
    %p110 = por %p108, %p109
    %p111 = scmp.ne.s32.totalorder %s103, %s106
    %p112 = scmp.eq.s32.totalorder %s9, 0
    %p113 = por %p111, %p112
    %p114 = scmp.ne.s32.totalorder %s103, %s106
    %p115 = scmp.eq.s32.totalorder %s14, 1
    %p116 = por %p114, %p115
    %p117 = scmp.ne.s32.totalorder %s106, %s107
    %p118 = scmp.eq.s32.totalorder %s14, 0
    %p119 = por %p117, %p118
    %p120 = scmp.ne.s32.totalorder %s106, %s107
    %p121 = scmp.eq.s32.totalorder %s15, 1
    %p122 = por %p120, %p121
    %p124 = scmp.ne.s32.totalorder %s107, %s123
    %p125 = scmp.eq.s32.totalorder %s15, 0
    %p126 = por %p124, %p125
    %p127 = scmp.le.s32.totalorder 1, %s9
    %p128 = scmp.lt.s32.totalorder %s9, 3
    %p129 = pnand %p127, %p128
    %p130 = pneg %p129
    // Predicated region
    $region9: #{conv_with_conn_forward.25} parent=5 // pred_check
      _
    $region10: #{conv_with_conn_forward.25} parent=5 // pred_check_branch
      %132 = sbr.rel (%p129) target = $region12
    $region11: #{conv_with_conn_forward.25} parent=5 // pred_region
      %s133 = ssub.s32 %s9, 1
      // Predicated region
      $region13: #{conv_with_conn_forward.25} parent=11 // pred_check
        %p134 = pneg %p70
      $region14: #{conv_with_conn_forward.25} parent=11 // pred_check_branch
        %136 = sbr.rel (%p134) target = $region16
      $region15: #{conv_with_conn_forward.25} parent=11 // pred_region
        _
      $region16: #{conv_with_conn_forward.25} parent=11 // pred_fallthru
        _
      // Predicated region
      $region17: #{conv_with_conn_forward.25} parent=11 // pred_check
        %p137 = pneg %p91
      $region18: #{conv_with_conn_forward.25} parent=11 // pred_check_branch
        %139 = sbr.rel (%p137) target = $region20
      $region19: #{conv_with_conn_forward.25} parent=11 // pred_region
        _
      $region20: #{conv_with_conn_forward.25} parent=11 // pred_fallthru
        _
    $region12: #{conv_with_conn_forward.25} parent=5 // pred_fallthru
      _
    %p140 = scmp.lt.s32.totalorder %s9, 2
    // Predicated region
    $region21: #{conv_with_conn_forward.25} parent=5 // pred_check
      %p141 = pneg %p140
    $region22: #{conv_with_conn_forward.25} parent=5 // pred_check_branch
      %143 = sbr.rel (%p141) target = $region24
    $region23: #{conv_with_conn_forward.25} parent=5 // pred_region
      // Predicated region
      $region25: #{conv_with_conn_forward.25} parent=23 // pred_check
        %p144 = pneg %p43
      $region26: #{conv_with_conn_forward.25} parent=23 // pred_check_branch
        %146 = sbr.rel (%p144) target = $region28
      $region27: #{conv_with_conn_forward.25} parent=23 // pred_region
        %s147 = smul.u32 8, %s17
        %p148 = scmp.lt.s32.totalorder %s16, 1
        %s149 = scalar_select %p148, %s16, 1
        %p150 = scmp.lt.s32.totalorder %s147, 7
        %s151 = scalar_select %p150, %s147, 7
        %s152 = smul.addr %s149, 8
        %s153 = sadd.s32 %s151, %s152
        %s154 = smul.addr %s153, 4
        %s155 = scalar_lea.vmem %s0, %s154
        %s156 = smul.u32 8, %s17
      $region28: #{conv_with_conn_forward.25} parent=23 // pred_fallthru
        _
    $region24: #{conv_with_conn_forward.25} parent=5 // pred_fallthru
      _
    %p157 = scmp.le.s32.totalorder 1, %s9
    %p158 = scmp.lt.s32.totalorder %s9, 3
    %p159 = pnand %p157, %p158
    %p160 = pneg %p159
    // Predicated region
    $region29: #{conv_with_conn_forward.25} parent=5 // pred_check
      _
    $region30: #{conv_with_conn_forward.25} parent=5 // pred_check_branch
      %162 = sbr.rel (%p159) target = $region32
    $region31: #{conv_with_conn_forward.25} parent=5 // pred_region
      %s163 = ssub.s32 %s9, 1
      %s164 = smul.u32 8, %s19
      %p165 = scmp.lt.s32.totalorder %s18, 1
      %s166 = scalar_select %p165, %s18, 1
      %p167 = scmp.lt.s32.totalorder %s164, 7
      %s168 = scalar_select %p167, %s164, 7
      %s169 = smul.addr %s166, 8
      %s170 = sadd.s32 %s168, %s169
      %s171 = smul.addr %s170, 4
      %s172 = scalar_lea.vmem %s0, %s171
      %p173 = pneg %p49
      %p174 = pneg %p46
      %p175 = pneg %p70
      %p176 = pneg %p67
      %p177 = pneg %p91
      %p178 = pneg %p88
      %p179 = pneg %p119
      %p180 = pneg %p116
      %s181 = smul.u32 8, %s19
      %p182 = scmp.lt.s32.totalorder %s18, 1
      %s183 = scalar_select %p182, %s18, 1
      %p184 = scmp.lt.s32.totalorder %s181, 7
      %s185 = scalar_select %p184, %s181, 7
      %s186 = smul.addr %s183, 8
      %s187 = sadd.s32 %s185, %s186
      %s188 = smul.addr %s187, 4
      %s189 = scalar_lea.vmem %s3, %s188
      %s190 = smul.u32 8, %s19
      %p191 = scmp.lt.s32.totalorder %s18, 1
      %s192 = scalar_select %p191, %s18, 1
      %p193 = scmp.lt.s32.totalorder %s190, 7
      %s194 = scalar_select %p193, %s190, 7
      %s195 = smul.addr %s192, 8
      %s196 = sadd.s32 %s194, %s195
      %s197 = smul.addr %s196, 4
      %s198 = scalar_lea.vmem %s0, %s197
      %s199 = smul.u32 8, %s19
      %s200 = smul.u32 8, %s19
      %p201 = scmp.lt.s32.totalorder %s18, 1
      %s202 = scalar_select %p201, %s18, 1
      %p203 = scmp.lt.s32.totalorder %s200, 7
      %s204 = scalar_select %p203, %s200, 7
      %s205 = smul.addr %s202, 8
      %s206 = sadd.s32 %s204, %s205
      %s207 = smul.addr %s206, 4
      %s208 = scalar_lea.vmem %s3, %s207
      %s209 = smul.u32 8, %s19
      %v211 = vld [vmem:[%s198] sm:$0xf]
      %v212 = vld [vmem:[%s198 + $0x4] sm:$0xf]
      %v213 = vld [vmem:[%s198 + $0x8] sm:$0xf]
      %v214 = vld [vmem:[%s198 + $0xc] sm:$0xf]
      %v215 = vld [vmem:[%s198 + $0x10] sm:$0xf]
      %v216 = vld [vmem:[%s198 + $0x14] sm:$0xf]
      %v217 = vld [vmem:[%s198 + $0x18] sm:$0xf]
      %v218 = vld [vmem:[%s198 + $0x1c] sm:$0xf]
      %v219 = vld [vmem:[%s1] sm:$0xf]
      %v220 = vld [vmem:[%s1 + $0x4] sm:$0xf]
      %v221 = vld [vmem:[%s1 + $0x8] sm:$0xf]
      %v222 = vld [vmem:[%s1 + $0xc] sm:$0xf]
      %v223 = vld [vmem:[%s2] sm:$0x1]
      %v225 = vperm.slane %v223, 0
      %v235 = vunpack.c.l.b16 %v211
      %v236 = vunpack.c.l.b16 %v212
      %v237 = vunpack.c.l.b16 %v213
      %v238 = vunpack.c.l.b16 %v214
      %v239 = vunpack.c.l.b16 %v215
      %v240 = vunpack.c.l.b16 %v216
      %v241 = vunpack.c.l.b16 %v217
      %v242 = vunpack.c.l.b16 %v218
      %v243 = vpack.c.b16 %v236, %v235
      %v244 = vpack.c.b16 %v238, %v237
      %v245 = vpack.c.b16 %v240, %v239
      %v246 = vpack.c.b16 %v242, %v241
      %v251 = vunpack.c.l.b16 %v219
      %v252 = vunpack.c.l.b16 %v220
      %v253 = vunpack.c.l.b16 %v221
      %v254 = vunpack.c.l.b16 %v222
      %v255 = vpack.c.b16 %v252, %v251
      %v256 = vpack.c.b16 %v254, %v253
      %vm259 = vcmask 261120
      %v261 = vsel %vm259, %v243, 0
      %v264 = vsel %vm259, %v244, 0
      %v267 = vsel %vm259, %v245, 0
      %v270 = vsel %vm259, %v246, 0
      %272 = vmatpush.bf16.msra.mxu0 0
      %273 = vmatpush.bf16.msra.mxu0 0
      %274 = vmatpush.bf16.msra.mxu0 0
      %275 = vmatpush.bf16.msra.mxu0 0
      %276 = vmatpush.bf16.msra.mxu0 0
      %277 = vmatpush.bf16.msra.mxu0 0
      %278 = vmatpush.bf16.msra.mxu0 %v256
      %279 = vmatpush.bf16.msra.mxu0 %v255
      %280 = vmatmul.bf16.gmra.mxu0 %v261
      %v281 = vpop.f32.mrf.mxu0
      %v282 = vadd.f32 %v225, %v281
      %v283 = vpop.f32.mrf.mxu0
      %v284 = vadd.f32 %v225, %v283
      %285 = vmatmul.bf16.gmra.mxu0 %v264
      %v286 = vpop.f32.mrf.mxu0
      %v287 = vadd.f32 %v225, %v286
      %v288 = vpop.f32.mrf.mxu0
      %v289 = vadd.f32 %v225, %v288
      %290 = vmatmul.bf16.gmra.mxu0 %v267
      %v291 = vpop.f32.mrf.mxu0
      %v292 = vadd.f32 %v225, %v291
      %v293 = vpop.f32.mrf.mxu0
      %v294 = vadd.f32 %v225, %v293
      %295 = vmatmul.bf16.gmra.mxu0 %v270
      %v296 = vpop.f32.mrf.mxu0
      %v297 = vadd.f32 %v225, %v296
      %v298 = vpop.f32.mrf.mxu0
      %v299 = vadd.f32 %v225, %v298
      %300 = vdwg.mxu0
      %v301 = vpack.c.bf16 %v282, %v282
      %v302 = vpack.c.bf16 %v284, %v284
      %v303 = vpack.c.bf16 %v287, %v287
      %v304 = vpack.c.bf16 %v289, %v289
      %v305 = vpack.c.bf16 %v292, %v292
      %v306 = vpack.c.bf16 %v294, %v294
      %v307 = vpack.c.bf16 %v297, %v297
      %v308 = vpack.c.bf16 %v299, %v299
      %vm309 = vcmask 519168
      %310 = vst.msk [vmem:[%s208] sm:$0xf] %vm309, %v301
      %311 = vst.msk [vmem:[%s208 + $0x4] sm:$0xf] %vm309, %v302
      %312 = vst.msk [vmem:[%s208 + $0x8] sm:$0xf] %vm309, %v303
      %313 = vst.msk [vmem:[%s208 + $0xc] sm:$0xf] %vm309, %v304
      %314 = vst.msk [vmem:[%s208 + $0x10] sm:$0xf] %vm309, %v305
      %315 = vst.msk [vmem:[%s208 + $0x14] sm:$0xf] %vm309, %v306
      %316 = vst.msk [vmem:[%s208 + $0x18] sm:$0xf] %vm309, %v307
      %317 = vst.msk [vmem:[%s208 + $0x1c] sm:$0xf] %vm309, %v308
      %s318 = smul.u32 8, %s19
      %p319 = scmp.lt.s32.totalorder %s18, 1
      %s320 = scalar_select %p319, %s18, 1
      %p321 = scmp.lt.s32.totalorder %s318, 7
      %s322 = scalar_select %p321, %s318, 7
      %s323 = smul.addr %s320, 8
      %s324 = sadd.s32 %s322, %s323
      %s325 = smul.addr %s324, 4
      %s326 = scalar_lea.vmem %s3, %s325
      // Predicated region
      $region33: #{conv_with_conn_forward.25} parent=31 // pred_check
        %p327 = pneg %p116
      $region34: #{conv_with_conn_forward.25} parent=31 // pred_check_branch
        %329 = sbr.rel (%p327) target = $region36
      $region35: #{conv_with_conn_forward.25} parent=31 // pred_region
        %s330 = smul.u32 8, %s19
      $region36: #{conv_with_conn_forward.25} parent=31 // pred_fallthru
        _
    $region32: #{conv_with_conn_forward.25} parent=5 // pred_fallthru
      _
    %p331 = scmp.le.s32.totalorder 2, %s9
    // Predicated region
    $region37: #{conv_with_conn_forward.25} parent=5 // pred_check
      %p332 = pneg %p331
    $region38: #{conv_with_conn_forward.25} parent=5 // pred_check_branch
      %334 = sbr.rel (%p332) target = $region40
    $region39: #{conv_with_conn_forward.25} parent=5 // pred_region
      %s335 = ssub.s32 %s9, 2
      // Predicated region
      $region41: #{conv_with_conn_forward.25} parent=39 // pred_check
        %p336 = pneg %p122
      $region42: #{conv_with_conn_forward.25} parent=39 // pred_check_branch
        %338 = sbr.rel (%p336) target = $region44
      $region43: #{conv_with_conn_forward.25} parent=39 // pred_region
        %s339 = smul.u32 8, %s21
        %p340 = scmp.lt.s32.totalorder %s20, 1
        %s341 = scalar_select %p340, %s20, 1
        %p342 = scmp.lt.s32.totalorder %s339, 7
        %s343 = scalar_select %p342, %s339, 7
        %s344 = smul.addr %s341, 8
        %s345 = sadd.s32 %s343, %s344
        %s346 = smul.addr %s345, 4
        %s347 = scalar_lea.vmem %s3, %s346
      $region44: #{conv_with_conn_forward.25} parent=39 // pred_fallthru
        _
    $region40: #{conv_with_conn_forward.25} parent=5 // pred_fallthru
      _
  $region6: #{conv_with_conn_forward.25} parent=0 // loop_footer
    %s13 = sadd.s32 1, %s9
  $region7: #{conv_with_conn_forward.25} parent=0 // loop_footer_branch
    %8 = sbr.rel target = $region3
  $region8: #{conv_with_conn_forward.25} parent=0 // loop_exit
    _

// kernel: conv_with_conn_forward.23
$region0: #{conv_with_conn_forward.23}
  #allocation0 [shape = 'u32[]', space=smem, size = 0x4, offset = 0x4, fixed_abs, tag = 'smem constant byte address 0x4 - core index']
  #allocation1 [shape = 'u32[72,128]{1,0:T(1,128)}', space=vmem, size = 0x9000, scoped, tag = 'internal scratch']
  %s0 = inlined_call_operand.vmem [shape: bf16[2,64,576], index: 0, kind: input, shape index: {}]
  %s1 = inlined_call_operand.vmem [shape: bf16[576,32], index: 1, kind: input, shape index: {}]
  %s2 = inlined_call_operand.vmem [shape: f32[1,32], index: 2, kind: input, shape index: {}]
  %s3 = inlined_call_operand.vmem [shape: f32[1,32], index: 3, kind: input, shape index: {}]
  %s4 = inlined_call_operand.vmem [shape: bf16[2,64,32], index: 4, kind: output, shape index: {}]
  %s5 = sld [smem:[#allocation0]]
  $region49: #{conv_with_conn_forward.23} parent=0
    _
  %s7 = ssub.s32 1, %s5
  %s8 = scalar_select 0, %s7, %s5
  loop: start=0, step=1, limit=4
  $region2: #{conv_with_conn_forward.23} parent=0 // loop_pre_header
    _
  $region3: #{conv_with_conn_forward.23} parent=0 // loop_header
    %s10 = sphi 0, %s14
    %p11 = scmp.ge.s32.totalorder %s10, 4
    %s17 = sphi 0, %s29
    %s18 = sphi 0, %s25
    %s19 = sphi 0, %s17
    %s20 = sphi 0, %s18
    %s21 = sphi 0, %s19
    %s22 = sphi 0, %s20
    %s34 = sphi 0, %s36
    %s37 = sphi 0, %s34
    %s38 = sphi 0, %s37
    %s54 = sphi 0, %s38
    %s58 = sphi 0, %s58
    %s60 = sphi 0, %s58
    %s61 = sphi 0, %s60
    %s75 = sphi 0, %s61
    %s79 = sphi 0, %s79
    %s81 = sphi 0, %s79
    %s82 = sphi 0, %s81
    %s96 = sphi 0, %s82
    %s100 = sphi 0, %s100
    %s102 = sphi 0, %s100
    %s103 = sphi 0, %s102
    %s117 = sphi 0, %s103
    %s125 = sphi 0, %s127
    %s128 = sphi 0, %s125
    %s129 = sphi 0, %s128
    %s145 = sphi 0, %s129
  $region4: #{conv_with_conn_forward.23} parent=0 // loop_header_branch
    %13 = sbr.rel (%p11) target = $region8
  $region5: #{conv_with_conn_forward.23} parent=0 // loop_body
    %s15 = ssub.s32 %s10, 1
    %s16 = ssub.s32 %s10, 2
    %s23 = sadd.s32 1, %s18
    %p24 = scmp.ge.s32.totalorder %s23, 1
    %s25 = scalar_select %p24, 0, %s23
    %s26 = sadd.s32 1, %s17
    %s27 = scalar_select %p24, %s26, %s17
    %p28 = scmp.ge.s32.totalorder %s27, 2
    %s29 = scalar_select %p28, 0, %s27
    %s30 = ssub.s32 %s17, %s29
    %s31 = ssub.s32 %s18, %s25
    %s32 = sor.u32 %s30, %s31
    %p33 = scmp.eq.s32.totalorder %s32, 0
    %s35 = sadd.s32 %s34, 1
    %s36 = scalar_select %p33, %s34, %s35
    %p39 = pneg %p33
    %p40 = scmp.eq.s32.totalorder %s10, 1
    %p41 = por %p39, %p40
    %p42 = scmp.ne.s32.totalorder %s34, %s37
    %p43 = scmp.eq.s32.totalorder %s10, 0
    %p44 = por %p42, %p43
    %p45 = scmp.ne.s32.totalorder %s34, %s37
    %p46 = scmp.eq.s32.totalorder %s15, 1
    %p47 = por %p45, %p46
    %p48 = scmp.ne.s32.totalorder %s37, %s38
    %p49 = scmp.eq.s32.totalorder %s15, 0
    %p50 = por %p48, %p49
    %p51 = scmp.ne.s32.totalorder %s37, %s38
    %p52 = scmp.eq.s32.totalorder %s16, 1
    %p53 = por %p51, %p52
    %p55 = scmp.ne.s32.totalorder %s38, %s54
    %p56 = scmp.eq.s32.totalorder %s16, 0
    %p57 = por %p55, %p56
    %s59 = sadd.s32 %s58, 1
    %p62 = scmp.eq.s32.totalorder %s10, 1
    %p63 = scmp.ne.s32.totalorder %s58, %s60
    %p64 = scmp.eq.s32.totalorder %s10, 0
    %p65 = por %p63, %p64
    %p66 = scmp.ne.s32.totalorder %s58, %s60
    %p67 = scmp.eq.s32.totalorder %s15, 1
    %p68 = por %p66, %p67
    %p69 = scmp.ne.s32.totalorder %s60, %s61
    %p70 = scmp.eq.s32.totalorder %s15, 0
    %p71 = por %p69, %p70
    %p72 = scmp.ne.s32.totalorder %s60, %s61
    %p73 = scmp.eq.s32.totalorder %s16, 1
    %p74 = por %p72, %p73
    %p76 = scmp.ne.s32.totalorder %s61, %s75
    %p77 = scmp.eq.s32.totalorder %s16, 0
    %p78 = por %p76, %p77
    %s80 = sadd.s32 %s79, 1
    %p83 = scmp.eq.s32.totalorder %s10, 1
    %p84 = scmp.ne.s32.totalorder %s79, %s81
    %p85 = scmp.eq.s32.totalorder %s10, 0
    %p86 = por %p84, %p85
    %p87 = scmp.ne.s32.totalorder %s79, %s81
    %p88 = scmp.eq.s32.totalorder %s15, 1
    %p89 = por %p87, %p88
    %p90 = scmp.ne.s32.totalorder %s81, %s82
    %p91 = scmp.eq.s32.totalorder %s15, 0
    %p92 = por %p90, %p91
    %p93 = scmp.ne.s32.totalorder %s81, %s82
    %p94 = scmp.eq.s32.totalorder %s16, 1
    %p95 = por %p93, %p94
    %p97 = scmp.ne.s32.totalorder %s82, %s96
    %p98 = scmp.eq.s32.totalorder %s16, 0
    %p99 = por %p97, %p98
    %s101 = sadd.s32 %s100, 1
    %p104 = scmp.eq.s32.totalorder %s10, 1
    %p105 = scmp.ne.s32.totalorder %s100, %s102
    %p106 = scmp.eq.s32.totalorder %s10, 0
    %p107 = por %p105, %p106
    %p108 = scmp.ne.s32.totalorder %s100, %s102
    %p109 = scmp.eq.s32.totalorder %s15, 1
    %p110 = por %p108, %p109
    %p111 = scmp.ne.s32.totalorder %s102, %s103
    %p112 = scmp.eq.s32.totalorder %s15, 0
    %p113 = por %p111, %p112
    %p114 = scmp.ne.s32.totalorder %s102, %s103
    %p115 = scmp.eq.s32.totalorder %s16, 1
    %p116 = por %p114, %p115
    %p118 = scmp.ne.s32.totalorder %s103, %s117
    %p119 = scmp.eq.s32.totalorder %s16, 0
    %p120 = por %p118, %p119
    %s121 = ssub.s32 %s17, %s29
    %s122 = ssub.s32 %s18, %s25
    %s123 = sor.u32 %s121, %s122
    %p124 = scmp.eq.s32.totalorder %s123, 0
    %s126 = sadd.s32 %s125, 1
    %s127 = scalar_select %p124, %s125, %s126
    %p130 = pneg %p124
    %p131 = scmp.eq.s32.totalorder %s10, 1
    %p132 = por %p130, %p131
    %p133 = scmp.ne.s32.totalorder %s125, %s128
    %p134 = scmp.eq.s32.totalorder %s10, 0
    %p135 = por %p133, %p134
    %p136 = scmp.ne.s32.totalorder %s125, %s128
    %p137 = scmp.eq.s32.totalorder %s15, 1
    %p138 = por %p136, %p137
    %p139 = scmp.ne.s32.totalorder %s128, %s129
    %p140 = scmp.eq.s32.totalorder %s15, 0
    %p141 = por %p139, %p140
    %p142 = scmp.ne.s32.totalorder %s128, %s129
    %p143 = scmp.eq.s32.totalorder %s16, 1
    %p144 = por %p142, %p143
    %p146 = scmp.ne.s32.totalorder %s129, %s145
    %p147 = scmp.eq.s32.totalorder %s16, 0
    %p148 = por %p146, %p147
    %p149 = scmp.le.s32.totalorder 1, %s10
    %p150 = scmp.lt.s32.totalorder %s10, 3
    %p151 = pnand %p149, %p150
    %p152 = pneg %p151
    // Predicated region
    $region9: #{conv_with_conn_forward.23} parent=5 // pred_check
      _
    $region10: #{conv_with_conn_forward.23} parent=5 // pred_check_branch
      %154 = sbr.rel (%p151) target = $region12
    $region11: #{conv_with_conn_forward.23} parent=5 // pred_region
      %s155 = ssub.s32 %s10, 1
      // Predicated region
      $region13: #{conv_with_conn_forward.23} parent=11 // pred_check
        %p156 = pneg %p71
      $region14: #{conv_with_conn_forward.23} parent=11 // pred_check_branch
        %158 = sbr.rel (%p156) target = $region16
      $region15: #{conv_with_conn_forward.23} parent=11 // pred_region
        _
      $region16: #{conv_with_conn_forward.23} parent=11 // pred_fallthru
        _
      // Predicated region
      $region17: #{conv_with_conn_forward.23} parent=11 // pred_check
        %p159 = pneg %p92
      $region18: #{conv_with_conn_forward.23} parent=11 // pred_check_branch
        %161 = sbr.rel (%p159) target = $region20
      $region19: #{conv_with_conn_forward.23} parent=11 // pred_region
        _
      $region20: #{conv_with_conn_forward.23} parent=11 // pred_fallthru
        _
      // Predicated region
      $region21: #{conv_with_conn_forward.23} parent=11 // pred_check
        %p162 = pneg %p113
      $region22: #{conv_with_conn_forward.23} parent=11 // pred_check_branch
        %164 = sbr.rel (%p162) target = $region24
      $region23: #{conv_with_conn_forward.23} parent=11 // pred_region
        _
      $region24: #{conv_with_conn_forward.23} parent=11 // pred_fallthru
        _
    $region12: #{conv_with_conn_forward.23} parent=5 // pred_fallthru
      _
    %p165 = scmp.lt.s32.totalorder %s10, 2
    // Predicated region
    $region25: #{conv_with_conn_forward.23} parent=5 // pred_check
      %p166 = pneg %p165
    $region26: #{conv_with_conn_forward.23} parent=5 // pred_check_branch
      %168 = sbr.rel (%p166) target = $region28
    $region27: #{conv_with_conn_forward.23} parent=5 // pred_region
      // Predicated region
      $region29: #{conv_with_conn_forward.23} parent=27 // pred_check
        %p169 = pneg %p44
      $region30: #{conv_with_conn_forward.23} parent=27 // pred_check_branch
        %171 = sbr.rel (%p169) target = $region32
      $region31: #{conv_with_conn_forward.23} parent=27 // pred_region
        %s172 = smul.u32 8, %s18
        %p173 = scmp.lt.s32.totalorder %s17, 1
        %s174 = scalar_select %p173, %s17, 1
        %p175 = scmp.lt.s32.totalorder %s172, 7
        %s176 = scalar_select %p175, %s172, 7
        %s177 = smul.addr %s176, 5
        %s178 = smul.addr %s174, 40
        %s179 = sadd.s32 %s177, %s178
        %s180 = smul.addr %s179, 4
        %s181 = scalar_lea.vmem %s0, %s180
        %s182 = smul.u32 8, %s18
      $region32: #{conv_with_conn_forward.23} parent=27 // pred_fallthru
        _
    $region28: #{conv_with_conn_forward.23} parent=5 // pred_fallthru
      _
    %p183 = scmp.le.s32.totalorder 1, %s10
    %p184 = scmp.lt.s32.totalorder %s10, 3
    %p185 = pnand %p183, %p184
    %p186 = pneg %p185
    // Predicated region
    $region33: #{conv_with_conn_forward.23} parent=5 // pred_check
      _
    $region34: #{conv_with_conn_forward.23} parent=5 // pred_check_branch
      %188 = sbr.rel (%p185) target = $region36
    $region35: #{conv_with_conn_forward.23} parent=5 // pred_region
      %s189 = ssub.s32 %s10, 1
      %s190 = smul.u32 8, %s20
      %p191 = scmp.lt.s32.totalorder %s19, 1
      %s192 = scalar_select %p191, %s19, 1
      %p193 = scmp.lt.s32.totalorder %s190, 7
      %s194 = scalar_select %p193, %s190, 7
      %s195 = smul.addr %s194, 5
      %s196 = smul.addr %s192, 40
      %s197 = sadd.s32 %s195, %s196
      %s198 = smul.addr %s197, 4
      %s199 = scalar_lea.vmem %s0, %s198
      %p200 = pneg %p50
      %p201 = pneg %p47
      %p202 = pneg %p71
      %p203 = pneg %p68
      %p204 = pneg %p92
      %p205 = pneg %p89
      %p206 = pneg %p113
      %p207 = pneg %p110
      %p208 = pneg %p141
      %p209 = pneg %p138
      %s210 = smul.u32 8, %s20
      %p211 = scmp.lt.s32.totalorder %s19, 1
      %s212 = scalar_select %p211, %s19, 1
      %p213 = scmp.lt.s32.totalorder %s210, 7
      %s214 = scalar_select %p213, %s210, 7
      %s215 = smul.addr %s212, 8
      %s216 = sadd.s32 %s214, %s215
      %s217 = smul.addr %s216, 4
      %s218 = scalar_lea.vmem %s4, %s217
      %s219 = smul.u32 8, %s20
      %p220 = scmp.lt.s32.totalorder %s19, 1
      %s221 = scalar_select %p220, %s19, 1
      %p222 = scmp.lt.s32.totalorder %s219, 7
      %s223 = scalar_select %p222, %s219, 7
      %s224 = smul.addr %s223, 5
      %s225 = smul.addr %s221, 40
      %s226 = sadd.s32 %s224, %s225
      %s227 = smul.addr %s226, 4
      %s228 = scalar_lea.vmem %s0, %s227
      %s229 = smul.u32 8, %s20
      %s230 = smul.u32 8, %s20
      %p231 = scmp.lt.s32.totalorder %s19, 1
      %s232 = scalar_select %p231, %s19, 1
      %p233 = scmp.lt.s32.totalorder %s230, 7
      %s234 = scalar_select %p233, %s230, 7
      %s235 = smul.addr %s232, 8
      %s236 = sadd.s32 %s234, %s235
      %s237 = smul.addr %s236, 4
      %s238 = scalar_lea.vmem %s4, %s237
      %s239 = smul.u32 8, %s20
      %v241 = vld [vmem:[%s228] sm:$0xff]
      %v242 = vld [vmem:[%s228 + $0x8] sm:$0xff]
      %v243 = vld [vmem:[%s228 + $0x10] sm:$0xf]
      %v244 = vld [vmem:[%s228 + $0x14] sm:$0xff]
      %v245 = vld [vmem:[%s228 + $0x1c] sm:$0xff]
      %v246 = vld [vmem:[%s228 + $0x24] sm:$0xf]
      %v247 = vld [vmem:[%s228 + $0x28] sm:$0xff]
      %v248 = vld [vmem:[%s228 + $0x30] sm:$0xff]
      %v249 = vld [vmem:[%s228 + $0x38] sm:$0xf]
      %v250 = vld [vmem:[%s228 + $0x3c] sm:$0xff]
      %v251 = vld [vmem:[%s228 + $0x44] sm:$0xff]
      %v252 = vld [vmem:[%s228 + $0x4c] sm:$0xf]
      %v253 = vld [vmem:[%s228 + $0x50] sm:$0xff]
      %v254 = vld [vmem:[%s228 + $0x58] sm:$0xff]
      %v255 = vld [vmem:[%s228 + $0x60] sm:$0xf]
      %v256 = vld [vmem:[%s228 + $0x64] sm:$0xff]
      %v257 = vld [vmem:[%s228 + $0x6c] sm:$0xff]
      %v258 = vld [vmem:[%s228 + $0x74] sm:$0xf]
      %v259 = vld [vmem:[%s228 + $0x78] sm:$0xff]
      %v260 = vld [vmem:[%s228 + $0x80] sm:$0xff]
      %v261 = vld [vmem:[%s228 + $0x88] sm:$0xf]
      %v262 = vld [vmem:[%s228 + $0x8c] sm:$0xff]
      %v263 = vld [vmem:[%s228 + $0x94] sm:$0xff]
      %v264 = vld [vmem:[%s228 + $0x9c] sm:$0xf]
      %v265 = vld [vmem:[%s1] sm:$0xf]
      %v266 = vld [vmem:[%s1 + $0x4] sm:$0xf]
      %v267 = vld [vmem:[%s1 + $0x8] sm:$0xf]
      %v268 = vld [vmem:[%s1 + $0xc] sm:$0xf]
      %v269 = vld [vmem:[%s1 + $0x10] sm:$0xf]
      %v270 = vld [vmem:[%s1 + $0x14] sm:$0xf]
      %v271 = vld [vmem:[%s1 + $0x18] sm:$0xf]
      %v272 = vld [vmem:[%s1 + $0x1c] sm:$0xf]
      %v273 = vld [vmem:[%s1 + $0x20] sm:$0xf]
      %v274 = vld [vmem:[%s1 + $0x24] sm:$0xf]
      %v275 = vld [vmem:[%s1 + $0x28] sm:$0xf]
      %v276 = vld [vmem:[%s1 + $0x2c] sm:$0xf]
      %v277 = vld [vmem:[%s1 + $0x30] sm:$0xf]
      %v278 = vld [vmem:[%s1 + $0x34] sm:$0xf]
      %v279 = vld [vmem:[%s1 + $0x38] sm:$0xf]
      %v280 = vld [vmem:[%s1 + $0x3c] sm:$0xf]
      %v281 = vld [vmem:[%s1 + $0x40] sm:$0xf]
      %v282 = vld [vmem:[%s1 + $0x44] sm:$0xf]
      %v283 = vld [vmem:[%s1 + $0x48] sm:$0xf]
      %v284 = vld [vmem:[%s1 + $0x4c] sm:$0xf]
      %v285 = vld [vmem:[%s1 + $0x50] sm:$0xf]
      %v286 = vld [vmem:[%s1 + $0x54] sm:$0xf]
      %v287 = vld [vmem:[%s1 + $0x58] sm:$0xf]
      %v288 = vld [vmem:[%s1 + $0x5c] sm:$0xf]
      %v289 = vld [vmem:[%s1 + $0x60] sm:$0xf]
      %v290 = vld [vmem:[%s1 + $0x64] sm:$0xf]
      %v291 = vld [vmem:[%s1 + $0x68] sm:$0xf]
      %v292 = vld [vmem:[%s1 + $0x6c] sm:$0xf]
      %v293 = vld [vmem:[%s1 + $0x70] sm:$0xf]
      %v294 = vld [vmem:[%s1 + $0x74] sm:$0xf]
      %v295 = vld [vmem:[%s1 + $0x78] sm:$0xf]
      %v296 = vld [vmem:[%s1 + $0x7c] sm:$0xf]
      %v297 = vld [vmem:[%s1 + $0x80] sm:$0xf]
      %v298 = vld [vmem:[%s1 + $0x84] sm:$0xf]
      %v299 = vld [vmem:[%s1 + $0x88] sm:$0xf]
      %v300 = vld [vmem:[%s1 + $0x8c] sm:$0xf]
      %v301 = vld [vmem:[%s1 + $0x90] sm:$0xf]
      %v302 = vld [vmem:[%s1 + $0x94] sm:$0xf]
      %v303 = vld [vmem:[%s1 + $0x98] sm:$0xf]
      %v304 = vld [vmem:[%s1 + $0x9c] sm:$0xf]
      %v305 = vld [vmem:[%s1 + $0xa0] sm:$0xf]
      %v306 = vld [vmem:[%s1 + $0xa4] sm:$0xf]
      %v307 = vld [vmem:[%s1 + $0xa8] sm:$0xf]
      %v308 = vld [vmem:[%s1 + $0xac] sm:$0xf]
      %v309 = vld [vmem:[%s1 + $0xb0] sm:$0xf]
      %v310 = vld [vmem:[%s1 + $0xb4] sm:$0xf]
      %v311 = vld [vmem:[%s1 + $0xb8] sm:$0xf]
      %v312 = vld [vmem:[%s1 + $0xbc] sm:$0xf]
      %v313 = vld [vmem:[%s1 + $0xc0] sm:$0xf]
      %v314 = vld [vmem:[%s1 + $0xc4] sm:$0xf]
      %v315 = vld [vmem:[%s1 + $0xc8] sm:$0xf]
      %v316 = vld [vmem:[%s1 + $0xcc] sm:$0xf]
      %v317 = vld [vmem:[%s1 + $0xd0] sm:$0xf]
      %v318 = vld [vmem:[%s1 + $0xd4] sm:$0xf]
      %v319 = vld [vmem:[%s1 + $0xd8] sm:$0xf]
      %v320 = vld [vmem:[%s1 + $0xdc] sm:$0xf]
      %v321 = vld [vmem:[%s1 + $0xe0] sm:$0xf]
      %v322 = vld [vmem:[%s1 + $0xe4] sm:$0xf]
      %v323 = vld [vmem:[%s1 + $0xe8] sm:$0xf]
      %v324 = vld [vmem:[%s1 + $0xec] sm:$0xf]
      %v325 = vld [vmem:[%s1 + $0xf0] sm:$0xf]
      %v326 = vld [vmem:[%s1 + $0xf4] sm:$0xf]
      %v327 = vld [vmem:[%s1 + $0xf8] sm:$0xf]
      %v328 = vld [vmem:[%s1 + $0xfc] sm:$0xf]
      %v329 = vld [vmem:[%s1 + $0x100] sm:$0xf]
      %v330 = vld [vmem:[%s1 + $0x104] sm:$0xf]
      %v331 = vld [vmem:[%s1 + $0x108] sm:$0xf]
      %v332 = vld [vmem:[%s1 + $0x10c] sm:$0xf]
      %v333 = vld [vmem:[%s1 + $0x110] sm:$0xf]
      %v334 = vld [vmem:[%s1 + $0x114] sm:$0xf]
      %v335 = vld [vmem:[%s1 + $0x118] sm:$0xf]
      %v336 = vld [vmem:[%s1 + $0x11c] sm:$0xf]
      %v361 = vunpack.c.l.b16 %v241
      %v362 = vunpack.c.h.b16 %v241
      %v363 = vunpack.c.l.b16 %v242
      %v364 = vunpack.c.h.b16 %v242
      %v365 = vunpack.c.l.b16 %v243
      %v366 = vunpack.c.l.b16 %v244
      %v367 = vunpack.c.h.b16 %v244
      %v368 = vunpack.c.l.b16 %v245
      %v369 = vunpack.c.h.b16 %v245
      %v370 = vunpack.c.l.b16 %v246
      %v371 = vunpack.c.l.b16 %v247
      %v372 = vunpack.c.h.b16 %v247
      %v373 = vunpack.c.l.b16 %v248
      %v374 = vunpack.c.h.b16 %v248
      %v375 = vunpack.c.l.b16 %v249
      %v376 = vunpack.c.l.b16 %v250
      %v377 = vunpack.c.h.b16 %v250
      %v378 = vunpack.c.l.b16 %v251
      %v379 = vunpack.c.h.b16 %v251
      %v380 = vunpack.c.l.b16 %v252
      %v381 = vunpack.c.l.b16 %v253
      %v382 = vunpack.c.h.b16 %v253
      %v383 = vunpack.c.l.b16 %v254
      %v384 = vunpack.c.h.b16 %v254
      %v385 = vunpack.c.l.b16 %v255
      %v386 = vunpack.c.l.b16 %v256
      %v387 = vunpack.c.h.b16 %v256
      %v388 = vunpack.c.l.b16 %v257
      %v389 = vunpack.c.h.b16 %v257
      %v390 = vunpack.c.l.b16 %v258
      %v391 = vunpack.c.l.b16 %v259
      %v392 = vunpack.c.h.b16 %v259
      %v393 = vunpack.c.l.b16 %v260
      %v394 = vunpack.c.h.b16 %v260
      %v395 = vunpack.c.l.b16 %v261
      %v396 = vunpack.c.l.b16 %v262
      %v397 = vunpack.c.h.b16 %v262
      %v398 = vunpack.c.l.b16 %v263
      %v399 = vunpack.c.h.b16 %v263
      %v400 = vunpack.c.l.b16 %v264
      %v401 = vpack.c.b16 %v366, %v361
      %v402 = vpack.c.b16 %v367, %v362
      %v403 = vpack.c.b16 %v368, %v363
      %v404 = vpack.c.b16 %v369, %v364
      %v405 = vpack.c.b16 %v370, %v365
      %v406 = vpack.c.b16 %v376, %v371
      %v407 = vpack.c.b16 %v377, %v372
      %v408 = vpack.c.b16 %v378, %v373
      %v409 = vpack.c.b16 %v379, %v374
      %v410 = vpack.c.b16 %v380, %v375
      %v411 = vpack.c.b16 %v386, %v381
      %v412 = vpack.c.b16 %v387, %v382
      %v413 = vpack.c.b16 %v388, %v383
      %v414 = vpack.c.b16 %v389, %v384
      %v415 = vpack.c.b16 %v390, %v385
      %v416 = vpack.c.b16 %v396, %v391
      %v417 = vpack.c.b16 %v397, %v392
      %v418 = vpack.c.b16 %v398, %v393
      %v419 = vpack.c.b16 %v399, %v394
      %v420 = vpack.c.b16 %v400, %v395
      %v509 = vunpack.c.l.b16 %v265
      %v510 = vunpack.c.l.b16 %v266
      %v511 = vunpack.c.l.b16 %v267
      %v512 = vunpack.c.l.b16 %v268
      %v513 = vunpack.c.l.b16 %v269
      %v514 = vunpack.c.l.b16 %v270
      %v515 = vunpack.c.l.b16 %v271
      %v516 = vunpack.c.l.b16 %v272
      %v517 = vunpack.c.l.b16 %v273
      %v518 = vunpack.c.l.b16 %v274
      %v519 = vunpack.c.l.b16 %v275
      %v520 = vunpack.c.l.b16 %v276
      %v521 = vunpack.c.l.b16 %v277
      %v522 = vunpack.c.l.b16 %v278
      %v523 = vunpack.c.l.b16 %v279
      %v524 = vunpack.c.l.b16 %v280
      %v525 = vunpack.c.l.b16 %v281
      %v526 = vunpack.c.l.b16 %v282
      %v527 = vunpack.c.l.b16 %v283
      %v528 = vunpack.c.l.b16 %v284
      %v529 = vunpack.c.l.b16 %v285
      %v530 = vunpack.c.l.b16 %v286
      %v531 = vunpack.c.l.b16 %v287
      %v532 = vunpack.c.l.b16 %v288
      %v533 = vunpack.c.l.b16 %v289
      %v534 = vunpack.c.l.b16 %v290
      %v535 = vunpack.c.l.b16 %v291
      %v536 = vunpack.c.l.b16 %v292
      %v537 = vunpack.c.l.b16 %v293
      %v538 = vunpack.c.l.b16 %v294
      %v539 = vunpack.c.l.b16 %v295
      %v540 = vunpack.c.l.b16 %v296
      %v541 = vunpack.c.l.b16 %v297
      %v542 = vunpack.c.l.b16 %v298
      %v543 = vunpack.c.l.b16 %v299
      %v544 = vunpack.c.l.b16 %v300
      %v545 = vunpack.c.l.b16 %v301
      %v546 = vunpack.c.l.b16 %v302
      %v547 = vunpack.c.l.b16 %v303
      %v548 = vunpack.c.l.b16 %v304
      %v549 = vunpack.c.l.b16 %v305
      %v550 = vunpack.c.l.b16 %v306
      %v551 = vunpack.c.l.b16 %v307
      %v552 = vunpack.c.l.b16 %v308
      %v553 = vunpack.c.l.b16 %v309
      %v554 = vunpack.c.l.b16 %v310
      %v555 = vunpack.c.l.b16 %v311
      %v556 = vunpack.c.l.b16 %v312
      %v557 = vunpack.c.l.b16 %v313
      %v558 = vunpack.c.l.b16 %v314
      %v559 = vunpack.c.l.b16 %v315
      %v560 = vunpack.c.l.b16 %v316
      %v561 = vunpack.c.l.b16 %v317
      %v562 = vunpack.c.l.b16 %v318
      %v563 = vunpack.c.l.b16 %v319
      %v564 = vunpack.c.l.b16 %v320
      %v565 = vunpack.c.l.b16 %v321
      %v566 = vunpack.c.l.b16 %v322
      %v567 = vunpack.c.l.b16 %v323
      %v568 = vunpack.c.l.b16 %v324
      %v569 = vunpack.c.l.b16 %v325
      %v570 = vunpack.c.l.b16 %v326
      %v571 = vunpack.c.l.b16 %v327
      %v572 = vunpack.c.l.b16 %v328
      %v573 = vunpack.c.l.b16 %v329
      %v574 = vunpack.c.l.b16 %v330
      %v575 = vunpack.c.l.b16 %v331
      %v576 = vunpack.c.l.b16 %v332
      %v577 = vunpack.c.l.b16 %v333
      %v578 = vunpack.c.l.b16 %v334
      %v579 = vunpack.c.l.b16 %v335
      %v580 = vunpack.c.l.b16 %v336
      %v581 = vpack.c.b16 %v510, %v509
      %v582 = vpack.c.b16 %v512, %v511
      %v583 = vpack.c.b16 %v514, %v513
      %v584 = vpack.c.b16 %v516, %v515
      %v585 = vpack.c.b16 %v518, %v517
      %v586 = vpack.c.b16 %v520, %v519
      %v587 = vpack.c.b16 %v522, %v521
      %v588 = vpack.c.b16 %v524, %v523
      %v589 = vpack.c.b16 %v526, %v525
      %v590 = vpack.c.b16 %v528, %v527
      %v591 = vpack.c.b16 %v530, %v529
      %v592 = vpack.c.b16 %v532, %v531
      %v593 = vpack.c.b16 %v534, %v533
      %v594 = vpack.c.b16 %v536, %v535
      %v595 = vpack.c.b16 %v538, %v537
      %v596 = vpack.c.b16 %v540, %v539
      %v597 = vpack.c.b16 %v542, %v541
      %v598 = vpack.c.b16 %v544, %v543
      %v599 = vpack.c.b16 %v546, %v545
      %v600 = vpack.c.b16 %v548, %v547
      %v601 = vpack.c.b16 %v550, %v549
      %v602 = vpack.c.b16 %v552, %v551
      %v603 = vpack.c.b16 %v554, %v553
      %v604 = vpack.c.b16 %v556, %v555
      %v605 = vpack.c.b16 %v558, %v557
      %v606 = vpack.c.b16 %v560, %v559
      %v607 = vpack.c.b16 %v562, %v561
      %v608 = vpack.c.b16 %v564, %v563
      %v609 = vpack.c.b16 %v566, %v565
      %v610 = vpack.c.b16 %v568, %v567
      %v611 = vpack.c.b16 %v570, %v569
      %v612 = vpack.c.b16 %v572, %v571
      %v613 = vpack.c.b16 %v574, %v573
      %v614 = vpack.c.b16 %v576, %v575
      %v615 = vpack.c.b16 %v578, %v577
      %v616 = vpack.c.b16 %v580, %v579
      %vm653 = vcmask 523264
      %v655 = vsel %vm653, %v405, 0
      %v658 = vsel %vm653, %v410, 0
      %v661 = vsel %vm653, %v415, 0
      %v664 = vsel %vm653, %v420, 0
      %666 = vmatpush.bf16.msra.mxu0 %v588
      %667 = vmatpush.bf16.msra.mxu0 %v587
      %668 = vmatpush.bf16.msra.mxu0 %v586
      %669 = vmatpush.bf16.msra.mxu0 %v585
      %670 = vmatpush.bf16.msra.mxu0 %v584
      %671 = vmatpush.bf16.msra.mxu0 %v583
      %672 = vmatpush.bf16.msra.mxu0 %v582
      %673 = vmatpush.bf16.msra.mxu0 %v581
      %674 = vmatmul.bf16.gmra.mxu0 %v401
      %v675 = vpop.f32.mrf.mxu0
      %v676 = vadd.f32 0.0, %v675
      %v677 = vpop.f32.mrf.mxu0
      %v678 = vadd.f32 0.0, %v677
      %679 = vmatmul.bf16.gmra.mxu0 %v406
      %v680 = vpop.f32.mrf.mxu0
      %v681 = vadd.f32 0.0, %v680
      %v682 = vpop.f32.mrf.mxu0
      %v683 = vadd.f32 0.0, %v682
      %684 = vmatmul.bf16.gmra.mxu0 %v411
      %v685 = vpop.f32.mrf.mxu0
      %v686 = vadd.f32 0.0, %v685
      %v687 = vpop.f32.mrf.mxu0
      %v688 = vadd.f32 0.0, %v687
      %689 = vmatmul.bf16.gmra.mxu0 %v416
      %v690 = vpop.f32.mrf.mxu0
      %v691 = vadd.f32 0.0, %v690
      %v692 = vpop.f32.mrf.mxu0
      %v693 = vadd.f32 0.0, %v692
      %694 = vdwg.mxu0
      %695 = vmatpush.bf16.msra.mxu0 %v596
      %696 = vmatpush.bf16.msra.mxu0 %v595
      %697 = vmatpush.bf16.msra.mxu0 %v594
      %698 = vmatpush.bf16.msra.mxu0 %v593
      %699 = vmatpush.bf16.msra.mxu0 %v592
      %700 = vmatpush.bf16.msra.mxu0 %v591
      %701 = vmatpush.bf16.msra.mxu0 %v590
      %702 = vmatpush.bf16.msra.mxu0 %v589
      %703 = vmatmul.bf16.gmra.mxu0 %v402
      %v704 = vpop.f32.mrf.mxu0
      %v705 = vadd.f32 %v676, %v704
      %v706 = vpop.f32.mrf.mxu0
      %v707 = vadd.f32 %v678, %v706
      %708 = vmatmul.bf16.gmra.mxu0 %v407
      %v709 = vpop.f32.mrf.mxu0
      %v710 = vadd.f32 %v681, %v709
      %v711 = vpop.f32.mrf.mxu0
      %v712 = vadd.f32 %v683, %v711
      %713 = vmatmul.bf16.gmra.mxu0 %v412
      %v714 = vpop.f32.mrf.mxu0
      %v715 = vadd.f32 %v686, %v714
      %v716 = vpop.f32.mrf.mxu0
      %v717 = vadd.f32 %v688, %v716
      %718 = vmatmul.bf16.gmra.mxu0 %v417
      %v719 = vpop.f32.mrf.mxu0
      %v720 = vadd.f32 %v691, %v719
      %v721 = vpop.f32.mrf.mxu0
      %v722 = vadd.f32 %v693, %v721
      %723 = vdwg.mxu0
      %724 = vmatpush.bf16.msra.mxu0 %v604
      %725 = vmatpush.bf16.msra.mxu0 %v603
      %726 = vmatpush.bf16.msra.mxu0 %v602
      %727 = vmatpush.bf16.msra.mxu0 %v601
      %728 = vmatpush.bf16.msra.mxu0 %v600
      %729 = vmatpush.bf16.msra.mxu0 %v599
      %730 = vmatpush.bf16.msra.mxu0 %v598
      %731 = vmatpush.bf16.msra.mxu0 %v597
      %732 = vmatmul.bf16.gmra.mxu0 %v403
      %v733 = vpop.f32.mrf.mxu0
      %v734 = vadd.f32 %v705, %v733
      %v735 = vpop.f32.mrf.mxu0
      %v736 = vadd.f32 %v707, %v735
      %737 = vmatmul.bf16.gmra.mxu0 %v408
      %v738 = vpop.f32.mrf.mxu0
      %v739 = vadd.f32 %v710, %v738
      %v740 = vpop.f32.mrf.mxu0
      %v741 = vadd.f32 %v712, %v740
      %742 = vmatmul.bf16.gmra.mxu0 %v413
      %v743 = vpop.f32.mrf.mxu0
      %v744 = vadd.f32 %v715, %v743
      %v745 = vpop.f32.mrf.mxu0
      %v746 = vadd.f32 %v717, %v745
      %747 = vmatmul.bf16.gmra.mxu0 %v418
      %v748 = vpop.f32.mrf.mxu0
      %v749 = vadd.f32 %v720, %v748
      %v750 = vpop.f32.mrf.mxu0
      %v751 = vadd.f32 %v722, %v750
      %752 = vdwg.mxu0
      %753 = vmatpush.bf16.msra.mxu0 %v612
      %754 = vmatpush.bf16.msra.mxu0 %v611
      %755 = vmatpush.bf16.msra.mxu0 %v610
      %756 = vmatpush.bf16.msra.mxu0 %v609
      %757 = vmatpush.bf16.msra.mxu0 %v608
      %758 = vmatpush.bf16.msra.mxu0 %v607
      %759 = vmatpush.bf16.msra.mxu0 %v606
      %760 = vmatpush.bf16.msra.mxu0 %v605
      %761 = vmatmul.bf16.gmra.mxu0 %v404
      %v762 = vpop.f32.mrf.mxu0
      %v763 = vadd.f32 %v734, %v762
      %v764 = vpop.f32.mrf.mxu0
      %v765 = vadd.f32 %v736, %v764
      %766 = vmatmul.bf16.gmra.mxu0 %v409
      %v767 = vpop.f32.mrf.mxu0
      %v768 = vadd.f32 %v739, %v767
      %v769 = vpop.f32.mrf.mxu0
      %v770 = vadd.f32 %v741, %v769
      %771 = vmatmul.bf16.gmra.mxu0 %v414
      %v772 = vpop.f32.mrf.mxu0
      %v773 = vadd.f32 %v744, %v772
      %v774 = vpop.f32.mrf.mxu0
      %v775 = vadd.f32 %v746, %v774
      %776 = vmatmul.bf16.gmra.mxu0 %v419
      %v777 = vpop.f32.mrf.mxu0
      %v778 = vadd.f32 %v749, %v777
      %v779 = vpop.f32.mrf.mxu0
      %v780 = vadd.f32 %v751, %v779
      %781 = vdwg.mxu0
      %782 = vmatpush.bf16.msra.mxu0 0
      %783 = vmatpush.bf16.msra.mxu0 0
      %784 = vmatpush.bf16.msra.mxu0 0
      %785 = vmatpush.bf16.msra.mxu0 0
      %786 = vmatpush.bf16.msra.mxu0 %v616
      %787 = vmatpush.bf16.msra.mxu0 %v615
      %788 = vmatpush.bf16.msra.mxu0 %v614
      %789 = vmatpush.bf16.msra.mxu0 %v613
      %790 = vmatmul.bf16.gmra.mxu0 %v655
      %v791 = vpop.f32.mrf.mxu0
      %v792 = vadd.f32 %v763, %v791
      %v793 = vpop.f32.mrf.mxu0
      %v794 = vadd.f32 %v765, %v793
      %795 = vmatmul.bf16.gmra.mxu0 %v658
      %v796 = vpop.f32.mrf.mxu0
      %v797 = vadd.f32 %v768, %v796
      %v798 = vpop.f32.mrf.mxu0
      %v799 = vadd.f32 %v770, %v798
      %800 = vmatmul.bf16.gmra.mxu0 %v661
      %v801 = vpop.f32.mrf.mxu0
      %v802 = vadd.f32 %v773, %v801
      %v803 = vpop.f32.mrf.mxu0
      %v804 = vadd.f32 %v775, %v803
      %805 = vmatmul.bf16.gmra.mxu0 %v664
      %v806 = vpop.f32.mrf.mxu0
      %v807 = vadd.f32 %v778, %v806
      %v808 = vpop.f32.mrf.mxu0
      %v809 = vadd.f32 %v780, %v808
      %810 = vdwg.mxu0
      %v811 = vld [vmem:[%s2] sm:$0x1]
      %v813 = vperm.slane %v811, 0
      %v815 = vmul.f32 %v792, %v813
      %v816 = vmul.f32 %v794, %v813
      %v817 = vmul.f32 %v797, %v813
      %v818 = vmul.f32 %v799, %v813
      %v819 = vmul.f32 %v802, %v813
      %v820 = vmul.f32 %v804, %v813
      %v821 = vmul.f32 %v807, %v813
      %v822 = vmul.f32 %v809, %v813
      %v823 = vld [vmem:[%s3] sm:$0x1]
      %v825 = vperm.slane %v823, 0
      %v827 = vadd.f32 %v815, %v825
      %v828 = vadd.f32 %v816, %v825
      %v829 = vadd.f32 %v817, %v825
      %v830 = vadd.f32 %v818, %v825
      %v831 = vadd.f32 %v819, %v825
      %v832 = vadd.f32 %v820, %v825
      %v833 = vadd.f32 %v821, %v825
      %v834 = vadd.f32 %v822, %v825
      %vm835 = vcmp.ge.f32.partialorder %v827, 0.0
      %vm836 = vcmp.ge.f32.partialorder %v828, 0.0
      %vm837 = vcmp.ge.f32.partialorder %v829, 0.0
      %vm838 = vcmp.ge.f32.partialorder %v830, 0.0
      %vm839 = vcmp.ge.f32.partialorder %v831, 0.0
      %vm840 = vcmp.ge.f32.partialorder %v832, 0.0
      %vm841 = vcmp.ge.f32.partialorder %v833, 0.0
      %vm842 = vcmp.ge.f32.partialorder %v834, 0.0
      %v843 = vmul.f32 %v827, 0.01
      %v844 = vmul.f32 %v828, 0.01
      %v845 = vmul.f32 %v829, 0.01
      %v846 = vmul.f32 %v830, 0.01
      %v847 = vmul.f32 %v831, 0.01
      %v848 = vmul.f32 %v832, 0.01
      %v849 = vmul.f32 %v833, 0.01
      %v850 = vmul.f32 %v834, 0.01
      %v851 = vsel %vm835, %v827, %v843
      %v852 = vsel %vm836, %v828, %v844
      %v853 = vsel %vm837, %v829, %v845
      %v854 = vsel %vm838, %v830, %v846
      %v855 = vsel %vm839, %v831, %v847
      %v856 = vsel %vm840, %v832, %v848
      %v857 = vsel %vm841, %v833, %v849
      %v858 = vsel %vm842, %v834, %v850
      %v859 = vpack.c.bf16 %v851, %v851
      %v860 = vpack.c.bf16 %v852, %v852
      %v861 = vpack.c.bf16 %v853, %v853
      %v862 = vpack.c.bf16 %v854, %v854
      %v863 = vpack.c.bf16 %v855, %v855
      %v864 = vpack.c.bf16 %v856, %v856
      %v865 = vpack.c.bf16 %v857, %v857
      %v866 = vpack.c.bf16 %v858, %v858
      %vm867 = vcmask 257024
      %868 = vst.msk [vmem:[%s238] sm:$0xf] %vm867, %v859
      %869 = vst.msk [vmem:[%s238 + $0x4] sm:$0xf] %vm867, %v860
      %870 = vst.msk [vmem:[%s238 + $0x8] sm:$0xf] %vm867, %v861
      %871 = vst.msk [vmem:[%s238 + $0xc] sm:$0xf] %vm867, %v862
      %872 = vst.msk [vmem:[%s238 + $0x10] sm:$0xf] %vm867, %v863
      %873 = vst.msk [vmem:[%s238 + $0x14] sm:$0xf] %vm867, %v864
      %874 = vst.msk [vmem:[%s238 + $0x18] sm:$0xf] %vm867, %v865
      %875 = vst.msk [vmem:[%s238 + $0x1c] sm:$0xf] %vm867, %v866
      %s876 = smul.u32 8, %s20
      %p877 = scmp.lt.s32.totalorder %s19, 1
      %s878 = scalar_select %p877, %s19, 1
      %p879 = scmp.lt.s32.totalorder %s876, 7
      %s880 = scalar_select %p879, %s876, 7
      %s881 = smul.addr %s878, 8
      %s882 = sadd.s32 %s880, %s881
      %s883 = smul.addr %s882, 4
      %s884 = scalar_lea.vmem %s4, %s883
      // Predicated region
      $region37: #{conv_with_conn_forward.23} parent=35 // pred_check
        %p885 = pneg %p138
      $region38: #{conv_with_conn_forward.23} parent=35 // pred_check_branch
        %887 = sbr.rel (%p885) target = $region40
      $region39: #{conv_with_conn_forward.23} parent=35 // pred_region
        %s888 = smul.u32 8, %s20
      $region40: #{conv_with_conn_forward.23} parent=35 // pred_fallthru
        _
    $region36: #{conv_with_conn_forward.23} parent=5 // pred_fallthru
      _
    %p889 = scmp.le.s32.totalorder 2, %s10
    // Predicated region
    $region41: #{conv_with_conn_forward.23} parent=5 // pred_check
      %p890 = pneg %p889
    $region42: #{conv_with_conn_forward.23} parent=5 // pred_check_branch
      %892 = sbr.rel (%p890) target = $region44
    $region43: #{conv_with_conn_forward.23} parent=5 // pred_region
      %s893 = ssub.s32 %s10, 2
      // Predicated region
      $region45: #{conv_with_conn_forward.23} parent=43 // pred_check
        %p894 = pneg %p144
      $region46: #{conv_with_conn_forward.23} parent=43 // pred_check_branch
        %896 = sbr.rel (%p894) target = $region48
      $region47: #{conv_with_conn_forward.23} parent=43 // pred_region
        %s897 = smul.u32 8, %s22
        %p898 = scmp.lt.s32.totalorder %s21, 1
        %s899 = scalar_select %p898, %s21, 1
        %p900 = scmp.lt.s32.totalorder %s897, 7
        %s901 = scalar_select %p900, %s897, 7
        %s902 = smul.addr %s899, 8
        %s903 = sadd.s32 %s901, %s902
        %s904 = smul.addr %s903, 4
        %s905 = scalar_lea.vmem %s4, %s904
      $region48: #{conv_with_conn_forward.23} parent=43 // pred_fallthru
        _
    $region44: #{conv_with_conn_forward.23} parent=5 // pred_fallthru
      _
  $region6: #{conv_with_conn_forward.23} parent=0 // loop_footer
    %s14 = sadd.s32 1, %s10
  $region7: #{conv_with_conn_forward.23} parent=0 // loop_footer_branch
    %9 = sbr.rel target = $region3
  $region8: #{conv_with_conn_forward.23} parent=0 // loop_exit
    _

// kernel: conv_with_conn_forward.26
$region0: #{conv_with_conn_forward.26}
  #allocation0 [shape = 'u32[]', space=smem, size = 0x4, offset = 0x4, fixed_abs, tag = 'smem constant byte address 0x4 - core index']
  #allocation1 [shape = 'u32[72,128]{1,0:T(1,128)}', space=vmem, size = 0x9000, scoped, tag = 'internal scratch']
  %s0 = inlined_call_operand.vmem [shape: bf16[2,256,288], index: 0, kind: input, shape index: {}]
  %s1 = inlined_call_operand.vmem [shape: bf16[288,16], index: 1, kind: input, shape index: {}]
  %s2 = inlined_call_operand.vmem [shape: f32[1,16], index: 2, kind: input, shape index: {}]
  %s3 = inlined_call_operand.vmem [shape: f32[1,16], index: 3, kind: input, shape index: {}]
  %s4 = inlined_call_operand.vmem [shape: bf16[2,256,16], index: 4, kind: output, shape index: {}]
  %s5 = sld [smem:[#allocation0]]
  $region49: #{conv_with_conn_forward.26} parent=0
    _
  %s7 = ssub.s32 1, %s5
  %s8 = scalar_select 0, %s7, %s5
  loop: start=0, step=1, limit=4
  $region2: #{conv_with_conn_forward.26} parent=0 // loop_pre_header
    _
  $region3: #{conv_with_conn_forward.26} parent=0 // loop_header
    %s10 = sphi 0, %s14
    %p11 = scmp.ge.s32.totalorder %s10, 4
    %s17 = sphi 0, %s29
    %s18 = sphi 0, %s25
    %s19 = sphi 0, %s17
    %s20 = sphi 0, %s18
    %s21 = sphi 0, %s19
    %s22 = sphi 0, %s20
    %s34 = sphi 0, %s36
    %s37 = sphi 0, %s34
    %s38 = sphi 0, %s37
    %s54 = sphi 0, %s38
    %s58 = sphi 0, %s58
    %s60 = sphi 0, %s58
    %s61 = sphi 0, %s60
    %s75 = sphi 0, %s61
    %s79 = sphi 0, %s79
    %s81 = sphi 0, %s79
    %s82 = sphi 0, %s81
    %s96 = sphi 0, %s82
    %s100 = sphi 0, %s100
    %s102 = sphi 0, %s100
    %s103 = sphi 0, %s102
    %s117 = sphi 0, %s103
    %s125 = sphi 0, %s127
    %s128 = sphi 0, %s125
    %s129 = sphi 0, %s128
    %s145 = sphi 0, %s129
  $region4: #{conv_with_conn_forward.26} parent=0 // loop_header_branch
    %13 = sbr.rel (%p11) target = $region8
  $region5: #{conv_with_conn_forward.26} parent=0 // loop_body
    %s15 = ssub.s32 %s10, 1
    %s16 = ssub.s32 %s10, 2
    %s23 = sadd.s32 1, %s18
    %p24 = scmp.ge.s32.totalorder %s23, 1
    %s25 = scalar_select %p24, 0, %s23
    %s26 = sadd.s32 1, %s17
    %s27 = scalar_select %p24, %s26, %s17
    %p28 = scmp.ge.s32.totalorder %s27, 2
    %s29 = scalar_select %p28, 0, %s27
    %s30 = ssub.s32 %s17, %s29
    %s31 = ssub.s32 %s18, %s25
    %s32 = sor.u32 %s30, %s31
    %p33 = scmp.eq.s32.totalorder %s32, 0
    %s35 = sadd.s32 %s34, 1
    %s36 = scalar_select %p33, %s34, %s35
    %p39 = pneg %p33
    %p40 = scmp.eq.s32.totalorder %s10, 1
    %p41 = por %p39, %p40
    %p42 = scmp.ne.s32.totalorder %s34, %s37
    %p43 = scmp.eq.s32.totalorder %s10, 0
    %p44 = por %p42, %p43
    %p45 = scmp.ne.s32.totalorder %s34, %s37
    %p46 = scmp.eq.s32.totalorder %s15, 1
    %p47 = por %p45, %p46
    %p48 = scmp.ne.s32.totalorder %s37, %s38
    %p49 = scmp.eq.s32.totalorder %s15, 0
    %p50 = por %p48, %p49
    %p51 = scmp.ne.s32.totalorder %s37, %s38
    %p52 = scmp.eq.s32.totalorder %s16, 1
    %p53 = por %p51, %p52
    %p55 = scmp.ne.s32.totalorder %s38, %s54
    %p56 = scmp.eq.s32.totalorder %s16, 0
    %p57 = por %p55, %p56
    %s59 = sadd.s32 %s58, 1
    %p62 = scmp.eq.s32.totalorder %s10, 1
    %p63 = scmp.ne.s32.totalorder %s58, %s60
    %p64 = scmp.eq.s32.totalorder %s10, 0
    %p65 = por %p63, %p64
    %p66 = scmp.ne.s32.totalorder %s58, %s60
    %p67 = scmp.eq.s32.totalorder %s15, 1
    %p68 = por %p66, %p67
    %p69 = scmp.ne.s32.totalorder %s60, %s61
    %p70 = scmp.eq.s32.totalorder %s15, 0
    %p71 = por %p69, %p70
    %p72 = scmp.ne.s32.totalorder %s60, %s61
    %p73 = scmp.eq.s32.totalorder %s16, 1
    %p74 = por %p72, %p73
    %p76 = scmp.ne.s32.totalorder %s61, %s75
    %p77 = scmp.eq.s32.totalorder %s16, 0
    %p78 = por %p76, %p77
    %s80 = sadd.s32 %s79, 1
    %p83 = scmp.eq.s32.totalorder %s10, 1
    %p84 = scmp.ne.s32.totalorder %s79, %s81
    %p85 = scmp.eq.s32.totalorder %s10, 0
    %p86 = por %p84, %p85
    %p87 = scmp.ne.s32.totalorder %s79, %s81
    %p88 = scmp.eq.s32.totalorder %s15, 1
    %p89 = por %p87, %p88
    %p90 = scmp.ne.s32.totalorder %s81, %s82
    %p91 = scmp.eq.s32.totalorder %s15, 0
    %p92 = por %p90, %p91
    %p93 = scmp.ne.s32.totalorder %s81, %s82
    %p94 = scmp.eq.s32.totalorder %s16, 1
    %p95 = por %p93, %p94
    %p97 = scmp.ne.s32.totalorder %s82, %s96
    %p98 = scmp.eq.s32.totalorder %s16, 0
    %p99 = por %p97, %p98
    %s101 = sadd.s32 %s100, 1
    %p104 = scmp.eq.s32.totalorder %s10, 1
    %p105 = scmp.ne.s32.totalorder %s100, %s102
    %p106 = scmp.eq.s32.totalorder %s10, 0
    %p107 = por %p105, %p106
    %p108 = scmp.ne.s32.totalorder %s100, %s102
    %p109 = scmp.eq.s32.totalorder %s15, 1
    %p110 = por %p108, %p109
    %p111 = scmp.ne.s32.totalorder %s102, %s103
    %p112 = scmp.eq.s32.totalorder %s15, 0
    %p113 = por %p111, %p112
    %p114 = scmp.ne.s32.totalorder %s102, %s103
    %p115 = scmp.eq.s32.totalorder %s16, 1
    %p116 = por %p114, %p115
    %p118 = scmp.ne.s32.totalorder %s103, %s117
    %p119 = scmp.eq.s32.totalorder %s16, 0
    %p120 = por %p118, %p119
    %s121 = ssub.s32 %s17, %s29
    %s122 = ssub.s32 %s18, %s25
    %s123 = sor.u32 %s121, %s122
    %p124 = scmp.eq.s32.totalorder %s123, 0
    %s126 = sadd.s32 %s125, 1
    %s127 = scalar_select %p124, %s125, %s126
    %p130 = pneg %p124
    %p131 = scmp.eq.s32.totalorder %s10, 1
    %p132 = por %p130, %p131
    %p133 = scmp.ne.s32.totalorder %s125, %s128
    %p134 = scmp.eq.s32.totalorder %s10, 0
    %p135 = por %p133, %p134
    %p136 = scmp.ne.s32.totalorder %s125, %s128
    %p137 = scmp.eq.s32.totalorder %s15, 1
    %p138 = por %p136, %p137
    %p139 = scmp.ne.s32.totalorder %s128, %s129
    %p140 = scmp.eq.s32.totalorder %s15, 0
    %p141 = por %p139, %p140
    %p142 = scmp.ne.s32.totalorder %s128, %s129
    %p143 = scmp.eq.s32.totalorder %s16, 1
    %p144 = por %p142, %p143
    %p146 = scmp.ne.s32.totalorder %s129, %s145
    %p147 = scmp.eq.s32.totalorder %s16, 0
    %p148 = por %p146, %p147
    %p149 = scmp.le.s32.totalorder 1, %s10
    %p150 = scmp.lt.s32.totalorder %s10, 3
    %p151 = pnand %p149, %p150
    %p152 = pneg %p151
    // Predicated region
    $region9: #{conv_with_conn_forward.26} parent=5 // pred_check
      _
    $region10: #{conv_with_conn_forward.26} parent=5 // pred_check_branch
      %154 = sbr.rel (%p151) target = $region12
    $region11: #{conv_with_conn_forward.26} parent=5 // pred_region
      %s155 = ssub.s32 %s10, 1
      // Predicated region
      $region13: #{conv_with_conn_forward.26} parent=11 // pred_check
        %p156 = pneg %p71
      $region14: #{conv_with_conn_forward.26} parent=11 // pred_check_branch
        %158 = sbr.rel (%p156) target = $region16
      $region15: #{conv_with_conn_forward.26} parent=11 // pred_region
        _
      $region16: #{conv_with_conn_forward.26} parent=11 // pred_fallthru
        _
      // Predicated region
      $region17: #{conv_with_conn_forward.26} parent=11 // pred_check
        %p159 = pneg %p92
      $region18: #{conv_with_conn_forward.26} parent=11 // pred_check_branch
        %161 = sbr.rel (%p159) target = $region20
      $region19: #{conv_with_conn_forward.26} parent=11 // pred_region
        _
      $region20: #{conv_with_conn_forward.26} parent=11 // pred_fallthru
        _
      // Predicated region
      $region21: #{conv_with_conn_forward.26} parent=11 // pred_check
        %p162 = pneg %p113
      $region22: #{conv_with_conn_forward.26} parent=11 // pred_check_branch
        %164 = sbr.rel (%p162) target = $region24
      $region23: #{conv_with_conn_forward.26} parent=11 // pred_region
        _
      $region24: #{conv_with_conn_forward.26} parent=11 // pred_fallthru
        _
    $region12: #{conv_with_conn_forward.26} parent=5 // pred_fallthru
      _
    %p165 = scmp.lt.s32.totalorder %s10, 2
    // Predicated region
    $region25: #{conv_with_conn_forward.26} parent=5 // pred_check
      %p166 = pneg %p165
    $region26: #{conv_with_conn_forward.26} parent=5 // pred_check_branch
      %168 = sbr.rel (%p166) target = $region28
    $region27: #{conv_with_conn_forward.26} parent=5 // pred_region
      // Predicated region
      $region29: #{conv_with_conn_forward.26} parent=27 // pred_check
        %p169 = pneg %p44
      $region30: #{conv_with_conn_forward.26} parent=27 // pred_check_branch
        %171 = sbr.rel (%p169) target = $region32
      $region31: #{conv_with_conn_forward.26} parent=27 // pred_region
        %s172 = smul.u32 32, %s18
        %p173 = scmp.lt.s32.totalorder %s17, 1
        %s174 = scalar_select %p173, %s17, 1
        %p175 = scmp.lt.s32.totalorder %s172, 31
        %s176 = scalar_select %p175, %s172, 31
        %s177 = smul.addr %s176, 3
        %s178 = smul.addr %s174, 96
        %s179 = sadd.s32 %s177, %s178
        %s180 = smul.addr %s179, 4
        %s181 = scalar_lea.vmem %s0, %s180
        %s182 = smul.u32 32, %s18
      $region32: #{conv_with_conn_forward.26} parent=27 // pred_fallthru
        _
    $region28: #{conv_with_conn_forward.26} parent=5 // pred_fallthru
      _
    %p183 = scmp.le.s32.totalorder 1, %s10
    %p184 = scmp.lt.s32.totalorder %s10, 3
    %p185 = pnand %p183, %p184
    %p186 = pneg %p185
    // Predicated region
    $region33: #{conv_with_conn_forward.26} parent=5 // pred_check
      _
    $region34: #{conv_with_conn_forward.26} parent=5 // pred_check_branch
      %188 = sbr.rel (%p185) target = $region36
    $region35: #{conv_with_conn_forward.26} parent=5 // pred_region
      %s189 = ssub.s32 %s10, 1
      %s190 = smul.u32 32, %s20
      %p191 = scmp.lt.s32.totalorder %s19, 1
      %s192 = scalar_select %p191, %s19, 1
      %p193 = scmp.lt.s32.totalorder %s190, 31
      %s194 = scalar_select %p193, %s190, 31
      %s195 = smul.addr %s194, 3
      %s196 = smul.addr %s192, 96
      %s197 = sadd.s32 %s195, %s196
      %s198 = smul.addr %s197, 4
      %s199 = scalar_lea.vmem %s0, %s198
      %p200 = pneg %p50
      %p201 = pneg %p47
      %p202 = pneg %p71
      %p203 = pneg %p68
      %p204 = pneg %p92
      %p205 = pneg %p89
      %p206 = pneg %p113
      %p207 = pneg %p110
      %p208 = pneg %p141
      %p209 = pneg %p138
      %s210 = smul.u32 32, %s20
      %p211 = scmp.lt.s32.totalorder %s19, 1
      %s212 = scalar_select %p211, %s19, 1
      %p213 = scmp.lt.s32.totalorder %s210, 31
      %s214 = scalar_select %p213, %s210, 31
      %s215 = smul.addr %s212, 32
      %s216 = sadd.s32 %s214, %s215
      %s217 = smul.addr %s216, 4
      %s218 = scalar_lea.vmem %s4, %s217
      %s219 = smul.u32 32, %s20
      %p220 = scmp.lt.s32.totalorder %s19, 1
      %s221 = scalar_select %p220, %s19, 1
      %p222 = scmp.lt.s32.totalorder %s219, 31
      %s223 = scalar_select %p222, %s219, 31
      %s224 = smul.addr %s223, 3
      %s225 = smul.addr %s221, 96
      %s226 = sadd.s32 %s224, %s225
      %s227 = smul.addr %s226, 4
      %s228 = scalar_lea.vmem %s0, %s227
      %s229 = smul.u32 32, %s20
      %s230 = smul.u32 32, %s20
      %p231 = scmp.lt.s32.totalorder %s19, 1
      %s232 = scalar_select %p231, %s19, 1
      %p233 = scmp.lt.s32.totalorder %s230, 31
      %s234 = scalar_select %p233, %s230, 31
      %s235 = smul.addr %s232, 32
      %s236 = sadd.s32 %s234, %s235
      %s237 = smul.addr %s236, 4
      %s238 = scalar_lea.vmem %s4, %s237
      %s239 = smul.u32 32, %s20
      %v241 = vld [vmem:[%s228] sm:$0xff]
      %v242 = vld [vmem:[%s228 + $0x8] sm:$0xf]
      %v243 = vld [vmem:[%s228 + $0xc] sm:$0xff]
      %v244 = vld [vmem:[%s228 + $0x14] sm:$0xf]
      %v245 = vld [vmem:[%s228 + $0x18] sm:$0xff]
      %v246 = vld [vmem:[%s228 + $0x20] sm:$0xf]
      %v247 = vld [vmem:[%s228 + $0x24] sm:$0xff]
      %v248 = vld [vmem:[%s228 + $0x2c] sm:$0xf]
      %v249 = vld [vmem:[%s228 + $0x30] sm:$0xff]
      %v250 = vld [vmem:[%s228 + $0x38] sm:$0xf]
      %v251 = vld [vmem:[%s228 + $0x3c] sm:$0xff]
      %v252 = vld [vmem:[%s228 + $0x44] sm:$0xf]
      %v253 = vld [vmem:[%s228 + $0x48] sm:$0xff]
      %v254 = vld [vmem:[%s228 + $0x50] sm:$0xf]
      %v255 = vld [vmem:[%s228 + $0x54] sm:$0xff]
      %v256 = vld [vmem:[%s228 + $0x5c] sm:$0xf]
      %v257 = vld [vmem:[%s228 + $0x60] sm:$0xff]
      %v258 = vld [vmem:[%s228 + $0x68] sm:$0xf]
      %v259 = vld [vmem:[%s228 + $0x6c] sm:$0xff]
      %v260 = vld [vmem:[%s228 + $0x74] sm:$0xf]
      %v261 = vld [vmem:[%s228 + $0x78] sm:$0xff]
      %v262 = vld [vmem:[%s228 + $0x80] sm:$0xf]
      %v263 = vld [vmem:[%s228 + $0x84] sm:$0xff]
      %v264 = vld [vmem:[%s228 + $0x8c] sm:$0xf]
      %v265 = vld [vmem:[%s228 + $0x90] sm:$0xff]
      %v266 = vld [vmem:[%s228 + $0x98] sm:$0xf]
      %v267 = vld [vmem:[%s228 + $0x9c] sm:$0xff]
      %v268 = vld [vmem:[%s228 + $0xa4] sm:$0xf]
      %v269 = vld [vmem:[%s228 + $0xa8] sm:$0xff]
      %v270 = vld [vmem:[%s228 + $0xb0] sm:$0xf]
      %v271 = vld [vmem:[%s228 + $0xb4] sm:$0xff]
      %v272 = vld [vmem:[%s228 + $0xbc] sm:$0xf]
      %v273 = vld [vmem:[%s228 + $0xc0] sm:$0xff]
      %v274 = vld [vmem:[%s228 + $0xc8] sm:$0xf]
      %v275 = vld [vmem:[%s228 + $0xcc] sm:$0xff]
      %v276 = vld [vmem:[%s228 + $0xd4] sm:$0xf]
      %v277 = vld [vmem:[%s228 + $0xd8] sm:$0xff]
      %v278 = vld [vmem:[%s228 + $0xe0] sm:$0xf]
      %v279 = vld [vmem:[%s228 + $0xe4] sm:$0xff]
      %v280 = vld [vmem:[%s228 + $0xec] sm:$0xf]
      %v281 = vld [vmem:[%s228 + $0xf0] sm:$0xff]
      %v282 = vld [vmem:[%s228 + $0xf8] sm:$0xf]
      %v283 = vld [vmem:[%s228 + $0xfc] sm:$0xff]
      %v284 = vld [vmem:[%s228 + $0x104] sm:$0xf]
      %v285 = vld [vmem:[%s228 + $0x108] sm:$0xff]
      %v286 = vld [vmem:[%s228 + $0x110] sm:$0xf]
      %v287 = vld [vmem:[%s228 + $0x114] sm:$0xff]
      %v288 = vld [vmem:[%s228 + $0x11c] sm:$0xf]
      %v289 = vld [vmem:[%s228 + $0x120] sm:$0xff]
      %v290 = vld [vmem:[%s228 + $0x128] sm:$0xf]
      %v291 = vld [vmem:[%s228 + $0x12c] sm:$0xff]
      %v292 = vld [vmem:[%s228 + $0x134] sm:$0xf]
      %v293 = vld [vmem:[%s228 + $0x138] sm:$0xff]
      %v294 = vld [vmem:[%s228 + $0x140] sm:$0xf]
      %v295 = vld [vmem:[%s228 + $0x144] sm:$0xff]
      %v296 = vld [vmem:[%s228 + $0x14c] sm:$0xf]
      %v297 = vld [vmem:[%s228 + $0x150] sm:$0xff]
      %v298 = vld [vmem:[%s228 + $0x158] sm:$0xf]
      %v299 = vld [vmem:[%s228 + $0x15c] sm:$0xff]
      %v300 = vld [vmem:[%s228 + $0x164] sm:$0xf]
      %v301 = vld [vmem:[%s228 + $0x168] sm:$0xff]
      %v302 = vld [vmem:[%s228 + $0x170] sm:$0xf]
      %v303 = vld [vmem:[%s228 + $0x174] sm:$0xff]
      %v304 = vld [vmem:[%s228 + $0x17c] sm:$0xf]
      %v305 = vld [vmem:[%s1] sm:$0xf]
      %v306 = vld [vmem:[%s1 + $0x4] sm:$0xf]
      %v307 = vld [vmem:[%s1 + $0x8] sm:$0xf]
      %v308 = vld [vmem:[%s1 + $0xc] sm:$0xf]
      %v309 = vld [vmem:[%s1 + $0x10] sm:$0xf]
      %v310 = vld [vmem:[%s1 + $0x14] sm:$0xf]
      %v311 = vld [vmem:[%s1 + $0x18] sm:$0xf]
      %v312 = vld [vmem:[%s1 + $0x1c] sm:$0xf]
      %v313 = vld [vmem:[%s1 + $0x20] sm:$0xf]
      %v314 = vld [vmem:[%s1 + $0x24] sm:$0xf]
      %v315 = vld [vmem:[%s1 + $0x28] sm:$0xf]
      %v316 = vld [vmem:[%s1 + $0x2c] sm:$0xf]
      %v317 = vld [vmem:[%s1 + $0x30] sm:$0xf]
      %v318 = vld [vmem:[%s1 + $0x34] sm:$0xf]
      %v319 = vld [vmem:[%s1 + $0x38] sm:$0xf]
      %v320 = vld [vmem:[%s1 + $0x3c] sm:$0xf]
      %v321 = vld [vmem:[%s1 + $0x40] sm:$0xf]
      %v322 = vld [vmem:[%s1 + $0x44] sm:$0xf]
      %v323 = vld [vmem:[%s1 + $0x48] sm:$0xf]
      %v324 = vld [vmem:[%s1 + $0x4c] sm:$0xf]
      %v325 = vld [vmem:[%s1 + $0x50] sm:$0xf]
      %v326 = vld [vmem:[%s1 + $0x54] sm:$0xf]
      %v327 = vld [vmem:[%s1 + $0x58] sm:$0xf]
      %v328 = vld [vmem:[%s1 + $0x5c] sm:$0xf]
      %v329 = vld [vmem:[%s1 + $0x60] sm:$0xf]
      %v330 = vld [vmem:[%s1 + $0x64] sm:$0xf]
      %v331 = vld [vmem:[%s1 + $0x68] sm:$0xf]
      %v332 = vld [vmem:[%s1 + $0x6c] sm:$0xf]
      %v333 = vld [vmem:[%s1 + $0x70] sm:$0xf]
      %v334 = vld [vmem:[%s1 + $0x74] sm:$0xf]
      %v335 = vld [vmem:[%s1 + $0x78] sm:$0xf]
      %v336 = vld [vmem:[%s1 + $0x7c] sm:$0xf]
      %v337 = vld [vmem:[%s1 + $0x80] sm:$0xf]
      %v338 = vld [vmem:[%s1 + $0x84] sm:$0xf]
      %v339 = vld [vmem:[%s1 + $0x88] sm:$0xf]
      %v340 = vld [vmem:[%s1 + $0x8c] sm:$0xf]
      %v405 = vunpack.c.l.b16 %v241
      %v406 = vunpack.c.h.b16 %v241
      %v407 = vunpack.c.l.b16 %v242
      %v408 = vunpack.c.l.b16 %v243
      %v409 = vunpack.c.h.b16 %v243
      %v410 = vunpack.c.l.b16 %v244
      %v411 = vunpack.c.l.b16 %v245
      %v412 = vunpack.c.h.b16 %v245
      %v413 = vunpack.c.l.b16 %v246
      %v414 = vunpack.c.l.b16 %v247
      %v415 = vunpack.c.h.b16 %v247
      %v416 = vunpack.c.l.b16 %v248
      %v417 = vunpack.c.l.b16 %v249
      %v418 = vunpack.c.h.b16 %v249
      %v419 = vunpack.c.l.b16 %v250
      %v420 = vunpack.c.l.b16 %v251
      %v421 = vunpack.c.h.b16 %v251
      %v422 = vunpack.c.l.b16 %v252
      %v423 = vunpack.c.l.b16 %v253
      %v424 = vunpack.c.h.b16 %v253
      %v425 = vunpack.c.l.b16 %v254
      %v426 = vunpack.c.l.b16 %v255
      %v427 = vunpack.c.h.b16 %v255
      %v428 = vunpack.c.l.b16 %v256
      %v429 = vunpack.c.l.b16 %v257
      %v430 = vunpack.c.h.b16 %v257
      %v431 = vunpack.c.l.b16 %v258
      %v432 = vunpack.c.l.b16 %v259
      %v433 = vunpack.c.h.b16 %v259
      %v434 = vunpack.c.l.b16 %v260
      %v435 = vunpack.c.l.b16 %v261
      %v436 = vunpack.c.h.b16 %v261
      %v437 = vunpack.c.l.b16 %v262
      %v438 = vunpack.c.l.b16 %v263
      %v439 = vunpack.c.h.b16 %v263
      %v440 = vunpack.c.l.b16 %v264
      %v441 = vunpack.c.l.b16 %v265
      %v442 = vunpack.c.h.b16 %v265
      %v443 = vunpack.c.l.b16 %v266
      %v444 = vunpack.c.l.b16 %v267
      %v445 = vunpack.c.h.b16 %v267
      %v446 = vunpack.c.l.b16 %v268
      %v447 = vunpack.c.l.b16 %v269
      %v448 = vunpack.c.h.b16 %v269
      %v449 = vunpack.c.l.b16 %v270
      %v450 = vunpack.c.l.b16 %v271
      %v451 = vunpack.c.h.b16 %v271
      %v452 = vunpack.c.l.b16 %v272
      %v453 = vunpack.c.l.b16 %v273
      %v454 = vunpack.c.h.b16 %v273
      %v455 = vunpack.c.l.b16 %v274
      %v456 = vunpack.c.l.b16 %v275
      %v457 = vunpack.c.h.b16 %v275
      %v458 = vunpack.c.l.b16 %v276
      %v459 = vunpack.c.l.b16 %v277
      %v460 = vunpack.c.h.b16 %v277
      %v461 = vunpack.c.l.b16 %v278
      %v462 = vunpack.c.l.b16 %v279
      %v463 = vunpack.c.h.b16 %v279
      %v464 = vunpack.c.l.b16 %v280
      %v465 = vunpack.c.l.b16 %v281
      %v466 = vunpack.c.h.b16 %v281
      %v467 = vunpack.c.l.b16 %v282
      %v468 = vunpack.c.l.b16 %v283
      %v469 = vunpack.c.h.b16 %v283
      %v470 = vunpack.c.l.b16 %v284
      %v471 = vunpack.c.l.b16 %v285
      %v472 = vunpack.c.h.b16 %v285
      %v473 = vunpack.c.l.b16 %v286
      %v474 = vunpack.c.l.b16 %v287
      %v475 = vunpack.c.h.b16 %v287
      %v476 = vunpack.c.l.b16 %v288
      %v477 = vunpack.c.l.b16 %v289
      %v478 = vunpack.c.h.b16 %v289
      %v479 = vunpack.c.l.b16 %v290
      %v480 = vunpack.c.l.b16 %v291
      %v481 = vunpack.c.h.b16 %v291
      %v482 = vunpack.c.l.b16 %v292
      %v483 = vunpack.c.l.b16 %v293
      %v484 = vunpack.c.h.b16 %v293
      %v485 = vunpack.c.l.b16 %v294
      %v486 = vunpack.c.l.b16 %v295
      %v487 = vunpack.c.h.b16 %v295
      %v488 = vunpack.c.l.b16 %v296
      %v489 = vunpack.c.l.b16 %v297
      %v490 = vunpack.c.h.b16 %v297
      %v491 = vunpack.c.l.b16 %v298
      %v492 = vunpack.c.l.b16 %v299
      %v493 = vunpack.c.h.b16 %v299
      %v494 = vunpack.c.l.b16 %v300
      %v495 = vunpack.c.l.b16 %v301
      %v496 = vunpack.c.h.b16 %v301
      %v497 = vunpack.c.l.b16 %v302
      %v498 = vunpack.c.l.b16 %v303
      %v499 = vunpack.c.h.b16 %v303
      %v500 = vunpack.c.l.b16 %v304
      %v501 = vpack.c.b16 %v408, %v405
      %v502 = vpack.c.b16 %v409, %v406
      %v503 = vpack.c.b16 %v410, %v407
      %v504 = vpack.c.b16 %v414, %v411
      %v505 = vpack.c.b16 %v415, %v412
      %v506 = vpack.c.b16 %v416, %v413
      %v507 = vpack.c.b16 %v420, %v417
      %v508 = vpack.c.b16 %v421, %v418
      %v509 = vpack.c.b16 %v422, %v419
      %v510 = vpack.c.b16 %v426, %v423
      %v511 = vpack.c.b16 %v427, %v424
      %v512 = vpack.c.b16 %v428, %v425
      %v513 = vpack.c.b16 %v432, %v429
      %v514 = vpack.c.b16 %v433, %v430
      %v515 = vpack.c.b16 %v434, %v431
      %v516 = vpack.c.b16 %v438, %v435
      %v517 = vpack.c.b16 %v439, %v436
      %v518 = vpack.c.b16 %v440, %v437
      %v519 = vpack.c.b16 %v444, %v441
      %v520 = vpack.c.b16 %v445, %v442
      %v521 = vpack.c.b16 %v446, %v443
      %v522 = vpack.c.b16 %v450, %v447
      %v523 = vpack.c.b16 %v451, %v448
      %v524 = vpack.c.b16 %v452, %v449
      %v525 = vpack.c.b16 %v456, %v453
      %v526 = vpack.c.b16 %v457, %v454
      %v527 = vpack.c.b16 %v458, %v455
      %v528 = vpack.c.b16 %v462, %v459
      %v529 = vpack.c.b16 %v463, %v460
      %v530 = vpack.c.b16 %v464, %v461
      %v531 = vpack.c.b16 %v468, %v465
      %v532 = vpack.c.b16 %v469, %v466
      %v533 = vpack.c.b16 %v470, %v467
      %v534 = vpack.c.b16 %v474, %v471
      %v535 = vpack.c.b16 %v475, %v472
      %v536 = vpack.c.b16 %v476, %v473
      %v537 = vpack.c.b16 %v480, %v477
      %v538 = vpack.c.b16 %v481, %v478
      %v539 = vpack.c.b16 %v482, %v479
      %v540 = vpack.c.b16 %v486, %v483
      %v541 = vpack.c.b16 %v487, %v484
      %v542 = vpack.c.b16 %v488, %v485
      %v543 = vpack.c.b16 %v492, %v489
      %v544 = vpack.c.b16 %v493, %v490
      %v545 = vpack.c.b16 %v494, %v491
      %v546 = vpack.c.b16 %v498, %v495
      %v547 = vpack.c.b16 %v499, %v496
      %v548 = vpack.c.b16 %v500, %v497
      %v617 = vunpack.c.l.b16 %v305
      %v618 = vunpack.c.l.b16 %v306
      %v619 = vunpack.c.l.b16 %v307
      %v620 = vunpack.c.l.b16 %v308
      %v621 = vunpack.c.l.b16 %v309
      %v622 = vunpack.c.l.b16 %v310
      %v623 = vunpack.c.l.b16 %v311
      %v624 = vunpack.c.l.b16 %v312
      %v625 = vunpack.c.l.b16 %v313
      %v626 = vunpack.c.l.b16 %v314
      %v627 = vunpack.c.l.b16 %v315
      %v628 = vunpack.c.l.b16 %v316
      %v629 = vunpack.c.l.b16 %v317
      %v630 = vunpack.c.l.b16 %v318
      %v631 = vunpack.c.l.b16 %v319
      %v632 = vunpack.c.l.b16 %v320
      %v633 = vunpack.c.l.b16 %v321
      %v634 = vunpack.c.l.b16 %v322
      %v635 = vunpack.c.l.b16 %v323
      %v636 = vunpack.c.l.b16 %v324
      %v637 = vunpack.c.l.b16 %v325
      %v638 = vunpack.c.l.b16 %v326
      %v639 = vunpack.c.l.b16 %v327
      %v640 = vunpack.c.l.b16 %v328
      %v641 = vunpack.c.l.b16 %v329
      %v642 = vunpack.c.l.b16 %v330
      %v643 = vunpack.c.l.b16 %v331
      %v644 = vunpack.c.l.b16 %v332
      %v645 = vunpack.c.l.b16 %v333
      %v646 = vunpack.c.l.b16 %v334
      %v647 = vunpack.c.l.b16 %v335
      %v648 = vunpack.c.l.b16 %v336
      %v649 = vunpack.c.l.b16 %v337
      %v650 = vunpack.c.l.b16 %v338
      %v651 = vunpack.c.l.b16 %v339
      %v652 = vunpack.c.l.b16 %v340
      %v653 = vpack.c.b16 %v618, %v617
      %v654 = vpack.c.b16 %v620, %v619
      %v655 = vpack.c.b16 %v622, %v621
      %v656 = vpack.c.b16 %v624, %v623
      %v657 = vpack.c.b16 %v626, %v625
      %v658 = vpack.c.b16 %v628, %v627
      %v659 = vpack.c.b16 %v630, %v629
      %v660 = vpack.c.b16 %v632, %v631
      %v661 = vpack.c.b16 %v634, %v633
      %v662 = vpack.c.b16 %v636, %v635
      %v663 = vpack.c.b16 %v638, %v637
      %v664 = vpack.c.b16 %v640, %v639
      %v665 = vpack.c.b16 %v642, %v641
      %v666 = vpack.c.b16 %v644, %v643
      %v667 = vpack.c.b16 %v646, %v645
      %v668 = vpack.c.b16 %v648, %v647
      %v669 = vpack.c.b16 %v650, %v649
      %v670 = vpack.c.b16 %v652, %v651
      %vm689 = vcmask 261120
      %v691 = vsel %vm689, %v503, 0
      %v694 = vsel %vm689, %v506, 0
      %v697 = vsel %vm689, %v509, 0
      %v700 = vsel %vm689, %v512, 0
      %v703 = vsel %vm689, %v515, 0
      %v706 = vsel %vm689, %v518, 0
      %v709 = vsel %vm689, %v521, 0
      %v712 = vsel %vm689, %v524, 0
      %v715 = vsel %vm689, %v527, 0
      %v718 = vsel %vm689, %v530, 0
      %v721 = vsel %vm689, %v533, 0
      %v724 = vsel %vm689, %v536, 0
      %v727 = vsel %vm689, %v539, 0
      %v730 = vsel %vm689, %v542, 0
      %v733 = vsel %vm689, %v545, 0
      %v736 = vsel %vm689, %v548, 0
      %738 = vmatpush.bf16.msra.mxu0 %v660
      %739 = vmatpush.bf16.msra.mxu0 %v659
      %740 = vmatpush.bf16.msra.mxu0 %v658
      %741 = vmatpush.bf16.msra.mxu0 %v657
      %742 = vmatpush.bf16.msra.mxu0 %v656
      %743 = vmatpush.bf16.msra.mxu0 %v655
      %744 = vmatpush.bf16.msra.mxu0 %v654
      %745 = vmatpush.bf16.msra.mxu0 %v653
      %746 = vmatmul.bf16.gmra.mxu0 %v501
      %v747 = vpop.f32.mrf.mxu0
      %v748 = vadd.f32 0.0, %v747
      %v749 = vpop.f32.mrf.mxu0
      %v750 = vadd.f32 0.0, %v749
      %751 = vmatmul.bf16.gmra.mxu0 %v504
      %v752 = vpop.f32.mrf.mxu0
      %v753 = vadd.f32 0.0, %v752
      %v754 = vpop.f32.mrf.mxu0
      %v755 = vadd.f32 0.0, %v754
      %756 = vmatmul.bf16.gmra.mxu0 %v507
      %v757 = vpop.f32.mrf.mxu0
      %v758 = vadd.f32 0.0, %v757
      %v759 = vpop.f32.mrf.mxu0
      %v760 = vadd.f32 0.0, %v759
      %761 = vmatmul.bf16.gmra.mxu0 %v510
      %v762 = vpop.f32.mrf.mxu0
      %v763 = vadd.f32 0.0, %v762
      %v764 = vpop.f32.mrf.mxu0
      %v765 = vadd.f32 0.0, %v764
      %766 = vmatmul.bf16.gmra.mxu0 %v513
      %v767 = vpop.f32.mrf.mxu0
      %v768 = vadd.f32 0.0, %v767
      %v769 = vpop.f32.mrf.mxu0
      %v770 = vadd.f32 0.0, %v769
      %771 = vmatmul.bf16.gmra.mxu0 %v516
      %v772 = vpop.f32.mrf.mxu0
      %v773 = vadd.f32 0.0, %v772
      %v774 = vpop.f32.mrf.mxu0
      %v775 = vadd.f32 0.0, %v774
      %776 = vmatmul.bf16.gmra.mxu0 %v519
      %v777 = vpop.f32.mrf.mxu0
      %v778 = vadd.f32 0.0, %v777
      %v779 = vpop.f32.mrf.mxu0
      %v780 = vadd.f32 0.0, %v779
      %781 = vmatmul.bf16.gmra.mxu0 %v522
      %v782 = vpop.f32.mrf.mxu0
      %v783 = vadd.f32 0.0, %v782
      %v784 = vpop.f32.mrf.mxu0
      %v785 = vadd.f32 0.0, %v784
      %786 = vmatmul.bf16.gmra.mxu0 %v525
      %v787 = vpop.f32.mrf.mxu0
      %v788 = vadd.f32 0.0, %v787
      %v789 = vpop.f32.mrf.mxu0
      %v790 = vadd.f32 0.0, %v789
      %791 = vmatmul.bf16.gmra.mxu0 %v528
      %v792 = vpop.f32.mrf.mxu0
      %v793 = vadd.f32 0.0, %v792
      %v794 = vpop.f32.mrf.mxu0
      %v795 = vadd.f32 0.0, %v794
      %796 = vmatmul.bf16.gmra.mxu0 %v531
      %v797 = vpop.f32.mrf.mxu0
      %v798 = vadd.f32 0.0, %v797
      %v799 = vpop.f32.mrf.mxu0
      %v800 = vadd.f32 0.0, %v799
      %801 = vmatmul.bf16.gmra.mxu0 %v534
      %v802 = vpop.f32.mrf.mxu0
      %v803 = vadd.f32 0.0, %v802
      %v804 = vpop.f32.mrf.mxu0
      %v805 = vadd.f32 0.0, %v804
      %806 = vmatmul.bf16.gmra.mxu0 %v537
      %v807 = vpop.f32.mrf.mxu0
      %v808 = vadd.f32 0.0, %v807
      %v809 = vpop.f32.mrf.mxu0
      %v810 = vadd.f32 0.0, %v809
      %811 = vmatmul.bf16.gmra.mxu0 %v540
      %v812 = vpop.f32.mrf.mxu0
      %v813 = vadd.f32 0.0, %v812
      %v814 = vpop.f32.mrf.mxu0
      %v815 = vadd.f32 0.0, %v814
      %816 = vmatmul.bf16.gmra.mxu0 %v543
      %v817 = vpop.f32.mrf.mxu0
      %v818 = vadd.f32 0.0, %v817
      %v819 = vpop.f32.mrf.mxu0
      %v820 = vadd.f32 0.0, %v819
      %821 = vmatmul.bf16.gmra.mxu0 %v546
      %v822 = vpop.f32.mrf.mxu0
      %v823 = vadd.f32 0.0, %v822
      %v824 = vpop.f32.mrf.mxu0
      %v825 = vadd.f32 0.0, %v824
      %826 = vdwg.mxu0
      %827 = vmatpush.bf16.msra.mxu0 %v668
      %828 = vmatpush.bf16.msra.mxu0 %v667
      %829 = vmatpush.bf16.msra.mxu0 %v666
      %830 = vmatpush.bf16.msra.mxu0 %v665
      %831 = vmatpush.bf16.msra.mxu0 %v664
      %832 = vmatpush.bf16.msra.mxu0 %v663
      %833 = vmatpush.bf16.msra.mxu0 %v662
      %834 = vmatpush.bf16.msra.mxu0 %v661
      %835 = vmatmul.bf16.gmra.mxu0 %v502
      %v836 = vpop.f32.mrf.mxu0
      %v837 = vadd.f32 %v748, %v836
      %v838 = vpop.f32.mrf.mxu0
      %v839 = vadd.f32 %v750, %v838
      %840 = vmatmul.bf16.gmra.mxu0 %v505
      %v841 = vpop.f32.mrf.mxu0
      %v842 = vadd.f32 %v753, %v841
      %v843 = vpop.f32.mrf.mxu0
      %v844 = vadd.f32 %v755, %v843
      %845 = vmatmul.bf16.gmra.mxu0 %v508
      %v846 = vpop.f32.mrf.mxu0
      %v847 = vadd.f32 %v758, %v846
      %v848 = vpop.f32.mrf.mxu0
      %v849 = vadd.f32 %v760, %v848
      %850 = vmatmul.bf16.gmra.mxu0 %v511
      %v851 = vpop.f32.mrf.mxu0
      %v852 = vadd.f32 %v763, %v851
      %v853 = vpop.f32.mrf.mxu0
      %v854 = vadd.f32 %v765, %v853
      %855 = vmatmul.bf16.gmra.mxu0 %v514
      %v856 = vpop.f32.mrf.mxu0
      %v857 = vadd.f32 %v768, %v856
      %v858 = vpop.f32.mrf.mxu0
      %v859 = vadd.f32 %v770, %v858
      %860 = vmatmul.bf16.gmra.mxu0 %v517
      %v861 = vpop.f32.mrf.mxu0
      %v862 = vadd.f32 %v773, %v861
      %v863 = vpop.f32.mrf.mxu0
      %v864 = vadd.f32 %v775, %v863
      %865 = vmatmul.bf16.gmra.mxu0 %v520
      %v866 = vpop.f32.mrf.mxu0
      %v867 = vadd.f32 %v778, %v866
      %v868 = vpop.f32.mrf.mxu0
      %v869 = vadd.f32 %v780, %v868
      %870 = vmatmul.bf16.gmra.mxu0 %v523
      %v871 = vpop.f32.mrf.mxu0
      %v872 = vadd.f32 %v783, %v871
      %v873 = vpop.f32.mrf.mxu0
      %v874 = vadd.f32 %v785, %v873
      %875 = vmatmul.bf16.gmra.mxu0 %v526
      %v876 = vpop.f32.mrf.mxu0
      %v877 = vadd.f32 %v788, %v876
      %v878 = vpop.f32.mrf.mxu0
      %v879 = vadd.f32 %v790, %v878
      %880 = vmatmul.bf16.gmra.mxu0 %v529
      %v881 = vpop.f32.mrf.mxu0
      %v882 = vadd.f32 %v793, %v881
      %v883 = vpop.f32.mrf.mxu0
      %v884 = vadd.f32 %v795, %v883
      %885 = vmatmul.bf16.gmra.mxu0 %v532
      %v886 = vpop.f32.mrf.mxu0
      %v887 = vadd.f32 %v798, %v886
      %v888 = vpop.f32.mrf.mxu0
      %v889 = vadd.f32 %v800, %v888
      %890 = vmatmul.bf16.gmra.mxu0 %v535
      %v891 = vpop.f32.mrf.mxu0
      %v892 = vadd.f32 %v803, %v891
      %v893 = vpop.f32.mrf.mxu0
      %v894 = vadd.f32 %v805, %v893
      %895 = vmatmul.bf16.gmra.mxu0 %v538
      %v896 = vpop.f32.mrf.mxu0
      %v897 = vadd.f32 %v808, %v896
      %v898 = vpop.f32.mrf.mxu0
      %v899 = vadd.f32 %v810, %v898
      %900 = vmatmul.bf16.gmra.mxu0 %v541
      %v901 = vpop.f32.mrf.mxu0
      %v902 = vadd.f32 %v813, %v901
      %v903 = vpop.f32.mrf.mxu0
      %v904 = vadd.f32 %v815, %v903
      %905 = vmatmul.bf16.gmra.mxu0 %v544
      %v906 = vpop.f32.mrf.mxu0
      %v907 = vadd.f32 %v818, %v906
      %v908 = vpop.f32.mrf.mxu0
      %v909 = vadd.f32 %v820, %v908
      %910 = vmatmul.bf16.gmra.mxu0 %v547
      %v911 = vpop.f32.mrf.mxu0
      %v912 = vadd.f32 %v823, %v911
      %v913 = vpop.f32.mrf.mxu0
      %v914 = vadd.f32 %v825, %v913
      %915 = vdwg.mxu0
      %916 = vmatpush.bf16.msra.mxu0 0
      %917 = vmatpush.bf16.msra.mxu0 0
      %918 = vmatpush.bf16.msra.mxu0 0
      %919 = vmatpush.bf16.msra.mxu0 0
      %920 = vmatpush.bf16.msra.mxu0 0
      %921 = vmatpush.bf16.msra.mxu0 0
      %922 = vmatpush.bf16.msra.mxu0 %v670
      %923 = vmatpush.bf16.msra.mxu0 %v669
      %924 = vmatmul.bf16.gmra.mxu0 %v691
      %v925 = vpop.f32.mrf.mxu0
      %v926 = vadd.f32 %v837, %v925
      %v927 = vpop.f32.mrf.mxu0
      %v928 = vadd.f32 %v839, %v927
      %929 = vmatmul.bf16.gmra.mxu0 %v694
      %v930 = vpop.f32.mrf.mxu0
      %v931 = vadd.f32 %v842, %v930
      %v932 = vpop.f32.mrf.mxu0
      %v933 = vadd.f32 %v844, %v932
      %934 = vmatmul.bf16.gmra.mxu0 %v697
      %v935 = vpop.f32.mrf.mxu0
      %v936 = vadd.f32 %v847, %v935
      %v937 = vpop.f32.mrf.mxu0
      %v938 = vadd.f32 %v849, %v937
      %939 = vmatmul.bf16.gmra.mxu0 %v700
      %v940 = vpop.f32.mrf.mxu0
      %v941 = vadd.f32 %v852, %v940
      %v942 = vpop.f32.mrf.mxu0
      %v943 = vadd.f32 %v854, %v942
      %944 = vmatmul.bf16.gmra.mxu0 %v703
      %v945 = vpop.f32.mrf.mxu0
      %v946 = vadd.f32 %v857, %v945
      %v947 = vpop.f32.mrf.mxu0
      %v948 = vadd.f32 %v859, %v947
      %949 = vmatmul.bf16.gmra.mxu0 %v706
      %v950 = vpop.f32.mrf.mxu0
      %v951 = vadd.f32 %v862, %v950
      %v952 = vpop.f32.mrf.mxu0
      %v953 = vadd.f32 %v864, %v952
      %954 = vmatmul.bf16.gmra.mxu0 %v709
      %v955 = vpop.f32.mrf.mxu0
      %v956 = vadd.f32 %v867, %v955
      %v957 = vpop.f32.mrf.mxu0
      %v958 = vadd.f32 %v869, %v957
      %959 = vmatmul.bf16.gmra.mxu0 %v712
      %v960 = vpop.f32.mrf.mxu0
      %v961 = vadd.f32 %v872, %v960
      %v962 = vpop.f32.mrf.mxu0
      %v963 = vadd.f32 %v874, %v962
      %964 = vmatmul.bf16.gmra.mxu0 %v715
      %v965 = vpop.f32.mrf.mxu0
      %v966 = vadd.f32 %v877, %v965
      %v967 = vpop.f32.mrf.mxu0
      %v968 = vadd.f32 %v879, %v967
      %969 = vmatmul.bf16.gmra.mxu0 %v718
      %v970 = vpop.f32.mrf.mxu0
      %v971 = vadd.f32 %v882, %v970
      %v972 = vpop.f32.mrf.mxu0
      %v973 = vadd.f32 %v884, %v972
      %974 = vmatmul.bf16.gmra.mxu0 %v721
      %v975 = vpop.f32.mrf.mxu0
      %v976 = vadd.f32 %v887, %v975
      %v977 = vpop.f32.mrf.mxu0
      %v978 = vadd.f32 %v889, %v977
      %979 = vmatmul.bf16.gmra.mxu0 %v724
      %v980 = vpop.f32.mrf.mxu0
      %v981 = vadd.f32 %v892, %v980
      %v982 = vpop.f32.mrf.mxu0
      %v983 = vadd.f32 %v894, %v982
      %984 = vmatmul.bf16.gmra.mxu0 %v727
      %v985 = vpop.f32.mrf.mxu0
      %v986 = vadd.f32 %v897, %v985
      %v987 = vpop.f32.mrf.mxu0
      %v988 = vadd.f32 %v899, %v987
      %989 = vmatmul.bf16.gmra.mxu0 %v730
      %v990 = vpop.f32.mrf.mxu0
      %v991 = vadd.f32 %v902, %v990
      %v992 = vpop.f32.mrf.mxu0
      %v993 = vadd.f32 %v904, %v992
      %994 = vmatmul.bf16.gmra.mxu0 %v733
      %v995 = vpop.f32.mrf.mxu0
      %v996 = vadd.f32 %v907, %v995
      %v997 = vpop.f32.mrf.mxu0
      %v998 = vadd.f32 %v909, %v997
      %999 = vmatmul.bf16.gmra.mxu0 %v736
      %v1000 = vpop.f32.mrf.mxu0
      %v1001 = vadd.f32 %v912, %v1000
      %v1002 = vpop.f32.mrf.mxu0
      %v1003 = vadd.f32 %v914, %v1002
      %1004 = vdwg.mxu0
      %v1005 = vld [vmem:[%s2] sm:$0x1]
      %v1007 = vperm.slane %v1005, 0
      %v1009 = vmul.f32 %v926, %v1007
      %v1010 = vmul.f32 %v928, %v1007
      %v1011 = vmul.f32 %v931, %v1007
      %v1012 = vmul.f32 %v933, %v1007
      %v1013 = vmul.f32 %v936, %v1007
      %v1014 = vmul.f32 %v938, %v1007
      %v1015 = vmul.f32 %v941, %v1007
      %v1016 = vmul.f32 %v943, %v1007
      %v1017 = vmul.f32 %v946, %v1007
      %v1018 = vmul.f32 %v948, %v1007
      %v1019 = vmul.f32 %v951, %v1007
      %v1020 = vmul.f32 %v953, %v1007
      %v1021 = vmul.f32 %v956, %v1007
      %v1022 = vmul.f32 %v958, %v1007
      %v1023 = vmul.f32 %v961, %v1007
      %v1024 = vmul.f32 %v963, %v1007
      %v1025 = vmul.f32 %v966, %v1007
      %v1026 = vmul.f32 %v968, %v1007
      %v1027 = vmul.f32 %v971, %v1007
      %v1028 = vmul.f32 %v973, %v1007
      %v1029 = vmul.f32 %v976, %v1007
      %v1030 = vmul.f32 %v978, %v1007
      %v1031 = vmul.f32 %v981, %v1007
      %v1032 = vmul.f32 %v983, %v1007
      %v1033 = vmul.f32 %v986, %v1007
      %v1034 = vmul.f32 %v988, %v1007
      %v1035 = vmul.f32 %v991, %v1007
      %v1036 = vmul.f32 %v993, %v1007
      %v1037 = vmul.f32 %v996, %v1007
      %v1038 = vmul.f32 %v998, %v1007
      %v1039 = vmul.f32 %v1001, %v1007
      %v1040 = vmul.f32 %v1003, %v1007
      %v1041 = vld [vmem:[%s3] sm:$0x1]
      %v1043 = vperm.slane %v1041, 0
      %v1045 = vadd.f32 %v1009, %v1043
      %v1046 = vadd.f32 %v1010, %v1043
      %v1047 = vadd.f32 %v1011, %v1043
      %v1048 = vadd.f32 %v1012, %v1043
      %v1049 = vadd.f32 %v1013, %v1043
      %v1050 = vadd.f32 %v1014, %v1043
      %v1051 = vadd.f32 %v1015, %v1043
      %v1052 = vadd.f32 %v1016, %v1043
      %v1053 = vadd.f32 %v1017, %v1043
      %v1054 = vadd.f32 %v1018, %v1043
      %v1055 = vadd.f32 %v1019, %v1043
      %v1056 = vadd.f32 %v1020, %v1043
      %v1057 = vadd.f32 %v1021, %v1043
      %v1058 = vadd.f32 %v1022, %v1043
      %v1059 = vadd.f32 %v1023, %v1043
      %v1060 = vadd.f32 %v1024, %v1043
      %v1061 = vadd.f32 %v1025, %v1043
      %v1062 = vadd.f32 %v1026, %v1043
      %v1063 = vadd.f32 %v1027, %v1043
      %v1064 = vadd.f32 %v1028, %v1043
      %v1065 = vadd.f32 %v1029, %v1043
      %v1066 = vadd.f32 %v1030, %v1043
      %v1067 = vadd.f32 %v1031, %v1043
      %v1068 = vadd.f32 %v1032, %v1043
      %v1069 = vadd.f32 %v1033, %v1043
      %v1070 = vadd.f32 %v1034, %v1043
      %v1071 = vadd.f32 %v1035, %v1043
      %v1072 = vadd.f32 %v1036, %v1043
      %v1073 = vadd.f32 %v1037, %v1043
      %v1074 = vadd.f32 %v1038, %v1043
      %v1075 = vadd.f32 %v1039, %v1043
      %v1076 = vadd.f32 %v1040, %v1043
      %vm1077 = vcmp.ge.f32.partialorder %v1045, 0.0
      %vm1078 = vcmp.ge.f32.partialorder %v1046, 0.0
      %vm1079 = vcmp.ge.f32.partialorder %v1047, 0.0
      %vm1080 = vcmp.ge.f32.partialorder %v1048, 0.0
      %vm1081 = vcmp.ge.f32.partialorder %v1049, 0.0
      %vm1082 = vcmp.ge.f32.partialorder %v1050, 0.0
      %vm1083 = vcmp.ge.f32.partialorder %v1051, 0.0
      %vm1084 = vcmp.ge.f32.partialorder %v1052, 0.0
      %vm1085 = vcmp.ge.f32.partialorder %v1053, 0.0
      %vm1086 = vcmp.ge.f32.partialorder %v1054, 0.0
      %vm1087 = vcmp.ge.f32.partialorder %v1055, 0.0
      %vm1088 = vcmp.ge.f32.partialorder %v1056, 0.0
      %vm1089 = vcmp.ge.f32.partialorder %v1057, 0.0
      %vm1090 = vcmp.ge.f32.partialorder %v1058, 0.0
      %vm1091 = vcmp.ge.f32.partialorder %v1059, 0.0
      %vm1092 = vcmp.ge.f32.partialorder %v1060, 0.0
      %vm1093 = vcmp.ge.f32.partialorder %v1061, 0.0
      %vm1094 = vcmp.ge.f32.partialorder %v1062, 0.0
      %vm1095 = vcmp.ge.f32.partialorder %v1063, 0.0
      %vm1096 = vcmp.ge.f32.partialorder %v1064, 0.0
      %vm1097 = vcmp.ge.f32.partialorder %v1065, 0.0
      %vm1098 = vcmp.ge.f32.partialorder %v1066, 0.0
      %vm1099 = vcmp.ge.f32.partialorder %v1067, 0.0
      %vm1100 = vcmp.ge.f32.partialorder %v1068, 0.0
      %vm1101 = vcmp.ge.f32.partialorder %v1069, 0.0
      %vm1102 = vcmp.ge.f32.partialorder %v1070, 0.0
      %vm1103 = vcmp.ge.f32.partialorder %v1071, 0.0
      %vm1104 = vcmp.ge.f32.partialorder %v1072, 0.0
      %vm1105 = vcmp.ge.f32.partialorder %v1073, 0.0
      %vm1106 = vcmp.ge.f32.partialorder %v1074, 0.0
      %vm1107 = vcmp.ge.f32.partialorder %v1075, 0.0
      %vm1108 = vcmp.ge.f32.partialorder %v1076, 0.0
      %v1109 = vmul.f32 %v1045, 0.01
      %v1110 = vmul.f32 %v1046, 0.01
      %v1111 = vmul.f32 %v1047, 0.01
      %v1112 = vmul.f32 %v1048, 0.01
      %v1113 = vmul.f32 %v1049, 0.01
      %v1114 = vmul.f32 %v1050, 0.01
      %v1115 = vmul.f32 %v1051, 0.01
      %v1116 = vmul.f32 %v1052, 0.01
      %v1117 = vmul.f32 %v1053, 0.01
      %v1118 = vmul.f32 %v1054, 0.01
      %v1119 = vmul.f32 %v1055, 0.01
      %v1120 = vmul.f32 %v1056, 0.01
      %v1121 = vmul.f32 %v1057, 0.01
      %v1122 = vmul.f32 %v1058, 0.01
      %v1123 = vmul.f32 %v1059, 0.01
      %v1124 = vmul.f32 %v1060, 0.01
      %v1125 = vmul.f32 %v1061, 0.01
      %v1126 = vmul.f32 %v1062, 0.01
      %v1127 = vmul.f32 %v1063, 0.01
      %v1128 = vmul.f32 %v1064, 0.01
      %v1129 = vmul.f32 %v1065, 0.01
      %v1130 = vmul.f32 %v1066, 0.01
      %v1131 = vmul.f32 %v1067, 0.01
      %v1132 = vmul.f32 %v1068, 0.01
      %v1133 = vmul.f32 %v1069, 0.01
      %v1134 = vmul.f32 %v1070, 0.01
      %v1135 = vmul.f32 %v1071, 0.01
      %v1136 = vmul.f32 %v1072, 0.01
      %v1137 = vmul.f32 %v1073, 0.01
      %v1138 = vmul.f32 %v1074, 0.01
      %v1139 = vmul.f32 %v1075, 0.01
      %v1140 = vmul.f32 %v1076, 0.01
      %v1141 = vsel %vm1077, %v1045, %v1109
      %v1142 = vsel %vm1078, %v1046, %v1110
      %v1143 = vsel %vm1079, %v1047, %v1111
      %v1144 = vsel %vm1080, %v1048, %v1112
      %v1145 = vsel %vm1081, %v1049, %v1113
      %v1146 = vsel %vm1082, %v1050, %v1114
      %v1147 = vsel %vm1083, %v1051, %v1115
      %v1148 = vsel %vm1084, %v1052, %v1116
      %v1149 = vsel %vm1085, %v1053, %v1117
      %v1150 = vsel %vm1086, %v1054, %v1118
      %v1151 = vsel %vm1087, %v1055, %v1119
      %v1152 = vsel %vm1088, %v1056, %v1120
      %v1153 = vsel %vm1089, %v1057, %v1121
      %v1154 = vsel %vm1090, %v1058, %v1122
      %v1155 = vsel %vm1091, %v1059, %v1123
      %v1156 = vsel %vm1092, %v1060, %v1124
      %v1157 = vsel %vm1093, %v1061, %v1125
      %v1158 = vsel %vm1094, %v1062, %v1126
      %v1159 = vsel %vm1095, %v1063, %v1127
      %v1160 = vsel %vm1096, %v1064, %v1128
      %v1161 = vsel %vm1097, %v1065, %v1129
      %v1162 = vsel %vm1098, %v1066, %v1130
      %v1163 = vsel %vm1099, %v1067, %v1131
      %v1164 = vsel %vm1100, %v1068, %v1132
      %v1165 = vsel %vm1101, %v1069, %v1133
      %v1166 = vsel %vm1102, %v1070, %v1134
      %v1167 = vsel %vm1103, %v1071, %v1135
      %v1168 = vsel %vm1104, %v1072, %v1136
      %v1169 = vsel %vm1105, %v1073, %v1137
      %v1170 = vsel %vm1106, %v1074, %v1138
      %v1171 = vsel %vm1107, %v1075, %v1139
      %v1172 = vsel %vm1108, %v1076, %v1140
      %v1173 = vpack.c.bf16 %v1141, %v1141
      %v1174 = vpack.c.bf16 %v1142, %v1142
      %v1175 = vpack.c.bf16 %v1143, %v1143
      %v1176 = vpack.c.bf16 %v1144, %v1144
      %v1177 = vpack.c.bf16 %v1145, %v1145
      %v1178 = vpack.c.bf16 %v1146, %v1146
      %v1179 = vpack.c.bf16 %v1147, %v1147
      %v1180 = vpack.c.bf16 %v1148, %v1148
      %v1181 = vpack.c.bf16 %v1149, %v1149
      %v1182 = vpack.c.bf16 %v1150, %v1150
      %v1183 = vpack.c.bf16 %v1151, %v1151
      %v1184 = vpack.c.bf16 %v1152, %v1152
      %v1185 = vpack.c.bf16 %v1153, %v1153
      %v1186 = vpack.c.bf16 %v1154, %v1154
      %v1187 = vpack.c.bf16 %v1155, %v1155
      %v1188 = vpack.c.bf16 %v1156, %v1156
      %v1189 = vpack.c.bf16 %v1157, %v1157
      %v1190 = vpack.c.bf16 %v1158, %v1158
      %v1191 = vpack.c.bf16 %v1159, %v1159
      %v1192 = vpack.c.bf16 %v1160, %v1160
      %v1193 = vpack.c.bf16 %v1161, %v1161
      %v1194 = vpack.c.bf16 %v1162, %v1162
      %v1195 = vpack.c.bf16 %v1163, %v1163
      %v1196 = vpack.c.bf16 %v1164, %v1164
      %v1197 = vpack.c.bf16 %v1165, %v1165
      %v1198 = vpack.c.bf16 %v1166, %v1166
      %v1199 = vpack.c.bf16 %v1167, %v1167
      %v1200 = vpack.c.bf16 %v1168, %v1168
      %v1201 = vpack.c.bf16 %v1169, %v1169
      %v1202 = vpack.c.bf16 %v1170, %v1170
      %v1203 = vpack.c.bf16 %v1171, %v1171
      %v1204 = vpack.c.bf16 %v1172, %v1172
      %vm1205 = vcmask 125952
      %1206 = vst.msk [vmem:[%s238] sm:$0xf] %vm1205, %v1173
      %1207 = vst.msk [vmem:[%s238 + $0x4] sm:$0xf] %vm1205, %v1174
      %1208 = vst.msk [vmem:[%s238 + $0x8] sm:$0xf] %vm1205, %v1175
      %1209 = vst.msk [vmem:[%s238 + $0xc] sm:$0xf] %vm1205, %v1176
      %1210 = vst.msk [vmem:[%s238 + $0x10] sm:$0xf] %vm1205, %v1177
      %1211 = vst.msk [vmem:[%s238 + $0x14] sm:$0xf] %vm1205, %v1178
      %1212 = vst.msk [vmem:[%s238 + $0x18] sm:$0xf] %vm1205, %v1179
      %1213 = vst.msk [vmem:[%s238 + $0x1c] sm:$0xf] %vm1205, %v1180
      %1214 = vst.msk [vmem:[%s238 + $0x20] sm:$0xf] %vm1205, %v1181
      %1215 = vst.msk [vmem:[%s238 + $0x24] sm:$0xf] %vm1205, %v1182
      %1216 = vst.msk [vmem:[%s238 + $0x28] sm:$0xf] %vm1205, %v1183
      %1217 = vst.msk [vmem:[%s238 + $0x2c] sm:$0xf] %vm1205, %v1184
      %1218 = vst.msk [vmem:[%s238 + $0x30] sm:$0xf] %vm1205, %v1185
      %1219 = vst.msk [vmem:[%s238 + $0x34] sm:$0xf] %vm1205, %v1186
      %1220 = vst.msk [vmem:[%s238 + $0x38] sm:$0xf] %vm1205, %v1187
      %1221 = vst.msk [vmem:[%s238 + $0x3c] sm:$0xf] %vm1205, %v1188
      %1222 = vst.msk [vmem:[%s238 + $0x40] sm:$0xf] %vm1205, %v1189
      %1223 = vst.msk [vmem:[%s238 + $0x44] sm:$0xf] %vm1205, %v1190
      %1224 = vst.msk [vmem:[%s238 + $0x48] sm:$0xf] %vm1205, %v1191
      %1225 = vst.msk [vmem:[%s238 + $0x4c] sm:$0xf] %vm1205, %v1192
      %1226 = vst.msk [vmem:[%s238 + $0x50] sm:$0xf] %vm1205, %v1193
      %1227 = vst.msk [vmem:[%s238 + $0x54] sm:$0xf] %vm1205, %v1194
      %1228 = vst.msk [vmem:[%s238 + $0x58] sm:$0xf] %vm1205, %v1195
      %1229 = vst.msk [vmem:[%s238 + $0x5c] sm:$0xf] %vm1205, %v1196
      %1230 = vst.msk [vmem:[%s238 + $0x60] sm:$0xf] %vm1205, %v1197
      %1231 = vst.msk [vmem:[%s238 + $0x64] sm:$0xf] %vm1205, %v1198
      %1232 = vst.msk [vmem:[%s238 + $0x68] sm:$0xf] %vm1205, %v1199
      %1233 = vst.msk [vmem:[%s238 + $0x6c] sm:$0xf] %vm1205, %v1200
      %1234 = vst.msk [vmem:[%s238 + $0x70] sm:$0xf] %vm1205, %v1201
      %1235 = vst.msk [vmem:[%s238 + $0x74] sm:$0xf] %vm1205, %v1202
      %1236 = vst.msk [vmem:[%s238 + $0x78] sm:$0xf] %vm1205, %v1203
      %1237 = vst.msk [vmem:[%s238 + $0x7c] sm:$0xf] %vm1205, %v1204
      %s1238 = smul.u32 32, %s20
      %p1239 = scmp.lt.s32.totalorder %s19, 1
      %s1240 = scalar_select %p1239, %s19, 1
      %p1241 = scmp.lt.s32.totalorder %s1238, 31
      %s1242 = scalar_select %p1241, %s1238, 31
      %s1243 = smul.addr %s1240, 32
      %s1244 = sadd.s32 %s1242, %s1243
      %s1245 = smul.addr %s1244, 4
      %s1246 = scalar_lea.vmem %s4, %s1245
      // Predicated region
      $region37: #{conv_with_conn_forward.26} parent=35 // pred_check
        %p1247 = pneg %p138
      $region38: #{conv_with_conn_forward.26} parent=35 // pred_check_branch
        %1249 = sbr.rel (%p1247) target = $region40
      $region39: #{conv_with_conn_forward.26} parent=35 // pred_region
        %s1250 = smul.u32 32, %s20
      $region40: #{conv_with_conn_forward.26} parent=35 // pred_fallthru
        _
    $region36: #{conv_with_conn_forward.26} parent=5 // pred_fallthru
      _
    %p1251 = scmp.le.s32.totalorder 2, %s10
    // Predicated region
    $region41: #{conv_with_conn_forward.26} parent=5 // pred_check
      %p1252 = pneg %p1251
    $region42: #{conv_with_conn_forward.26} parent=5 // pred_check_branch
      %1254 = sbr.rel (%p1252) target = $region44
    $region43: #{conv_with_conn_forward.26} parent=5 // pred_region
      %s1255 = ssub.s32 %s10, 2
      // Predicated region
      $region45: #{conv_with_conn_forward.26} parent=43 // pred_check
        %p1256 = pneg %p144
      $region46: #{conv_with_conn_forward.26} parent=43 // pred_check_branch
        %1258 = sbr.rel (%p1256) target = $region48
      $region47: #{conv_with_conn_forward.26} parent=43 // pred_region
        %s1259 = smul.u32 32, %s22
        %p1260 = scmp.lt.s32.totalorder %s21, 1
        %s1261 = scalar_select %p1260, %s21, 1
        %p1262 = scmp.lt.s32.totalorder %s1259, 31
        %s1263 = scalar_select %p1262, %s1259, 31
        %s1264 = smul.addr %s1261, 32
        %s1265 = sadd.s32 %s1263, %s1264
        %s1266 = smul.addr %s1265, 4
        %s1267 = scalar_lea.vmem %s4, %s1266
      $region48: #{conv_with_conn_forward.26} parent=43 // pred_fallthru
        _
    $region44: #{conv_with_conn_forward.26} parent=5 // pred_fallthru
      _
  $region6: #{conv_with_conn_forward.26} parent=0 // loop_footer
    %s14 = sadd.s32 1, %s10
  $region7: #{conv_with_conn_forward.26} parent=0 // loop_footer_branch
    %9 = sbr.rel target = $region3
  $region8: #{conv_with_conn_forward.26} parent=0 // loop_exit
    _

// kernel: conv_with_conn_forward.27
$region0: #{conv_with_conn_forward.27}
  #allocation0 [shape = 'u32[]', space=smem, size = 0x4, offset = 0x4, fixed_abs, tag = 'smem constant byte address 0x4 - core index']
  #allocation1 [shape = 'u32[72,128]{1,0:T(1,128)}', space=vmem, size = 0x9000, scoped, tag = 'internal scratch']
  %s0 = inlined_call_operand.vmem [shape: bf16[2,256,144], index: 0, kind: input, shape index: {}]
  %s1 = inlined_call_operand.vmem [shape: bf16[144,16], index: 1, kind: input, shape index: {}]
  %s2 = inlined_call_operand.vmem [shape: f32[1,16], index: 2, kind: input, shape index: {}]
  %s3 = inlined_call_operand.vmem [shape: f32[1,16], index: 3, kind: input, shape index: {}]
  %s4 = inlined_call_operand.vmem [shape: bf16[16,3], index: 4, kind: input, shape index: {}]
  %s5 = inlined_call_operand.vmem [shape: f32[1,3], index: 5, kind: input, shape index: {}]
  %s6 = inlined_call_operand.vmem [shape: f32[2,256,3], index: 6, kind: output, shape index: {}]
  %s7 = sld [smem:[#allocation0]]
  $region57: #{conv_with_conn_forward.27} parent=0
    _
  %s9 = ssub.s32 1, %s7
  %s10 = scalar_select 0, %s9, %s7
  loop: start=0, step=1, limit=4
  $region2: #{conv_with_conn_forward.27} parent=0 // loop_pre_header
    _
  $region3: #{conv_with_conn_forward.27} parent=0 // loop_header
    %s12 = sphi 0, %s16
    %p13 = scmp.ge.s32.totalorder %s12, 4
    %s19 = sphi 0, %s31
    %s20 = sphi 0, %s27
    %s21 = sphi 0, %s19
    %s22 = sphi 0, %s20
    %s23 = sphi 0, %s21
    %s24 = sphi 0, %s22
    %s36 = sphi 0, %s38
    %s39 = sphi 0, %s36
    %s40 = sphi 0, %s39
    %s56 = sphi 0, %s40
    %s60 = sphi 0, %s60
    %s62 = sphi 0, %s60
    %s63 = sphi 0, %s62
    %s77 = sphi 0, %s63
    %s81 = sphi 0, %s81
    %s83 = sphi 0, %s81
    %s84 = sphi 0, %s83
    %s98 = sphi 0, %s84
    %s102 = sphi 0, %s102
    %s104 = sphi 0, %s102
    %s105 = sphi 0, %s104
    %s119 = sphi 0, %s105
    %s123 = sphi 0, %s123
    %s125 = sphi 0, %s123
    %s126 = sphi 0, %s125
    %s140 = sphi 0, %s126
    %s144 = sphi 0, %s144
    %s146 = sphi 0, %s144
    %s147 = sphi 0, %s146
    %s161 = sphi 0, %s147
    %s169 = sphi 0, %s171
    %s172 = sphi 0, %s169
    %s173 = sphi 0, %s172
    %s189 = sphi 0, %s173
  $region4: #{conv_with_conn_forward.27} parent=0 // loop_header_branch
    %15 = sbr.rel (%p13) target = $region8
  $region5: #{conv_with_conn_forward.27} parent=0 // loop_body
    %s17 = ssub.s32 %s12, 1
    %s18 = ssub.s32 %s12, 2
    %s25 = sadd.s32 1, %s20
    %p26 = scmp.ge.s32.totalorder %s25, 1
    %s27 = scalar_select %p26, 0, %s25
    %s28 = sadd.s32 1, %s19
    %s29 = scalar_select %p26, %s28, %s19
    %p30 = scmp.ge.s32.totalorder %s29, 2
    %s31 = scalar_select %p30, 0, %s29
    %s32 = ssub.s32 %s19, %s31
    %s33 = ssub.s32 %s20, %s27
    %s34 = sor.u32 %s32, %s33
    %p35 = scmp.eq.s32.totalorder %s34, 0
    %s37 = sadd.s32 %s36, 1
    %s38 = scalar_select %p35, %s36, %s37
    %p41 = pneg %p35
    %p42 = scmp.eq.s32.totalorder %s12, 1
    %p43 = por %p41, %p42
    %p44 = scmp.ne.s32.totalorder %s36, %s39
    %p45 = scmp.eq.s32.totalorder %s12, 0
    %p46 = por %p44, %p45
    %p47 = scmp.ne.s32.totalorder %s36, %s39
    %p48 = scmp.eq.s32.totalorder %s17, 1
    %p49 = por %p47, %p48
    %p50 = scmp.ne.s32.totalorder %s39, %s40
    %p51 = scmp.eq.s32.totalorder %s17, 0
    %p52 = por %p50, %p51
    %p53 = scmp.ne.s32.totalorder %s39, %s40
    %p54 = scmp.eq.s32.totalorder %s18, 1
    %p55 = por %p53, %p54
    %p57 = scmp.ne.s32.totalorder %s40, %s56
    %p58 = scmp.eq.s32.totalorder %s18, 0
    %p59 = por %p57, %p58
    %s61 = sadd.s32 %s60, 1
    %p64 = scmp.eq.s32.totalorder %s12, 1
    %p65 = scmp.ne.s32.totalorder %s60, %s62
    %p66 = scmp.eq.s32.totalorder %s12, 0
    %p67 = por %p65, %p66
    %p68 = scmp.ne.s32.totalorder %s60, %s62
    %p69 = scmp.eq.s32.totalorder %s17, 1
    %p70 = por %p68, %p69
    %p71 = scmp.ne.s32.totalorder %s62, %s63
    %p72 = scmp.eq.s32.totalorder %s17, 0
    %p73 = por %p71, %p72
    %p74 = scmp.ne.s32.totalorder %s62, %s63
    %p75 = scmp.eq.s32.totalorder %s18, 1
    %p76 = por %p74, %p75
    %p78 = scmp.ne.s32.totalorder %s63, %s77
    %p79 = scmp.eq.s32.totalorder %s18, 0
    %p80 = por %p78, %p79
    %s82 = sadd.s32 %s81, 1
    %p85 = scmp.eq.s32.totalorder %s12, 1
    %p86 = scmp.ne.s32.totalorder %s81, %s83
    %p87 = scmp.eq.s32.totalorder %s12, 0
    %p88 = por %p86, %p87
    %p89 = scmp.ne.s32.totalorder %s81, %s83
    %p90 = scmp.eq.s32.totalorder %s17, 1
    %p91 = por %p89, %p90
    %p92 = scmp.ne.s32.totalorder %s83, %s84
    %p93 = scmp.eq.s32.totalorder %s17, 0
    %p94 = por %p92, %p93
    %p95 = scmp.ne.s32.totalorder %s83, %s84
    %p96 = scmp.eq.s32.totalorder %s18, 1
    %p97 = por %p95, %p96
    %p99 = scmp.ne.s32.totalorder %s84, %s98
    %p100 = scmp.eq.s32.totalorder %s18, 0
    %p101 = por %p99, %p100
    %s103 = sadd.s32 %s102, 1
    %p106 = scmp.eq.s32.totalorder %s12, 1
    %p107 = scmp.ne.s32.totalorder %s102, %s104
    %p108 = scmp.eq.s32.totalorder %s12, 0
    %p109 = por %p107, %p108
    %p110 = scmp.ne.s32.totalorder %s102, %s104
    %p111 = scmp.eq.s32.totalorder %s17, 1
    %p112 = por %p110, %p111
    %p113 = scmp.ne.s32.totalorder %s104, %s105
    %p114 = scmp.eq.s32.totalorder %s17, 0
    %p115 = por %p113, %p114
    %p116 = scmp.ne.s32.totalorder %s104, %s105
    %p117 = scmp.eq.s32.totalorder %s18, 1
    %p118 = por %p116, %p117
    %p120 = scmp.ne.s32.totalorder %s105, %s119
    %p121 = scmp.eq.s32.totalorder %s18, 0
    %p122 = por %p120, %p121
    %s124 = sadd.s32 %s123, 1
    %p127 = scmp.eq.s32.totalorder %s12, 1
    %p128 = scmp.ne.s32.totalorder %s123, %s125
    %p129 = scmp.eq.s32.totalorder %s12, 0
    %p130 = por %p128, %p129
    %p131 = scmp.ne.s32.totalorder %s123, %s125
    %p132 = scmp.eq.s32.totalorder %s17, 1
    %p133 = por %p131, %p132
    %p134 = scmp.ne.s32.totalorder %s125, %s126
    %p135 = scmp.eq.s32.totalorder %s17, 0
    %p136 = por %p134, %p135
    %p137 = scmp.ne.s32.totalorder %s125, %s126
    %p138 = scmp.eq.s32.totalorder %s18, 1
    %p139 = por %p137, %p138
    %p141 = scmp.ne.s32.totalorder %s126, %s140
    %p142 = scmp.eq.s32.totalorder %s18, 0
    %p143 = por %p141, %p142
    %s145 = sadd.s32 %s144, 1
    %p148 = scmp.eq.s32.totalorder %s12, 1
    %p149 = scmp.ne.s32.totalorder %s144, %s146
    %p150 = scmp.eq.s32.totalorder %s12, 0
    %p151 = por %p149, %p150
    %p152 = scmp.ne.s32.totalorder %s144, %s146
    %p153 = scmp.eq.s32.totalorder %s17, 1
    %p154 = por %p152, %p153
    %p155 = scmp.ne.s32.totalorder %s146, %s147
    %p156 = scmp.eq.s32.totalorder %s17, 0
    %p157 = por %p155, %p156
    %p158 = scmp.ne.s32.totalorder %s146, %s147
    %p159 = scmp.eq.s32.totalorder %s18, 1
    %p160 = por %p158, %p159
    %p162 = scmp.ne.s32.totalorder %s147, %s161
    %p163 = scmp.eq.s32.totalorder %s18, 0
    %p164 = por %p162, %p163
    %s165 = ssub.s32 %s19, %s31
    %s166 = ssub.s32 %s20, %s27
    %s167 = sor.u32 %s165, %s166
    %p168 = scmp.eq.s32.totalorder %s167, 0
    %s170 = sadd.s32 %s169, 1
    %s171 = scalar_select %p168, %s169, %s170
    %p174 = pneg %p168
    %p175 = scmp.eq.s32.totalorder %s12, 1
    %p176 = por %p174, %p175
    %p177 = scmp.ne.s32.totalorder %s169, %s172
    %p178 = scmp.eq.s32.totalorder %s12, 0
    %p179 = por %p177, %p178
    %p180 = scmp.ne.s32.totalorder %s169, %s172
    %p181 = scmp.eq.s32.totalorder %s17, 1
    %p182 = por %p180, %p181
    %p183 = scmp.ne.s32.totalorder %s172, %s173
    %p184 = scmp.eq.s32.totalorder %s17, 0
    %p185 = por %p183, %p184
    %p186 = scmp.ne.s32.totalorder %s172, %s173
    %p187 = scmp.eq.s32.totalorder %s18, 1
    %p188 = por %p186, %p187
    %p190 = scmp.ne.s32.totalorder %s173, %s189
    %p191 = scmp.eq.s32.totalorder %s18, 0
    %p192 = por %p190, %p191
    %p193 = scmp.le.s32.totalorder 1, %s12
    %p194 = scmp.lt.s32.totalorder %s12, 3
    %p195 = pnand %p193, %p194
    %p196 = pneg %p195
    // Predicated region
    $region9: #{conv_with_conn_forward.27} parent=5 // pred_check
      _
    $region10: #{conv_with_conn_forward.27} parent=5 // pred_check_branch
      %198 = sbr.rel (%p195) target = $region12
    $region11: #{conv_with_conn_forward.27} parent=5 // pred_region
      %s199 = ssub.s32 %s12, 1
      // Predicated region
      $region13: #{conv_with_conn_forward.27} parent=11 // pred_check
        %p200 = pneg %p73
      $region14: #{conv_with_conn_forward.27} parent=11 // pred_check_branch
        %202 = sbr.rel (%p200) target = $region16
      $region15: #{conv_with_conn_forward.27} parent=11 // pred_region
        _
      $region16: #{conv_with_conn_forward.27} parent=11 // pred_fallthru
        _
      // Predicated region
      $region17: #{conv_with_conn_forward.27} parent=11 // pred_check
        %p203 = pneg %p94
      $region18: #{conv_with_conn_forward.27} parent=11 // pred_check_branch
        %205 = sbr.rel (%p203) target = $region20
      $region19: #{conv_with_conn_forward.27} parent=11 // pred_region
        _
      $region20: #{conv_with_conn_forward.27} parent=11 // pred_fallthru
        _
      // Predicated region
      $region21: #{conv_with_conn_forward.27} parent=11 // pred_check
        %p206 = pneg %p115
      $region22: #{conv_with_conn_forward.27} parent=11 // pred_check_branch
        %208 = sbr.rel (%p206) target = $region24
      $region23: #{conv_with_conn_forward.27} parent=11 // pred_region
        _
      $region24: #{conv_with_conn_forward.27} parent=11 // pred_fallthru
        _
      // Predicated region
      $region25: #{conv_with_conn_forward.27} parent=11 // pred_check
        %p209 = pneg %p136
      $region26: #{conv_with_conn_forward.27} parent=11 // pred_check_branch
        %211 = sbr.rel (%p209) target = $region28
      $region27: #{conv_with_conn_forward.27} parent=11 // pred_region
        _
      $region28: #{conv_with_conn_forward.27} parent=11 // pred_fallthru
        _
      // Predicated region
      $region29: #{conv_with_conn_forward.27} parent=11 // pred_check
        %p212 = pneg %p157
      $region30: #{conv_with_conn_forward.27} parent=11 // pred_check_branch
        %214 = sbr.rel (%p212) target = $region32
      $region31: #{conv_with_conn_forward.27} parent=11 // pred_region
        _
      $region32: #{conv_with_conn_forward.27} parent=11 // pred_fallthru
        _
    $region12: #{conv_with_conn_forward.27} parent=5 // pred_fallthru
      _
    %p215 = scmp.lt.s32.totalorder %s12, 2
    // Predicated region
    $region33: #{conv_with_conn_forward.27} parent=5 // pred_check
      %p216 = pneg %p215
    $region34: #{conv_with_conn_forward.27} parent=5 // pred_check_branch
      %218 = sbr.rel (%p216) target = $region36
    $region35: #{conv_with_conn_forward.27} parent=5 // pred_region
      // Predicated region
      $region37: #{conv_with_conn_forward.27} parent=35 // pred_check
        %p219 = pneg %p46
      $region38: #{conv_with_conn_forward.27} parent=35 // pred_check_branch
        %221 = sbr.rel (%p219) target = $region40
      $region39: #{conv_with_conn_forward.27} parent=35 // pred_region
        %s222 = smul.u32 32, %s20
        %p223 = scmp.lt.s32.totalorder %s19, 1
        %s224 = scalar_select %p223, %s19, 1
        %p225 = scmp.lt.s32.totalorder %s222, 31
        %s226 = scalar_select %p225, %s222, 31
        %s227 = smul.addr %s226, 2
        %s228 = smul.addr %s224, 64
        %s229 = sadd.s32 %s227, %s228
        %s230 = smul.addr %s229, 4
        %s231 = scalar_lea.vmem %s0, %s230
        %s232 = smul.u32 32, %s20
      $region40: #{conv_with_conn_forward.27} parent=35 // pred_fallthru
        _
    $region36: #{conv_with_conn_forward.27} parent=5 // pred_fallthru
      _
    %p233 = scmp.le.s32.totalorder 1, %s12
    %p234 = scmp.lt.s32.totalorder %s12, 3
    %p235 = pnand %p233, %p234
    %p236 = pneg %p235
    // Predicated region
    $region41: #{conv_with_conn_forward.27} parent=5 // pred_check
      _
    $region42: #{conv_with_conn_forward.27} parent=5 // pred_check_branch
      %238 = sbr.rel (%p235) target = $region44
    $region43: #{conv_with_conn_forward.27} parent=5 // pred_region
      %s239 = ssub.s32 %s12, 1
      %s240 = smul.u32 32, %s22
      %p241 = scmp.lt.s32.totalorder %s21, 1
      %s242 = scalar_select %p241, %s21, 1
      %p243 = scmp.lt.s32.totalorder %s240, 31
      %s244 = scalar_select %p243, %s240, 31
      %s245 = smul.addr %s244, 2
      %s246 = smul.addr %s242, 64
      %s247 = sadd.s32 %s245, %s246
      %s248 = smul.addr %s247, 4
      %s249 = scalar_lea.vmem %s0, %s248
      %p250 = pneg %p52
      %p251 = pneg %p49
      %p252 = pneg %p73
      %p253 = pneg %p70
      %p254 = pneg %p94
      %p255 = pneg %p91
      %p256 = pneg %p115
      %p257 = pneg %p112
      %p258 = pneg %p136
      %p259 = pneg %p133
      %p260 = pneg %p157
      %p261 = pneg %p154
      %p262 = pneg %p185
      %p263 = pneg %p182
      %s264 = smul.u32 32, %s22
      %p265 = scmp.lt.s32.totalorder %s21, 1
      %s266 = scalar_select %p265, %s21, 1
      %p267 = scmp.lt.s32.totalorder %s264, 31
      %s268 = scalar_select %p267, %s264, 31
      %s269 = smul.addr %s266, 32
      %s270 = sadd.s32 %s268, %s269
      %s271 = smul.addr %s270, 8
      %s272 = scalar_lea.vmem %s6, %s271
      %s273 = smul.u32 32, %s22
      %p274 = scmp.lt.s32.totalorder %s21, 1
      %s275 = scalar_select %p274, %s21, 1
      %p276 = scmp.lt.s32.totalorder %s273, 31
      %s277 = scalar_select %p276, %s273, 31
      %s278 = smul.addr %s277, 2
      %s279 = smul.addr %s275, 64
      %s280 = sadd.s32 %s278, %s279
      %s281 = smul.addr %s280, 4
      %s282 = scalar_lea.vmem %s0, %s281
      %s283 = smul.u32 32, %s22
      %s284 = smul.u32 32, %s22
      %p285 = scmp.lt.s32.totalorder %s21, 1
      %s286 = scalar_select %p285, %s21, 1
      %p287 = scmp.lt.s32.totalorder %s284, 31
      %s288 = scalar_select %p287, %s284, 31
      %s289 = smul.addr %s286, 32
      %s290 = sadd.s32 %s288, %s289
      %s291 = smul.addr %s290, 8
      %s292 = scalar_lea.vmem %s6, %s291
      %s293 = smul.u32 32, %s22
      %v295 = vld [vmem:[%s282] sm:$0xff]
      %v296 = vld [vmem:[%s282 + $0x8] sm:$0xff]
      %v297 = vld [vmem:[%s282 + $0x10] sm:$0xff]
      %v298 = vld [vmem:[%s282 + $0x18] sm:$0xff]
      %v299 = vld [vmem:[%s282 + $0x20] sm:$0xff]
      %v300 = vld [vmem:[%s282 + $0x28] sm:$0xff]
      %v301 = vld [vmem:[%s282 + $0x30] sm:$0xff]
      %v302 = vld [vmem:[%s282 + $0x38] sm:$0xff]
      %v303 = vld [vmem:[%s282 + $0x40] sm:$0xff]
      %v304 = vld [vmem:[%s282 + $0x48] sm:$0xff]
      %v305 = vld [vmem:[%s282 + $0x50] sm:$0xff]
      %v306 = vld [vmem:[%s282 + $0x58] sm:$0xff]
      %v307 = vld [vmem:[%s282 + $0x60] sm:$0xff]
      %v308 = vld [vmem:[%s282 + $0x68] sm:$0xff]
      %v309 = vld [vmem:[%s282 + $0x70] sm:$0xff]
      %v310 = vld [vmem:[%s282 + $0x78] sm:$0xff]
      %v311 = vld [vmem:[%s282 + $0x80] sm:$0xff]
      %v312 = vld [vmem:[%s282 + $0x88] sm:$0xff]
      %v313 = vld [vmem:[%s282 + $0x90] sm:$0xff]
      %v314 = vld [vmem:[%s282 + $0x98] sm:$0xff]
      %v315 = vld [vmem:[%s282 + $0xa0] sm:$0xff]
      %v316 = vld [vmem:[%s282 + $0xa8] sm:$0xff]
      %v317 = vld [vmem:[%s282 + $0xb0] sm:$0xff]
      %v318 = vld [vmem:[%s282 + $0xb8] sm:$0xff]
      %v319 = vld [vmem:[%s282 + $0xc0] sm:$0xff]
      %v320 = vld [vmem:[%s282 + $0xc8] sm:$0xff]
      %v321 = vld [vmem:[%s282 + $0xd0] sm:$0xff]
      %v322 = vld [vmem:[%s282 + $0xd8] sm:$0xff]
      %v323 = vld [vmem:[%s282 + $0xe0] sm:$0xff]
      %v324 = vld [vmem:[%s282 + $0xe8] sm:$0xff]
      %v325 = vld [vmem:[%s282 + $0xf0] sm:$0xff]
      %v326 = vld [vmem:[%s282 + $0xf8] sm:$0xff]
      %v327 = vld [vmem:[%s1] sm:$0xf]
      %v328 = vld [vmem:[%s1 + $0x4] sm:$0xf]
      %v329 = vld [vmem:[%s1 + $0x8] sm:$0xf]
      %v330 = vld [vmem:[%s1 + $0xc] sm:$0xf]
      %v331 = vld [vmem:[%s1 + $0x10] sm:$0xf]
      %v332 = vld [vmem:[%s1 + $0x14] sm:$0xf]
      %v333 = vld [vmem:[%s1 + $0x18] sm:$0xf]
      %v334 = vld [vmem:[%s1 + $0x1c] sm:$0xf]
      %v335 = vld [vmem:[%s1 + $0x20] sm:$0xf]
      %v336 = vld [vmem:[%s1 + $0x24] sm:$0xf]
      %v337 = vld [vmem:[%s1 + $0x28] sm:$0xf]
      %v338 = vld [vmem:[%s1 + $0x2c] sm:$0xf]
      %v339 = vld [vmem:[%s1 + $0x30] sm:$0xf]
      %v340 = vld [vmem:[%s1 + $0x34] sm:$0xf]
      %v341 = vld [vmem:[%s1 + $0x38] sm:$0xf]
      %v342 = vld [vmem:[%s1 + $0x3c] sm:$0xf]
      %v343 = vld [vmem:[%s1 + $0x40] sm:$0xf]
      %v344 = vld [vmem:[%s1 + $0x44] sm:$0xf]
      %v377 = vunpack.c.l.b16 %v295
      %v378 = vunpack.c.h.b16 %v295
      %v379 = vunpack.c.l.b16 %v296
      %v380 = vunpack.c.h.b16 %v296
      %v381 = vunpack.c.l.b16 %v297
      %v382 = vunpack.c.h.b16 %v297
      %v383 = vunpack.c.l.b16 %v298
      %v384 = vunpack.c.h.b16 %v298
      %v385 = vunpack.c.l.b16 %v299
      %v386 = vunpack.c.h.b16 %v299
      %v387 = vunpack.c.l.b16 %v300
      %v388 = vunpack.c.h.b16 %v300
      %v389 = vunpack.c.l.b16 %v301
      %v390 = vunpack.c.h.b16 %v301
      %v391 = vunpack.c.l.b16 %v302
      %v392 = vunpack.c.h.b16 %v302
      %v393 = vunpack.c.l.b16 %v303
      %v394 = vunpack.c.h.b16 %v303
      %v395 = vunpack.c.l.b16 %v304
      %v396 = vunpack.c.h.b16 %v304
      %v397 = vunpack.c.l.b16 %v305
      %v398 = vunpack.c.h.b16 %v305
      %v399 = vunpack.c.l.b16 %v306
      %v400 = vunpack.c.h.b16 %v306
      %v401 = vunpack.c.l.b16 %v307
      %v402 = vunpack.c.h.b16 %v307
      %v403 = vunpack.c.l.b16 %v308
      %v404 = vunpack.c.h.b16 %v308
      %v405 = vunpack.c.l.b16 %v309
      %v406 = vunpack.c.h.b16 %v309
      %v407 = vunpack.c.l.b16 %v310
      %v408 = vunpack.c.h.b16 %v310
      %v409 = vunpack.c.l.b16 %v311
      %v410 = vunpack.c.h.b16 %v311
      %v411 = vunpack.c.l.b16 %v312
      %v412 = vunpack.c.h.b16 %v312
      %v413 = vunpack.c.l.b16 %v313
      %v414 = vunpack.c.h.b16 %v313
      %v415 = vunpack.c.l.b16 %v314
      %v416 = vunpack.c.h.b16 %v314
      %v417 = vunpack.c.l.b16 %v315
      %v418 = vunpack.c.h.b16 %v315
      %v419 = vunpack.c.l.b16 %v316
      %v420 = vunpack.c.h.b16 %v316
      %v421 = vunpack.c.l.b16 %v317
      %v422 = vunpack.c.h.b16 %v317
      %v423 = vunpack.c.l.b16 %v318
      %v424 = vunpack.c.h.b16 %v318
      %v425 = vunpack.c.l.b16 %v319
      %v426 = vunpack.c.h.b16 %v319
      %v427 = vunpack.c.l.b16 %v320
      %v428 = vunpack.c.h.b16 %v320
      %v429 = vunpack.c.l.b16 %v321
      %v430 = vunpack.c.h.b16 %v321
      %v431 = vunpack.c.l.b16 %v322
      %v432 = vunpack.c.h.b16 %v322
      %v433 = vunpack.c.l.b16 %v323
      %v434 = vunpack.c.h.b16 %v323
      %v435 = vunpack.c.l.b16 %v324
      %v436 = vunpack.c.h.b16 %v324
      %v437 = vunpack.c.l.b16 %v325
      %v438 = vunpack.c.h.b16 %v325
      %v439 = vunpack.c.l.b16 %v326
      %v440 = vunpack.c.h.b16 %v326
      %v441 = vpack.c.b16 %v379, %v377
      %v442 = vpack.c.b16 %v380, %v378
      %v443 = vpack.c.b16 %v383, %v381
      %v444 = vpack.c.b16 %v384, %v382
      %v445 = vpack.c.b16 %v387, %v385
      %v446 = vpack.c.b16 %v388, %v386
      %v447 = vpack.c.b16 %v391, %v389
      %v448 = vpack.c.b16 %v392, %v390
      %v449 = vpack.c.b16 %v395, %v393
      %v450 = vpack.c.b16 %v396, %v394
      %v451 = vpack.c.b16 %v399, %v397
      %v452 = vpack.c.b16 %v400, %v398
      %v453 = vpack.c.b16 %v403, %v401
      %v454 = vpack.c.b16 %v404, %v402
      %v455 = vpack.c.b16 %v407, %v405
      %v456 = vpack.c.b16 %v408, %v406
      %v457 = vpack.c.b16 %v411, %v409
      %v458 = vpack.c.b16 %v412, %v410
      %v459 = vpack.c.b16 %v415, %v413
      %v460 = vpack.c.b16 %v416, %v414
      %v461 = vpack.c.b16 %v419, %v417
      %v462 = vpack.c.b16 %v420, %v418
      %v463 = vpack.c.b16 %v423, %v421
      %v464 = vpack.c.b16 %v424, %v422
      %v465 = vpack.c.b16 %v427, %v425
      %v466 = vpack.c.b16 %v428, %v426
      %v467 = vpack.c.b16 %v431, %v429
      %v468 = vpack.c.b16 %v432, %v430
      %v469 = vpack.c.b16 %v435, %v433
      %v470 = vpack.c.b16 %v436, %v434
      %v471 = vpack.c.b16 %v439, %v437
      %v472 = vpack.c.b16 %v440, %v438
      %v507 = vunpack.c.l.b16 %v327
      %v508 = vunpack.c.l.b16 %v328
      %v509 = vunpack.c.l.b16 %v329
      %v510 = vunpack.c.l.b16 %v330
      %v511 = vunpack.c.l.b16 %v331
      %v512 = vunpack.c.l.b16 %v332
      %v513 = vunpack.c.l.b16 %v333
      %v514 = vunpack.c.l.b16 %v334
      %v515 = vunpack.c.l.b16 %v335
      %v516 = vunpack.c.l.b16 %v336
      %v517 = vunpack.c.l.b16 %v337
      %v518 = vunpack.c.l.b16 %v338
      %v519 = vunpack.c.l.b16 %v339
      %v520 = vunpack.c.l.b16 %v340
      %v521 = vunpack.c.l.b16 %v341
      %v522 = vunpack.c.l.b16 %v342
      %v523 = vunpack.c.l.b16 %v343
      %v524 = vunpack.c.l.b16 %v344
      %v525 = vpack.c.b16 %v508, %v507
      %v526 = vpack.c.b16 %v510, %v509
      %v527 = vpack.c.b16 %v512, %v511
      %v528 = vpack.c.b16 %v514, %v513
      %v529 = vpack.c.b16 %v516, %v515
      %v530 = vpack.c.b16 %v518, %v517
      %v531 = vpack.c.b16 %v520, %v519
      %v532 = vpack.c.b16 %v522, %v521
      %v533 = vpack.c.b16 %v524, %v523
      %vm543 = vcmask 130048
      %v545 = vsel %vm543, %v442, 0
      %v548 = vsel %vm543, %v444, 0
      %v551 = vsel %vm543, %v446, 0
      %v554 = vsel %vm543, %v448, 0
      %v557 = vsel %vm543, %v450, 0
      %v560 = vsel %vm543, %v452, 0
      %v563 = vsel %vm543, %v454, 0
      %v566 = vsel %vm543, %v456, 0
      %v569 = vsel %vm543, %v458, 0
      %v572 = vsel %vm543, %v460, 0
      %v575 = vsel %vm543, %v462, 0
      %v578 = vsel %vm543, %v464, 0
      %v581 = vsel %vm543, %v466, 0
      %v584 = vsel %vm543, %v468, 0
      %v587 = vsel %vm543, %v470, 0
      %v590 = vsel %vm543, %v472, 0
      %592 = vmatpush.bf16.msra.mxu0 %v532
      %593 = vmatpush.bf16.msra.mxu0 %v531
      %594 = vmatpush.bf16.msra.mxu0 %v530
      %595 = vmatpush.bf16.msra.mxu0 %v529
      %596 = vmatpush.bf16.msra.mxu0 %v528
      %597 = vmatpush.bf16.msra.mxu0 %v527
      %598 = vmatpush.bf16.msra.mxu0 %v526
      %599 = vmatpush.bf16.msra.mxu0 %v525
      %600 = vmatmul.bf16.gmra.mxu0 %v441
      %v601 = vpop.f32.mrf.mxu0
      %v602 = vadd.f32 0.0, %v601
      %v603 = vpop.f32.mrf.mxu0
      %v604 = vadd.f32 0.0, %v603
      %605 = vmatmul.bf16.gmra.mxu0 %v443
      %v606 = vpop.f32.mrf.mxu0
      %v607 = vadd.f32 0.0, %v606
      %v608 = vpop.f32.mrf.mxu0
      %v609 = vadd.f32 0.0, %v608
      %610 = vmatmul.bf16.gmra.mxu0 %v445
      %v611 = vpop.f32.mrf.mxu0
      %v612 = vadd.f32 0.0, %v611
      %v613 = vpop.f32.mrf.mxu0
      %v614 = vadd.f32 0.0, %v613
      %615 = vmatmul.bf16.gmra.mxu0 %v447
      %v616 = vpop.f32.mrf.mxu0
      %v617 = vadd.f32 0.0, %v616
      %v618 = vpop.f32.mrf.mxu0
      %v619 = vadd.f32 0.0, %v618
      %620 = vmatmul.bf16.gmra.mxu0 %v449
      %v621 = vpop.f32.mrf.mxu0
      %v622 = vadd.f32 0.0, %v621
      %v623 = vpop.f32.mrf.mxu0
      %v624 = vadd.f32 0.0, %v623
      %625 = vmatmul.bf16.gmra.mxu0 %v451
      %v626 = vpop.f32.mrf.mxu0
      %v627 = vadd.f32 0.0, %v626
      %v628 = vpop.f32.mrf.mxu0
      %v629 = vadd.f32 0.0, %v628
      %630 = vmatmul.bf16.gmra.mxu0 %v453
      %v631 = vpop.f32.mrf.mxu0
      %v632 = vadd.f32 0.0, %v631
      %v633 = vpop.f32.mrf.mxu0
      %v634 = vadd.f32 0.0, %v633
      %635 = vmatmul.bf16.gmra.mxu0 %v455
      %v636 = vpop.f32.mrf.mxu0
      %v637 = vadd.f32 0.0, %v636
      %v638 = vpop.f32.mrf.mxu0
      %v639 = vadd.f32 0.0, %v638
      %640 = vmatmul.bf16.gmra.mxu0 %v457
      %v641 = vpop.f32.mrf.mxu0
      %v642 = vadd.f32 0.0, %v641
      %v643 = vpop.f32.mrf.mxu0
      %v644 = vadd.f32 0.0, %v643
      %645 = vmatmul.bf16.gmra.mxu0 %v459
      %v646 = vpop.f32.mrf.mxu0
      %v647 = vadd.f32 0.0, %v646
      %v648 = vpop.f32.mrf.mxu0
      %v649 = vadd.f32 0.0, %v648
      %650 = vmatmul.bf16.gmra.mxu0 %v461
      %v651 = vpop.f32.mrf.mxu0
      %v652 = vadd.f32 0.0, %v651
      %v653 = vpop.f32.mrf.mxu0
      %v654 = vadd.f32 0.0, %v653
      %655 = vmatmul.bf16.gmra.mxu0 %v463
      %v656 = vpop.f32.mrf.mxu0
      %v657 = vadd.f32 0.0, %v656
      %v658 = vpop.f32.mrf.mxu0
      %v659 = vadd.f32 0.0, %v658
      %660 = vmatmul.bf16.gmra.mxu0 %v465
      %v661 = vpop.f32.mrf.mxu0
      %v662 = vadd.f32 0.0, %v661
      %v663 = vpop.f32.mrf.mxu0
      %v664 = vadd.f32 0.0, %v663
      %665 = vmatmul.bf16.gmra.mxu0 %v467
      %v666 = vpop.f32.mrf.mxu0
      %v667 = vadd.f32 0.0, %v666
      %v668 = vpop.f32.mrf.mxu0
      %v669 = vadd.f32 0.0, %v668
      %670 = vmatmul.bf16.gmra.mxu0 %v469
      %v671 = vpop.f32.mrf.mxu0
      %v672 = vadd.f32 0.0, %v671
      %v673 = vpop.f32.mrf.mxu0
      %v674 = vadd.f32 0.0, %v673
      %675 = vmatmul.bf16.gmra.mxu0 %v471
      %v676 = vpop.f32.mrf.mxu0
      %v677 = vadd.f32 0.0, %v676
      %v678 = vpop.f32.mrf.mxu0
      %v679 = vadd.f32 0.0, %v678
      %680 = vdwg.mxu0
      %681 = vmatpush.bf16.msra.mxu0 0
      %682 = vmatpush.bf16.msra.mxu0 0
      %683 = vmatpush.bf16.msra.mxu0 0
      %684 = vmatpush.bf16.msra.mxu0 0
      %685 = vmatpush.bf16.msra.mxu0 0
      %686 = vmatpush.bf16.msra.mxu0 0
      %687 = vmatpush.bf16.msra.mxu0 0
      %688 = vmatpush.bf16.msra.mxu0 %v533
      %689 = vmatmul.bf16.gmra.mxu0 %v545
      %v690 = vpop.f32.mrf.mxu0
      %v691 = vadd.f32 %v602, %v690
      %v692 = vpop.f32.mrf.mxu0
      %v693 = vadd.f32 %v604, %v692
      %694 = vmatmul.bf16.gmra.mxu0 %v548
      %v695 = vpop.f32.mrf.mxu0
      %v696 = vadd.f32 %v607, %v695
      %v697 = vpop.f32.mrf.mxu0
      %v698 = vadd.f32 %v609, %v697
      %699 = vmatmul.bf16.gmra.mxu0 %v551
      %v700 = vpop.f32.mrf.mxu0
      %v701 = vadd.f32 %v612, %v700
      %v702 = vpop.f32.mrf.mxu0
      %v703 = vadd.f32 %v614, %v702
      %704 = vmatmul.bf16.gmra.mxu0 %v554
      %v705 = vpop.f32.mrf.mxu0
      %v706 = vadd.f32 %v617, %v705
      %v707 = vpop.f32.mrf.mxu0
      %v708 = vadd.f32 %v619, %v707
      %709 = vmatmul.bf16.gmra.mxu0 %v557
      %v710 = vpop.f32.mrf.mxu0
      %v711 = vadd.f32 %v622, %v710
      %v712 = vpop.f32.mrf.mxu0
      %v713 = vadd.f32 %v624, %v712
      %714 = vmatmul.bf16.gmra.mxu0 %v560
      %v715 = vpop.f32.mrf.mxu0
      %v716 = vadd.f32 %v627, %v715
      %v717 = vpop.f32.mrf.mxu0
      %v718 = vadd.f32 %v629, %v717
      %719 = vmatmul.bf16.gmra.mxu0 %v563
      %v720 = vpop.f32.mrf.mxu0
      %v721 = vadd.f32 %v632, %v720
      %v722 = vpop.f32.mrf.mxu0
      %v723 = vadd.f32 %v634, %v722
      %724 = vmatmul.bf16.gmra.mxu0 %v566
      %v725 = vpop.f32.mrf.mxu0
      %v726 = vadd.f32 %v637, %v725
      %v727 = vpop.f32.mrf.mxu0
      %v728 = vadd.f32 %v639, %v727
      %729 = vmatmul.bf16.gmra.mxu0 %v569
      %v730 = vpop.f32.mrf.mxu0
      %v731 = vadd.f32 %v642, %v730
      %v732 = vpop.f32.mrf.mxu0
      %v733 = vadd.f32 %v644, %v732
      %734 = vmatmul.bf16.gmra.mxu0 %v572
      %v735 = vpop.f32.mrf.mxu0
      %v736 = vadd.f32 %v647, %v735
      %v737 = vpop.f32.mrf.mxu0
      %v738 = vadd.f32 %v649, %v737
      %739 = vmatmul.bf16.gmra.mxu0 %v575
      %v740 = vpop.f32.mrf.mxu0
      %v741 = vadd.f32 %v652, %v740
      %v742 = vpop.f32.mrf.mxu0
      %v743 = vadd.f32 %v654, %v742
      %744 = vmatmul.bf16.gmra.mxu0 %v578
      %v745 = vpop.f32.mrf.mxu0
      %v746 = vadd.f32 %v657, %v745
      %v747 = vpop.f32.mrf.mxu0
      %v748 = vadd.f32 %v659, %v747
      %749 = vmatmul.bf16.gmra.mxu0 %v581
      %v750 = vpop.f32.mrf.mxu0
      %v751 = vadd.f32 %v662, %v750
      %v752 = vpop.f32.mrf.mxu0
      %v753 = vadd.f32 %v664, %v752
      %754 = vmatmul.bf16.gmra.mxu0 %v584
      %v755 = vpop.f32.mrf.mxu0
      %v756 = vadd.f32 %v667, %v755
      %v757 = vpop.f32.mrf.mxu0
      %v758 = vadd.f32 %v669, %v757
      %759 = vmatmul.bf16.gmra.mxu0 %v587
      %v760 = vpop.f32.mrf.mxu0
      %v761 = vadd.f32 %v672, %v760
      %v762 = vpop.f32.mrf.mxu0
      %v763 = vadd.f32 %v674, %v762
      %764 = vmatmul.bf16.gmra.mxu0 %v590
      %v765 = vpop.f32.mrf.mxu0
      %v766 = vadd.f32 %v677, %v765
      %v767 = vpop.f32.mrf.mxu0
      %v768 = vadd.f32 %v679, %v767
      %769 = vdwg.mxu0
      %v770 = vld [vmem:[%s2] sm:$0x1]
      %v772 = vperm.slane %v770, 0
      %v774 = vmul.f32 %v691, %v772
      %v775 = vmul.f32 %v693, %v772
      %v776 = vmul.f32 %v696, %v772
      %v777 = vmul.f32 %v698, %v772
      %v778 = vmul.f32 %v701, %v772
      %v779 = vmul.f32 %v703, %v772
      %v780 = vmul.f32 %v706, %v772
      %v781 = vmul.f32 %v708, %v772
      %v782 = vmul.f32 %v711, %v772
      %v783 = vmul.f32 %v713, %v772
      %v784 = vmul.f32 %v716, %v772
      %v785 = vmul.f32 %v718, %v772
      %v786 = vmul.f32 %v721, %v772
      %v787 = vmul.f32 %v723, %v772
      %v788 = vmul.f32 %v726, %v772
      %v789 = vmul.f32 %v728, %v772
      %v790 = vmul.f32 %v731, %v772
      %v791 = vmul.f32 %v733, %v772
      %v792 = vmul.f32 %v736, %v772
      %v793 = vmul.f32 %v738, %v772
      %v794 = vmul.f32 %v741, %v772
      %v795 = vmul.f32 %v743, %v772
      %v796 = vmul.f32 %v746, %v772
      %v797 = vmul.f32 %v748, %v772
      %v798 = vmul.f32 %v751, %v772
      %v799 = vmul.f32 %v753, %v772
      %v800 = vmul.f32 %v756, %v772
      %v801 = vmul.f32 %v758, %v772
      %v802 = vmul.f32 %v761, %v772
      %v803 = vmul.f32 %v763, %v772
      %v804 = vmul.f32 %v766, %v772
      %v805 = vmul.f32 %v768, %v772
      %v806 = vld [vmem:[%s3] sm:$0x1]
      %v808 = vperm.slane %v806, 0
      %v810 = vadd.f32 %v774, %v808
      %v811 = vadd.f32 %v775, %v808
      %v812 = vadd.f32 %v776, %v808
      %v813 = vadd.f32 %v777, %v808
      %v814 = vadd.f32 %v778, %v808
      %v815 = vadd.f32 %v779, %v808
      %v816 = vadd.f32 %v780, %v808
      %v817 = vadd.f32 %v781, %v808
      %v818 = vadd.f32 %v782, %v808
      %v819 = vadd.f32 %v783, %v808
      %v820 = vadd.f32 %v784, %v808
      %v821 = vadd.f32 %v785, %v808
      %v822 = vadd.f32 %v786, %v808
      %v823 = vadd.f32 %v787, %v808
      %v824 = vadd.f32 %v788, %v808
      %v825 = vadd.f32 %v789, %v808
      %v826 = vadd.f32 %v790, %v808
      %v827 = vadd.f32 %v791, %v808
      %v828 = vadd.f32 %v792, %v808
      %v829 = vadd.f32 %v793, %v808
      %v830 = vadd.f32 %v794, %v808
      %v831 = vadd.f32 %v795, %v808
      %v832 = vadd.f32 %v796, %v808
      %v833 = vadd.f32 %v797, %v808
      %v834 = vadd.f32 %v798, %v808
      %v835 = vadd.f32 %v799, %v808
      %v836 = vadd.f32 %v800, %v808
      %v837 = vadd.f32 %v801, %v808
      %v838 = vadd.f32 %v802, %v808
      %v839 = vadd.f32 %v803, %v808
      %v840 = vadd.f32 %v804, %v808
      %v841 = vadd.f32 %v805, %v808
      %vm842 = vcmp.ge.f32.partialorder %v810, 0.0
      %vm843 = vcmp.ge.f32.partialorder %v811, 0.0
      %vm844 = vcmp.ge.f32.partialorder %v812, 0.0
      %vm845 = vcmp.ge.f32.partialorder %v813, 0.0
      %vm846 = vcmp.ge.f32.partialorder %v814, 0.0
      %vm847 = vcmp.ge.f32.partialorder %v815, 0.0
      %vm848 = vcmp.ge.f32.partialorder %v816, 0.0
      %vm849 = vcmp.ge.f32.partialorder %v817, 0.0
      %vm850 = vcmp.ge.f32.partialorder %v818, 0.0
      %vm851 = vcmp.ge.f32.partialorder %v819, 0.0
      %vm852 = vcmp.ge.f32.partialorder %v820, 0.0
      %vm853 = vcmp.ge.f32.partialorder %v821, 0.0
      %vm854 = vcmp.ge.f32.partialorder %v822, 0.0
      %vm855 = vcmp.ge.f32.partialorder %v823, 0.0
      %vm856 = vcmp.ge.f32.partialorder %v824, 0.0
      %vm857 = vcmp.ge.f32.partialorder %v825, 0.0
      %vm858 = vcmp.ge.f32.partialorder %v826, 0.0
      %vm859 = vcmp.ge.f32.partialorder %v827, 0.0
      %vm860 = vcmp.ge.f32.partialorder %v828, 0.0
      %vm861 = vcmp.ge.f32.partialorder %v829, 0.0
      %vm862 = vcmp.ge.f32.partialorder %v830, 0.0
      %vm863 = vcmp.ge.f32.partialorder %v831, 0.0
      %vm864 = vcmp.ge.f32.partialorder %v832, 0.0
      %vm865 = vcmp.ge.f32.partialorder %v833, 0.0
      %vm866 = vcmp.ge.f32.partialorder %v834, 0.0
      %vm867 = vcmp.ge.f32.partialorder %v835, 0.0
      %vm868 = vcmp.ge.f32.partialorder %v836, 0.0
      %vm869 = vcmp.ge.f32.partialorder %v837, 0.0
      %vm870 = vcmp.ge.f32.partialorder %v838, 0.0
      %vm871 = vcmp.ge.f32.partialorder %v839, 0.0
      %vm872 = vcmp.ge.f32.partialorder %v840, 0.0
      %vm873 = vcmp.ge.f32.partialorder %v841, 0.0
      %v874 = vmul.f32 %v810, 0.01
      %v875 = vmul.f32 %v811, 0.01
      %v876 = vmul.f32 %v812, 0.01
      %v877 = vmul.f32 %v813, 0.01
      %v878 = vmul.f32 %v814, 0.01
      %v879 = vmul.f32 %v815, 0.01
      %v880 = vmul.f32 %v816, 0.01
      %v881 = vmul.f32 %v817, 0.01
      %v882 = vmul.f32 %v818, 0.01
      %v883 = vmul.f32 %v819, 0.01
      %v884 = vmul.f32 %v820, 0.01
      %v885 = vmul.f32 %v821, 0.01
      %v886 = vmul.f32 %v822, 0.01
      %v887 = vmul.f32 %v823, 0.01
      %v888 = vmul.f32 %v824, 0.01
      %v889 = vmul.f32 %v825, 0.01
      %v890 = vmul.f32 %v826, 0.01
      %v891 = vmul.f32 %v827, 0.01
      %v892 = vmul.f32 %v828, 0.01
      %v893 = vmul.f32 %v829, 0.01
      %v894 = vmul.f32 %v830, 0.01
      %v895 = vmul.f32 %v831, 0.01
      %v896 = vmul.f32 %v832, 0.01
      %v897 = vmul.f32 %v833, 0.01
      %v898 = vmul.f32 %v834, 0.01
      %v899 = vmul.f32 %v835, 0.01
      %v900 = vmul.f32 %v836, 0.01
      %v901 = vmul.f32 %v837, 0.01
      %v902 = vmul.f32 %v838, 0.01
      %v903 = vmul.f32 %v839, 0.01
      %v904 = vmul.f32 %v840, 0.01
      %v905 = vmul.f32 %v841, 0.01
      %v906 = vsel %vm842, %v810, %v874
      %v907 = vsel %vm843, %v811, %v875
      %v908 = vsel %vm844, %v812, %v876
      %v909 = vsel %vm845, %v813, %v877
      %v910 = vsel %vm846, %v814, %v878
      %v911 = vsel %vm847, %v815, %v879
      %v912 = vsel %vm848, %v816, %v880
      %v913 = vsel %vm849, %v817, %v881
      %v914 = vsel %vm850, %v818, %v882
      %v915 = vsel %vm851, %v819, %v883
      %v916 = vsel %vm852, %v820, %v884
      %v917 = vsel %vm853, %v821, %v885
      %v918 = vsel %vm854, %v822, %v886
      %v919 = vsel %vm855, %v823, %v887
      %v920 = vsel %vm856, %v824, %v888
      %v921 = vsel %vm857, %v825, %v889
      %v922 = vsel %vm858, %v826, %v890
      %v923 = vsel %vm859, %v827, %v891
      %v924 = vsel %vm860, %v828, %v892
      %v925 = vsel %vm861, %v829, %v893
      %v926 = vsel %vm862, %v830, %v894
      %v927 = vsel %vm863, %v831, %v895
      %v928 = vsel %vm864, %v832, %v896
      %v929 = vsel %vm865, %v833, %v897
      %v930 = vsel %vm866, %v834, %v898
      %v931 = vsel %vm867, %v835, %v899
      %v932 = vsel %vm868, %v836, %v900
      %v933 = vsel %vm869, %v837, %v901
      %v934 = vsel %vm870, %v838, %v902
      %v935 = vsel %vm871, %v839, %v903
      %v936 = vsel %vm872, %v840, %v904
      %v937 = vsel %vm873, %v841, %v905
      %v938 = vpack.c.bf16 %v907, %v906
      %v939 = vpack.c.bf16 %v909, %v908
      %v940 = vpack.c.bf16 %v911, %v910
      %v941 = vpack.c.bf16 %v913, %v912
      %v942 = vpack.c.bf16 %v915, %v914
      %v943 = vpack.c.bf16 %v917, %v916
      %v944 = vpack.c.bf16 %v919, %v918
      %v945 = vpack.c.bf16 %v921, %v920
      %v946 = vpack.c.bf16 %v923, %v922
      %v947 = vpack.c.bf16 %v925, %v924
      %v948 = vpack.c.bf16 %v927, %v926
      %v949 = vpack.c.bf16 %v929, %v928
      %v950 = vpack.c.bf16 %v931, %v930
      %v951 = vpack.c.bf16 %v933, %v932
      %v952 = vpack.c.bf16 %v935, %v934
      %v953 = vpack.c.bf16 %v937, %v936
      %v954 = vld [vmem:[%s4] sm:$0xf]
      %v955 = vld [vmem:[%s4 + $0x4] sm:$0xf]
      %v956 = vld [vmem:[%s5] sm:$0x1]
      %v958 = vperm.slane %v956, 0
      %v962 = vunpack.c.l.b16 %v954
      %v963 = vunpack.c.l.b16 %v955
      %v964 = vpack.c.b16 %v963, %v962
      %v967 = vsel %vm543, %v938, 0
      %v970 = vsel %vm543, %v939, 0
      %v973 = vsel %vm543, %v940, 0
      %v976 = vsel %vm543, %v941, 0
      %v979 = vsel %vm543, %v942, 0
      %v982 = vsel %vm543, %v943, 0
      %v985 = vsel %vm543, %v944, 0
      %v988 = vsel %vm543, %v945, 0
      %v991 = vsel %vm543, %v946, 0
      %v994 = vsel %vm543, %v947, 0
      %v997 = vsel %vm543, %v948, 0
      %v1000 = vsel %vm543, %v949, 0
      %v1003 = vsel %vm543, %v950, 0
      %v1006 = vsel %vm543, %v951, 0
      %v1009 = vsel %vm543, %v952, 0
      %v1012 = vsel %vm543, %v953, 0
      %1014 = vmatpush.bf16.msra.mxu0 0
      %1015 = vmatpush.bf16.msra.mxu0 0
      %1016 = vmatpush.bf16.msra.mxu0 0
      %1017 = vmatpush.bf16.msra.mxu0 0
      %1018 = vmatpush.bf16.msra.mxu0 0
      %1019 = vmatpush.bf16.msra.mxu0 0
      %1020 = vmatpush.bf16.msra.mxu0 0
      %1021 = vmatpush.bf16.msra.mxu0 %v964
      %1022 = vmatmul.bf16.gmra.mxu0 %v967
      %v1023 = vpop.f32.mrf.mxu0
      %v1024 = vadd.f32 %v958, %v1023
      %v1025 = vpop.f32.mrf.mxu0
      %v1026 = vadd.f32 %v958, %v1025
      %1027 = vmatmul.bf16.gmra.mxu0 %v970
      %v1028 = vpop.f32.mrf.mxu0
      %v1029 = vadd.f32 %v958, %v1028
      %v1030 = vpop.f32.mrf.mxu0
      %v1031 = vadd.f32 %v958, %v1030
      %1032 = vmatmul.bf16.gmra.mxu0 %v973
      %v1033 = vpop.f32.mrf.mxu0
      %v1034 = vadd.f32 %v958, %v1033
      %v1035 = vpop.f32.mrf.mxu0
      %v1036 = vadd.f32 %v958, %v1035
      %1037 = vmatmul.bf16.gmra.mxu0 %v976
      %v1038 = vpop.f32.mrf.mxu0
      %v1039 = vadd.f32 %v958, %v1038
      %v1040 = vpop.f32.mrf.mxu0
      %v1041 = vadd.f32 %v958, %v1040
      %1042 = vmatmul.bf16.gmra.mxu0 %v979
      %v1043 = vpop.f32.mrf.mxu0
      %v1044 = vadd.f32 %v958, %v1043
      %v1045 = vpop.f32.mrf.mxu0
      %v1046 = vadd.f32 %v958, %v1045
      %1047 = vmatmul.bf16.gmra.mxu0 %v982
      %v1048 = vpop.f32.mrf.mxu0
      %v1049 = vadd.f32 %v958, %v1048
      %v1050 = vpop.f32.mrf.mxu0
      %v1051 = vadd.f32 %v958, %v1050
      %1052 = vmatmul.bf16.gmra.mxu0 %v985
      %v1053 = vpop.f32.mrf.mxu0
      %v1054 = vadd.f32 %v958, %v1053
      %v1055 = vpop.f32.mrf.mxu0
      %v1056 = vadd.f32 %v958, %v1055
      %1057 = vmatmul.bf16.gmra.mxu0 %v988
      %v1058 = vpop.f32.mrf.mxu0
      %v1059 = vadd.f32 %v958, %v1058
      %v1060 = vpop.f32.mrf.mxu0
      %v1061 = vadd.f32 %v958, %v1060
      %1062 = vmatmul.bf16.gmra.mxu0 %v991
      %v1063 = vpop.f32.mrf.mxu0
      %v1064 = vadd.f32 %v958, %v1063
      %v1065 = vpop.f32.mrf.mxu0
      %v1066 = vadd.f32 %v958, %v1065
      %1067 = vmatmul.bf16.gmra.mxu0 %v994
      %v1068 = vpop.f32.mrf.mxu0
      %v1069 = vadd.f32 %v958, %v1068
      %v1070 = vpop.f32.mrf.mxu0
      %v1071 = vadd.f32 %v958, %v1070
      %1072 = vmatmul.bf16.gmra.mxu0 %v997
      %v1073 = vpop.f32.mrf.mxu0
      %v1074 = vadd.f32 %v958, %v1073
      %v1075 = vpop.f32.mrf.mxu0
      %v1076 = vadd.f32 %v958, %v1075
      %1077 = vmatmul.bf16.gmra.mxu0 %v1000
      %v1078 = vpop.f32.mrf.mxu0
      %v1079 = vadd.f32 %v958, %v1078
      %v1080 = vpop.f32.mrf.mxu0
      %v1081 = vadd.f32 %v958, %v1080
      %1082 = vmatmul.bf16.gmra.mxu0 %v1003
      %v1083 = vpop.f32.mrf.mxu0
      %v1084 = vadd.f32 %v958, %v1083
      %v1085 = vpop.f32.mrf.mxu0
      %v1086 = vadd.f32 %v958, %v1085
      %1087 = vmatmul.bf16.gmra.mxu0 %v1006
      %v1088 = vpop.f32.mrf.mxu0
      %v1089 = vadd.f32 %v958, %v1088
      %v1090 = vpop.f32.mrf.mxu0
      %v1091 = vadd.f32 %v958, %v1090
      %1092 = vmatmul.bf16.gmra.mxu0 %v1009
      %v1093 = vpop.f32.mrf.mxu0
      %v1094 = vadd.f32 %v958, %v1093
      %v1095 = vpop.f32.mrf.mxu0
      %v1096 = vadd.f32 %v958, %v1095
      %1097 = vmatmul.bf16.gmra.mxu0 %v1012
      %v1098 = vpop.f32.mrf.mxu0
      %v1099 = vadd.f32 %v958, %v1098
      %v1100 = vpop.f32.mrf.mxu0
      %v1101 = vadd.f32 %v958, %v1100
      %1102 = vdwg.mxu0
      %vm1103 = vcmask 23552
      %1104 = vst.msk [vmem:[%s292] sm:$0xff] %vm1103, %v1024
      %1105 = vst.msk [vmem:[%s292 + $0x8] sm:$0xff] %vm1103, %v1026
      %1106 = vst.msk [vmem:[%s292 + $0x10] sm:$0xff] %vm1103, %v1029
      %1107 = vst.msk [vmem:[%s292 + $0x18] sm:$0xff] %vm1103, %v1031
      %1108 = vst.msk [vmem:[%s292 + $0x20] sm:$0xff] %vm1103, %v1034
      %1109 = vst.msk [vmem:[%s292 + $0x28] sm:$0xff] %vm1103, %v1036
      %1110 = vst.msk [vmem:[%s292 + $0x30] sm:$0xff] %vm1103, %v1039
      %1111 = vst.msk [vmem:[%s292 + $0x38] sm:$0xff] %vm1103, %v1041
      %1112 = vst.msk [vmem:[%s292 + $0x40] sm:$0xff] %vm1103, %v1044
      %1113 = vst.msk [vmem:[%s292 + $0x48] sm:$0xff] %vm1103, %v1046
      %1114 = vst.msk [vmem:[%s292 + $0x50] sm:$0xff] %vm1103, %v1049
      %1115 = vst.msk [vmem:[%s292 + $0x58] sm:$0xff] %vm1103, %v1051
      %1116 = vst.msk [vmem:[%s292 + $0x60] sm:$0xff] %vm1103, %v1054
      %1117 = vst.msk [vmem:[%s292 + $0x68] sm:$0xff] %vm1103, %v1056
      %1118 = vst.msk [vmem:[%s292 + $0x70] sm:$0xff] %vm1103, %v1059
      %1119 = vst.msk [vmem:[%s292 + $0x78] sm:$0xff] %vm1103, %v1061
      %1120 = vst.msk [vmem:[%s292 + $0x80] sm:$0xff] %vm1103, %v1064
      %1121 = vst.msk [vmem:[%s292 + $0x88] sm:$0xff] %vm1103, %v1066
      %1122 = vst.msk [vmem:[%s292 + $0x90] sm:$0xff] %vm1103, %v1069
      %1123 = vst.msk [vmem:[%s292 + $0x98] sm:$0xff] %vm1103, %v1071
      %1124 = vst.msk [vmem:[%s292 + $0xa0] sm:$0xff] %vm1103, %v1074
      %1125 = vst.msk [vmem:[%s292 + $0xa8] sm:$0xff] %vm1103, %v1076
      %1126 = vst.msk [vmem:[%s292 + $0xb0] sm:$0xff] %vm1103, %v1079
      %1127 = vst.msk [vmem:[%s292 + $0xb8] sm:$0xff] %vm1103, %v1081
      %1128 = vst.msk [vmem:[%s292 + $0xc0] sm:$0xff] %vm1103, %v1084
      %1129 = vst.msk [vmem:[%s292 + $0xc8] sm:$0xff] %vm1103, %v1086
      %1130 = vst.msk [vmem:[%s292 + $0xd0] sm:$0xff] %vm1103, %v1089
      %1131 = vst.msk [vmem:[%s292 + $0xd8] sm:$0xff] %vm1103, %v1091
      %1132 = vst.msk [vmem:[%s292 + $0xe0] sm:$0xff] %vm1103, %v1094
      %1133 = vst.msk [vmem:[%s292 + $0xe8] sm:$0xff] %vm1103, %v1096
      %1134 = vst.msk [vmem:[%s292 + $0xf0] sm:$0xff] %vm1103, %v1099
      %1135 = vst.msk [vmem:[%s292 + $0xf8] sm:$0xff] %vm1103, %v1101
      %s1136 = smul.u32 32, %s22
      %p1137 = scmp.lt.s32.totalorder %s21, 1
      %s1138 = scalar_select %p1137, %s21, 1
      %p1139 = scmp.lt.s32.totalorder %s1136, 31
      %s1140 = scalar_select %p1139, %s1136, 31
      %s1141 = smul.addr %s1138, 32
      %s1142 = sadd.s32 %s1140, %s1141
      %s1143 = smul.addr %s1142, 8
      %s1144 = scalar_lea.vmem %s6, %s1143
      // Predicated region
      $region45: #{conv_with_conn_forward.27} parent=43 // pred_check
        %p1145 = pneg %p182
      $region46: #{conv_with_conn_forward.27} parent=43 // pred_check_branch
        %1147 = sbr.rel (%p1145) target = $region48
      $region47: #{conv_with_conn_forward.27} parent=43 // pred_region
        %s1148 = smul.u32 32, %s22
      $region48: #{conv_with_conn_forward.27} parent=43 // pred_fallthru
        _
    $region44: #{conv_with_conn_forward.27} parent=5 // pred_fallthru
      _
    %p1149 = scmp.le.s32.totalorder 2, %s12
    // Predicated region
    $region49: #{conv_with_conn_forward.27} parent=5 // pred_check
      %p1150 = pneg %p1149
    $region50: #{conv_with_conn_forward.27} parent=5 // pred_check_branch
      %1152 = sbr.rel (%p1150) target = $region52
    $region51: #{conv_with_conn_forward.27} parent=5 // pred_region
      %s1153 = ssub.s32 %s12, 2
      // Predicated region
      $region53: #{conv_with_conn_forward.27} parent=51 // pred_check
        %p1154 = pneg %p188
      $region54: #{conv_with_conn_forward.27} parent=51 // pred_check_branch
        %1156 = sbr.rel (%p1154) target = $region56
      $region55: #{conv_with_conn_forward.27} parent=51 // pred_region
        %s1157 = smul.u32 32, %s24
        %p1158 = scmp.lt.s32.totalorder %s23, 1
        %s1159 = scalar_select %p1158, %s23, 1
        %p1160 = scmp.lt.s32.totalorder %s1157, 31
        %s1161 = scalar_select %p1160, %s1157, 31
        %s1162 = smul.addr %s1159, 32
        %s1163 = sadd.s32 %s1161, %s1162
        %s1164 = smul.addr %s1163, 8
        %s1165 = scalar_lea.vmem %s6, %s1164
      $region56: #{conv_with_conn_forward.27} parent=51 // pred_fallthru
        _
    $region52: #{conv_with_conn_forward.27} parent=5 // pred_fallthru
      _
  $region6: #{conv_with_conn_forward.27} parent=0 // loop_footer
    %s16 = sadd.s32 1, %s12
  $region7: #{conv_with_conn_forward.27} parent=0 // loop_footer_branch
    %11 = sbr.rel target = $region3
  $region8: #{conv_with_conn_forward.27} parent=0 // loop_exit
    _

</llo_original>
